<compile_context>
chip_gen: v7x
topology: tpu7x:2x2x1
jax: 0.10.0
libtpu: 0.0.40
codegen_flags: <defaults>
</compile_context>

<pallas_src>
import math
import functools

import jax
import jax.numpy as jnp
from jax import lax
from jax.experimental import pallas as pl
from jax.experimental.pallas import tpu as pltpu

NUM_HEADS = 16
HEAD_DIM = 64
HIDDEN = NUM_HEADS * HEAD_DIM          # 1024  (nn.Linear(1024, 1024))
HEADS_PER_BLOCK = 4                    # 4 heads per attention grid step -> 256-lane outputs
COMPUTE_DTYPE = jnp.bfloat16           # MXU operand dtype (f32 accumulation)


# ----------------------------------------------------------------------------
# Kernel 1: fused QKV projection    out = x @ W_qkv^T + b_qkv
#   W_qkv is the nn.Linear (3N, K) layout, rows pre-permuted per head-group.
# ----------------------------------------------------------------------------
def _qkv_kernel(x_ref, w_ref, b_ref, o_ref):
    x = x_ref[...].astype(w_ref.dtype)                        # (TM, K) -> bf16
    acc = lax.dot_general(                                    # (TM, 3N) f32
        x, w_ref[...],
        dimension_numbers=(((1,), (1,)), ((), ())),           # contract K dims
        preferred_element_type=jnp.float32)
    o_ref[...] = (acc + b_ref[...]).astype(o_ref.dtype)


def qkv_projection(x2d, w_qkv, b_qkv, *, row_tile=1024):
    """x2d: (M, K) f32; w_qkv: (3N, K) bf16; b_qkv: (1, 3N) f32 -> (M, 3N) bf16."""
    M, K = x2d.shape
    N3, K2 = w_qkv.shape
    assert K == K2
    tm = M if M <= row_tile else row_tile
    grid = (pl.cdiv(M, tm),)
    return pl.pallas_call(
        _qkv_kernel,
        out_shape=jax.ShapeDtypeStruct((M, N3), w_qkv.dtype),
        grid_spec=pltpu.PrefetchScalarGridSpec(
            num_scalar_prefetch=0,
            grid=grid,
            in_specs=[
                pl.BlockSpec((tm, K), lambda i: (i, 0)),       # x tile (pipelined)
                pl.BlockSpec((N3, K), lambda i: (0, 0)),       # weight resident
                pl.BlockSpec((1, N3), lambda i: (0, 0)),       # bias resident
            ],
            out_specs=pl.BlockSpec((tm, N3), lambda i: (i, 0)),
        ),
        compiler_params=pltpu.CompilerParams(
            dimension_semantics=("parallel",),
            vmem_limit_bytes=48 * 1024 * 1024),
    )(x2d, w_qkv, b_qkv)


# ----------------------------------------------------------------------------
# Kernel 2: attention over one (batch, head-group) block.
#   qkv_ref block is (1, S, 3*gw) laid out as [Q_group | K_group | V_group];
#   the query columns already carry the 1/sqrt(D) scale (folded at prep time).
# ----------------------------------------------------------------------------
def _attn_kernel(qkv_ref, o_ref, ctx_ref, *, heads, head_dim):
    gw = heads * head_dim
    # Short static loop (heads == 4); each iteration terminates in a scratch
    # store so only one S x S score tile is live at a time.
    for h in range(heads):
        lo = h * head_dim
        q = qkv_ref[0, :, lo:lo + head_dim]                       # (S, D) bf16, pre-scaled
        k = qkv_ref[0, :, gw + lo:gw + lo + head_dim]             # (S, D) bf16
        v = qkv_ref[0, :, 2 * gw + lo:2 * gw + lo + head_dim]     # (S, D) bf16
        s = lax.dot_general(                                      # (S, S) f32, no k.T
            q, k, dimension_numbers=(((1,), (1,)), ((), ())),
            preferred_element_type=jnp.float32)
        m = jnp.max(s, axis=-1, keepdims=True)
        p = jnp.exp(s - m)                                        # unnormalized probs, f32
        denom = jnp.sum(p, axis=-1, keepdims=True)                # f32 row sum (accuracy)
        ctx = jnp.dot(p.astype(v.dtype), v,                       # (S, D), f32 accumulation
                      preferred_element_type=jnp.float32)
        # Normalize AFTER the PV matmul: S*D multiplies instead of S*S.
        # pl.reciprocal(approx=True) -> ~1e-3 rel error, EUP slot (free-ish).
        ctx_ref[:, lo:lo + head_dim] = ctx * pl.reciprocal(denom, approx=True)
    # Single full-width (heads*64 >= 256 lane) store per group: no masked vst.
    o_ref[0] = ctx_ref[...].astype(o_ref.dtype)


def attention(qkv, *, num_heads=NUM_HEADS, head_dim=HEAD_DIM,
              heads_per_block=HEADS_PER_BLOCK, out_dtype=jnp.float32):
    """qkv: (B, S, 3*H*D) bf16 in grouped [Q_g|K_g|V_g] layout -> (B, S, H*D)."""
    B, S, threeH = qkv.shape
    hidden = num_heads * head_dim
    assert threeH == 3 * hidden
    assert num_heads % heads_per_block == 0
    hpb = heads_per_block
    n_groups = num_heads // hpb
    gw = hpb * head_dim                                           # 256-lane output blocks

    kernel = functools.partial(_attn_kernel, heads=hpb, head_dim=head_dim)

    return pl.pallas_call(
        kernel,
        out_shape=jax.ShapeDtypeStruct((B, S, hidden), out_dtype),
        grid_spec=pltpu.PrefetchScalarGridSpec(
            num_scalar_prefetch=0,
            grid=(B, n_groups),
            in_specs=[pl.BlockSpec((1, S, 3 * gw), lambda b, g: (b, 0, g))],
            out_specs=pl.BlockSpec((1, S, gw), lambda b, g: (b, 0, g)),
            scratch_shapes=[pltpu.VMEM((S, gw), jnp.float32)],
        ),
        compiler_params=pltpu.CompilerParams(
            dimension_semantics=("parallel", "parallel"),
            vmem_limit_bytes=32 * 1024 * 1024),
    )(qkv)


# ----------------------------------------------------------------------------
# Parameter prep (one-time, outside the hot path):
#   * fold 1/sqrt(HEAD_DIM) into the query weight/bias (exact: 1/8).
#   * permute fused rows into per-head-group [Q_g | K_g | V_g] order so the
#     attention kernel needs a single contiguous input BlockSpec per group.
# ----------------------------------------------------------------------------
def prepare_qkv_params(params, *, heads_per_block=HEADS_PER_BLOCK,
                       compute_dtype=COMPUTE_DTYPE):
    H, D = NUM_HEADS, HEAD_DIM
    n_groups = H // heads_per_block
    scale = 1.0 / math.sqrt(D)                                    # exact power of two
    wq = params["query_w"] * scale
    bq = params["query_b"] * scale
    wk, bk = params["key_w"], params["key_b"]
    wv, bv = params["value_w"], params["value_b"]

    w_rows, b_rows = [], []
    for g in range(n_groups):
        sl = slice(g * heads_per_block * D, (g + 1) * heads_per_block * D)
        w_rows += [wq[sl], wk[sl], wv[sl]]
        b_rows += [bq[sl], bk[sl], bv[sl]]
    w = jnp.concatenate(w_rows, axis=0).astype(compute_dtype)     # (3N, K) bf16
    b = jnp.concatenate(b_rows, axis=0).astype(jnp.float32).reshape(1, -1)
    return {"w_qkv": w, "b_qkv": b}


# ----------------------------------------------------------------------------
# Module forward (ViTSelfAttention with dropout p=0.0, head_mask=None).
# ----------------------------------------------------------------------------
def vit_self_attention(hidden_states, fused_params, *, out_dtype=jnp.float32):
    """hidden_states: (B, S, 1024) f32 -> context (B, S, 1024)."""
    B, S, Hd = hidden_states.shape
    assert Hd == HIDDEN
    x2d = hidden_states.reshape(B * S, Hd)                        # free reshape
    qkv = qkv_projection(x2d, fused_params["w_qkv"], fused_params["b_qkv"])
    qkv = qkv.reshape(B, S, 3 * HIDDEN)                           # free reshape
    return attention(qkv, out_dtype=out_dtype)                    # (B, S, 1024)


# ----------------------------------------------------------------------------
# Pure-JAX references for validation.
# ----------------------------------------------------------------------------
def reference_matched(hidden_states, params, compute_dtype=COMPUTE_DTYPE):
    """Reference with the same bf16-operand / f32-accumulation strategy."""
    cd = compute_dtype
    B, S, _ = hidden_states.shape
    x = hidden_states.reshape(B * S, HIDDEN).astype(cd)

    def proj(name):
        w = params[f"{name}_w"].astype(cd)                        # (N, K)
        b = params[f"{name}_b"].astype(jnp.float32)
        y = lax.dot_general(x, w, (((1,), (1,)), ((), ())),
                            preferred_element_type=jnp.float32) + b
        y = y.astype(cd)
        return y.reshape(B, S, NUM_HEADS, HEAD_DIM).transpose(0, 2, 1, 3)

    q, k, v = proj("query"), proj("key"), proj("value")
    q = q * (1.0 / math.sqrt(HEAD_DIM))
    s = jnp.einsum("bhqd,bhkd->bhqk", q, k, preferred_element_type=jnp.float32)
    p = jax.nn.softmax(s, axis=-1)
    ctx = jnp.einsum("bhqk,bhkd->bhqd", p.astype(cd), v,
                     preferred_element_type=jnp.float32)
    return ctx.transpose(0, 2, 1, 3).reshape(B, S, HIDDEN)


def reference_f32(hidden_states, params):
    def proj(name):
        y = hidden_states @ params[f"{name}_w"].T + params[f"{name}_b"]
        B, S, _ = y.shape
        return y.reshape(B, S, NUM_HEADS, HEAD_DIM).transpose(0, 2, 1, 3)

    q, k, v = proj("query"), proj("key"), proj("value")
    s = jnp.einsum("bhqd,bhkd->bhqk", q, k) / math.sqrt(HEAD_DIM)
    p = jax.nn.softmax(s, axis=-1)
    ctx = jnp.einsum("bhqk,bhkd->bhqd", p, v)
    B, H, S, D = ctx.shape
    return ctx.transpose(0, 2, 1, 3).reshape(B, S, H * D)


if __name__ == "__main__":
    key = jax.random.PRNGKey(0)
    k_x, k_qw, k_qb, k_kw, k_kb, k_vw, k_vb = jax.random.split(key, 7)

    # Deterministic synthetic parameters (shapes match nn.Linear(1024, 1024)).
    params = {
        "query_w": jax.random.normal(k_qw, (HIDDEN, HIDDEN), jnp.float32) * 0.02,
        "query_b": jax.random.normal(k_qb, (HIDDEN,), jnp.float32) * 0.02,
        "key_w":   jax.random.normal(k_kw, (HIDDEN, HIDDEN), jnp.float32) * 0.02,
        "key_b":   jax.random.normal(k_kb, (HIDDEN,), jnp.float32) * 0.02,
        "value_w": jax.random.normal(k_vw, (HIDDEN, HIDDEN), jnp.float32) * 0.02,
        "value_b": jax.random.normal(k_vb, (HIDDEN,), jnp.float32) * 0.02,
    }
    fused = prepare_qkv_params(params)                            # one-time prep
    fwd = jax.jit(vit_self_attention)

    # --- Small smoke test (B=2, S=8) -------------------------------------
    B, S = 2, 8
    hidden_states = jax.random.normal(k_x, (B, S, HIDDEN), dtype=jnp.float32)
    out = jax.block_until_ready(fwd(hidden_states, fused))
    ref = reference_matched(hidden_states, params)
    ref32 = reference_f32(hidden_states, params)
    assert out.shape == (B, S, HIDDEN), out.shape
    err_matched = float(jnp.max(jnp.abs(out - ref)))
    err_f32 = float(jnp.max(jnp.abs(out - ref32)))
    assert jnp.allclose(out, ref, atol=2e-2, rtol=2e-2), (err_matched, err_f32)

    # --- Moderate sequence length (layout / accumulation sanity) ---------
    B2, S2 = 1, 128
    x2 = jax.random.normal(jax.random.PRNGKey(1), (B2, S2, HIDDEN), jnp.float32)
    out2 = jax.block_until_ready(fwd(x2, fused))
    ref2 = reference_matched(x2, params)
    err2 = float(jnp.max(jnp.abs(out2 - ref2)))
    assert out2.shape == (B2, S2, HIDDEN), out2.shape
    assert jnp.allclose(out2, ref2, atol=2e-2, rtol=2e-2), err2

    print("KERNEL_OK")
</pallas_src>

<mosaic_0001>
module attributes {stable_mosaic.version = 11 : i64} {
  func.func @_qkv_kernel(%arg0: i32, %arg1: memref<16x1024xf32, #tpu.memory_space<vmem>>, %arg2: memref<3072x1024xbf16, #tpu.memory_space<vmem>>, %arg3: memref<1x3072xf32, #tpu.memory_space<vmem>>, %arg4: memref<16x3072xbf16, #tpu.memory_space<vmem>>) attributes {dimension_semantics = [#tpu.dimension_semantics<parallel>], iteration_bounds = array<i64: 1>, scalar_prefetch = 0 : i64, scratch_operands = 0 : i64, tpu.core_type = #tpu.core_type<tc>, window_params = [{transform_indices = @transform_0, window_bounds = array<i64: 16, 1024>}, {pipeline_mode = #tpu.pipeline_mode<synchronous>, transform_indices = @transform_1, window_bounds = array<i64: 3072, 1024>}, {pipeline_mode = #tpu.pipeline_mode<synchronous>, transform_indices = @transform_2, window_bounds = array<i64: 1, 3072>}, {transform_indices = @transform_3, window_bounds = array<i64: 16, 3072>}]} {
    %c0 = arith.constant 0 : index
    %c0_0 = arith.constant 0 : index
    %0 = vector.load %arg1[%c0, %c0_0] : memref<16x1024xf32, #tpu.memory_space<vmem>>, vector<16x1024xf32>
    %1 = arith.truncf %0 : vector<16x1024xf32> to vector<16x1024xbf16>
    %c0_1 = arith.constant 0 : index
    %c0_2 = arith.constant 0 : index
    %2 = vector.load %arg2[%c0_1, %c0_2] : memref<3072x1024xbf16, #tpu.memory_space<vmem>>, vector<3072x1024xbf16>
    %cst = arith.constant dense<0.000000e+00> : vector<16x3072xf32>
    %3 = tpu.matmul %1, %2, %cst {dimension_numbers = #tpu.dot_dimension_numbers<[1], [1], [0], [0], [0, 0, 1, 0], [], []>} : vector<16x1024xbf16>, vector<3072x1024xbf16>, vector<16x3072xf32> -> vector<16x3072xf32>
    %c0_3 = arith.constant 0 : index
    %c0_4 = arith.constant 0 : index
    %4 = vector.load %arg3[%c0_3, %c0_4] : memref<1x3072xf32, #tpu.memory_space<vmem>>, vector<1x3072xf32>
    %5 = vector.broadcast %4 : vector<1x3072xf32> to vector<16x3072xf32>
    %6 = arith.addf %3, %5 : vector<16x3072xf32>
    %7 = arith.truncf %6 : vector<16x3072xf32> to vector<16x3072xbf16>
    %c0_5 = arith.constant 0 : index
    %c0_6 = arith.constant 0 : index
    %8 = vector.load %arg4[%c0_5, %c0_6] : memref<16x3072xbf16, #tpu.memory_space<vmem>>, vector<16x3072xbf16>
    tpu.vector_store %arg4[%c0_5, %c0_6], %7 {strides = array<i32>} : memref<16x3072xbf16, #tpu.memory_space<vmem>>, vector<16x3072xbf16>,
    return
  }
  func.func @transform_0(%arg0: i32) -> (i32, i32) {
    %c0_i32 = arith.constant 0 : i32
    %c0_i32_0 = arith.constant 0 : i32
    return %arg0, %c0_i32 : i32, i32
  }
  func.func @transform_1(%arg0: i32) -> (i32, i32) {
    %c0_i32 = arith.constant 0 : i32
    %c0_i32_0 = arith.constant 0 : i32
    %c0_i32_1 = arith.constant 0 : i32
    return %c0_i32, %c0_i32_0 : i32, i32
  }
  func.func @transform_2(%arg0: i32) -> (i32, i32) {
    %c0_i32 = arith.constant 0 : i32
    %c0_i32_0 = arith.constant 0 : i32
    %c0_i32_1 = arith.constant 0 : i32
    return %c0_i32, %c0_i32_0 : i32, i32
  }
  func.func @transform_3(%arg0: i32) -> (i32, i32) {
    %c0_i32 = arith.constant 0 : i32
    %c0_i32_0 = arith.constant 0 : i32
    return %arg0, %c0_i32 : i32, i32
  }
}

module attributes {stable_mosaic.version = 11 : i64} {
  func.func @_attn_kernel(%arg0: i32, %arg1: i32, %arg2: memref<1x8x768xbf16, #tpu.memory_space<vmem>>, %arg3: memref<1x8x256xf32, #tpu.memory_space<vmem>>, %arg4: memref<8x256xf32, #tpu.memory_space<vmem>>) attributes {dimension_semantics = [#tpu.dimension_semantics<parallel>, #tpu.dimension_semantics<parallel>], iteration_bounds = array<i64: 2, 4>, scalar_prefetch = 0 : i64, scratch_operands = 1 : i64, tpu.core_type = #tpu.core_type<tc>, window_params = [{transform_indices = @transform_0, window_bounds = array<i64: 1, 8, 768>}, {transform_indices = @transform_1, window_bounds = array<i64: 1, 8, 256>}]} {
    %c0 = arith.constant 0 : index
    %c0_0 = arith.constant 0 : index
    %c0_1 = arith.constant 0 : index
    %0 = vector.load %arg2[%c0, %c0_0, %c0_1] : memref<1x8x768xbf16, #tpu.memory_space<vmem>>, vector<1x8x64xbf16>
    %1 = vector.shape_cast %0 : vector<1x8x64xbf16> to vector<8x64xbf16>
    %c0_2 = arith.constant 0 : index
    %c0_3 = arith.constant 0 : index
    %c256 = arith.constant 256 : index
    %2 = vector.load %arg2[%c0_2, %c0_3, %c256] : memref<1x8x768xbf16, #tpu.memory_space<vmem>>, vector<1x8x64xbf16>
    %3 = vector.shape_cast %2 : vector<1x8x64xbf16> to vector<8x64xbf16>
    %c0_4 = arith.constant 0 : index
    %c0_5 = arith.constant 0 : index
    %c512 = arith.constant 512 : index
    %4 = vector.load %arg2[%c0_4, %c0_5, %c512] : memref<1x8x768xbf16, #tpu.memory_space<vmem>>, vector<1x8x64xbf16>
    %5 = vector.shape_cast %4 : vector<1x8x64xbf16> to vector<8x64xbf16>
    %cst = arith.constant dense<0.000000e+00> : vector<8x8xf32>
    %6 = tpu.matmul %1, %3, %cst {dimension_numbers = #tpu.dot_dimension_numbers<[1], [1], [0], [0], [0, 0, 1, 0], [], []>} : vector<8x64xbf16>, vector<8x64xbf16>, vector<8x8xf32> -> vector<8x8xf32>
    %cst_6 = arith.constant dense<0xFF800000> : vector<8xf32>
    %7 = vector.multi_reduction <maximumf>, %6, %cst_6 [1] : vector<8x8xf32> to vector<8xf32>
    %8 = vector.shape_cast %7 : vector<8xf32> to vector<8x1xf32>
    %9 = vector.broadcast %8 : vector<8x1xf32> to vector<8x8xf32>
    %10 = arith.subf %6, %9 : vector<8x8xf32>
    %11 = math.exp %10 : vector<8x8xf32>
    %cst_7 = arith.constant dense<0.000000e+00> : vector<8xf32>
    %12 = vector.multi_reduction <add>, %11, %cst_7 [1] : vector<8x8xf32> to vector<8xf32>
    %13 = vector.shape_cast %12 : vector<8xf32> to vector<8x1xf32>
    %14 = arith.truncf %11 : vector<8x8xf32> to vector<8x8xbf16>
    %cst_8 = arith.constant dense<0.000000e+00> : vector<8x64xf32>
    %15 = tpu.matmul %14, %5, %cst_8 {dimension_numbers = #tpu.dot_dimension_numbers<[1], [0], [0], [1], [0, 0, 1, 1], [], []>} : vector<8x8xbf16>, vector<8x64xbf16>, vector<8x64xf32> -> vector<8x64xf32>
    %16 = tpu.reciprocal %13 {approx = true} : vector<8x1xf32> -> vector<8x1xf32>
    %17 = vector.broadcast %16 : vector<8x1xf32> to vector<8x64xf32>
    %18 = arith.mulf %15, %17 : vector<8x64xf32>
    %c0_9 = arith.constant 0 : index
    %c0_10 = arith.constant 0 : index
    %19 = vector.load %arg4[%c0_9, %c0_10] : memref<8x256xf32, #tpu.memory_space<vmem>>, vector<8x64xf32>
    tpu.vector_store %arg4[%c0_9, %c0_10], %18 {strides = array<i32>} : memref<8x256xf32, #tpu.memory_space<vmem>>, vector<8x64xf32>,
    %c0_11 = arith.constant 0 : index
    %c0_12 = arith.constant 0 : index
    %c64 = arith.constant 64 : index
    %20 = vector.load %arg2[%c0_11, %c0_12, %c64] : memref<1x8x768xbf16, #tpu.memory_space<vmem>>, vector<1x8x64xbf16>
    %21 = vector.shape_cast %20 : vector<1x8x64xbf16> to vector<8x64xbf16>
    %c0_13 = arith.constant 0 : index
    %c0_14 = arith.constant 0 : index
    %c320 = arith.constant 320 : index
    %22 = vector.load %arg2[%c0_13, %c0_14, %c320] : memref<1x8x768xbf16, #tpu.memory_space<vmem>>, vector<1x8x64xbf16>
    %23 = vector.shape_cast %22 : vector<1x8x64xbf16> to vector<8x64xbf16>
    %c0_15 = arith.constant 0 : index
    %c0_16 = arith.constant 0 : index
    %c576 = arith.constant 576 : index
    %24 = vector.load %arg2[%c0_15, %c0_16, %c576] : memref<1x8x768xbf16, #tpu.memory_space<vmem>>, vector<1x8x64xbf16>
    %25 = vector.shape_cast %24 : vector<1x8x64xbf16> to vector<8x64xbf16>
    %cst_17 = arith.constant dense<0.000000e+00> : vector<8x8xf32>
    %26 = tpu.matmul %21, %23, %cst_17 {dimension_numbers = #tpu.dot_dimension_numbers<[1], [1], [0], [0], [0, 0, 1, 0], [], []>} : vector<8x64xbf16>, vector<8x64xbf16>, vector<8x8xf32> -> vector<8x8xf32>
    %cst_18 = arith.constant dense<0xFF800000> : vector<8xf32>
    %27 = vector.multi_reduction <maximumf>, %26, %cst_18 [1] : vector<8x8xf32> to vector<8xf32>
    %28 = vector.shape_cast %27 : vector<8xf32> to vector<8x1xf32>
    %29 = vector.broadcast %28 : vector<8x1xf32> to vector<8x8xf32>
    %30 = arith.subf %26, %29 : vector<8x8xf32>
    %31 = math.exp %30 : vector<8x8xf32>
    %cst_19 = arith.constant dense<0.000000e+00> : vector<8xf32>
    %32 = vector.multi_reduction <add>, %31, %cst_19 [1] : vector<8x8xf32> to vector<8xf32>
    %33 = vector.shape_cast %32 : vector<8xf32> to vector<8x1xf32>
    %34 = arith.truncf %31 : vector<8x8xf32> to vector<8x8xbf16>
    %cst_20 = arith.constant dense<0.000000e+00> : vector<8x64xf32>
    %35 = tpu.matmul %34, %25, %cst_20 {dimension_numbers = #tpu.dot_dimension_numbers<[1], [0], [0], [1], [0, 0, 1, 1], [], []>} : vector<8x8xbf16>, vector<8x64xbf16>, vector<8x64xf32> -> vector<8x64xf32>
    %36 = tpu.reciprocal %33 {approx = true} : vector<8x1xf32> -> vector<8x1xf32>
    %37 = vector.broadcast %36 : vector<8x1xf32> to vector<8x64xf32>
    %38 = arith.mulf %35, %37 : vector<8x64xf32>
    %c0_21 = arith.constant 0 : index
    %c64_22 = arith.constant 64 : index
    %39 = vector.load %arg4[%c0_21, %c64_22] : memref<8x256xf32, #tpu.memory_space<vmem>>, vector<8x64xf32>
    tpu.vector_store %arg4[%c0_21, %c64_22], %38 {strides = array<i32>} : memref<8x256xf32, #tpu.memory_space<vmem>>, vector<8x64xf32>,
    %c0_23 = arith.constant 0 : index
    %c0_24 = arith.constant 0 : index
    %c128 = arith.constant 128 : index
    %40 = vector.load %arg2[%c0_23, %c0_24, %c128] : memref<1x8x768xbf16, #tpu.memory_space<vmem>>, vector<1x8x64xbf16>
    %41 = vector.shape_cast %40 : vector<1x8x64xbf16> to vector<8x64xbf16>
    %c0_25 = arith.constant 0 : index
    %c0_26 = arith.constant 0 : index
    %c384 = arith.constant 384 : index
    %42 = vector.load %arg2[%c0_25, %c0_26, %c384] : memref<1x8x768xbf16, #tpu.memory_space<vmem>>, vector<1x8x64xbf16>
    %43 = vector.shape_cast %42 : vector<1x8x64xbf16> to vector<8x64xbf16>
    %c0_27 = arith.constant 0 : index
    %c0_28 = arith.constant 0 : index
    %c640 = arith.constant 640 : index
    %44 = vector.load %arg2[%c0_27, %c0_28, %c640] : memref<1x8x768xbf16, #tpu.memory_space<vmem>>, vector<1x8x64xbf16>
    %45 = vector.shape_cast %44 : vector<1x8x64xbf16> to vector<8x64xbf16>
    %cst_29 = arith.constant dense<0.000000e+00> : vector<8x8xf32>
    %46 = tpu.matmul %41, %43, %cst_29 {dimension_numbers = #tpu.dot_dimension_numbers<[1], [1], [0], [0], [0, 0, 1, 0], [], []>} : vector<8x64xbf16>, vector<8x64xbf16>, vector<8x8xf32> -> vector<8x8xf32>
    %cst_30 = arith.constant dense<0xFF800000> : vector<8xf32>
    %47 = vector.multi_reduction <maximumf>, %46, %cst_30 [1] : vector<8x8xf32> to vector<8xf32>
    %48 = vector.shape_cast %47 : vector<8xf32> to vector<8x1xf32>
    %49 = vector.broadcast %48 : vector<8x1xf32> to vector<8x8xf32>
    %50 = arith.subf %46, %49 : vector<8x8xf32>
    %51 = math.exp %50 : vector<8x8xf32>
    %cst_31 = arith.constant dense<0.000000e+00> : vector<8xf32>
    %52 = vector.multi_reduction <add>, %51, %cst_31 [1] : vector<8x8xf32> to vector<8xf32>
    %53 = vector.shape_cast %52 : vector<8xf32> to vector<8x1xf32>
    %54 = arith.truncf %51 : vector<8x8xf32> to vector<8x8xbf16>
    %cst_32 = arith.constant dense<0.000000e+00> : vector<8x64xf32>
    %55 = tpu.matmul %54, %45, %cst_32 {dimension_numbers = #tpu.dot_dimension_numbers<[1], [0], [0], [1], [0, 0, 1, 1], [], []>} : vector<8x8xbf16>, vector<8x64xbf16>, vector<8x64xf32> -> vector<8x64xf32>
    %56 = tpu.reciprocal %53 {approx = true} : vector<8x1xf32> -> vector<8x1xf32>
    %57 = vector.broadcast %56 : vector<8x1xf32> to vector<8x64xf32>
    %58 = arith.mulf %55, %57 : vector<8x64xf32>
    %c0_33 = arith.constant 0 : index
    %c128_34 = arith.constant 128 : index
    %59 = vector.load %arg4[%c0_33, %c128_34] : memref<8x256xf32, #tpu.memory_space<vmem>>, vector<8x64xf32>
    tpu.vector_store %arg4[%c0_33, %c128_34], %58 {strides = array<i32>} : memref<8x256xf32, #tpu.memory_space<vmem>>, vector<8x64xf32>,
    %c0_35 = arith.constant 0 : index
    %c0_36 = arith.constant 0 : index
    %c192 = arith.constant 192 : index
    %60 = vector.load %arg2[%c0_35, %c0_36, %c192] : memref<1x8x768xbf16, #tpu.memory_space<vmem>>, vector<1x8x64xbf16>
    %61 = vector.shape_cast %60 : vector<1x8x64xbf16> to vector<8x64xbf16>
    %c0_37 = arith.constant 0 : index
    %c0_38 = arith.constant 0 : index
    %c448 = arith.constant 448 : index
    %62 = vector.load %arg2[%c0_37, %c0_38, %c448] : memref<1x8x768xbf16, #tpu.memory_space<vmem>>, vector<1x8x64xbf16>
    %63 = vector.shape_cast %62 : vector<1x8x64xbf16> to vector<8x64xbf16>
    %c0_39 = arith.constant 0 : index
    %c0_40 = arith.constant 0 : index
    %c704 = arith.constant 704 : index
    %64 = vector.load %arg2[%c0_39, %c0_40, %c704] : memref<1x8x768xbf16, #tpu.memory_space<vmem>>, vector<1x8x64xbf16>
    %65 = vector.shape_cast %64 : vector<1x8x64xbf16> to vector<8x64xbf16>
    %cst_41 = arith.constant dense<0.000000e+00> : vector<8x8xf32>
    %66 = tpu.matmul %61, %63, %cst_41 {dimension_numbers = #tpu.dot_dimension_numbers<[1], [1], [0], [0], [0, 0, 1, 0], [], []>} : vector<8x64xbf16>, vector<8x64xbf16>, vector<8x8xf32> -> vector<8x8xf32>
    %cst_42 = arith.constant dense<0xFF800000> : vector<8xf32>
    %67 = vector.multi_reduction <maximumf>, %66, %cst_42 [1] : vector<8x8xf32> to vector<8xf32>
    %68 = vector.shape_cast %67 : vector<8xf32> to vector<8x1xf32>
    %69 = vector.broadcast %68 : vector<8x1xf32> to vector<8x8xf32>
    %70 = arith.subf %66, %69 : vector<8x8xf32>
    %71 = math.exp %70 : vector<8x8xf32>
    %cst_43 = arith.constant dense<0.000000e+00> : vector<8xf32>
    %72 = vector.multi_reduction <add>, %71, %cst_43 [1] : vector<8x8xf32> to vector<8xf32>
    %73 = vector.shape_cast %72 : vector<8xf32> to vector<8x1xf32>
    %74 = arith.truncf %71 : vector<8x8xf32> to vector<8x8xbf16>
    %cst_44 = arith.constant dense<0.000000e+00> : vector<8x64xf32>
    %75 = tpu.matmul %74, %65, %cst_44 {dimension_numbers = #tpu.dot_dimension_numbers<[1], [0], [0], [1], [0, 0, 1, 1], [], []>} : vector<8x8xbf16>, vector<8x64xbf16>, vector<8x64xf32> -> vector<8x64xf32>
    %76 = tpu.reciprocal %73 {approx = true} : vector<8x1xf32> -> vector<8x1xf32>
    %77 = vector.broadcast %76 : vector<8x1xf32> to vector<8x64xf32>
    %78 = arith.mulf %75, %77 : vector<8x64xf32>
    %c0_45 = arith.constant 0 : index
    %c192_46 = arith.constant 192 : index
    %79 = vector.load %arg4[%c0_45, %c192_46] : memref<8x256xf32, #tpu.memory_space<vmem>>, vector<8x64xf32>
    tpu.vector_store %arg4[%c0_45, %c192_46], %78 {strides = array<i32>} : memref<8x256xf32, #tpu.memory_space<vmem>>, vector<8x64xf32>,
    %c0_47 = arith.constant 0 : index
    %c0_48 = arith.constant 0 : index
    %80 = vector.load %arg4[%c0_47, %c0_48] : memref<8x256xf32, #tpu.memory_space<vmem>>, vector<8x256xf32>
    %c0_49 = arith.constant 0 : index
    %c0_50 = arith.constant 0 : index
    %c0_51 = arith.constant 0 : index
    %81 = vector.load %arg3[%c0_49, %c0_50, %c0_51] : memref<1x8x256xf32, #tpu.memory_space<vmem>>, vector<1x8x256xf32>
    %82 = vector.shape_cast %81 : vector<1x8x256xf32> to vector<8x256xf32>
    %83 = vector.shape_cast %80 : vector<8x256xf32> to vector<1x8x256xf32>
    tpu.vector_store %arg3[%c0_49, %c0_50, %c0_51], %83 {strides = array<i32>} : memref<1x8x256xf32, #tpu.memory_space<vmem>>, vector<1x8x256xf32>,
    return
  }
  func.func @transform_0(%arg0: i32, %arg1: i32) -> (i32, i32, i32) {
    %c0_i32 = arith.constant 0 : i32
    %c0_i32_0 = arith.constant 0 : i32
    return %arg0, %c0_i32, %arg1 : i32, i32, i32
  }
  func.func @transform_1(%arg0: i32, %arg1: i32) -> (i32, i32, i32) {
    %c0_i32 = arith.constant 0 : i32
    %c0_i32_0 = arith.constant 0 : i32
    return %arg0, %c0_i32, %arg1 : i32, i32, i32
  }
}

</mosaic_0001>

<llo_original>
// kernel: vit_self_attention.3
$region0: #{vit_self_attention.3}
  #allocation0 [shape = 'u32[]', space=smem, size = 0x4, offset = 0x4, fixed_abs, tag = 'smem constant byte address 0x4 - core index']
  #allocation1 [shape = 'u32[144,128]{1,0:T(1,128)}', space=vmem, size = 0x12000, scoped, tag = 'internal scratch']
  #allocation2 [shape = 'f32[8,256]{1,0:T(8,128)}', space=vmem, size = 0x2000, scoped, tag = 'scratch operand']
  %s0 = inlined_call_operand.vmem [shape: bf16[2,8,3072], index: 0, kind: input, shape index: {}]
  %s1 = inlined_call_operand.hbm [shape: f32[2,8,1024], index: 1, kind: output, shape index: {}]
  %s2 = sld [smem:[#allocation0]]
  $region37: #{vit_self_attention.3} parent=0
    _
  %s4 = ssub.s32 1, %s2
  %s5 = scalar_select 0, %s4, %s2
  $region1: #{vit_self_attention.3} parent=0
    #allocation3 [shape = 'u8[16384]{0}', space=vmem, size = 0x4000, scoped, tag = 'output window, operand 0']
    #allocation4 [shape = 's32[2]{0}', space=sflag, size = 0x8, scoped, tag = 'scoped memory for vit_self_attention.3']
    %6 = vsyncpa [#allocation4], 0
    %s7 = scalar_lea.sflag [#allocation4], 1
    %8 = vsyncpa %s7, 0
    loop: start=0, step=1, limit=10
    $region2: #{vit_self_attention.3} parent=1 // loop_pre_header
      _
    $region3: #{vit_self_attention.3} parent=1 // loop_header
      %s10 = sphi 0, %s14
      %p11 = scmp.ge.s32.totalorder %s10, 10
      %s17 = sphi 0, %s29
      %s18 = sphi 0, %s25
      %s19 = sphi 0, %s17
      %s20 = sphi 0, %s18
      %s21 = sphi 0, %s19
      %s22 = sphi 0, %s20
      %s34 = sphi 0, %s36
      %s37 = sphi 0, %s34
      %s38 = sphi 0, %s37
      %s54 = sphi 0, %s38
      %s62 = sphi 0, %s64
      %s65 = sphi 0, %s62
      %s66 = sphi 0, %s65
      %s82 = sphi 0, %s66
    $region4: #{vit_self_attention.3} parent=1 // loop_header_branch
      %13 = sbr.rel (%p11) target = $region8
    $region5: #{vit_self_attention.3} parent=1 // loop_body
      %s15 = ssub.s32 %s10, 1
      %s16 = ssub.s32 %s10, 2
      %s23 = sadd.s32 1, %s18
      %p24 = scmp.ge.s32.totalorder %s23, 4
      %s25 = scalar_select %p24, 0, %s23
      %s26 = sadd.s32 1, %s17
      %s27 = scalar_select %p24, %s26, %s17
      %p28 = scmp.ge.s32.totalorder %s27, 2
      %s29 = scalar_select %p28, 0, %s27
      %s30 = ssub.s32 %s17, %s29
      %s31 = ssub.s32 %s18, %s25
      %s32 = sor.u32 %s30, %s31
      %p33 = scmp.eq.s32.totalorder %s32, 0
      %s35 = sadd.s32 %s34, 1
      %s36 = scalar_select %p33, %s34, %s35
      %p39 = pneg %p33
      %p40 = scmp.eq.s32.totalorder %s10, 7
      %p41 = por %p39, %p40
      %p42 = scmp.ne.s32.totalorder %s34, %s37
      %p43 = scmp.eq.s32.totalorder %s10, 0
      %p44 = por %p42, %p43
      %p45 = scmp.ne.s32.totalorder %s34, %s37
      %p46 = scmp.eq.s32.totalorder %s15, 7
      %p47 = por %p45, %p46
      %p48 = scmp.ne.s32.totalorder %s37, %s38
      %p49 = scmp.eq.s32.totalorder %s15, 0
      %p50 = por %p48, %p49
      %p51 = scmp.ne.s32.totalorder %s37, %s38
      %p52 = scmp.eq.s32.totalorder %s16, 7
      %p53 = por %p51, %p52
      %p55 = scmp.ne.s32.totalorder %s38, %s54
      %p56 = scmp.eq.s32.totalorder %s16, 0
      %p57 = por %p55, %p56
      %s58 = ssub.s32 %s17, %s29
      %s59 = ssub.s32 %s18, %s25
      %s60 = sor.u32 %s58, %s59
      %p61 = scmp.eq.s32.totalorder %s60, 0
      %s63 = sadd.s32 %s62, 1
      %s64 = scalar_select %p61, %s62, %s63
      %p67 = pneg %p61
      %p68 = scmp.eq.s32.totalorder %s10, 7
      %p69 = por %p67, %p68
      %p70 = scmp.ne.s32.totalorder %s62, %s65
      %p71 = scmp.eq.s32.totalorder %s10, 0
      %p72 = por %p70, %p71
      %p73 = scmp.ne.s32.totalorder %s62, %s65
      %p74 = scmp.eq.s32.totalorder %s15, 7
      %p75 = por %p73, %p74
      %p76 = scmp.ne.s32.totalorder %s65, %s66
      %p77 = scmp.eq.s32.totalorder %s15, 0
      %p78 = por %p76, %p77
      %p79 = scmp.ne.s32.totalorder %s65, %s66
      %p80 = scmp.eq.s32.totalorder %s16, 7
      %p81 = por %p79, %p80
      %p83 = scmp.ne.s32.totalorder %s66, %s82
      %p84 = scmp.eq.s32.totalorder %s16, 0
      %p85 = por %p83, %p84
      %p86 = scmp.le.s32.totalorder 1, %s10
      %p87 = scmp.lt.s32.totalorder %s10, 9
      %p88 = pnand %p86, %p87
      %p89 = pneg %p88
      // Predicated region
      $region9: #{vit_self_attention.3} parent=5 // pred_check
        _
      $region10: #{vit_self_attention.3} parent=5 // pred_check_branch
        %91 = sbr.rel (%p88) target = $region12
      $region11: #{vit_self_attention.3} parent=5 // pred_region
        %s92 = ssub.s32 %s10, 1
      $region12: #{vit_self_attention.3} parent=5 // pred_fallthru
        _
      %p93 = scmp.lt.s32.totalorder %s10, 8
      // Predicated region
      $region13: #{vit_self_attention.3} parent=5 // pred_check
        %p94 = pneg %p93
      $region14: #{vit_self_attention.3} parent=5 // pred_check_branch
        %96 = sbr.rel (%p94) target = $region16
      $region15: #{vit_self_attention.3} parent=5 // pred_region
        // Predicated region
        $region17: #{vit_self_attention.3} parent=15 // pred_check
          %p97 = pneg %p44
        $region18: #{vit_self_attention.3} parent=15 // pred_check_branch
          %99 = sbr.rel (%p97) target = $region20
        $region19: #{vit_self_attention.3} parent=15 // pred_region
          %s100 = smul.u32 6, %s18
          %p101 = scmp.lt.s32.totalorder %s17, 1
          %s102 = scalar_select %p101, %s17, 1
          %p103 = scmp.lt.s32.totalorder %s100, 23
          %s104 = scalar_select %p103, %s100, 23
          %s105 = smul.addr %s102, 24
          %s106 = sadd.s32 %s104, %s105
          %s107 = smul.addr %s106, 4
          %s108 = scalar_lea.vmem %s0, %s107
          %s109 = smul.u32 6, %s18
        $region20: #{vit_self_attention.3} parent=15 // pred_fallthru
          _
      $region16: #{vit_self_attention.3} parent=5 // pred_fallthru
        _
      %p110 = scmp.le.s32.totalorder 1, %s10
      %p111 = scmp.lt.s32.totalorder %s10, 9
      %p112 = pnand %p110, %p111
      %p113 = pneg %p112
      // Predicated region
      $region21: #{vit_self_attention.3} parent=5 // pred_check
        _
      $region22: #{vit_self_attention.3} parent=5 // pred_check_branch
        %115 = sbr.rel (%p112) target = $region24
      $region23: #{vit_self_attention.3} parent=5 // pred_region
        %s116 = ssub.s32 %s10, 1
        %s117 = smul.u32 6, %s20
        %p118 = scmp.lt.s32.totalorder %s19, 1
        %s119 = scalar_select %p118, %s19, 1
        %p120 = scmp.lt.s32.totalorder %s117, 23
        %s121 = scalar_select %p120, %s117, 23
        %s122 = smul.addr %s119, 24
        %s123 = sadd.s32 %s121, %s122
        %s124 = smul.addr %s123, 4
        %s125 = scalar_lea.vmem %s0, %s124
        %p126 = pneg %p50
        %p127 = pneg %p47
        %p128 = pneg %p78
        %p129 = pneg %p75
        %s130 = sand.u32 %s65, 1
        %s131 = scalar_lea.sflag [#allocation4], %s130
        %s132 = sand.u32 %s65, 1
        %s133 = smul.addr %s132, 16
        %s134 = scalar_lea.vmem [#allocation3], %s133
        %s135 = smul.u32 6, %s20
        %p136 = scmp.lt.s32.totalorder %s19, 1
        %s137 = scalar_select %p136, %s19, 1
        %p138 = scmp.lt.s32.totalorder %s135, 23
        %s139 = scalar_select %p138, %s135, 23
        %s140 = smul.addr %s137, 24
        %s141 = sadd.s32 %s139, %s140
        %s142 = smul.addr %s141, 4
        %s143 = scalar_lea.vmem %s0, %s142
        %s144 = smul.u32 6, %s20
        %s145 = smul.u32 2, %s20
        %v147 = vld [vmem:[%s143] sm:$0xf]
        %v148 = vld [vmem:[%s143 + $0x8] sm:$0xf]
        %v149 = vld [vmem:[%s143 + $0x10] sm:$0xf]
        %vm150 = vcmask 523264
        %v152 = vsel %vm150, %v147, 0
        %v155 = vsel %vm150, %v148, 0
        %157 = vmatprep.subr.bf16.mxu0 0
        %158 = vmatpush1.bf16.xpose.msra.mxu0 %v155
        %159 = vmatprep.subr.bf16.mxu0 0
        %160 = vmatpush1.bf16.xpose.msra.mxu0 0
        %161 = vmatprep.subr.bf16.mxu0 0
        %162 = vmatpush1.bf16.xpose.msra.mxu0 0
        %163 = vmatprep.subr.bf16.mxu0 0
        %164 = vmatpush1.bf16.xpose.msra.mxu0 0
        %165 = vmatprep.subr.bf16.mxu0 0
        %166 = vmatpush1.bf16.xpose.msra.mxu0 0
        %167 = vmatprep.subr.bf16.mxu0 0
        %168 = vmatpush1.bf16.xpose.msra.mxu0 0
        %169 = vmatprep.subr.bf16.mxu0 0
        %170 = vmatpush1.bf16.xpose.msra.mxu0 0
        %171 = vmatprep.subr.bf16.mxu0 0
        %172 = vmatpush1.bf16.xpose.msra.mxu0 0
        %173 = vmatprep.subr.bf16.mxu0 0
        %174 = vmatpush1.bf16.xpose.msra.mxu0 0
        %175 = vmatprep.subr.bf16.mxu0 0
        %176 = vmatpush1.bf16.xpose.msra.mxu0 0
        %177 = vmatprep.subr.bf16.mxu0 0
        %178 = vmatpush1.bf16.xpose.msra.mxu0 0
        %179 = vmatprep.subr.bf16.mxu0 0
        %180 = vmatpush1.bf16.xpose.msra.mxu0 0
        %181 = vmatprep.subr.bf16.mxu0 0
        %182 = vmatpush1.bf16.xpose.msra.mxu0 0
        %183 = vmatprep.subr.bf16.mxu0 0
        %184 = vmatpush1.bf16.xpose.msra.mxu0 0
        %185 = vmatprep.subr.bf16.mxu0 0
        %186 = vmatpush1.bf16.xpose.msra.mxu0 0
        %187 = vmatprep.subr.bf16.mxu0 0
        %188 = vmatpush1.bf16.xpose.msra.mxu0 0
        %189 = vmatprep.mubr.bf16.mxu0 0
        %190 = vmatmul.mubr.bf16.gmra.mrb[0].mxu0 %v152
        %v191 = vpop.f32.mrb[0].mxu0
        %v192 = vadd.f32 0.0, %v191
        %v193 = vpop.f32.mrb[0].mxu0
        %v194 = vpop.f32.mrb[0].mxu0
        %v195 = vpop.f32.mrb[0].mxu0
        %196 = vdwg.mxu0
        %vm197 = vcmask 64512
        %v198 = vsel %vm197, %v192, -inf
        %199 = vmax.xlane.f32.xlu0 %v198
        %v200 = vpop.xlane.xlu0 %199
        %v201 = vsub.f32 %v192, %v200
        %v202 = vmul.f32 %v201, 1.442695
        %v203 = vpow.pop %v202
        %v204 = vsel %vm197, %v203, 0.0
        %205 = vadd.xlane.f32.xlu0 %v204
        %v206 = vpop.xlane.xlu0 %205
        %v207 = vpack.c.bf16 %v203, %v203
        %v209 = vsel %vm197, %v207, 0
        %vm211 = vcmask 1043456
        %v213 = vsel %vm211, %v149, 0
        %215 = vmatprep.subr.bf16.mxu0 0
        %216 = vmatpush1.bf16.msra.mxu0 %v213
        %217 = vmatprep.subr.bf16.mxu0 0
        %218 = vmatpush1.bf16.msra.mxu0 0
        %219 = vmatprep.subr.bf16.mxu0 0
        %220 = vmatpush1.bf16.msra.mxu0 0
        %221 = vmatprep.subr.bf16.mxu0 0
        %222 = vmatpush1.bf16.msra.mxu0 0
        %223 = vmatprep.subr.bf16.mxu0 0
        %224 = vmatpush1.bf16.msra.mxu0 0
        %225 = vmatprep.subr.bf16.mxu0 0
        %226 = vmatpush1.bf16.msra.mxu0 0
        %227 = vmatprep.subr.bf16.mxu0 0
        %228 = vmatpush1.bf16.msra.mxu0 0
        %229 = vmatprep.subr.bf16.mxu0 0
        %230 = vmatpush1.bf16.msra.mxu0 0
        %231 = vmatprep.subr.bf16.mxu0 0
        %232 = vmatpush1.bf16.msra.mxu0 0
        %233 = vmatprep.subr.bf16.mxu0 0
        %234 = vmatpush1.bf16.msra.mxu0 0
        %235 = vmatprep.subr.bf16.mxu0 0
        %236 = vmatpush1.bf16.msra.mxu0 0
        %237 = vmatprep.subr.bf16.mxu0 0
        %238 = vmatpush1.bf16.msra.mxu0 0
        %239 = vmatprep.subr.bf16.mxu0 0
        %240 = vmatpush1.bf16.msra.mxu0 0
        %241 = vmatprep.subr.bf16.mxu0 0
        %242 = vmatpush1.bf16.msra.mxu0 0
        %243 = vmatprep.subr.bf16.mxu0 0
        %244 = vmatpush1.bf16.msra.mxu0 0
        %245 = vmatprep.subr.bf16.mxu0 0
        %246 = vmatpush1.bf16.msra.mxu0 0
        %247 = vmatprep.mubr.bf16.mxu0 0
        %248 = vmatmul.mubr.bf16.gmra.mrb[0].mxu0 %v209
        %v249 = vpop.f32.mrb[0].mxu0
        %v250 = vadd.f32 0.0, %v249
        %v251 = vpop.f32.mrb[0].mxu0
        %v252 = vpop.f32.mrb[0].mxu0
        %v253 = vpop.f32.mrb[0].mxu0
        %254 = vdwg.mxu0
        %v255 = vrcp.pop %v206
        %v256 = vmul.f32 %v250, %v255
        %257 = vst.msk [vmem:[#allocation2] sm:$0xff] %vm150, %v256
        %v258 = vld [vmem:[%s143] sm:$0xf]
        %v259 = vld [vmem:[%s143 + $0x8] sm:$0xf]
        %v260 = vld [vmem:[%s143 + $0x10] sm:$0xf]
        %v262 = vunpack.c.l.b16 %v258
        %v263 = vpack.c.b16 %v262, %v262
        %264 = vrot.lane.b32.xlu0 %v263, 64
        %v265 = vpop.permute.xlu0 %264
        %v267 = vunpack.c.l.b16 %v259
        %v268 = vpack.c.b16 %v267, %v267
        %269 = vrot.lane.b32.xlu0 %v268, 64
        %v270 = vpop.permute.xlu0 %269
        %v272 = vsel %vm150, %v265, 0
        %v275 = vsel %vm150, %v270, 0
        %277 = vmatprep.subr.bf16.mxu0 0
        %278 = vmatpush1.bf16.xpose.msra.mxu0 %v275
        %279 = vmatprep.subr.bf16.mxu0 0
        %280 = vmatpush1.bf16.xpose.msra.mxu0 0
        %281 = vmatprep.subr.bf16.mxu0 0
        %282 = vmatpush1.bf16.xpose.msra.mxu0 0
        %283 = vmatprep.subr.bf16.mxu0 0
        %284 = vmatpush1.bf16.xpose.msra.mxu0 0
        %285 = vmatprep.subr.bf16.mxu0 0
        %286 = vmatpush1.bf16.xpose.msra.mxu0 0
        %287 = vmatprep.subr.bf16.mxu0 0
        %288 = vmatpush1.bf16.xpose.msra.mxu0 0
        %289 = vmatprep.subr.bf16.mxu0 0
        %290 = vmatpush1.bf16.xpose.msra.mxu0 0
        %291 = vmatprep.subr.bf16.mxu0 0
        %292 = vmatpush1.bf16.xpose.msra.mxu0 0
        %293 = vmatprep.subr.bf16.mxu0 0
        %294 = vmatpush1.bf16.xpose.msra.mxu0 0
        %295 = vmatprep.subr.bf16.mxu0 0
        %296 = vmatpush1.bf16.xpose.msra.mxu0 0
        %297 = vmatprep.subr.bf16.mxu0 0
        %298 = vmatpush1.bf16.xpose.msra.mxu0 0
        %299 = vmatprep.subr.bf16.mxu0 0
        %300 = vmatpush1.bf16.xpose.msra.mxu0 0
        %301 = vmatprep.subr.bf16.mxu0 0
        %302 = vmatpush1.bf16.xpose.msra.mxu0 0
        %303 = vmatprep.subr.bf16.mxu0 0
        %304 = vmatpush1.bf16.xpose.msra.mxu0 0
        %305 = vmatprep.subr.bf16.mxu0 0
        %306 = vmatpush1.bf16.xpose.msra.mxu0 0
        %307 = vmatprep.subr.bf16.mxu0 0
        %308 = vmatpush1.bf16.xpose.msra.mxu0 0
        %309 = vmatprep.mubr.bf16.mxu0 0
        %310 = vmatmul.mubr.bf16.gmra.mrb[0].mxu0 %v272
        %v311 = vpop.f32.mrb[0].mxu0
        %v312 = vadd.f32 0.0, %v311
        %v313 = vpop.f32.mrb[0].mxu0
        %v314 = vpop.f32.mrb[0].mxu0
        %v315 = vpop.f32.mrb[0].mxu0
        %316 = vdwg.mxu0
        %v317 = vsel %vm197, %v312, -inf
        %318 = vmax.xlane.f32.xlu0 %v317
        %v319 = vpop.xlane.xlu0 %318
        %v320 = vsub.f32 %v312, %v319
        %v321 = vmul.f32 %v320, 1.442695
        %v322 = vpow.pop %v321
        %v323 = vsel %vm197, %v322, 0.0
        %324 = vadd.xlane.f32.xlu0 %v323
        %v325 = vpop.xlane.xlu0 %324
        %v326 = vpack.c.bf16 %v322, %v322
        %v328 = vunpack.c.l.b16 %v260
        %v329 = vpack.c.b16 %v328, %v328
        %330 = vrot.lane.b32.xlu0 %v329, 64
        %v331 = vpop.permute.xlu0 %330
        %v333 = vsel %vm197, %v326, 0
        %v336 = vsel %vm211, %v331, 0
        %338 = vmatprep.subr.bf16.mxu0 0
        %339 = vmatpush1.bf16.msra.mxu0 %v336
        %340 = vmatprep.subr.bf16.mxu0 0
        %341 = vmatpush1.bf16.msra.mxu0 0
        %342 = vmatprep.subr.bf16.mxu0 0
        %343 = vmatpush1.bf16.msra.mxu0 0
        %344 = vmatprep.subr.bf16.mxu0 0
        %345 = vmatpush1.bf16.msra.mxu0 0
        %346 = vmatprep.subr.bf16.mxu0 0
        %347 = vmatpush1.bf16.msra.mxu0 0
        %348 = vmatprep.subr.bf16.mxu0 0
        %349 = vmatpush1.bf16.msra.mxu0 0
        %350 = vmatprep.subr.bf16.mxu0 0
        %351 = vmatpush1.bf16.msra.mxu0 0
        %352 = vmatprep.subr.bf16.mxu0 0
        %353 = vmatpush1.bf16.msra.mxu0 0
        %354 = vmatprep.subr.bf16.mxu0 0
        %355 = vmatpush1.bf16.msra.mxu0 0
        %356 = vmatprep.subr.bf16.mxu0 0
        %357 = vmatpush1.bf16.msra.mxu0 0
        %358 = vmatprep.subr.bf16.mxu0 0
        %359 = vmatpush1.bf16.msra.mxu0 0
        %360 = vmatprep.subr.bf16.mxu0 0
        %361 = vmatpush1.bf16.msra.mxu0 0
        %362 = vmatprep.subr.bf16.mxu0 0
        %363 = vmatpush1.bf16.msra.mxu0 0
        %364 = vmatprep.subr.bf16.mxu0 0
        %365 = vmatpush1.bf16.msra.mxu0 0
        %366 = vmatprep.subr.bf16.mxu0 0
        %367 = vmatpush1.bf16.msra.mxu0 0
        %368 = vmatprep.subr.bf16.mxu0 0
        %369 = vmatpush1.bf16.msra.mxu0 0
        %370 = vmatprep.mubr.bf16.mxu0 0
        %371 = vmatmul.mubr.bf16.gmra.mrb[0].mxu0 %v333
        %v372 = vpop.f32.mrb[0].mxu0
        %v373 = vadd.f32 0.0, %v372
        %v374 = vpop.f32.mrb[0].mxu0
        %v375 = vpop.f32.mrb[0].mxu0
        %v376 = vpop.f32.mrb[0].mxu0
        %377 = vdwg.mxu0
        %v378 = vrcp.pop %v325
        %v379 = vmul.f32 %v373, %v378
        %381 = vrot.lane.b32.xlu0 %v379, 64
        %v382 = vpop.permute.xlu0 %381
        %vm384 = vcmask 1048064
        %385 = vst.msk [vmem:[#allocation2] sm:$0xff] %vm384, %v382
        %v386 = vld [vmem:[%s143 + $0x4] sm:$0xf]
        %v387 = vld [vmem:[%s143 + $0xc] sm:$0xf]
        %v388 = vld [vmem:[%s143 + $0x14] sm:$0xf]
        %v390 = vsel %vm150, %v386, 0
        %v393 = vsel %vm150, %v387, 0
        %395 = vmatprep.subr.bf16.mxu0 0
        %396 = vmatpush1.bf16.xpose.msra.mxu0 %v393
        %397 = vmatprep.subr.bf16.mxu0 0
        %398 = vmatpush1.bf16.xpose.msra.mxu0 0
        %399 = vmatprep.subr.bf16.mxu0 0
        %400 = vmatpush1.bf16.xpose.msra.mxu0 0
        %401 = vmatprep.subr.bf16.mxu0 0
        %402 = vmatpush1.bf16.xpose.msra.mxu0 0
        %403 = vmatprep.subr.bf16.mxu0 0
        %404 = vmatpush1.bf16.xpose.msra.mxu0 0
        %405 = vmatprep.subr.bf16.mxu0 0
        %406 = vmatpush1.bf16.xpose.msra.mxu0 0
        %407 = vmatprep.subr.bf16.mxu0 0
        %408 = vmatpush1.bf16.xpose.msra.mxu0 0
        %409 = vmatprep.subr.bf16.mxu0 0
        %410 = vmatpush1.bf16.xpose.msra.mxu0 0
        %411 = vmatprep.subr.bf16.mxu0 0
        %412 = vmatpush1.bf16.xpose.msra.mxu0 0
        %413 = vmatprep.subr.bf16.mxu0 0
        %414 = vmatpush1.bf16.xpose.msra.mxu0 0
        %415 = vmatprep.subr.bf16.mxu0 0
        %416 = vmatpush1.bf16.xpose.msra.mxu0 0
        %417 = vmatprep.subr.bf16.mxu0 0
        %418 = vmatpush1.bf16.xpose.msra.mxu0 0
        %419 = vmatprep.subr.bf16.mxu0 0
        %420 = vmatpush1.bf16.xpose.msra.mxu0 0
        %421 = vmatprep.subr.bf16.mxu0 0
        %422 = vmatpush1.bf16.xpose.msra.mxu0 0
        %423 = vmatprep.subr.bf16.mxu0 0
        %424 = vmatpush1.bf16.xpose.msra.mxu0 0
        %425 = vmatprep.subr.bf16.mxu0 0
        %426 = vmatpush1.bf16.xpose.msra.mxu0 0
        %427 = vmatprep.mubr.bf16.mxu0 0
        %428 = vmatmul.mubr.bf16.gmra.mrb[0].mxu0 %v390
        %v429 = vpop.f32.mrb[0].mxu0
        %v430 = vadd.f32 0.0, %v429
        %v431 = vpop.f32.mrb[0].mxu0
        %v432 = vpop.f32.mrb[0].mxu0
        %v433 = vpop.f32.mrb[0].mxu0
        %434 = vdwg.mxu0
        %v435 = vsel %vm197, %v430, -inf
        %436 = vmax.xlane.f32.xlu0 %v435
        %v437 = vpop.xlane.xlu0 %436
        %v438 = vsub.f32 %v430, %v437
        %v439 = vmul.f32 %v438, 1.442695
        %v440 = vpow.pop %v439
        %v441 = vsel %vm197, %v440, 0.0
        %442 = vadd.xlane.f32.xlu0 %v441
        %v443 = vpop.xlane.xlu0 %442
        %v444 = vpack.c.bf16 %v440, %v440
        %v446 = vsel %vm197, %v444, 0
        %v449 = vsel %vm211, %v388, 0
        %451 = vmatprep.subr.bf16.mxu0 0
        %452 = vmatpush1.bf16.msra.mxu0 %v449
        %453 = vmatprep.subr.bf16.mxu0 0
        %454 = vmatpush1.bf16.msra.mxu0 0
        %455 = vmatprep.subr.bf16.mxu0 0
        %456 = vmatpush1.bf16.msra.mxu0 0
        %457 = vmatprep.subr.bf16.mxu0 0
        %458 = vmatpush1.bf16.msra.mxu0 0
        %459 = vmatprep.subr.bf16.mxu0 0
        %460 = vmatpush1.bf16.msra.mxu0 0
        %461 = vmatprep.subr.bf16.mxu0 0
        %462 = vmatpush1.bf16.msra.mxu0 0
        %463 = vmatprep.subr.bf16.mxu0 0
        %464 = vmatpush1.bf16.msra.mxu0 0
        %465 = vmatprep.subr.bf16.mxu0 0
        %466 = vmatpush1.bf16.msra.mxu0 0
        %467 = vmatprep.subr.bf16.mxu0 0
        %468 = vmatpush1.bf16.msra.mxu0 0
        %469 = vmatprep.subr.bf16.mxu0 0
        %470 = vmatpush1.bf16.msra.mxu0 0
        %471 = vmatprep.subr.bf16.mxu0 0
        %472 = vmatpush1.bf16.msra.mxu0 0
        %473 = vmatprep.subr.bf16.mxu0 0
        %474 = vmatpush1.bf16.msra.mxu0 0
        %475 = vmatprep.subr.bf16.mxu0 0
        %476 = vmatpush1.bf16.msra.mxu0 0
        %477 = vmatprep.subr.bf16.mxu0 0
        %478 = vmatpush1.bf16.msra.mxu0 0
        %479 = vmatprep.subr.bf16.mxu0 0
        %480 = vmatpush1.bf16.msra.mxu0 0
        %481 = vmatprep.subr.bf16.mxu0 0
        %482 = vmatpush1.bf16.msra.mxu0 0
        %483 = vmatprep.mubr.bf16.mxu0 0
        %484 = vmatmul.mubr.bf16.gmra.mrb[0].mxu0 %v446
        %v485 = vpop.f32.mrb[0].mxu0
        %v486 = vadd.f32 0.0, %v485
        %v487 = vpop.f32.mrb[0].mxu0
        %v488 = vpop.f32.mrb[0].mxu0
        %v489 = vpop.f32.mrb[0].mxu0
        %490 = vdwg.mxu0
        %v491 = vrcp.pop %v443
        %v492 = vmul.f32 %v486, %v491
        %493 = vst.msk [vmem:[#allocation2 + $0x8] sm:$0xff] %vm150, %v492
        %v494 = vld [vmem:[%s143 + $0x4] sm:$0xf]
        %v495 = vld [vmem:[%s143 + $0xc] sm:$0xf]
        %v496 = vld [vmem:[%s143 + $0x14] sm:$0xf]
        %v498 = vunpack.c.l.b16 %v494
        %v499 = vpack.c.b16 %v498, %v498
        %500 = vrot.lane.b32.xlu0 %v499, 64
        %v501 = vpop.permute.xlu0 %500
        %v503 = vunpack.c.l.b16 %v495
        %v504 = vpack.c.b16 %v503, %v503
        %505 = vrot.lane.b32.xlu0 %v504, 64
        %v506 = vpop.permute.xlu0 %505
        %v508 = vsel %vm150, %v501, 0
        %v511 = vsel %vm150, %v506, 0
        %513 = vmatprep.subr.bf16.mxu0 0
        %514 = vmatpush1.bf16.xpose.msra.mxu0 %v511
        %515 = vmatprep.subr.bf16.mxu0 0
        %516 = vmatpush1.bf16.xpose.msra.mxu0 0
        %517 = vmatprep.subr.bf16.mxu0 0
        %518 = vmatpush1.bf16.xpose.msra.mxu0 0
        %519 = vmatprep.subr.bf16.mxu0 0
        %520 = vmatpush1.bf16.xpose.msra.mxu0 0
        %521 = vmatprep.subr.bf16.mxu0 0
        %522 = vmatpush1.bf16.xpose.msra.mxu0 0
        %523 = vmatprep.subr.bf16.mxu0 0
        %524 = vmatpush1.bf16.xpose.msra.mxu0 0
        %525 = vmatprep.subr.bf16.mxu0 0
        %526 = vmatpush1.bf16.xpose.msra.mxu0 0
        %527 = vmatprep.subr.bf16.mxu0 0
        %528 = vmatpush1.bf16.xpose.msra.mxu0 0
        %529 = vmatprep.subr.bf16.mxu0 0
        %530 = vmatpush1.bf16.xpose.msra.mxu0 0
        %531 = vmatprep.subr.bf16.mxu0 0
        %532 = vmatpush1.bf16.xpose.msra.mxu0 0
        %533 = vmatprep.subr.bf16.mxu0 0
        %534 = vmatpush1.bf16.xpose.msra.mxu0 0
        %535 = vmatprep.subr.bf16.mxu0 0
        %536 = vmatpush1.bf16.xpose.msra.mxu0 0
        %537 = vmatprep.subr.bf16.mxu0 0
        %538 = vmatpush1.bf16.xpose.msra.mxu0 0
        %539 = vmatprep.subr.bf16.mxu0 0
        %540 = vmatpush1.bf16.xpose.msra.mxu0 0
        %541 = vmatprep.subr.bf16.mxu0 0
        %542 = vmatpush1.bf16.xpose.msra.mxu0 0
        %543 = vmatprep.subr.bf16.mxu0 0
        %544 = vmatpush1.bf16.xpose.msra.mxu0 0
        %545 = vmatprep.mubr.bf16.mxu0 0
        %546 = vmatmul.mubr.bf16.gmra.mrb[0].mxu0 %v508
        %v547 = vpop.f32.mrb[0].mxu0
        %v548 = vadd.f32 0.0, %v547
        %v549 = vpop.f32.mrb[0].mxu0
        %v550 = vpop.f32.mrb[0].mxu0
        %v551 = vpop.f32.mrb[0].mxu0
        %552 = vdwg.mxu0
        %v553 = vsel %vm197, %v548, -inf
        %554 = vmax.xlane.f32.xlu0 %v553
        %v555 = vpop.xlane.xlu0 %554
        %v556 = vsub.f32 %v548, %v555
        %v557 = vmul.f32 %v556, 1.442695
        %v558 = vpow.pop %v557
        %v559 = vsel %vm197, %v558, 0.0
        %560 = vadd.xlane.f32.xlu0 %v559
        %v561 = vpop.xlane.xlu0 %560
        %v562 = vpack.c.bf16 %v558, %v558
        %v564 = vunpack.c.l.b16 %v496
        %v565 = vpack.c.b16 %v564, %v564
        %566 = vrot.lane.b32.xlu0 %v565, 64
        %v567 = vpop.permute.xlu0 %566
        %v569 = vsel %vm197, %v562, 0
        %v572 = vsel %vm211, %v567, 0
        %574 = vmatprep.subr.bf16.mxu0 0
        %575 = vmatpush1.bf16.msra.mxu0 %v572
        %576 = vmatprep.subr.bf16.mxu0 0
        %577 = vmatpush1.bf16.msra.mxu0 0
        %578 = vmatprep.subr.bf16.mxu0 0
        %579 = vmatpush1.bf16.msra.mxu0 0
        %580 = vmatprep.subr.bf16.mxu0 0
        %581 = vmatpush1.bf16.msra.mxu0 0
        %582 = vmatprep.subr.bf16.mxu0 0
        %583 = vmatpush1.bf16.msra.mxu0 0
        %584 = vmatprep.subr.bf16.mxu0 0
        %585 = vmatpush1.bf16.msra.mxu0 0
        %586 = vmatprep.subr.bf16.mxu0 0
        %587 = vmatpush1.bf16.msra.mxu0 0
        %588 = vmatprep.subr.bf16.mxu0 0
        %589 = vmatpush1.bf16.msra.mxu0 0
        %590 = vmatprep.subr.bf16.mxu0 0
        %591 = vmatpush1.bf16.msra.mxu0 0
        %592 = vmatprep.subr.bf16.mxu0 0
        %593 = vmatpush1.bf16.msra.mxu0 0
        %594 = vmatprep.subr.bf16.mxu0 0
        %595 = vmatpush1.bf16.msra.mxu0 0
        %596 = vmatprep.subr.bf16.mxu0 0
        %597 = vmatpush1.bf16.msra.mxu0 0
        %598 = vmatprep.subr.bf16.mxu0 0
        %599 = vmatpush1.bf16.msra.mxu0 0
        %600 = vmatprep.subr.bf16.mxu0 0
        %601 = vmatpush1.bf16.msra.mxu0 0
        %602 = vmatprep.subr.bf16.mxu0 0
        %603 = vmatpush1.bf16.msra.mxu0 0
        %604 = vmatprep.subr.bf16.mxu0 0
        %605 = vmatpush1.bf16.msra.mxu0 0
        %606 = vmatprep.mubr.bf16.mxu0 0
        %607 = vmatmul.mubr.bf16.gmra.mrb[0].mxu0 %v569
        %v608 = vpop.f32.mrb[0].mxu0
        %v609 = vadd.f32 0.0, %v608
        %v610 = vpop.f32.mrb[0].mxu0
        %v611 = vpop.f32.mrb[0].mxu0
        %v612 = vpop.f32.mrb[0].mxu0
        %613 = vdwg.mxu0
        %v614 = vrcp.pop %v561
        %v615 = vmul.f32 %v609, %v614
        %617 = vrot.lane.b32.xlu0 %v615, 64
        %v618 = vpop.permute.xlu0 %617
        %620 = vst.msk [vmem:[#allocation2 + $0x8] sm:$0xff] %vm384, %v618
        %v621 = vld [vmem:[#allocation2] sm:$0xff]
        %v622 = vld [vmem:[#allocation2 + $0x8] sm:$0xff]
        %623 = vst [vmem:[%s134] sm:$0xff] %v621
        %624 = vst [vmem:[%s134 + $0x8] sm:$0xff] %v622
        %s625 = sand.u32 %s65, 1
        %s626 = scalar_lea.sflag [#allocation4], %s625
        %s627 = sand.u32 %s65, 1
        %s628 = smul.addr %s627, 16
        %s629 = scalar_lea.vmem [#allocation3], %s628
        // Predicated region
        $region25: #{vit_self_attention.3} parent=23 // pred_check
          %p630 = pneg %p75
        $region26: #{vit_self_attention.3} parent=23 // pred_check_branch
          %632 = sbr.rel (%p630) target = $region28
        $region27: #{vit_self_attention.3} parent=23 // pred_region
          %s633 = smul.u32 2, %s20
          %s635 = ssub.s32 256, 256
          %636 = vsyncadd %s626, %s635
          %s637 = smul.addr %s19, 8
          %s638 = sadd.s32 %s633, %s637
          %s639 = smul.addr %s638, 128
          %s640 = scalar_lea.hbm %s1, %s639
          %s642 = sshll.u32 %s629, 4
          %s643 = int_to_ptr.vmem [resolvable:$true] %s642
          %645 = dma.vmem_to_hbm [thread:$0]  %s643, 256, %s640, %s626
        $region28: #{vit_self_attention.3} parent=23 // pred_fallthru
          _
      $region24: #{vit_self_attention.3} parent=5 // pred_fallthru
        _
      %p646 = scmp.le.s32.totalorder 2, %s10
      // Predicated region
      $region29: #{vit_self_attention.3} parent=5 // pred_check
        %p647 = pneg %p646
      $region30: #{vit_self_attention.3} parent=5 // pred_check_branch
        %649 = sbr.rel (%p647) target = $region32
      $region31: #{vit_self_attention.3} parent=5 // pred_region
        %s650 = ssub.s32 %s10, 2
        // Predicated region
        $region33: #{vit_self_attention.3} parent=31 // pred_check
          %p651 = pneg %p81
        $region34: #{vit_self_attention.3} parent=31 // pred_check_branch
          %653 = sbr.rel (%p651) target = $region36
        $region35: #{vit_self_attention.3} parent=31 // pred_region
          %s654 = sand.u32 %s66, 1
          %s655 = scalar_lea.sflag [#allocation4], %s654
          %s656 = sand.u32 %s66, 1
          %s657 = smul.addr %s656, 16
          %s658 = scalar_lea.vmem [#allocation3], %s657
          %659 = dma.done %s655, 256
        $region36: #{vit_self_attention.3} parent=31 // pred_fallthru
          _
      $region32: #{vit_self_attention.3} parent=5 // pred_fallthru
        _
    $region6: #{vit_self_attention.3} parent=1 // loop_footer
      %s14 = sadd.s32 1, %s10
    $region7: #{vit_self_attention.3} parent=1 // loop_footer_branch
      %9 = sbr.rel target = $region3
    $region8: #{vit_self_attention.3} parent=1 // loop_exit
      _
    %660 = vsyncpa [#allocation4], 1
    %s661 = scalar_lea.sflag [#allocation4], 1
    %662 = vsyncpa %s661, 1

// kernel: vit_self_attention.2
$region0: #{vit_self_attention.2}
  #allocation0 [shape = 'u32[]', space=smem, size = 0x4, offset = 0x4, fixed_abs, tag = 'smem constant byte address 0x4 - core index']
  #allocation1 [shape = 'u32[144,128]{1,0:T(1,128)}', space=vmem, size = 0x12000, scoped, tag = 'internal scratch']
  %s0 = inlined_call_operand.hbm [shape: f32[16,1024], index: 0, kind: input, shape index: {}]
  %s1 = inlined_call_operand.hbm [shape: bf16[3072,1024], index: 1, kind: input, shape index: {}]
  %s2 = inlined_call_operand.hbm [shape: f32[1,3072], index: 2, kind: input, shape index: {}]
  %s3 = inlined_call_operand.vmem [shape: bf16[16,3072], index: 3, kind: output, shape index: {}]
  %s4 = sld [smem:[#allocation0]]
  $region34: #{vit_self_attention.2} parent=0
    _
  %s6 = ssub.s32 1, %s4
  %s7 = scalar_select 0, %s6, %s4
  $region1: #{vit_self_attention.2} parent=0
    #allocation2 [shape = 'u8[65536]{0}', space=vmem, size = 0x10000, scoped, tag = 'input window, operand 0, single buffered']
    #allocation3 [shape = 's32[1]{0}', space=sflag, size = 0x4, scoped, tag = 'scoped memory for vit_self_attention.2']
    #allocation4 [shape = 'u8[6291456]{0}', space=vmem, size = 0x600000, scoped, tag = 'input window, operand 1, single buffered']
    #allocation5 [shape = 's32[1]{0}', space=sflag, size = 0x4, scoped, tag = 'scoped memory for vit_self_attention.2']
    #allocation6 [shape = 'u8[12288]{0}', space=vmem, size = 0x3000, scoped, tag = 'input window, operand 2, single buffered']
    %8 = vsyncpa [#allocation3], 0
    %9 = vsyncpa [#allocation5], 0
    // Predicated region
    $region2: #{vit_self_attention.2} parent=1 // pred_check
      _
    $region3: #{vit_self_attention.2} parent=1 // pred_check_branch
      %11 = sbr.rel (0) target = $region5
    $region4: #{vit_self_attention.2} parent=1 // pred_region
      %s13 = ssub.s32 2048, 2048
      %14 = vsyncadd [#allocation3], %s13
      %s15 = sshll.u32 [#allocation2], 4
      %s16 = int_to_ptr.vmem [resolvable:$true] %s15
      %21 = dma.hbm_to_vmem [thread:$0]  %s0, 2048, %s16, [#allocation3], 1024, 1024, 64
    $region5: #{vit_self_attention.2} parent=1 // pred_fallthru
      _
    // Predicated region
    $region6: #{vit_self_attention.2} parent=1 // pred_check
      _
    $region7: #{vit_self_attention.2} parent=1 // pred_check_branch
      %23 = sbr.rel (0) target = $region9
    $region8: #{vit_self_attention.2} parent=1 // pred_region
      %s25 = ssub.s32 196608, 196608
      %26 = vsyncadd [#allocation5], %s25
      %s27 = sshll.u32 [#allocation4], 4
      %s28 = int_to_ptr.vmem [resolvable:$true] %s27
      %33 = dma.hbm_to_vmem [thread:$0]  %s1, 196608, %s28, [#allocation5], 512, 512, 32
    $region9: #{vit_self_attention.2} parent=1 // pred_fallthru
      _
    // Predicated region
    $region10: #{vit_self_attention.2} parent=1 // pred_check
      _
    $region11: #{vit_self_attention.2} parent=1 // pred_check_branch
      %35 = sbr.rel (0) target = $region13
    $region12: #{vit_self_attention.2} parent=1 // pred_region
      %s37 = ssub.s32 384, 384
      %38 = vsyncadd [#allocation5], %s37
      %s40 = sshll.u32 [#allocation6], 4
      %s41 = int_to_ptr.vmem [resolvable:$true] %s40
      %43 = dma.hbm_to_vmem [thread:$0]  %s2, 384, %s41, [#allocation5]
    $region13: #{vit_self_attention.2} parent=1 // pred_fallthru
      _
    // Predicated region
    $region14: #{vit_self_attention.2} parent=1 // pred_check
      _
    $region15: #{vit_self_attention.2} parent=1 // pred_check_branch
      %45 = sbr.rel (0) target = $region17
    $region16: #{vit_self_attention.2} parent=1 // pred_region
      %46 = dma.done [#allocation3], 2048
    $region17: #{vit_self_attention.2} parent=1 // pred_fallthru
      _
    // Predicated region
    $region18: #{vit_self_attention.2} parent=1 // pred_check
      _
    $region19: #{vit_self_attention.2} parent=1 // pred_check_branch
      %48 = sbr.rel (0) target = $region21
    $region20: #{vit_self_attention.2} parent=1 // pred_region
      %49 = dma.done [#allocation5], 196608
    $region21: #{vit_self_attention.2} parent=1 // pred_fallthru
      _
    // Predicated region
    $region22: #{vit_self_attention.2} parent=1 // pred_check
      _
    $region23: #{vit_self_attention.2} parent=1 // pred_check_branch
      %51 = sbr.rel (0) target = $region25
    $region24: #{vit_self_attention.2} parent=1 // pred_region
      %52 = dma.done [#allocation5], 384
    $region25: #{vit_self_attention.2} parent=1 // pred_fallthru
      _
    %v53 = vld [vmem:[#allocation2] sm:$0xff]
    %v54 = vld [vmem:[#allocation2 + $0x8] sm:$0xff]
    %v55 = vld [vmem:[#allocation2 + $0x10] sm:$0xff]
    %v56 = vld [vmem:[#allocation2 + $0x18] sm:$0xff]
    %v57 = vld [vmem:[#allocation2 + $0x20] sm:$0xff]
    %v58 = vld [vmem:[#allocation2 + $0x28] sm:$0xff]
    %v59 = vld [vmem:[#allocation2 + $0x30] sm:$0xff]
    %v60 = vld [vmem:[#allocation2 + $0x38] sm:$0xff]
    %v61 = vld [vmem:[#allocation2 + $0x40] sm:$0xff]
    %v62 = vld [vmem:[#allocation2 + $0x48] sm:$0xff]
    %v63 = vld [vmem:[#allocation2 + $0x50] sm:$0xff]
    %v64 = vld [vmem:[#allocation2 + $0x58] sm:$0xff]
    %v65 = vld [vmem:[#allocation2 + $0x60] sm:$0xff]
    %v66 = vld [vmem:[#allocation2 + $0x68] sm:$0xff]
    %v67 = vld [vmem:[#allocation2 + $0x70] sm:$0xff]
    %v68 = vld [vmem:[#allocation2 + $0x78] sm:$0xff]
    %v69 = vpack.c.bf16 %v61, %v53
    %v70 = vpack.c.bf16 %v62, %v54
    %v71 = vpack.c.bf16 %v63, %v55
    %v72 = vpack.c.bf16 %v64, %v56
    %v73 = vpack.c.bf16 %v65, %v57
    %v74 = vpack.c.bf16 %v66, %v58
    %v75 = vpack.c.bf16 %v67, %v59
    %v76 = vpack.c.bf16 %v68, %v60
    %v77 = vld [vmem:[#allocation4] sm:$0xff]
    %v78 = vld [vmem:[#allocation4 + $0x8] sm:$0xff]
    %v79 = vld [vmem:[#allocation4 + $0x10] sm:$0xff]
    %v80 = vld [vmem:[#allocation4 + $0x18] sm:$0xff]
    %v81 = vld [vmem:[#allocation4 + $0x20] sm:$0xff]
    %v82 = vld [vmem:[#allocation4 + $0x28] sm:$0xff]
    %v83 = vld [vmem:[#allocation4 + $0x30] sm:$0xff]
    %v84 = vld [vmem:[#allocation4 + $0x38] sm:$0xff]
    %v85 = vld [vmem:[#allocation4 + $0x40] sm:$0xff]
    %v86 = vld [vmem:[#allocation4 + $0x48] sm:$0xff]
    %v87 = vld [vmem:[#allocation4 + $0x50] sm:$0xff]
    %v88 = vld [vmem:[#allocation4 + $0x58] sm:$0xff]
    %v89 = vld [vmem:[#allocation4 + $0x60] sm:$0xff]
    %v90 = vld [vmem:[#allocation4 + $0x68] sm:$0xff]
    %v91 = vld [vmem:[#allocation4 + $0x70] sm:$0xff]
    %v92 = vld [vmem:[#allocation4 + $0x78] sm:$0xff]
    %v93 = vld [vmem:[#allocation4 + $0x80] sm:$0xff]
    %v94 = vld [vmem:[#allocation4 + $0x88] sm:$0xff]
    %v95 = vld [vmem:[#allocation4 + $0x90] sm:$0xff]
    %v96 = vld [vmem:[#allocation4 + $0x98] sm:$0xff]
    %v97 = vld [vmem:[#allocation4 + $0xa0] sm:$0xff]
    %v98 = vld [vmem:[#allocation4 + $0xa8] sm:$0xff]
    %v99 = vld [vmem:[#allocation4 + $0xb0] sm:$0xff]
    %v100 = vld [vmem:[#allocation4 + $0xb8] sm:$0xff]
    %v101 = vld [vmem:[#allocation4 + $0xc0] sm:$0xff]
    %v102 = vld [vmem:[#allocation4 + $0xc8] sm:$0xff]
    %v103 = vld [vmem:[#allocation4 + $0xd0] sm:$0xff]
    %v104 = vld [vmem:[#allocation4 + $0xd8] sm:$0xff]
    %v105 = vld [vmem:[#allocation4 + $0xe0] sm:$0xff]
    %v106 = vld [vmem:[#allocation4 + $0xe8] sm:$0xff]
    %v107 = vld [vmem:[#allocation4 + $0xf0] sm:$0xff]
    %v108 = vld [vmem:[#allocation4 + $0xf8] sm:$0xff]
    %v109 = vld [vmem:[#allocation4 + $0x100] sm:$0xff]
    %v110 = vld [vmem:[#allocation4 + $0x108] sm:$0xff]
    %v111 = vld [vmem:[#allocation4 + $0x110] sm:$0xff]
    %v112 = vld [vmem:[#allocation4 + $0x118] sm:$0xff]
    %v113 = vld [vmem:[#allocation4 + $0x120] sm:$0xff]
    %v114 = vld [vmem:[#allocation4 + $0x128] sm:$0xff]
    %v115 = vld [vmem:[#allocation4 + $0x130] sm:$0xff]
    %v116 = vld [vmem:[#allocation4 + $0x138] sm:$0xff]
    %v117 = vld [vmem:[#allocation4 + $0x140] sm:$0xff]
    %v118 = vld [vmem:[#allocation4 + $0x148] sm:$0xff]
    %v119 = vld [vmem:[#allocation4 + $0x150] sm:$0xff]
    %v120 = vld [vmem:[#allocation4 + $0x158] sm:$0xff]
    %v121 = vld [vmem:[#allocation4 + $0x160] sm:$0xff]
    %v122 = vld [vmem:[#allocation4 + $0x168] sm:$0xff]
    %v123 = vld [vmem:[#allocation4 + $0x170] sm:$0xff]
    %v124 = vld [vmem:[#allocation4 + $0x178] sm:$0xff]
    %v125 = vld [vmem:[#allocation4 + $0x180] sm:$0xff]
    %v126 = vld [vmem:[#allocation4 + $0x188] sm:$0xff]
    %v127 = vld [vmem:[#allocation4 + $0x190] sm:$0xff]
    %v128 = vld [vmem:[#allocation4 + $0x198] sm:$0xff]
    %v129 = vld [vmem:[#allocation4 + $0x1a0] sm:$0xff]
    %v130 = vld [vmem:[#allocation4 + $0x1a8] sm:$0xff]
    %v131 = vld [vmem:[#allocation4 + $0x1b0] sm:$0xff]
    %v132 = vld [vmem:[#allocation4 + $0x1b8] sm:$0xff]
    %v133 = vld [vmem:[#allocation4 + $0x1c0] sm:$0xff]
    %v134 = vld [vmem:[#allocation4 + $0x1c8] sm:$0xff]
    %v135 = vld [vmem:[#allocation4 + $0x1d0] sm:$0xff]
    %v136 = vld [vmem:[#allocation4 + $0x1d8] sm:$0xff]
    %v137 = vld [vmem:[#allocation4 + $0x1e0] sm:$0xff]
    %v138 = vld [vmem:[#allocation4 + $0x1e8] sm:$0xff]
    %v139 = vld [vmem:[#allocation4 + $0x1f0] sm:$0xff]
    %v140 = vld [vmem:[#allocation4 + $0x1f8] sm:$0xff]
    %v141 = vld [vmem:[#allocation4 + $0x200] sm:$0xff]
    %v142 = vld [vmem:[#allocation4 + $0x208] sm:$0xff]
    %v143 = vld [vmem:[#allocation4 + $0x210] sm:$0xff]
    %v144 = vld [vmem:[#allocation4 + $0x218] sm:$0xff]
    %v145 = vld [vmem:[#allocation4 + $0x220] sm:$0xff]
    %v146 = vld [vmem:[#allocation4 + $0x228] sm:$0xff]
    %v147 = vld [vmem:[#allocation4 + $0x230] sm:$0xff]
    %v148 = vld [vmem:[#allocation4 + $0x238] sm:$0xff]
    %v149 = vld [vmem:[#allocation4 + $0x240] sm:$0xff]
    %v150 = vld [vmem:[#allocation4 + $0x248] sm:$0xff]
    %v151 = vld [vmem:[#allocation4 + $0x250] sm:$0xff]
    %v152 = vld [vmem:[#allocation4 + $0x258] sm:$0xff]
    %v153 = vld [vmem:[#allocation4 + $0x260] sm:$0xff]
    %v154 = vld [vmem:[#allocation4 + $0x268] sm:$0xff]
    %v155 = vld [vmem:[#allocation4 + $0x270] sm:$0xff]
    %v156 = vld [vmem:[#allocation4 + $0x278] sm:$0xff]
    %v157 = vld [vmem:[#allocation4 + $0x280] sm:$0xff]
    %v158 = vld [vmem:[#allocation4 + $0x288] sm:$0xff]
    %v159 = vld [vmem:[#allocation4 + $0x290] sm:$0xff]
    %v160 = vld [vmem:[#allocation4 + $0x298] sm:$0xff]
    %v161 = vld [vmem:[#allocation4 + $0x2a0] sm:$0xff]
    %v162 = vld [vmem:[#allocation4 + $0x2a8] sm:$0xff]
    %v163 = vld [vmem:[#allocation4 + $0x2b0] sm:$0xff]
    %v164 = vld [vmem:[#allocation4 + $0x2b8] sm:$0xff]
    %v165 = vld [vmem:[#allocation4 + $0x2c0] sm:$0xff]
    %v166 = vld [vmem:[#allocation4 + $0x2c8] sm:$0xff]
    %v167 = vld [vmem:[#allocation4 + $0x2d0] sm:$0xff]
    %v168 = vld [vmem:[#allocation4 + $0x2d8] sm:$0xff]
    %v169 = vld [vmem:[#allocation4 + $0x2e0] sm:$0xff]
    %v170 = vld [vmem:[#allocation4 + $0x2e8] sm:$0xff]
    %v171 = vld [vmem:[#allocation4 + $0x2f0] sm:$0xff]
    %v172 = vld [vmem:[#allocation4 + $0x2f8] sm:$0xff]
    %v173 = vld [vmem:[#allocation4 + $0x300] sm:$0xff]
    %v174 = vld [vmem:[#allocation4 + $0x308] sm:$0xff]
    %v175 = vld [vmem:[#allocation4 + $0x310] sm:$0xff]
    %v176 = vld [vmem:[#allocation4 + $0x318] sm:$0xff]
    %v177 = vld [vmem:[#allocation4 + $0x320] sm:$0xff]
    %v178 = vld [vmem:[#allocation4 + $0x328] sm:$0xff]
    %v179 = vld [vmem:[#allocation4 + $0x330] sm:$0xff]
    %v180 = vld [vmem:[#allocation4 + $0x338] sm:$0xff]
    %v181 = vld [vmem:[#allocation4 + $0x340] sm:$0xff]
    %v182 = vld [vmem:[#allocation4 + $0x348] sm:$0xff]
    %v183 = vld [vmem:[#allocation4 + $0x350] sm:$0xff]
    %v184 = vld [vmem:[#allocation4 + $0x358] sm:$0xff]
    %v185 = vld [vmem:[#allocation4 + $0x360] sm:$0xff]
    %v186 = vld [vmem:[#allocation4 + $0x368] sm:$0xff]
    %v187 = vld [vmem:[#allocation4 + $0x370] sm:$0xff]
    %v188 = vld [vmem:[#allocation4 + $0x378] sm:$0xff]
    %v189 = vld [vmem:[#allocation4 + $0x380] sm:$0xff]
    %v190 = vld [vmem:[#allocation4 + $0x388] sm:$0xff]
    %v191 = vld [vmem:[#allocation4 + $0x390] sm:$0xff]
    %v192 = vld [vmem:[#allocation4 + $0x398] sm:$0xff]
    %v193 = vld [vmem:[#allocation4 + $0x3a0] sm:$0xff]
    %v194 = vld [vmem:[#allocation4 + $0x3a8] sm:$0xff]
    %v195 = vld [vmem:[#allocation4 + $0x3b0] sm:$0xff]
    %v196 = vld [vmem:[#allocation4 + $0x3b8] sm:$0xff]
    %v197 = vld [vmem:[#allocation4 + $0x3c0] sm:$0xff]
    %v198 = vld [vmem:[#allocation4 + $0x3c8] sm:$0xff]
    %v199 = vld [vmem:[#allocation4 + $0x3d0] sm:$0xff]
    %v200 = vld [vmem:[#allocation4 + $0x3d8] sm:$0xff]
    %v201 = vld [vmem:[#allocation4 + $0x3e0] sm:$0xff]
    %v202 = vld [vmem:[#allocation4 + $0x3e8] sm:$0xff]
    %v203 = vld [vmem:[#allocation4 + $0x3f0] sm:$0xff]
    %v204 = vld [vmem:[#allocation4 + $0x3f8] sm:$0xff]
    %v205 = vld [vmem:[#allocation4 + $0x400] sm:$0xff]
    %v206 = vld [vmem:[#allocation4 + $0x408] sm:$0xff]
    %v207 = vld [vmem:[#allocation4 + $0x410] sm:$0xff]
    %v208 = vld [vmem:[#allocation4 + $0x418] sm:$0xff]
    %v209 = vld [vmem:[#allocation4 + $0x420] sm:$0xff]
    %v210 = vld [vmem:[#allocation4 + $0x428] sm:$0xff]
    %v211 = vld [vmem:[#allocation4 + $0x430] sm:$0xff]
    %v212 = vld [vmem:[#allocation4 + $0x438] sm:$0xff]
    %v213 = vld [vmem:[#allocation4 + $0x440] sm:$0xff]
    %v214 = vld [vmem:[#allocation4 + $0x448] sm:$0xff]
    %v215 = vld [vmem:[#allocation4 + $0x450] sm:$0xff]
    %v216 = vld [vmem:[#allocation4 + $0x458] sm:$0xff]
    %v217 = vld [vmem:[#allocation4 + $0x460] sm:$0xff]
    %v218 = vld [vmem:[#allocation4 + $0x468] sm:$0xff]
    %v219 = vld [vmem:[#allocation4 + $0x470] sm:$0xff]
    %v220 = vld [vmem:[#allocation4 + $0x478] sm:$0xff]
    %v221 = vld [vmem:[#allocation4 + $0x480] sm:$0xff]
    %v222 = vld [vmem:[#allocation4 + $0x488] sm:$0xff]
    %v223 = vld [vmem:[#allocation4 + $0x490] sm:$0xff]
    %v224 = vld [vmem:[#allocation4 + $0x498] sm:$0xff]
    %v225 = vld [vmem:[#allocation4 + $0x4a0] sm:$0xff]
    %v226 = vld [vmem:[#allocation4 + $0x4a8] sm:$0xff]
    %v227 = vld [vmem:[#allocation4 + $0x4b0] sm:$0xff]
    %v228 = vld [vmem:[#allocation4 + $0x4b8] sm:$0xff]
    %v229 = vld [vmem:[#allocation4 + $0x4c0] sm:$0xff]
    %v230 = vld [vmem:[#allocation4 + $0x4c8] sm:$0xff]
    %v231 = vld [vmem:[#allocation4 + $0x4d0] sm:$0xff]
    %v232 = vld [vmem:[#allocation4 + $0x4d8] sm:$0xff]
    %v233 = vld [vmem:[#allocation4 + $0x4e0] sm:$0xff]
    %v234 = vld [vmem:[#allocation4 + $0x4e8] sm:$0xff]
    %v235 = vld [vmem:[#allocation4 + $0x4f0] sm:$0xff]
    %v236 = vld [vmem:[#allocation4 + $0x4f8] sm:$0xff]
    %v237 = vld [vmem:[#allocation4 + $0x500] sm:$0xff]
    %v238 = vld [vmem:[#allocation4 + $0x508] sm:$0xff]
    %v239 = vld [vmem:[#allocation4 + $0x510] sm:$0xff]
    %v240 = vld [vmem:[#allocation4 + $0x518] sm:$0xff]
    %v241 = vld [vmem:[#allocation4 + $0x520] sm:$0xff]
    %v242 = vld [vmem:[#allocation4 + $0x528] sm:$0xff]
    %v243 = vld [vmem:[#allocation4 + $0x530] sm:$0xff]
    %v244 = vld [vmem:[#allocation4 + $0x538] sm:$0xff]
    %v245 = vld [vmem:[#allocation4 + $0x540] sm:$0xff]
    %v246 = vld [vmem:[#allocation4 + $0x548] sm:$0xff]
    %v247 = vld [vmem:[#allocation4 + $0x550] sm:$0xff]
    %v248 = vld [vmem:[#allocation4 + $0x558] sm:$0xff]
    %v249 = vld [vmem:[#allocation4 + $0x560] sm:$0xff]
    %v250 = vld [vmem:[#allocation4 + $0x568] sm:$0xff]
    %v251 = vld [vmem:[#allocation4 + $0x570] sm:$0xff]
    %v252 = vld [vmem:[#allocation4 + $0x578] sm:$0xff]
    %v253 = vld [vmem:[#allocation4 + $0x580] sm:$0xff]
    %v254 = vld [vmem:[#allocation4 + $0x588] sm:$0xff]
    %v255 = vld [vmem:[#allocation4 + $0x590] sm:$0xff]
    %v256 = vld [vmem:[#allocation4 + $0x598] sm:$0xff]
    %v257 = vld [vmem:[#allocation4 + $0x5a0] sm:$0xff]
    %v258 = vld [vmem:[#allocation4 + $0x5a8] sm:$0xff]
    %v259 = vld [vmem:[#allocation4 + $0x5b0] sm:$0xff]
    %v260 = vld [vmem:[#allocation4 + $0x5b8] sm:$0xff]
    %v261 = vld [vmem:[#allocation4 + $0x5c0] sm:$0xff]
    %v262 = vld [vmem:[#allocation4 + $0x5c8] sm:$0xff]
    %v263 = vld [vmem:[#allocation4 + $0x5d0] sm:$0xff]
    %v264 = vld [vmem:[#allocation4 + $0x5d8] sm:$0xff]
    %v265 = vld [vmem:[#allocation4 + $0x5e0] sm:$0xff]
    %v266 = vld [vmem:[#allocation4 + $0x5e8] sm:$0xff]
    %v267 = vld [vmem:[#allocation4 + $0x5f0] sm:$0xff]
    %v268 = vld [vmem:[#allocation4 + $0x5f8] sm:$0xff]
    %v269 = vld [vmem:[#allocation4 + $0x600] sm:$0xff]
    %v270 = vld [vmem:[#allocation4 + $0x608] sm:$0xff]
    %v271 = vld [vmem:[#allocation4 + $0x610] sm:$0xff]
    %v272 = vld [vmem:[#allocation4 + $0x618] sm:$0xff]
    %v273 = vld [vmem:[#allocation4 + $0x620] sm:$0xff]
    %v274 = vld [vmem:[#allocation4 + $0x628] sm:$0xff]
    %v275 = vld [vmem:[#allocation4 + $0x630] sm:$0xff]
    %v276 = vld [vmem:[#allocation4 + $0x638] sm:$0xff]
    %v277 = vld [vmem:[#allocation4 + $0x640] sm:$0xff]
    %v278 = vld [vmem:[#allocation4 + $0x648] sm:$0xff]
    %v279 = vld [vmem:[#allocation4 + $0x650] sm:$0xff]
    %v280 = vld [vmem:[#allocation4 + $0x658] sm:$0xff]
    %v281 = vld [vmem:[#allocation4 + $0x660] sm:$0xff]
    %v282 = vld [vmem:[#allocation4 + $0x668] sm:$0xff]
    %v283 = vld [vmem:[#allocation4 + $0x670] sm:$0xff]
    %v284 = vld [vmem:[#allocation4 + $0x678] sm:$0xff]
    %v285 = vld [vmem:[#allocation4 + $0x680] sm:$0xff]
    %v286 = vld [vmem:[#allocation4 + $0x688] sm:$0xff]
    %v287 = vld [vmem:[#allocation4 + $0x690] sm:$0xff]
    %v288 = vld [vmem:[#allocation4 + $0x698] sm:$0xff]
    %v289 = vld [vmem:[#allocation4 + $0x6a0] sm:$0xff]
    %v290 = vld [vmem:[#allocation4 + $0x6a8] sm:$0xff]
    %v291 = vld [vmem:[#allocation4 + $0x6b0] sm:$0xff]
    %v292 = vld [vmem:[#allocation4 + $0x6b8] sm:$0xff]
    %v293 = vld [vmem:[#allocation4 + $0x6c0] sm:$0xff]
    %v294 = vld [vmem:[#allocation4 + $0x6c8] sm:$0xff]
    %v295 = vld [vmem:[#allocation4 + $0x6d0] sm:$0xff]
    %v296 = vld [vmem:[#allocation4 + $0x6d8] sm:$0xff]
    %v297 = vld [vmem:[#allocation4 + $0x6e0] sm:$0xff]
    %v298 = vld [vmem:[#allocation4 + $0x6e8] sm:$0xff]
    %v299 = vld [vmem:[#allocation4 + $0x6f0] sm:$0xff]
    %v300 = vld [vmem:[#allocation4 + $0x6f8] sm:$0xff]
    %v301 = vld [vmem:[#allocation4 + $0x700] sm:$0xff]
    %v302 = vld [vmem:[#allocation4 + $0x708] sm:$0xff]
    %v303 = vld [vmem:[#allocation4 + $0x710] sm:$0xff]
    %v304 = vld [vmem:[#allocation4 + $0x718] sm:$0xff]
    %v305 = vld [vmem:[#allocation4 + $0x720] sm:$0xff]
    %v306 = vld [vmem:[#allocation4 + $0x728] sm:$0xff]
    %v307 = vld [vmem:[#allocation4 + $0x730] sm:$0xff]
    %v308 = vld [vmem:[#allocation4 + $0x738] sm:$0xff]
    %v309 = vld [vmem:[#allocation4 + $0x740] sm:$0xff]
    %v310 = vld [vmem:[#allocation4 + $0x748] sm:$0xff]
    %v311 = vld [vmem:[#allocation4 + $0x750] sm:$0xff]
    %v312 = vld [vmem:[#allocation4 + $0x758] sm:$0xff]
    %v313 = vld [vmem:[#allocation4 + $0x760] sm:$0xff]
    %v314 = vld [vmem:[#allocation4 + $0x768] sm:$0xff]
    %v315 = vld [vmem:[#allocation4 + $0x770] sm:$0xff]
    %v316 = vld [vmem:[#allocation4 + $0x778] sm:$0xff]
    %v317 = vld [vmem:[#allocation4 + $0x780] sm:$0xff]
    %v318 = vld [vmem:[#allocation4 + $0x788] sm:$0xff]
    %v319 = vld [vmem:[#allocation4 + $0x790] sm:$0xff]
    %v320 = vld [vmem:[#allocation4 + $0x798] sm:$0xff]
    %v321 = vld [vmem:[#allocation4 + $0x7a0] sm:$0xff]
    %v322 = vld [vmem:[#allocation4 + $0x7a8] sm:$0xff]
    %v323 = vld [vmem:[#allocation4 + $0x7b0] sm:$0xff]
    %v324 = vld [vmem:[#allocation4 + $0x7b8] sm:$0xff]
    %v325 = vld [vmem:[#allocation4 + $0x7c0] sm:$0xff]
    %v326 = vld [vmem:[#allocation4 + $0x7c8] sm:$0xff]
    %v327 = vld [vmem:[#allocation4 + $0x7d0] sm:$0xff]
    %v328 = vld [vmem:[#allocation4 + $0x7d8] sm:$0xff]
    %v329 = vld [vmem:[#allocation4 + $0x7e0] sm:$0xff]
    %v330 = vld [vmem:[#allocation4 + $0x7e8] sm:$0xff]
    %v331 = vld [vmem:[#allocation4 + $0x7f0] sm:$0xff]
    %v332 = vld [vmem:[#allocation4 + $0x7f8] sm:$0xff]
    %v333 = vld [vmem:[#allocation4 + $0x800] sm:$0xff]
    %v334 = vld [vmem:[#allocation4 + $0x808] sm:$0xff]
    %v335 = vld [vmem:[#allocation4 + $0x810] sm:$0xff]
    %v336 = vld [vmem:[#allocation4 + $0x818] sm:$0xff]
    %v337 = vld [vmem:[#allocation4 + $0x820] sm:$0xff]
    %v338 = vld [vmem:[#allocation4 + $0x828] sm:$0xff]
    %v339 = vld [vmem:[#allocation4 + $0x830] sm:$0xff]
    %v340 = vld [vmem:[#allocation4 + $0x838] sm:$0xff]
    %v341 = vld [vmem:[#allocation4 + $0x840] sm:$0xff]
    %v342 = vld [vmem:[#allocation4 + $0x848] sm:$0xff]
    %v343 = vld [vmem:[#allocation4 + $0x850] sm:$0xff]
    %v344 = vld [vmem:[#allocation4 + $0x858] sm:$0xff]
    %v345 = vld [vmem:[#allocation4 + $0x860] sm:$0xff]
    %v346 = vld [vmem:[#allocation4 + $0x868] sm:$0xff]
    %v347 = vld [vmem:[#allocation4 + $0x870] sm:$0xff]
    %v348 = vld [vmem:[#allocation4 + $0x878] sm:$0xff]
    %v349 = vld [vmem:[#allocation4 + $0x880] sm:$0xff]
    %v350 = vld [vmem:[#allocation4 + $0x888] sm:$0xff]
    %v351 = vld [vmem:[#allocation4 + $0x890] sm:$0xff]
    %v352 = vld [vmem:[#allocation4 + $0x898] sm:$0xff]
    %v353 = vld [vmem:[#allocation4 + $0x8a0] sm:$0xff]
    %v354 = vld [vmem:[#allocation4 + $0x8a8] sm:$0xff]
    %v355 = vld [vmem:[#allocation4 + $0x8b0] sm:$0xff]
    %v356 = vld [vmem:[#allocation4 + $0x8b8] sm:$0xff]
    %v357 = vld [vmem:[#allocation4 + $0x8c0] sm:$0xff]
    %v358 = vld [vmem:[#allocation4 + $0x8c8] sm:$0xff]
    %v359 = vld [vmem:[#allocation4 + $0x8d0] sm:$0xff]
    %v360 = vld [vmem:[#allocation4 + $0x8d8] sm:$0xff]
    %v361 = vld [vmem:[#allocation4 + $0x8e0] sm:$0xff]
    %v362 = vld [vmem:[#allocation4 + $0x8e8] sm:$0xff]
    %v363 = vld [vmem:[#allocation4 + $0x8f0] sm:$0xff]
    %v364 = vld [vmem:[#allocation4 + $0x8f8] sm:$0xff]
    %v365 = vld [vmem:[#allocation4 + $0x900] sm:$0xff]
    %v366 = vld [vmem:[#allocation4 + $0x908] sm:$0xff]
    %v367 = vld [vmem:[#allocation4 + $0x910] sm:$0xff]
    %v368 = vld [vmem:[#allocation4 + $0x918] sm:$0xff]
    %v369 = vld [vmem:[#allocation4 + $0x920] sm:$0xff]
    %v370 = vld [vmem:[#allocation4 + $0x928] sm:$0xff]
    %v371 = vld [vmem:[#allocation4 + $0x930] sm:$0xff]
    %v372 = vld [vmem:[#allocation4 + $0x938] sm:$0xff]
    %v373 = vld [vmem:[#allocation4 + $0x940] sm:$0xff]
    %v374 = vld [vmem:[#allocation4 + $0x948] sm:$0xff]
    %v375 = vld [vmem:[#allocation4 + $0x950] sm:$0xff]
    %v376 = vld [vmem:[#allocation4 + $0x958] sm:$0xff]
    %v377 = vld [vmem:[#allocation4 + $0x960] sm:$0xff]
    %v378 = vld [vmem:[#allocation4 + $0x968] sm:$0xff]
    %v379 = vld [vmem:[#allocation4 + $0x970] sm:$0xff]
    %v380 = vld [vmem:[#allocation4 + $0x978] sm:$0xff]
    %v381 = vld [vmem:[#allocation4 + $0x980] sm:$0xff]
    %v382 = vld [vmem:[#allocation4 + $0x988] sm:$0xff]
    %v383 = vld [vmem:[#allocation4 + $0x990] sm:$0xff]
    %v384 = vld [vmem:[#allocation4 + $0x998] sm:$0xff]
    %v385 = vld [vmem:[#allocation4 + $0x9a0] sm:$0xff]
    %v386 = vld [vmem:[#allocation4 + $0x9a8] sm:$0xff]
    %v387 = vld [vmem:[#allocation4 + $0x9b0] sm:$0xff]
    %v388 = vld [vmem:[#allocation4 + $0x9b8] sm:$0xff]
    %v389 = vld [vmem:[#allocation4 + $0x9c0] sm:$0xff]
    %v390 = vld [vmem:[#allocation4 + $0x9c8] sm:$0xff]
    %v391 = vld [vmem:[#allocation4 + $0x9d0] sm:$0xff]
    %v392 = vld [vmem:[#allocation4 + $0x9d8] sm:$0xff]
    %v393 = vld [vmem:[#allocation4 + $0x9e0] sm:$0xff]
    %v394 = vld [vmem:[#allocation4 + $0x9e8] sm:$0xff]
    %v395 = vld [vmem:[#allocation4 + $0x9f0] sm:$0xff]
    %v396 = vld [vmem:[#allocation4 + $0x9f8] sm:$0xff]
    %v397 = vld [vmem:[#allocation4 + $0xa00] sm:$0xff]
    %v398 = vld [vmem:[#allocation4 + $0xa08] sm:$0xff]
    %v399 = vld [vmem:[#allocation4 + $0xa10] sm:$0xff]
    %v400 = vld [vmem:[#allocation4 + $0xa18] sm:$0xff]
    %v401 = vld [vmem:[#allocation4 + $0xa20] sm:$0xff]
    %v402 = vld [vmem:[#allocation4 + $0xa28] sm:$0xff]
    %v403 = vld [vmem:[#allocation4 + $0xa30] sm:$0xff]
    %v404 = vld [vmem:[#allocation4 + $0xa38] sm:$0xff]
    %v405 = vld [vmem:[#allocation4 + $0xa40] sm:$0xff]
    %v406 = vld [vmem:[#allocation4 + $0xa48] sm:$0xff]
    %v407 = vld [vmem:[#allocation4 + $0xa50] sm:$0xff]
    %v408 = vld [vmem:[#allocation4 + $0xa58] sm:$0xff]
    %v409 = vld [vmem:[#allocation4 + $0xa60] sm:$0xff]
    %v410 = vld [vmem:[#allocation4 + $0xa68] sm:$0xff]
    %v411 = vld [vmem:[#allocation4 + $0xa70] sm:$0xff]
    %v412 = vld [vmem:[#allocation4 + $0xa78] sm:$0xff]
    %v413 = vld [vmem:[#allocation4 + $0xa80] sm:$0xff]
    %v414 = vld [vmem:[#allocation4 + $0xa88] sm:$0xff]
    %v415 = vld [vmem:[#allocation4 + $0xa90] sm:$0xff]
    %v416 = vld [vmem:[#allocation4 + $0xa98] sm:$0xff]
    %v417 = vld [vmem:[#allocation4 + $0xaa0] sm:$0xff]
    %v418 = vld [vmem:[#allocation4 + $0xaa8] sm:$0xff]
    %v419 = vld [vmem:[#allocation4 + $0xab0] sm:$0xff]
    %v420 = vld [vmem:[#allocation4 + $0xab8] sm:$0xff]
    %v421 = vld [vmem:[#allocation4 + $0xac0] sm:$0xff]
    %v422 = vld [vmem:[#allocation4 + $0xac8] sm:$0xff]
    %v423 = vld [vmem:[#allocation4 + $0xad0] sm:$0xff]
    %v424 = vld [vmem:[#allocation4 + $0xad8] sm:$0xff]
    %v425 = vld [vmem:[#allocation4 + $0xae0] sm:$0xff]
    %v426 = vld [vmem:[#allocation4 + $0xae8] sm:$0xff]
    %v427 = vld [vmem:[#allocation4 + $0xaf0] sm:$0xff]
    %v428 = vld [vmem:[#allocation4 + $0xaf8] sm:$0xff]
    %v429 = vld [vmem:[#allocation4 + $0xb00] sm:$0xff]
    %v430 = vld [vmem:[#allocation4 + $0xb08] sm:$0xff]
    %v431 = vld [vmem:[#allocation4 + $0xb10] sm:$0xff]
    %v432 = vld [vmem:[#allocation4 + $0xb18] sm:$0xff]
    %v433 = vld [vmem:[#allocation4 + $0xb20] sm:$0xff]
    %v434 = vld [vmem:[#allocation4 + $0xb28] sm:$0xff]
    %v435 = vld [vmem:[#allocation4 + $0xb30] sm:$0xff]
    %v436 = vld [vmem:[#allocation4 + $0xb38] sm:$0xff]
    %v437 = vld [vmem:[#allocation4 + $0xb40] sm:$0xff]
    %v438 = vld [vmem:[#allocation4 + $0xb48] sm:$0xff]
    %v439 = vld [vmem:[#allocation4 + $0xb50] sm:$0xff]
    %v440 = vld [vmem:[#allocation4 + $0xb58] sm:$0xff]
    %v441 = vld [vmem:[#allocation4 + $0xb60] sm:$0xff]
    %v442 = vld [vmem:[#allocation4 + $0xb68] sm:$0xff]
    %v443 = vld [vmem:[#allocation4 + $0xb70] sm:$0xff]
    %v444 = vld [vmem:[#allocation4 + $0xb78] sm:$0xff]
    %v445 = vld [vmem:[#allocation4 + $0xb80] sm:$0xff]
    %v446 = vld [vmem:[#allocation4 + $0xb88] sm:$0xff]
    %v447 = vld [vmem:[#allocation4 + $0xb90] sm:$0xff]
    %v448 = vld [vmem:[#allocation4 + $0xb98] sm:$0xff]
    %v449 = vld [vmem:[#allocation4 + $0xba0] sm:$0xff]
    %v450 = vld [vmem:[#allocation4 + $0xba8] sm:$0xff]
    %v451 = vld [vmem:[#allocation4 + $0xbb0] sm:$0xff]
    %v452 = vld [vmem:[#allocation4 + $0xbb8] sm:$0xff]
    %v453 = vld [vmem:[#allocation4 + $0xbc0] sm:$0xff]
    %v454 = vld [vmem:[#allocation4 + $0xbc8] sm:$0xff]
    %v455 = vld [vmem:[#allocation4 + $0xbd0] sm:$0xff]
    %v456 = vld [vmem:[#allocation4 + $0xbd8] sm:$0xff]
    %v457 = vld [vmem:[#allocation4 + $0xbe0] sm:$0xff]
    %v458 = vld [vmem:[#allocation4 + $0xbe8] sm:$0xff]
    %v459 = vld [vmem:[#allocation4 + $0xbf0] sm:$0xff]
    %v460 = vld [vmem:[#allocation4 + $0xbf8] sm:$0xff]
    %v461 = vld [vmem:[#allocation4 + $0xc00] sm:$0xff]
    %v462 = vld [vmem:[#allocation4 + $0xc08] sm:$0xff]
    %v463 = vld [vmem:[#allocation4 + $0xc10] sm:$0xff]
    %v464 = vld [vmem:[#allocation4 + $0xc18] sm:$0xff]
    %v465 = vld [vmem:[#allocation4 + $0xc20] sm:$0xff]
    %v466 = vld [vmem:[#allocation4 + $0xc28] sm:$0xff]
    %v467 = vld [vmem:[#allocation4 + $0xc30] sm:$0xff]
    %v468 = vld [vmem:[#allocation4 + $0xc38] sm:$0xff]
    %v469 = vld [vmem:[#allocation4 + $0xc40] sm:$0xff]
    %v470 = vld [vmem:[#allocation4 + $0xc48] sm:$0xff]
    %v471 = vld [vmem:[#allocation4 + $0xc50] sm:$0xff]
    %v472 = vld [vmem:[#allocation4 + $0xc58] sm:$0xff]
    %v473 = vld [vmem:[#allocation4 + $0xc60] sm:$0xff]
    %v474 = vld [vmem:[#allocation4 + $0xc68] sm:$0xff]
    %v475 = vld [vmem:[#allocation4 + $0xc70] sm:$0xff]
    %v476 = vld [vmem:[#allocation4 + $0xc78] sm:$0xff]
    %v477 = vld [vmem:[#allocation4 + $0xc80] sm:$0xff]
    %v478 = vld [vmem:[#allocation4 + $0xc88] sm:$0xff]
    %v479 = vld [vmem:[#allocation4 + $0xc90] sm:$0xff]
    %v480 = vld [vmem:[#allocation4 + $0xc98] sm:$0xff]
    %v481 = vld [vmem:[#allocation4 + $0xca0] sm:$0xff]
    %v482 = vld [vmem:[#allocation4 + $0xca8] sm:$0xff]
    %v483 = vld [vmem:[#allocation4 + $0xcb0] sm:$0xff]
    %v484 = vld [vmem:[#allocation4 + $0xcb8] sm:$0xff]
    %v485 = vld [vmem:[#allocation4 + $0xcc0] sm:$0xff]
    %v486 = vld [vmem:[#allocation4 + $0xcc8] sm:$0xff]
    %v487 = vld [vmem:[#allocation4 + $0xcd0] sm:$0xff]
    %v488 = vld [vmem:[#allocation4 + $0xcd8] sm:$0xff]
    %v489 = vld [vmem:[#allocation4 + $0xce0] sm:$0xff]
    %v490 = vld [vmem:[#allocation4 + $0xce8] sm:$0xff]
    %v491 = vld [vmem:[#allocation4 + $0xcf0] sm:$0xff]
    %v492 = vld [vmem:[#allocation4 + $0xcf8] sm:$0xff]
    %v493 = vld [vmem:[#allocation4 + $0xd00] sm:$0xff]
    %v494 = vld [vmem:[#allocation4 + $0xd08] sm:$0xff]
    %v495 = vld [vmem:[#allocation4 + $0xd10] sm:$0xff]
    %v496 = vld [vmem:[#allocation4 + $0xd18] sm:$0xff]
    %v497 = vld [vmem:[#allocation4 + $0xd20] sm:$0xff]
    %v498 = vld [vmem:[#allocation4 + $0xd28] sm:$0xff]
    %v499 = vld [vmem:[#allocation4 + $0xd30] sm:$0xff]
    %v500 = vld [vmem:[#allocation4 + $0xd38] sm:$0xff]
    %v501 = vld [vmem:[#allocation4 + $0xd40] sm:$0xff]
    %v502 = vld [vmem:[#allocation4 + $0xd48] sm:$0xff]
    %v503 = vld [vmem:[#allocation4 + $0xd50] sm:$0xff]
    %v504 = vld [vmem:[#allocation4 + $0xd58] sm:$0xff]
    %v505 = vld [vmem:[#allocation4 + $0xd60] sm:$0xff]
    %v506 = vld [vmem:[#allocation4 + $0xd68] sm:$0xff]
    %v507 = vld [vmem:[#allocation4 + $0xd70] sm:$0xff]
    %v508 = vld [vmem:[#allocation4 + $0xd78] sm:$0xff]
    %v509 = vld [vmem:[#allocation4 + $0xd80] sm:$0xff]
    %v510 = vld [vmem:[#allocation4 + $0xd88] sm:$0xff]
    %v511 = vld [vmem:[#allocation4 + $0xd90] sm:$0xff]
    %v512 = vld [vmem:[#allocation4 + $0xd98] sm:$0xff]
    %v513 = vld [vmem:[#allocation4 + $0xda0] sm:$0xff]
    %v514 = vld [vmem:[#allocation4 + $0xda8] sm:$0xff]
    %v515 = vld [vmem:[#allocation4 + $0xdb0] sm:$0xff]
    %v516 = vld [vmem:[#allocation4 + $0xdb8] sm:$0xff]
    %v517 = vld [vmem:[#allocation4 + $0xdc0] sm:$0xff]
    %v518 = vld [vmem:[#allocation4 + $0xdc8] sm:$0xff]
    %v519 = vld [vmem:[#allocation4 + $0xdd0] sm:$0xff]
    %v520 = vld [vmem:[#allocation4 + $0xdd8] sm:$0xff]
    %v521 = vld [vmem:[#allocation4 + $0xde0] sm:$0xff]
    %v522 = vld [vmem:[#allocation4 + $0xde8] sm:$0xff]
    %v523 = vld [vmem:[#allocation4 + $0xdf0] sm:$0xff]
    %v524 = vld [vmem:[#allocation4 + $0xdf8] sm:$0xff]
    %v525 = vld [vmem:[#allocation4 + $0xe00] sm:$0xff]
    %v526 = vld [vmem:[#allocation4 + $0xe08] sm:$0xff]
    %v527 = vld [vmem:[#allocation4 + $0xe10] sm:$0xff]
    %v528 = vld [vmem:[#allocation4 + $0xe18] sm:$0xff]
    %v529 = vld [vmem:[#allocation4 + $0xe20] sm:$0xff]
    %v530 = vld [vmem:[#allocation4 + $0xe28] sm:$0xff]
    %v531 = vld [vmem:[#allocation4 + $0xe30] sm:$0xff]
    %v532 = vld [vmem:[#allocation4 + $0xe38] sm:$0xff]
    %v533 = vld [vmem:[#allocation4 + $0xe40] sm:$0xff]
    %v534 = vld [vmem:[#allocation4 + $0xe48] sm:$0xff]
    %v535 = vld [vmem:[#allocation4 + $0xe50] sm:$0xff]
    %v536 = vld [vmem:[#allocation4 + $0xe58] sm:$0xff]
    %v537 = vld [vmem:[#allocation4 + $0xe60] sm:$0xff]
    %v538 = vld [vmem:[#allocation4 + $0xe68] sm:$0xff]
    %v539 = vld [vmem:[#allocation4 + $0xe70] sm:$0xff]
    %v540 = vld [vmem:[#allocation4 + $0xe78] sm:$0xff]
    %v541 = vld [vmem:[#allocation4 + $0xe80] sm:$0xff]
    %v542 = vld [vmem:[#allocation4 + $0xe88] sm:$0xff]
    %v543 = vld [vmem:[#allocation4 + $0xe90] sm:$0xff]
    %v544 = vld [vmem:[#allocation4 + $0xe98] sm:$0xff]
    %v545 = vld [vmem:[#allocation4 + $0xea0] sm:$0xff]
    %v546 = vld [vmem:[#allocation4 + $0xea8] sm:$0xff]
    %v547 = vld [vmem:[#allocation4 + $0xeb0] sm:$0xff]
    %v548 = vld [vmem:[#allocation4 + $0xeb8] sm:$0xff]
    %v549 = vld [vmem:[#allocation4 + $0xec0] sm:$0xff]
    %v550 = vld [vmem:[#allocation4 + $0xec8] sm:$0xff]
    %v551 = vld [vmem:[#allocation4 + $0xed0] sm:$0xff]
    %v552 = vld [vmem:[#allocation4 + $0xed8] sm:$0xff]
    %v553 = vld [vmem:[#allocation4 + $0xee0] sm:$0xff]
    %v554 = vld [vmem:[#allocation4 + $0xee8] sm:$0xff]
    %v555 = vld [vmem:[#allocation4 + $0xef0] sm:$0xff]
    %v556 = vld [vmem:[#allocation4 + $0xef8] sm:$0xff]
    %v557 = vld [vmem:[#allocation4 + $0xf00] sm:$0xff]
    %v558 = vld [vmem:[#allocation4 + $0xf08] sm:$0xff]
    %v559 = vld [vmem:[#allocation4 + $0xf10] sm:$0xff]
    %v560 = vld [vmem:[#allocation4 + $0xf18] sm:$0xff]
    %v561 = vld [vmem:[#allocation4 + $0xf20] sm:$0xff]
    %v562 = vld [vmem:[#allocation4 + $0xf28] sm:$0xff]
    %v563 = vld [vmem:[#allocation4 + $0xf30] sm:$0xff]
    %v564 = vld [vmem:[#allocation4 + $0xf38] sm:$0xff]
    %v565 = vld [vmem:[#allocation4 + $0xf40] sm:$0xff]
    %v566 = vld [vmem:[#allocation4 + $0xf48] sm:$0xff]
    %v567 = vld [vmem:[#allocation4 + $0xf50] sm:$0xff]
    %v568 = vld [vmem:[#allocation4 + $0xf58] sm:$0xff]
    %v569 = vld [vmem:[#allocation4 + $0xf60] sm:$0xff]
    %v570 = vld [vmem:[#allocation4 + $0xf68] sm:$0xff]
    %v571 = vld [vmem:[#allocation4 + $0xf70] sm:$0xff]
    %v572 = vld [vmem:[#allocation4 + $0xf78] sm:$0xff]
    %v573 = vld [vmem:[#allocation4 + $0xf80] sm:$0xff]
    %v574 = vld [vmem:[#allocation4 + $0xf88] sm:$0xff]
    %v575 = vld [vmem:[#allocation4 + $0xf90] sm:$0xff]
    %v576 = vld [vmem:[#allocation4 + $0xf98] sm:$0xff]
    %v577 = vld [vmem:[#allocation4 + $0xfa0] sm:$0xff]
    %v578 = vld [vmem:[#allocation4 + $0xfa8] sm:$0xff]
    %v579 = vld [vmem:[#allocation4 + $0xfb0] sm:$0xff]
    %v580 = vld [vmem:[#allocation4 + $0xfb8] sm:$0xff]
    %v581 = vld [vmem:[#allocation4 + $0xfc0] sm:$0xff]
    %v582 = vld [vmem:[#allocation4 + $0xfc8] sm:$0xff]
    %v583 = vld [vmem:[#allocation4 + $0xfd0] sm:$0xff]
    %v584 = vld [vmem:[#allocation4 + $0xfd8] sm:$0xff]
    %v585 = vld [vmem:[#allocation4 + $0xfe0] sm:$0xff]
    %v586 = vld [vmem:[#allocation4 + $0xfe8] sm:$0xff]
    %v587 = vld [vmem:[#allocation4 + $0xff0] sm:$0xff]
    %v588 = vld [vmem:[#allocation4 + $0xff8] sm:$0xff]
    %v589 = vld [vmem:[#allocation4 + $0x1000] sm:$0xff]
    %v590 = vld [vmem:[#allocation4 + $0x1008] sm:$0xff]
    %v591 = vld [vmem:[#allocation4 + $0x1010] sm:$0xff]
    %v592 = vld [vmem:[#allocation4 + $0x1018] sm:$0xff]
    %v593 = vld [vmem:[#allocation4 + $0x1020] sm:$0xff]
    %v594 = vld [vmem:[#allocation4 + $0x1028] sm:$0xff]
    %v595 = vld [vmem:[#allocation4 + $0x1030] sm:$0xff]
    %v596 = vld [vmem:[#allocation4 + $0x1038] sm:$0xff]
    %v597 = vld [vmem:[#allocation4 + $0x1040] sm:$0xff]
    %v598 = vld [vmem:[#allocation4 + $0x1048] sm:$0xff]
    %v599 = vld [vmem:[#allocation4 + $0x1050] sm:$0xff]
    %v600 = vld [vmem:[#allocation4 + $0x1058] sm:$0xff]
    %v601 = vld [vmem:[#allocation4 + $0x1060] sm:$0xff]
    %v602 = vld [vmem:[#allocation4 + $0x1068] sm:$0xff]
    %v603 = vld [vmem:[#allocation4 + $0x1070] sm:$0xff]
    %v604 = vld [vmem:[#allocation4 + $0x1078] sm:$0xff]
    %v605 = vld [vmem:[#allocation4 + $0x1080] sm:$0xff]
    %v606 = vld [vmem:[#allocation4 + $0x1088] sm:$0xff]
    %v607 = vld [vmem:[#allocation4 + $0x1090] sm:$0xff]
    %v608 = vld [vmem:[#allocation4 + $0x1098] sm:$0xff]
    %v609 = vld [vmem:[#allocation4 + $0x10a0] sm:$0xff]
    %v610 = vld [vmem:[#allocation4 + $0x10a8] sm:$0xff]
    %v611 = vld [vmem:[#allocation4 + $0x10b0] sm:$0xff]
    %v612 = vld [vmem:[#allocation4 + $0x10b8] sm:$0xff]
    %v613 = vld [vmem:[#allocation4 + $0x10c0] sm:$0xff]
    %v614 = vld [vmem:[#allocation4 + $0x10c8] sm:$0xff]
    %v615 = vld [vmem:[#allocation4 + $0x10d0] sm:$0xff]
    %v616 = vld [vmem:[#allocation4 + $0x10d8] sm:$0xff]
    %v617 = vld [vmem:[#allocation4 + $0x10e0] sm:$0xff]
    %v618 = vld [vmem:[#allocation4 + $0x10e8] sm:$0xff]
    %v619 = vld [vmem:[#allocation4 + $0x10f0] sm:$0xff]
    %v620 = vld [vmem:[#allocation4 + $0x10f8] sm:$0xff]
    %v621 = vld [vmem:[#allocation4 + $0x1100] sm:$0xff]
    %v622 = vld [vmem:[#allocation4 + $0x1108] sm:$0xff]
    %v623 = vld [vmem:[#allocation4 + $0x1110] sm:$0xff]
    %v624 = vld [vmem:[#allocation4 + $0x1118] sm:$0xff]
    %v625 = vld [vmem:[#allocation4 + $0x1120] sm:$0xff]
    %v626 = vld [vmem:[#allocation4 + $0x1128] sm:$0xff]
    %v627 = vld [vmem:[#allocation4 + $0x1130] sm:$0xff]
    %v628 = vld [vmem:[#allocation4 + $0x1138] sm:$0xff]
    %v629 = vld [vmem:[#allocation4 + $0x1140] sm:$0xff]
    %v630 = vld [vmem:[#allocation4 + $0x1148] sm:$0xff]
    %v631 = vld [vmem:[#allocation4 + $0x1150] sm:$0xff]
    %v632 = vld [vmem:[#allocation4 + $0x1158] sm:$0xff]
    %v633 = vld [vmem:[#allocation4 + $0x1160] sm:$0xff]
    %v634 = vld [vmem:[#allocation4 + $0x1168] sm:$0xff]
    %v635 = vld [vmem:[#allocation4 + $0x1170] sm:$0xff]
    %v636 = vld [vmem:[#allocation4 + $0x1178] sm:$0xff]
    %v637 = vld [vmem:[#allocation4 + $0x1180] sm:$0xff]
    %v638 = vld [vmem:[#allocation4 + $0x1188] sm:$0xff]
    %v639 = vld [vmem:[#allocation4 + $0x1190] sm:$0xff]
    %v640 = vld [vmem:[#allocation4 + $0x1198] sm:$0xff]
    %v641 = vld [vmem:[#allocation4 + $0x11a0] sm:$0xff]
    %v642 = vld [vmem:[#allocation4 + $0x11a8] sm:$0xff]
    %v643 = vld [vmem:[#allocation4 + $0x11b0] sm:$0xff]
    %v644 = vld [vmem:[#allocation4 + $0x11b8] sm:$0xff]
    %v645 = vld [vmem:[#allocation4 + $0x11c0] sm:$0xff]
    %v646 = vld [vmem:[#allocation4 + $0x11c8] sm:$0xff]
    %v647 = vld [vmem:[#allocation4 + $0x11d0] sm:$0xff]
    %v648 = vld [vmem:[#allocation4 + $0x11d8] sm:$0xff]
    %v649 = vld [vmem:[#allocation4 + $0x11e0] sm:$0xff]
    %v650 = vld [vmem:[#allocation4 + $0x11e8] sm:$0xff]
    %v651 = vld [vmem:[#allocation4 + $0x11f0] sm:$0xff]
    %v652 = vld [vmem:[#allocation4 + $0x11f8] sm:$0xff]
    %v653 = vld [vmem:[#allocation4 + $0x1200] sm:$0xff]
    %v654 = vld [vmem:[#allocation4 + $0x1208] sm:$0xff]
    %v655 = vld [vmem:[#allocation4 + $0x1210] sm:$0xff]
    %v656 = vld [vmem:[#allocation4 + $0x1218] sm:$0xff]
    %v657 = vld [vmem:[#allocation4 + $0x1220] sm:$0xff]
    %v658 = vld [vmem:[#allocation4 + $0x1228] sm:$0xff]
    %v659 = vld [vmem:[#allocation4 + $0x1230] sm:$0xff]
    %v660 = vld [vmem:[#allocation4 + $0x1238] sm:$0xff]
    %v661 = vld [vmem:[#allocation4 + $0x1240] sm:$0xff]
    %v662 = vld [vmem:[#allocation4 + $0x1248] sm:$0xff]
    %v663 = vld [vmem:[#allocation4 + $0x1250] sm:$0xff]
    %v664 = vld [vmem:[#allocation4 + $0x1258] sm:$0xff]
    %v665 = vld [vmem:[#allocation4 + $0x1260] sm:$0xff]
    %v666 = vld [vmem:[#allocation4 + $0x1268] sm:$0xff]
    %v667 = vld [vmem:[#allocation4 + $0x1270] sm:$0xff]
    %v668 = vld [vmem:[#allocation4 + $0x1278] sm:$0xff]
    %v669 = vld [vmem:[#allocation4 + $0x1280] sm:$0xff]
    %v670 = vld [vmem:[#allocation4 + $0x1288] sm:$0xff]
    %v671 = vld [vmem:[#allocation4 + $0x1290] sm:$0xff]
    %v672 = vld [vmem:[#allocation4 + $0x1298] sm:$0xff]
    %v673 = vld [vmem:[#allocation4 + $0x12a0] sm:$0xff]
    %v674 = vld [vmem:[#allocation4 + $0x12a8] sm:$0xff]
    %v675 = vld [vmem:[#allocation4 + $0x12b0] sm:$0xff]
    %v676 = vld [vmem:[#allocation4 + $0x12b8] sm:$0xff]
    %v677 = vld [vmem:[#allocation4 + $0x12c0] sm:$0xff]
    %v678 = vld [vmem:[#allocation4 + $0x12c8] sm:$0xff]
    %v679 = vld [vmem:[#allocation4 + $0x12d0] sm:$0xff]
    %v680 = vld [vmem:[#allocation4 + $0x12d8] sm:$0xff]
    %v681 = vld [vmem:[#allocation4 + $0x12e0] sm:$0xff]
    %v682 = vld [vmem:[#allocation4 + $0x12e8] sm:$0xff]
    %v683 = vld [vmem:[#allocation4 + $0x12f0] sm:$0xff]
    %v684 = vld [vmem:[#allocation4 + $0x12f8] sm:$0xff]
    %v685 = vld [vmem:[#allocation4 + $0x1300] sm:$0xff]
    %v686 = vld [vmem:[#allocation4 + $0x1308] sm:$0xff]
    %v687 = vld [vmem:[#allocation4 + $0x1310] sm:$0xff]
    %v688 = vld [vmem:[#allocation4 + $0x1318] sm:$0xff]
    %v689 = vld [vmem:[#allocation4 + $0x1320] sm:$0xff]
    %v690 = vld [vmem:[#allocation4 + $0x1328] sm:$0xff]
    %v691 = vld [vmem:[#allocation4 + $0x1330] sm:$0xff]
    %v692 = vld [vmem:[#allocation4 + $0x1338] sm:$0xff]
    %v693 = vld [vmem:[#allocation4 + $0x1340] sm:$0xff]
    %v694 = vld [vmem:[#allocation4 + $0x1348] sm:$0xff]
    %v695 = vld [vmem:[#allocation4 + $0x1350] sm:$0xff]
    %v696 = vld [vmem:[#allocation4 + $0x1358] sm:$0xff]
    %v697 = vld [vmem:[#allocation4 + $0x1360] sm:$0xff]
    %v698 = vld [vmem:[#allocation4 + $0x1368] sm:$0xff]
    %v699 = vld [vmem:[#allocation4 + $0x1370] sm:$0xff]
    %v700 = vld [vmem:[#allocation4 + $0x1378] sm:$0xff]
    %v701 = vld [vmem:[#allocation4 + $0x1380] sm:$0xff]
    %v702 = vld [vmem:[#allocation4 + $0x1388] sm:$0xff]
    %v703 = vld [vmem:[#allocation4 + $0x1390] sm:$0xff]
    %v704 = vld [vmem:[#allocation4 + $0x1398] sm:$0xff]
    %v705 = vld [vmem:[#allocation4 + $0x13a0] sm:$0xff]
    %v706 = vld [vmem:[#allocation4 + $0x13a8] sm:$0xff]
    %v707 = vld [vmem:[#allocation4 + $0x13b0] sm:$0xff]
    %v708 = vld [vmem:[#allocation4 + $0x13b8] sm:$0xff]
    %v709 = vld [vmem:[#allocation4 + $0x13c0] sm:$0xff]
    %v710 = vld [vmem:[#allocation4 + $0x13c8] sm:$0xff]
    %v711 = vld [vmem:[#allocation4 + $0x13d0] sm:$0xff]
    %v712 = vld [vmem:[#allocation4 + $0x13d8] sm:$0xff]
    %v713 = vld [vmem:[#allocation4 + $0x13e0] sm:$0xff]
    %v714 = vld [vmem:[#allocation4 + $0x13e8] sm:$0xff]
    %v715 = vld [vmem:[#allocation4 + $0x13f0] sm:$0xff]
    %v716 = vld [vmem:[#allocation4 + $0x13f8] sm:$0xff]
    %v717 = vld [vmem:[#allocation4 + $0x1400] sm:$0xff]
    %v718 = vld [vmem:[#allocation4 + $0x1408] sm:$0xff]
    %v719 = vld [vmem:[#allocation4 + $0x1410] sm:$0xff]
    %v720 = vld [vmem:[#allocation4 + $0x1418] sm:$0xff]
    %v721 = vld [vmem:[#allocation4 + $0x1420] sm:$0xff]
    %v722 = vld [vmem:[#allocation4 + $0x1428] sm:$0xff]
    %v723 = vld [vmem:[#allocation4 + $0x1430] sm:$0xff]
    %v724 = vld [vmem:[#allocation4 + $0x1438] sm:$0xff]
    %v725 = vld [vmem:[#allocation4 + $0x1440] sm:$0xff]
    %v726 = vld [vmem:[#allocation4 + $0x1448] sm:$0xff]
    %v727 = vld [vmem:[#allocation4 + $0x1450] sm:$0xff]
    %v728 = vld [vmem:[#allocation4 + $0x1458] sm:$0xff]
    %v729 = vld [vmem:[#allocation4 + $0x1460] sm:$0xff]
    %v730 = vld [vmem:[#allocation4 + $0x1468] sm:$0xff]
    %v731 = vld [vmem:[#allocation4 + $0x1470] sm:$0xff]
    %v732 = vld [vmem:[#allocation4 + $0x1478] sm:$0xff]
    %v733 = vld [vmem:[#allocation4 + $0x1480] sm:$0xff]
    %v734 = vld [vmem:[#allocation4 + $0x1488] sm:$0xff]
    %v735 = vld [vmem:[#allocation4 + $0x1490] sm:$0xff]
    %v736 = vld [vmem:[#allocation4 + $0x1498] sm:$0xff]
    %v737 = vld [vmem:[#allocation4 + $0x14a0] sm:$0xff]
    %v738 = vld [vmem:[#allocation4 + $0x14a8] sm:$0xff]
    %v739 = vld [vmem:[#allocation4 + $0x14b0] sm:$0xff]
    %v740 = vld [vmem:[#allocation4 + $0x14b8] sm:$0xff]
    %v741 = vld [vmem:[#allocation4 + $0x14c0] sm:$0xff]
    %v742 = vld [vmem:[#allocation4 + $0x14c8] sm:$0xff]
    %v743 = vld [vmem:[#allocation4 + $0x14d0] sm:$0xff]
    %v744 = vld [vmem:[#allocation4 + $0x14d8] sm:$0xff]
    %v745 = vld [vmem:[#allocation4 + $0x14e0] sm:$0xff]
    %v746 = vld [vmem:[#allocation4 + $0x14e8] sm:$0xff]
    %v747 = vld [vmem:[#allocation4 + $0x14f0] sm:$0xff]
    %v748 = vld [vmem:[#allocation4 + $0x14f8] sm:$0xff]
    %v749 = vld [vmem:[#allocation4 + $0x1500] sm:$0xff]
    %v750 = vld [vmem:[#allocation4 + $0x1508] sm:$0xff]
    %v751 = vld [vmem:[#allocation4 + $0x1510] sm:$0xff]
    %v752 = vld [vmem:[#allocation4 + $0x1518] sm:$0xff]
    %v753 = vld [vmem:[#allocation4 + $0x1520] sm:$0xff]
    %v754 = vld [vmem:[#allocation4 + $0x1528] sm:$0xff]
    %v755 = vld [vmem:[#allocation4 + $0x1530] sm:$0xff]
    %v756 = vld [vmem:[#allocation4 + $0x1538] sm:$0xff]
    %v757 = vld [vmem:[#allocation4 + $0x1540] sm:$0xff]
    %v758 = vld [vmem:[#allocation4 + $0x1548] sm:$0xff]
    %v759 = vld [vmem:[#allocation4 + $0x1550] sm:$0xff]
    %v760 = vld [vmem:[#allocation4 + $0x1558] sm:$0xff]
    %v761 = vld [vmem:[#allocation4 + $0x1560] sm:$0xff]
    %v762 = vld [vmem:[#allocation4 + $0x1568] sm:$0xff]
    %v763 = vld [vmem:[#allocation4 + $0x1570] sm:$0xff]
    %v764 = vld [vmem:[#allocation4 + $0x1578] sm:$0xff]
    %v765 = vld [vmem:[#allocation4 + $0x1580] sm:$0xff]
    %v766 = vld [vmem:[#allocation4 + $0x1588] sm:$0xff]
    %v767 = vld [vmem:[#allocation4 + $0x1590] sm:$0xff]
    %v768 = vld [vmem:[#allocation4 + $0x1598] sm:$0xff]
    %v769 = vld [vmem:[#allocation4 + $0x15a0] sm:$0xff]
    %v770 = vld [vmem:[#allocation4 + $0x15a8] sm:$0xff]
    %v771 = vld [vmem:[#allocation4 + $0x15b0] sm:$0xff]
    %v772 = vld [vmem:[#allocation4 + $0x15b8] sm:$0xff]
    %v773 = vld [vmem:[#allocation4 + $0x15c0] sm:$0xff]
    %v774 = vld [vmem:[#allocation4 + $0x15c8] sm:$0xff]
    %v775 = vld [vmem:[#allocation4 + $0x15d0] sm:$0xff]
    %v776 = vld [vmem:[#allocation4 + $0x15d8] sm:$0xff]
    %v777 = vld [vmem:[#allocation4 + $0x15e0] sm:$0xff]
    %v778 = vld [vmem:[#allocation4 + $0x15e8] sm:$0xff]
    %v779 = vld [vmem:[#allocation4 + $0x15f0] sm:$0xff]
    %v780 = vld [vmem:[#allocation4 + $0x15f8] sm:$0xff]
    %v781 = vld [vmem:[#allocation4 + $0x1600] sm:$0xff]
    %v782 = vld [vmem:[#allocation4 + $0x1608] sm:$0xff]
    %v783 = vld [vmem:[#allocation4 + $0x1610] sm:$0xff]
    %v784 = vld [vmem:[#allocation4 + $0x1618] sm:$0xff]
    %v785 = vld [vmem:[#allocation4 + $0x1620] sm:$0xff]
    %v786 = vld [vmem:[#allocation4 + $0x1628] sm:$0xff]
    %v787 = vld [vmem:[#allocation4 + $0x1630] sm:$0xff]
    %v788 = vld [vmem:[#allocation4 + $0x1638] sm:$0xff]
    %v789 = vld [vmem:[#allocation4 + $0x1640] sm:$0xff]
    %v790 = vld [vmem:[#allocation4 + $0x1648] sm:$0xff]
    %v791 = vld [vmem:[#allocation4 + $0x1650] sm:$0xff]
    %v792 = vld [vmem:[#allocation4 + $0x1658] sm:$0xff]
    %v793 = vld [vmem:[#allocation4 + $0x1660] sm:$0xff]
    %v794 = vld [vmem:[#allocation4 + $0x1668] sm:$0xff]
    %v795 = vld [vmem:[#allocation4 + $0x1670] sm:$0xff]
    %v796 = vld [vmem:[#allocation4 + $0x1678] sm:$0xff]
    %v797 = vld [vmem:[#allocation4 + $0x1680] sm:$0xff]
    %v798 = vld [vmem:[#allocation4 + $0x1688] sm:$0xff]
    %v799 = vld [vmem:[#allocation4 + $0x1690] sm:$0xff]
    %v800 = vld [vmem:[#allocation4 + $0x1698] sm:$0xff]
    %v801 = vld [vmem:[#allocation4 + $0x16a0] sm:$0xff]
    %v802 = vld [vmem:[#allocation4 + $0x16a8] sm:$0xff]
    %v803 = vld [vmem:[#allocation4 + $0x16b0] sm:$0xff]
    %v804 = vld [vmem:[#allocation4 + $0x16b8] sm:$0xff]
    %v805 = vld [vmem:[#allocation4 + $0x16c0] sm:$0xff]
    %v806 = vld [vmem:[#allocation4 + $0x16c8] sm:$0xff]
    %v807 = vld [vmem:[#allocation4 + $0x16d0] sm:$0xff]
    %v808 = vld [vmem:[#allocation4 + $0x16d8] sm:$0xff]
    %v809 = vld [vmem:[#allocation4 + $0x16e0] sm:$0xff]
    %v810 = vld [vmem:[#allocation4 + $0x16e8] sm:$0xff]
    %v811 = vld [vmem:[#allocation4 + $0x16f0] sm:$0xff]
    %v812 = vld [vmem:[#allocation4 + $0x16f8] sm:$0xff]
    %v813 = vld [vmem:[#allocation4 + $0x1700] sm:$0xff]
    %v814 = vld [vmem:[#allocation4 + $0x1708] sm:$0xff]
    %v815 = vld [vmem:[#allocation4 + $0x1710] sm:$0xff]
    %v816 = vld [vmem:[#allocation4 + $0x1718] sm:$0xff]
    %v817 = vld [vmem:[#allocation4 + $0x1720] sm:$0xff]
    %v818 = vld [vmem:[#allocation4 + $0x1728] sm:$0xff]
    %v819 = vld [vmem:[#allocation4 + $0x1730] sm:$0xff]
    %v820 = vld [vmem:[#allocation4 + $0x1738] sm:$0xff]
    %v821 = vld [vmem:[#allocation4 + $0x1740] sm:$0xff]
    %v822 = vld [vmem:[#allocation4 + $0x1748] sm:$0xff]
    %v823 = vld [vmem:[#allocation4 + $0x1750] sm:$0xff]
    %v824 = vld [vmem:[#allocation4 + $0x1758] sm:$0xff]
    %v825 = vld [vmem:[#allocation4 + $0x1760] sm:$0xff]
    %v826 = vld [vmem:[#allocation4 + $0x1768] sm:$0xff]
    %v827 = vld [vmem:[#allocation4 + $0x1770] sm:$0xff]
    %v828 = vld [vmem:[#allocation4 + $0x1778] sm:$0xff]
    %v829 = vld [vmem:[#allocation4 + $0x1780] sm:$0xff]
    %v830 = vld [vmem:[#allocation4 + $0x1788] sm:$0xff]
    %v831 = vld [vmem:[#allocation4 + $0x1790] sm:$0xff]
    %v832 = vld [vmem:[#allocation4 + $0x1798] sm:$0xff]
    %v833 = vld [vmem:[#allocation4 + $0x17a0] sm:$0xff]
    %v834 = vld [vmem:[#allocation4 + $0x17a8] sm:$0xff]
    %v835 = vld [vmem:[#allocation4 + $0x17b0] sm:$0xff]
    %v836 = vld [vmem:[#allocation4 + $0x17b8] sm:$0xff]
    %v837 = vld [vmem:[#allocation4 + $0x17c0] sm:$0xff]
    %v838 = vld [vmem:[#allocation4 + $0x17c8] sm:$0xff]
    %v839 = vld [vmem:[#allocation4 + $0x17d0] sm:$0xff]
    %v840 = vld [vmem:[#allocation4 + $0x17d8] sm:$0xff]
    %v841 = vld [vmem:[#allocation4 + $0x17e0] sm:$0xff]
    %v842 = vld [vmem:[#allocation4 + $0x17e8] sm:$0xff]
    %v843 = vld [vmem:[#allocation4 + $0x17f0] sm:$0xff]
    %v844 = vld [vmem:[#allocation4 + $0x17f8] sm:$0xff]
    %v845 = vld [vmem:[#allocation4 + $0x1800] sm:$0xff]
    %v846 = vld [vmem:[#allocation4 + $0x1808] sm:$0xff]
    %v847 = vld [vmem:[#allocation4 + $0x1810] sm:$0xff]
    %v848 = vld [vmem:[#allocation4 + $0x1818] sm:$0xff]
    %v849 = vld [vmem:[#allocation4 + $0x1820] sm:$0xff]
    %v850 = vld [vmem:[#allocation4 + $0x1828] sm:$0xff]
    %v851 = vld [vmem:[#allocation4 + $0x1830] sm:$0xff]
    %v852 = vld [vmem:[#allocation4 + $0x1838] sm:$0xff]
    %v853 = vld [vmem:[#allocation4 + $0x1840] sm:$0xff]
    %v854 = vld [vmem:[#allocation4 + $0x1848] sm:$0xff]
    %v855 = vld [vmem:[#allocation4 + $0x1850] sm:$0xff]
    %v856 = vld [vmem:[#allocation4 + $0x1858] sm:$0xff]
    %v857 = vld [vmem:[#allocation4 + $0x1860] sm:$0xff]
    %v858 = vld [vmem:[#allocation4 + $0x1868] sm:$0xff]
    %v859 = vld [vmem:[#allocation4 + $0x1870] sm:$0xff]
    %v860 = vld [vmem:[#allocation4 + $0x1878] sm:$0xff]
    %v861 = vld [vmem:[#allocation4 + $0x1880] sm:$0xff]
    %v862 = vld [vmem:[#allocation4 + $0x1888] sm:$0xff]
    %v863 = vld [vmem:[#allocation4 + $0x1890] sm:$0xff]
    %v864 = vld [vmem:[#allocation4 + $0x1898] sm:$0xff]
    %v865 = vld [vmem:[#allocation4 + $0x18a0] sm:$0xff]
    %v866 = vld [vmem:[#allocation4 + $0x18a8] sm:$0xff]
    %v867 = vld [vmem:[#allocation4 + $0x18b0] sm:$0xff]
    %v868 = vld [vmem:[#allocation4 + $0x18b8] sm:$0xff]
    %v869 = vld [vmem:[#allocation4 + $0x18c0] sm:$0xff]
    %v870 = vld [vmem:[#allocation4 + $0x18c8] sm:$0xff]
    %v871 = vld [vmem:[#allocation4 + $0x18d0] sm:$0xff]
    %v872 = vld [vmem:[#allocation4 + $0x18d8] sm:$0xff]
    %v873 = vld [vmem:[#allocation4 + $0x18e0] sm:$0xff]
    %v874 = vld [vmem:[#allocation4 + $0x18e8] sm:$0xff]
    %v875 = vld [vmem:[#allocation4 + $0x18f0] sm:$0xff]
    %v876 = vld [vmem:[#allocation4 + $0x18f8] sm:$0xff]
    %v877 = vld [vmem:[#allocation4 + $0x1900] sm:$0xff]
    %v878 = vld [vmem:[#allocation4 + $0x1908] sm:$0xff]
    %v879 = vld [vmem:[#allocation4 + $0x1910] sm:$0xff]
    %v880 = vld [vmem:[#allocation4 + $0x1918] sm:$0xff]
    %v881 = vld [vmem:[#allocation4 + $0x1920] sm:$0xff]
    %v882 = vld [vmem:[#allocation4 + $0x1928] sm:$0xff]
    %v883 = vld [vmem:[#allocation4 + $0x1930] sm:$0xff]
    %v884 = vld [vmem:[#allocation4 + $0x1938] sm:$0xff]
    %v885 = vld [vmem:[#allocation4 + $0x1940] sm:$0xff]
    %v886 = vld [vmem:[#allocation4 + $0x1948] sm:$0xff]
    %v887 = vld [vmem:[#allocation4 + $0x1950] sm:$0xff]
    %v888 = vld [vmem:[#allocation4 + $0x1958] sm:$0xff]
    %v889 = vld [vmem:[#allocation4 + $0x1960] sm:$0xff]
    %v890 = vld [vmem:[#allocation4 + $0x1968] sm:$0xff]
    %v891 = vld [vmem:[#allocation4 + $0x1970] sm:$0xff]
    %v892 = vld [vmem:[#allocation4 + $0x1978] sm:$0xff]
    %v893 = vld [vmem:[#allocation4 + $0x1980] sm:$0xff]
    %v894 = vld [vmem:[#allocation4 + $0x1988] sm:$0xff]
    %v895 = vld [vmem:[#allocation4 + $0x1990] sm:$0xff]
    %v896 = vld [vmem:[#allocation4 + $0x1998] sm:$0xff]
    %v897 = vld [vmem:[#allocation4 + $0x19a0] sm:$0xff]
    %v898 = vld [vmem:[#allocation4 + $0x19a8] sm:$0xff]
    %v899 = vld [vmem:[#allocation4 + $0x19b0] sm:$0xff]
    %v900 = vld [vmem:[#allocation4 + $0x19b8] sm:$0xff]
    %v901 = vld [vmem:[#allocation4 + $0x19c0] sm:$0xff]
    %v902 = vld [vmem:[#allocation4 + $0x19c8] sm:$0xff]
    %v903 = vld [vmem:[#allocation4 + $0x19d0] sm:$0xff]
    %v904 = vld [vmem:[#allocation4 + $0x19d8] sm:$0xff]
    %v905 = vld [vmem:[#allocation4 + $0x19e0] sm:$0xff]
    %v906 = vld [vmem:[#allocation4 + $0x19e8] sm:$0xff]
    %v907 = vld [vmem:[#allocation4 + $0x19f0] sm:$0xff]
    %v908 = vld [vmem:[#allocation4 + $0x19f8] sm:$0xff]
    %v909 = vld [vmem:[#allocation4 + $0x1a00] sm:$0xff]
    %v910 = vld [vmem:[#allocation4 + $0x1a08] sm:$0xff]
    %v911 = vld [vmem:[#allocation4 + $0x1a10] sm:$0xff]
    %v912 = vld [vmem:[#allocation4 + $0x1a18] sm:$0xff]
    %v913 = vld [vmem:[#allocation4 + $0x1a20] sm:$0xff]
    %v914 = vld [vmem:[#allocation4 + $0x1a28] sm:$0xff]
    %v915 = vld [vmem:[#allocation4 + $0x1a30] sm:$0xff]
    %v916 = vld [vmem:[#allocation4 + $0x1a38] sm:$0xff]
    %v917 = vld [vmem:[#allocation4 + $0x1a40] sm:$0xff]
    %v918 = vld [vmem:[#allocation4 + $0x1a48] sm:$0xff]
    %v919 = vld [vmem:[#allocation4 + $0x1a50] sm:$0xff]
    %v920 = vld [vmem:[#allocation4 + $0x1a58] sm:$0xff]
    %v921 = vld [vmem:[#allocation4 + $0x1a60] sm:$0xff]
    %v922 = vld [vmem:[#allocation4 + $0x1a68] sm:$0xff]
    %v923 = vld [vmem:[#allocation4 + $0x1a70] sm:$0xff]
    %v924 = vld [vmem:[#allocation4 + $0x1a78] sm:$0xff]
    %v925 = vld [vmem:[#allocation4 + $0x1a80] sm:$0xff]
    %v926 = vld [vmem:[#allocation4 + $0x1a88] sm:$0xff]
    %v927 = vld [vmem:[#allocation4 + $0x1a90] sm:$0xff]
    %v928 = vld [vmem:[#allocation4 + $0x1a98] sm:$0xff]
    %v929 = vld [vmem:[#allocation4 + $0x1aa0] sm:$0xff]
    %v930 = vld [vmem:[#allocation4 + $0x1aa8] sm:$0xff]
    %v931 = vld [vmem:[#allocation4 + $0x1ab0] sm:$0xff]
    %v932 = vld [vmem:[#allocation4 + $0x1ab8] sm:$0xff]
    %v933 = vld [vmem:[#allocation4 + $0x1ac0] sm:$0xff]
    %v934 = vld [vmem:[#allocation4 + $0x1ac8] sm:$0xff]
    %v935 = vld [vmem:[#allocation4 + $0x1ad0] sm:$0xff]
    %v936 = vld [vmem:[#allocation4 + $0x1ad8] sm:$0xff]
    %v937 = vld [vmem:[#allocation4 + $0x1ae0] sm:$0xff]
    %v938 = vld [vmem:[#allocation4 + $0x1ae8] sm:$0xff]
    %v939 = vld [vmem:[#allocation4 + $0x1af0] sm:$0xff]
    %v940 = vld [vmem:[#allocation4 + $0x1af8] sm:$0xff]
    %v941 = vld [vmem:[#allocation4 + $0x1b00] sm:$0xff]
    %v942 = vld [vmem:[#allocation4 + $0x1b08] sm:$0xff]
    %v943 = vld [vmem:[#allocation4 + $0x1b10] sm:$0xff]
    %v944 = vld [vmem:[#allocation4 + $0x1b18] sm:$0xff]
    %v945 = vld [vmem:[#allocation4 + $0x1b20] sm:$0xff]
    %v946 = vld [vmem:[#allocation4 + $0x1b28] sm:$0xff]
    %v947 = vld [vmem:[#allocation4 + $0x1b30] sm:$0xff]
    %v948 = vld [vmem:[#allocation4 + $0x1b38] sm:$0xff]
    %v949 = vld [vmem:[#allocation4 + $0x1b40] sm:$0xff]
    %v950 = vld [vmem:[#allocation4 + $0x1b48] sm:$0xff]
    %v951 = vld [vmem:[#allocation4 + $0x1b50] sm:$0xff]
    %v952 = vld [vmem:[#allocation4 + $0x1b58] sm:$0xff]
    %v953 = vld [vmem:[#allocation4 + $0x1b60] sm:$0xff]
    %v954 = vld [vmem:[#allocation4 + $0x1b68] sm:$0xff]
    %v955 = vld [vmem:[#allocation4 + $0x1b70] sm:$0xff]
    %v956 = vld [vmem:[#allocation4 + $0x1b78] sm:$0xff]
    %v957 = vld [vmem:[#allocation4 + $0x1b80] sm:$0xff]
    %v958 = vld [vmem:[#allocation4 + $0x1b88] sm:$0xff]
    %v959 = vld [vmem:[#allocation4 + $0x1b90] sm:$0xff]
    %v960 = vld [vmem:[#allocation4 + $0x1b98] sm:$0xff]
    %v961 = vld [vmem:[#allocation4 + $0x1ba0] sm:$0xff]
    %v962 = vld [vmem:[#allocation4 + $0x1ba8] sm:$0xff]
    %v963 = vld [vmem:[#allocation4 + $0x1bb0] sm:$0xff]
    %v964 = vld [vmem:[#allocation4 + $0x1bb8] sm:$0xff]
    %v965 = vld [vmem:[#allocation4 + $0x1bc0] sm:$0xff]
    %v966 = vld [vmem:[#allocation4 + $0x1bc8] sm:$0xff]
    %v967 = vld [vmem:[#allocation4 + $0x1bd0] sm:$0xff]
    %v968 = vld [vmem:[#allocation4 + $0x1bd8] sm:$0xff]
    %v969 = vld [vmem:[#allocation4 + $0x1be0] sm:$0xff]
    %v970 = vld [vmem:[#allocation4 + $0x1be8] sm:$0xff]
    %v971 = vld [vmem:[#allocation4 + $0x1bf0] sm:$0xff]
    %v972 = vld [vmem:[#allocation4 + $0x1bf8] sm:$0xff]
    %v973 = vld [vmem:[#allocation4 + $0x1c00] sm:$0xff]
    %v974 = vld [vmem:[#allocation4 + $0x1c08] sm:$0xff]
    %v975 = vld [vmem:[#allocation4 + $0x1c10] sm:$0xff]
    %v976 = vld [vmem:[#allocation4 + $0x1c18] sm:$0xff]
    %v977 = vld [vmem:[#allocation4 + $0x1c20] sm:$0xff]
    %v978 = vld [vmem:[#allocation4 + $0x1c28] sm:$0xff]
    %v979 = vld [vmem:[#allocation4 + $0x1c30] sm:$0xff]
    %v980 = vld [vmem:[#allocation4 + $0x1c38] sm:$0xff]
    %v981 = vld [vmem:[#allocation4 + $0x1c40] sm:$0xff]
    %v982 = vld [vmem:[#allocation4 + $0x1c48] sm:$0xff]
    %v983 = vld [vmem:[#allocation4 + $0x1c50] sm:$0xff]
    %v984 = vld [vmem:[#allocation4 + $0x1c58] sm:$0xff]
    %v985 = vld [vmem:[#allocation4 + $0x1c60] sm:$0xff]
    %v986 = vld [vmem:[#allocation4 + $0x1c68] sm:$0xff]
    %v987 = vld [vmem:[#allocation4 + $0x1c70] sm:$0xff]
    %v988 = vld [vmem:[#allocation4 + $0x1c78] sm:$0xff]
    %v989 = vld [vmem:[#allocation4 + $0x1c80] sm:$0xff]
    %v990 = vld [vmem:[#allocation4 + $0x1c88] sm:$0xff]
    %v991 = vld [vmem:[#allocation4 + $0x1c90] sm:$0xff]
    %v992 = vld [vmem:[#allocation4 + $0x1c98] sm:$0xff]
    %v993 = vld [vmem:[#allocation4 + $0x1ca0] sm:$0xff]
    %v994 = vld [vmem:[#allocation4 + $0x1ca8] sm:$0xff]
    %v995 = vld [vmem:[#allocation4 + $0x1cb0] sm:$0xff]
    %v996 = vld [vmem:[#allocation4 + $0x1cb8] sm:$0xff]
    %v997 = vld [vmem:[#allocation4 + $0x1cc0] sm:$0xff]
    %v998 = vld [vmem:[#allocation4 + $0x1cc8] sm:$0xff]
    %v999 = vld [vmem:[#allocation4 + $0x1cd0] sm:$0xff]
    %v1000 = vld [vmem:[#allocation4 + $0x1cd8] sm:$0xff]
    %v1001 = vld [vmem:[#allocation4 + $0x1ce0] sm:$0xff]
    %v1002 = vld [vmem:[#allocation4 + $0x1ce8] sm:$0xff]
    %v1003 = vld [vmem:[#allocation4 + $0x1cf0] sm:$0xff]
    %v1004 = vld [vmem:[#allocation4 + $0x1cf8] sm:$0xff]
    %v1005 = vld [vmem:[#allocation4 + $0x1d00] sm:$0xff]
    %v1006 = vld [vmem:[#allocation4 + $0x1d08] sm:$0xff]
    %v1007 = vld [vmem:[#allocation4 + $0x1d10] sm:$0xff]
    %v1008 = vld [vmem:[#allocation4 + $0x1d18] sm:$0xff]
    %v1009 = vld [vmem:[#allocation4 + $0x1d20] sm:$0xff]
    %v1010 = vld [vmem:[#allocation4 + $0x1d28] sm:$0xff]
    %v1011 = vld [vmem:[#allocation4 + $0x1d30] sm:$0xff]
    %v1012 = vld [vmem:[#allocation4 + $0x1d38] sm:$0xff]
    %v1013 = vld [vmem:[#allocation4 + $0x1d40] sm:$0xff]
    %v1014 = vld [vmem:[#allocation4 + $0x1d48] sm:$0xff]
    %v1015 = vld [vmem:[#allocation4 + $0x1d50] sm:$0xff]
    %v1016 = vld [vmem:[#allocation4 + $0x1d58] sm:$0xff]
    %v1017 = vld [vmem:[#allocation4 + $0x1d60] sm:$0xff]
    %v1018 = vld [vmem:[#allocation4 + $0x1d68] sm:$0xff]
    %v1019 = vld [vmem:[#allocation4 + $0x1d70] sm:$0xff]
    %v1020 = vld [vmem:[#allocation4 + $0x1d78] sm:$0xff]
    %v1021 = vld [vmem:[#allocation4 + $0x1d80] sm:$0xff]
    %v1022 = vld [vmem:[#allocation4 + $0x1d88] sm:$0xff]
    %v1023 = vld [vmem:[#allocation4 + $0x1d90] sm:$0xff]
    %v1024 = vld [vmem:[#allocation4 + $0x1d98] sm:$0xff]
    %v1025 = vld [vmem:[#allocation4 + $0x1da0] sm:$0xff]
    %v1026 = vld [vmem:[#allocation4 + $0x1da8] sm:$0xff]
    %v1027 = vld [vmem:[#allocation4 + $0x1db0] sm:$0xff]
    %v1028 = vld [vmem:[#allocation4 + $0x1db8] sm:$0xff]
    %v1029 = vld [vmem:[#allocation4 + $0x1dc0] sm:$0xff]
    %v1030 = vld [vmem:[#allocation4 + $0x1dc8] sm:$0xff]
    %v1031 = vld [vmem:[#allocation4 + $0x1dd0] sm:$0xff]
    %v1032 = vld [vmem:[#allocation4 + $0x1dd8] sm:$0xff]
    %v1033 = vld [vmem:[#allocation4 + $0x1de0] sm:$0xff]
    %v1034 = vld [vmem:[#allocation4 + $0x1de8] sm:$0xff]
    %v1035 = vld [vmem:[#allocation4 + $0x1df0] sm:$0xff]
    %v1036 = vld [vmem:[#allocation4 + $0x1df8] sm:$0xff]
    %v1037 = vld [vmem:[#allocation4 + $0x1e00] sm:$0xff]
    %v1038 = vld [vmem:[#allocation4 + $0x1e08] sm:$0xff]
    %v1039 = vld [vmem:[#allocation4 + $0x1e10] sm:$0xff]
    %v1040 = vld [vmem:[#allocation4 + $0x1e18] sm:$0xff]
    %v1041 = vld [vmem:[#allocation4 + $0x1e20] sm:$0xff]
    %v1042 = vld [vmem:[#allocation4 + $0x1e28] sm:$0xff]
    %v1043 = vld [vmem:[#allocation4 + $0x1e30] sm:$0xff]
    %v1044 = vld [vmem:[#allocation4 + $0x1e38] sm:$0xff]
    %v1045 = vld [vmem:[#allocation4 + $0x1e40] sm:$0xff]
    %v1046 = vld [vmem:[#allocation4 + $0x1e48] sm:$0xff]
    %v1047 = vld [vmem:[#allocation4 + $0x1e50] sm:$0xff]
    %v1048 = vld [vmem:[#allocation4 + $0x1e58] sm:$0xff]
    %v1049 = vld [vmem:[#allocation4 + $0x1e60] sm:$0xff]
    %v1050 = vld [vmem:[#allocation4 + $0x1e68] sm:$0xff]
    %v1051 = vld [vmem:[#allocation4 + $0x1e70] sm:$0xff]
    %v1052 = vld [vmem:[#allocation4 + $0x1e78] sm:$0xff]
    %v1053 = vld [vmem:[#allocation4 + $0x1e80] sm:$0xff]
    %v1054 = vld [vmem:[#allocation4 + $0x1e88] sm:$0xff]
    %v1055 = vld [vmem:[#allocation4 + $0x1e90] sm:$0xff]
    %v1056 = vld [vmem:[#allocation4 + $0x1e98] sm:$0xff]
    %v1057 = vld [vmem:[#allocation4 + $0x1ea0] sm:$0xff]
    %v1058 = vld [vmem:[#allocation4 + $0x1ea8] sm:$0xff]
    %v1059 = vld [vmem:[#allocation4 + $0x1eb0] sm:$0xff]
    %v1060 = vld [vmem:[#allocation4 + $0x1eb8] sm:$0xff]
    %v1061 = vld [vmem:[#allocation4 + $0x1ec0] sm:$0xff]
    %v1062 = vld [vmem:[#allocation4 + $0x1ec8] sm:$0xff]
    %v1063 = vld [vmem:[#allocation4 + $0x1ed0] sm:$0xff]
    %v1064 = vld [vmem:[#allocation4 + $0x1ed8] sm:$0xff]
    %v1065 = vld [vmem:[#allocation4 + $0x1ee0] sm:$0xff]
    %v1066 = vld [vmem:[#allocation4 + $0x1ee8] sm:$0xff]
    %v1067 = vld [vmem:[#allocation4 + $0x1ef0] sm:$0xff]
    %v1068 = vld [vmem:[#allocation4 + $0x1ef8] sm:$0xff]
    %v1069 = vld [vmem:[#allocation4 + $0x1f00] sm:$0xff]
    %v1070 = vld [vmem:[#allocation4 + $0x1f08] sm:$0xff]
    %v1071 = vld [vmem:[#allocation4 + $0x1f10] sm:$0xff]
    %v1072 = vld [vmem:[#allocation4 + $0x1f18] sm:$0xff]
    %v1073 = vld [vmem:[#allocation4 + $0x1f20] sm:$0xff]
    %v1074 = vld [vmem:[#allocation4 + $0x1f28] sm:$0xff]
    %v1075 = vld [vmem:[#allocation4 + $0x1f30] sm:$0xff]
    %v1076 = vld [vmem:[#allocation4 + $0x1f38] sm:$0xff]
    %v1077 = vld [vmem:[#allocation4 + $0x1f40] sm:$0xff]
    %v1078 = vld [vmem:[#allocation4 + $0x1f48] sm:$0xff]
    %v1079 = vld [vmem:[#allocation4 + $0x1f50] sm:$0xff]
    %v1080 = vld [vmem:[#allocation4 + $0x1f58] sm:$0xff]
    %v1081 = vld [vmem:[#allocation4 + $0x1f60] sm:$0xff]
    %v1082 = vld [vmem:[#allocation4 + $0x1f68] sm:$0xff]
    %v1083 = vld [vmem:[#allocation4 + $0x1f70] sm:$0xff]
    %v1084 = vld [vmem:[#allocation4 + $0x1f78] sm:$0xff]
    %v1085 = vld [vmem:[#allocation4 + $0x1f80] sm:$0xff]
    %v1086 = vld [vmem:[#allocation4 + $0x1f88] sm:$0xff]
    %v1087 = vld [vmem:[#allocation4 + $0x1f90] sm:$0xff]
    %v1088 = vld [vmem:[#allocation4 + $0x1f98] sm:$0xff]
    %v1089 = vld [vmem:[#allocation4 + $0x1fa0] sm:$0xff]
    %v1090 = vld [vmem:[#allocation4 + $0x1fa8] sm:$0xff]
    %v1091 = vld [vmem:[#allocation4 + $0x1fb0] sm:$0xff]
    %v1092 = vld [vmem:[#allocation4 + $0x1fb8] sm:$0xff]
    %v1093 = vld [vmem:[#allocation4 + $0x1fc0] sm:$0xff]
    %v1094 = vld [vmem:[#allocation4 + $0x1fc8] sm:$0xff]
    %v1095 = vld [vmem:[#allocation4 + $0x1fd0] sm:$0xff]
    %v1096 = vld [vmem:[#allocation4 + $0x1fd8] sm:$0xff]
    %v1097 = vld [vmem:[#allocation4 + $0x1fe0] sm:$0xff]
    %v1098 = vld [vmem:[#allocation4 + $0x1fe8] sm:$0xff]
    %v1099 = vld [vmem:[#allocation4 + $0x1ff0] sm:$0xff]
    %v1100 = vld [vmem:[#allocation4 + $0x1ff8] sm:$0xff]
    %v1101 = vld [vmem:[#allocation4 + $0x2000] sm:$0xff]
    %v1102 = vld [vmem:[#allocation4 + $0x2008] sm:$0xff]
    %v1103 = vld [vmem:[#allocation4 + $0x2010] sm:$0xff]
    %v1104 = vld [vmem:[#allocation4 + $0x2018] sm:$0xff]
    %v1105 = vld [vmem:[#allocation4 + $0x2020] sm:$0xff]
    %v1106 = vld [vmem:[#allocation4 + $0x2028] sm:$0xff]
    %v1107 = vld [vmem:[#allocation4 + $0x2030] sm:$0xff]
    %v1108 = vld [vmem:[#allocation4 + $0x2038] sm:$0xff]
    %v1109 = vld [vmem:[#allocation4 + $0x2040] sm:$0xff]
    %v1110 = vld [vmem:[#allocation4 + $0x2048] sm:$0xff]
    %v1111 = vld [vmem:[#allocation4 + $0x2050] sm:$0xff]
    %v1112 = vld [vmem:[#allocation4 + $0x2058] sm:$0xff]
    %v1113 = vld [vmem:[#allocation4 + $0x2060] sm:$0xff]
    %v1114 = vld [vmem:[#allocation4 + $0x2068] sm:$0xff]
    %v1115 = vld [vmem:[#allocation4 + $0x2070] sm:$0xff]
    %v1116 = vld [vmem:[#allocation4 + $0x2078] sm:$0xff]
    %v1117 = vld [vmem:[#allocation4 + $0x2080] sm:$0xff]
    %v1118 = vld [vmem:[#allocation4 + $0x2088] sm:$0xff]
    %v1119 = vld [vmem:[#allocation4 + $0x2090] sm:$0xff]
    %v1120 = vld [vmem:[#allocation4 + $0x2098] sm:$0xff]
    %v1121 = vld [vmem:[#allocation4 + $0x20a0] sm:$0xff]
    %v1122 = vld [vmem:[#allocation4 + $0x20a8] sm:$0xff]
    %v1123 = vld [vmem:[#allocation4 + $0x20b0] sm:$0xff]
    %v1124 = vld [vmem:[#allocation4 + $0x20b8] sm:$0xff]
    %v1125 = vld [vmem:[#allocation4 + $0x20c0] sm:$0xff]
    %v1126 = vld [vmem:[#allocation4 + $0x20c8] sm:$0xff]
    %v1127 = vld [vmem:[#allocation4 + $0x20d0] sm:$0xff]
    %v1128 = vld [vmem:[#allocation4 + $0x20d8] sm:$0xff]
    %v1129 = vld [vmem:[#allocation4 + $0x20e0] sm:$0xff]
    %v1130 = vld [vmem:[#allocation4 + $0x20e8] sm:$0xff]
    %v1131 = vld [vmem:[#allocation4 + $0x20f0] sm:$0xff]
    %v1132 = vld [vmem:[#allocation4 + $0x20f8] sm:$0xff]
    %v1133 = vld [vmem:[#allocation4 + $0x2100] sm:$0xff]
    %v1134 = vld [vmem:[#allocation4 + $0x2108] sm:$0xff]
    %v1135 = vld [vmem:[#allocation4 + $0x2110] sm:$0xff]
    %v1136 = vld [vmem:[#allocation4 + $0x2118] sm:$0xff]
    %v1137 = vld [vmem:[#allocation4 + $0x2120] sm:$0xff]
    %v1138 = vld [vmem:[#allocation4 + $0x2128] sm:$0xff]
    %v1139 = vld [vmem:[#allocation4 + $0x2130] sm:$0xff]
    %v1140 = vld [vmem:[#allocation4 + $0x2138] sm:$0xff]
    %v1141 = vld [vmem:[#allocation4 + $0x2140] sm:$0xff]
    %v1142 = vld [vmem:[#allocation4 + $0x2148] sm:$0xff]
    %v1143 = vld [vmem:[#allocation4 + $0x2150] sm:$0xff]
    %v1144 = vld [vmem:[#allocation4 + $0x2158] sm:$0xff]
    %v1145 = vld [vmem:[#allocation4 + $0x2160] sm:$0xff]
    %v1146 = vld [vmem:[#allocation4 + $0x2168] sm:$0xff]
    %v1147 = vld [vmem:[#allocation4 + $0x2170] sm:$0xff]
    %v1148 = vld [vmem:[#allocation4 + $0x2178] sm:$0xff]
    %v1149 = vld [vmem:[#allocation4 + $0x2180] sm:$0xff]
    %v1150 = vld [vmem:[#allocation4 + $0x2188] sm:$0xff]
    %v1151 = vld [vmem:[#allocation4 + $0x2190] sm:$0xff]
    %v1152 = vld [vmem:[#allocation4 + $0x2198] sm:$0xff]
    %v1153 = vld [vmem:[#allocation4 + $0x21a0] sm:$0xff]
    %v1154 = vld [vmem:[#allocation4 + $0x21a8] sm:$0xff]
    %v1155 = vld [vmem:[#allocation4 + $0x21b0] sm:$0xff]
    %v1156 = vld [vmem:[#allocation4 + $0x21b8] sm:$0xff]
    %v1157 = vld [vmem:[#allocation4 + $0x21c0] sm:$0xff]
    %v1158 = vld [vmem:[#allocation4 + $0x21c8] sm:$0xff]
    %v1159 = vld [vmem:[#allocation4 + $0x21d0] sm:$0xff]
    %v1160 = vld [vmem:[#allocation4 + $0x21d8] sm:$0xff]
    %v1161 = vld [vmem:[#allocation4 + $0x21e0] sm:$0xff]
    %v1162 = vld [vmem:[#allocation4 + $0x21e8] sm:$0xff]
    %v1163 = vld [vmem:[#allocation4 + $0x21f0] sm:$0xff]
    %v1164 = vld [vmem:[#allocation4 + $0x21f8] sm:$0xff]
    %v1165 = vld [vmem:[#allocation4 + $0x2200] sm:$0xff]
    %v1166 = vld [vmem:[#allocation4 + $0x2208] sm:$0xff]
    %v1167 = vld [vmem:[#allocation4 + $0x2210] sm:$0xff]
    %v1168 = vld [vmem:[#allocation4 + $0x2218] sm:$0xff]
    %v1169 = vld [vmem:[#allocation4 + $0x2220] sm:$0xff]
    %v1170 = vld [vmem:[#allocation4 + $0x2228] sm:$0xff]
    %v1171 = vld [vmem:[#allocation4 + $0x2230] sm:$0xff]
    %v1172 = vld [vmem:[#allocation4 + $0x2238] sm:$0xff]
    %v1173 = vld [vmem:[#allocation4 + $0x2240] sm:$0xff]
    %v1174 = vld [vmem:[#allocation4 + $0x2248] sm:$0xff]
    %v1175 = vld [vmem:[#allocation4 + $0x2250] sm:$0xff]
    %v1176 = vld [vmem:[#allocation4 + $0x2258] sm:$0xff]
    %v1177 = vld [vmem:[#allocation4 + $0x2260] sm:$0xff]
    %v1178 = vld [vmem:[#allocation4 + $0x2268] sm:$0xff]
    %v1179 = vld [vmem:[#allocation4 + $0x2270] sm:$0xff]
    %v1180 = vld [vmem:[#allocation4 + $0x2278] sm:$0xff]
    %v1181 = vld [vmem:[#allocation4 + $0x2280] sm:$0xff]
    %v1182 = vld [vmem:[#allocation4 + $0x2288] sm:$0xff]
    %v1183 = vld [vmem:[#allocation4 + $0x2290] sm:$0xff]
    %v1184 = vld [vmem:[#allocation4 + $0x2298] sm:$0xff]
    %v1185 = vld [vmem:[#allocation4 + $0x22a0] sm:$0xff]
    %v1186 = vld [vmem:[#allocation4 + $0x22a8] sm:$0xff]
    %v1187 = vld [vmem:[#allocation4 + $0x22b0] sm:$0xff]
    %v1188 = vld [vmem:[#allocation4 + $0x22b8] sm:$0xff]
    %v1189 = vld [vmem:[#allocation4 + $0x22c0] sm:$0xff]
    %v1190 = vld [vmem:[#allocation4 + $0x22c8] sm:$0xff]
    %v1191 = vld [vmem:[#allocation4 + $0x22d0] sm:$0xff]
    %v1192 = vld [vmem:[#allocation4 + $0x22d8] sm:$0xff]
    %v1193 = vld [vmem:[#allocation4 + $0x22e0] sm:$0xff]
    %v1194 = vld [vmem:[#allocation4 + $0x22e8] sm:$0xff]
    %v1195 = vld [vmem:[#allocation4 + $0x22f0] sm:$0xff]
    %v1196 = vld [vmem:[#allocation4 + $0x22f8] sm:$0xff]
    %v1197 = vld [vmem:[#allocation4 + $0x2300] sm:$0xff]
    %v1198 = vld [vmem:[#allocation4 + $0x2308] sm:$0xff]
    %v1199 = vld [vmem:[#allocation4 + $0x2310] sm:$0xff]
    %v1200 = vld [vmem:[#allocation4 + $0x2318] sm:$0xff]
    %v1201 = vld [vmem:[#allocation4 + $0x2320] sm:$0xff]
    %v1202 = vld [vmem:[#allocation4 + $0x2328] sm:$0xff]
    %v1203 = vld [vmem:[#allocation4 + $0x2330] sm:$0xff]
    %v1204 = vld [vmem:[#allocation4 + $0x2338] sm:$0xff]
    %v1205 = vld [vmem:[#allocation4 + $0x2340] sm:$0xff]
    %v1206 = vld [vmem:[#allocation4 + $0x2348] sm:$0xff]
    %v1207 = vld [vmem:[#allocation4 + $0x2350] sm:$0xff]
    %v1208 = vld [vmem:[#allocation4 + $0x2358] sm:$0xff]
    %v1209 = vld [vmem:[#allocation4 + $0x2360] sm:$0xff]
    %v1210 = vld [vmem:[#allocation4 + $0x2368] sm:$0xff]
    %v1211 = vld [vmem:[#allocation4 + $0x2370] sm:$0xff]
    %v1212 = vld [vmem:[#allocation4 + $0x2378] sm:$0xff]
    %v1213 = vld [vmem:[#allocation4 + $0x2380] sm:$0xff]
    %v1214 = vld [vmem:[#allocation4 + $0x2388] sm:$0xff]
    %v1215 = vld [vmem:[#allocation4 + $0x2390] sm:$0xff]
    %v1216 = vld [vmem:[#allocation4 + $0x2398] sm:$0xff]
    %v1217 = vld [vmem:[#allocation4 + $0x23a0] sm:$0xff]
    %v1218 = vld [vmem:[#allocation4 + $0x23a8] sm:$0xff]
    %v1219 = vld [vmem:[#allocation4 + $0x23b0] sm:$0xff]
    %v1220 = vld [vmem:[#allocation4 + $0x23b8] sm:$0xff]
    %v1221 = vld [vmem:[#allocation4 + $0x23c0] sm:$0xff]
    %v1222 = vld [vmem:[#allocation4 + $0x23c8] sm:$0xff]
    %v1223 = vld [vmem:[#allocation4 + $0x23d0] sm:$0xff]
    %v1224 = vld [vmem:[#allocation4 + $0x23d8] sm:$0xff]
    %v1225 = vld [vmem:[#allocation4 + $0x23e0] sm:$0xff]
    %v1226 = vld [vmem:[#allocation4 + $0x23e8] sm:$0xff]
    %v1227 = vld [vmem:[#allocation4 + $0x23f0] sm:$0xff]
    %v1228 = vld [vmem:[#allocation4 + $0x23f8] sm:$0xff]
    %v1229 = vld [vmem:[#allocation4 + $0x2400] sm:$0xff]
    %v1230 = vld [vmem:[#allocation4 + $0x2408] sm:$0xff]
    %v1231 = vld [vmem:[#allocation4 + $0x2410] sm:$0xff]
    %v1232 = vld [vmem:[#allocation4 + $0x2418] sm:$0xff]
    %v1233 = vld [vmem:[#allocation4 + $0x2420] sm:$0xff]
    %v1234 = vld [vmem:[#allocation4 + $0x2428] sm:$0xff]
    %v1235 = vld [vmem:[#allocation4 + $0x2430] sm:$0xff]
    %v1236 = vld [vmem:[#allocation4 + $0x2438] sm:$0xff]
    %v1237 = vld [vmem:[#allocation4 + $0x2440] sm:$0xff]
    %v1238 = vld [vmem:[#allocation4 + $0x2448] sm:$0xff]
    %v1239 = vld [vmem:[#allocation4 + $0x2450] sm:$0xff]
    %v1240 = vld [vmem:[#allocation4 + $0x2458] sm:$0xff]
    %v1241 = vld [vmem:[#allocation4 + $0x2460] sm:$0xff]
    %v1242 = vld [vmem:[#allocation4 + $0x2468] sm:$0xff]
    %v1243 = vld [vmem:[#allocation4 + $0x2470] sm:$0xff]
    %v1244 = vld [vmem:[#allocation4 + $0x2478] sm:$0xff]
    %v1245 = vld [vmem:[#allocation4 + $0x2480] sm:$0xff]
    %v1246 = vld [vmem:[#allocation4 + $0x2488] sm:$0xff]
    %v1247 = vld [vmem:[#allocation4 + $0x2490] sm:$0xff]
    %v1248 = vld [vmem:[#allocation4 + $0x2498] sm:$0xff]
    %v1249 = vld [vmem:[#allocation4 + $0x24a0] sm:$0xff]
    %v1250 = vld [vmem:[#allocation4 + $0x24a8] sm:$0xff]
    %v1251 = vld [vmem:[#allocation4 + $0x24b0] sm:$0xff]
    %v1252 = vld [vmem:[#allocation4 + $0x24b8] sm:$0xff]
    %v1253 = vld [vmem:[#allocation4 + $0x24c0] sm:$0xff]
    %v1254 = vld [vmem:[#allocation4 + $0x24c8] sm:$0xff]
    %v1255 = vld [vmem:[#allocation4 + $0x24d0] sm:$0xff]
    %v1256 = vld [vmem:[#allocation4 + $0x24d8] sm:$0xff]
    %v1257 = vld [vmem:[#allocation4 + $0x24e0] sm:$0xff]
    %v1258 = vld [vmem:[#allocation4 + $0x24e8] sm:$0xff]
    %v1259 = vld [vmem:[#allocation4 + $0x24f0] sm:$0xff]
    %v1260 = vld [vmem:[#allocation4 + $0x24f8] sm:$0xff]
    %v1261 = vld [vmem:[#allocation4 + $0x2500] sm:$0xff]
    %v1262 = vld [vmem:[#allocation4 + $0x2508] sm:$0xff]
    %v1263 = vld [vmem:[#allocation4 + $0x2510] sm:$0xff]
    %v1264 = vld [vmem:[#allocation4 + $0x2518] sm:$0xff]
    %v1265 = vld [vmem:[#allocation4 + $0x2520] sm:$0xff]
    %v1266 = vld [vmem:[#allocation4 + $0x2528] sm:$0xff]
    %v1267 = vld [vmem:[#allocation4 + $0x2530] sm:$0xff]
    %v1268 = vld [vmem:[#allocation4 + $0x2538] sm:$0xff]
    %v1269 = vld [vmem:[#allocation4 + $0x2540] sm:$0xff]
    %v1270 = vld [vmem:[#allocation4 + $0x2548] sm:$0xff]
    %v1271 = vld [vmem:[#allocation4 + $0x2550] sm:$0xff]
    %v1272 = vld [vmem:[#allocation4 + $0x2558] sm:$0xff]
    %v1273 = vld [vmem:[#allocation4 + $0x2560] sm:$0xff]
    %v1274 = vld [vmem:[#allocation4 + $0x2568] sm:$0xff]
    %v1275 = vld [vmem:[#allocation4 + $0x2570] sm:$0xff]
    %v1276 = vld [vmem:[#allocation4 + $0x2578] sm:$0xff]
    %v1277 = vld [vmem:[#allocation4 + $0x2580] sm:$0xff]
    %v1278 = vld [vmem:[#allocation4 + $0x2588] sm:$0xff]
    %v1279 = vld [vmem:[#allocation4 + $0x2590] sm:$0xff]
    %v1280 = vld [vmem:[#allocation4 + $0x2598] sm:$0xff]
    %v1281 = vld [vmem:[#allocation4 + $0x25a0] sm:$0xff]
    %v1282 = vld [vmem:[#allocation4 + $0x25a8] sm:$0xff]
    %v1283 = vld [vmem:[#allocation4 + $0x25b0] sm:$0xff]
    %v1284 = vld [vmem:[#allocation4 + $0x25b8] sm:$0xff]
    %v1285 = vld [vmem:[#allocation4 + $0x25c0] sm:$0xff]
    %v1286 = vld [vmem:[#allocation4 + $0x25c8] sm:$0xff]
    %v1287 = vld [vmem:[#allocation4 + $0x25d0] sm:$0xff]
    %v1288 = vld [vmem:[#allocation4 + $0x25d8] sm:$0xff]
    %v1289 = vld [vmem:[#allocation4 + $0x25e0] sm:$0xff]
    %v1290 = vld [vmem:[#allocation4 + $0x25e8] sm:$0xff]
    %v1291 = vld [vmem:[#allocation4 + $0x25f0] sm:$0xff]
    %v1292 = vld [vmem:[#allocation4 + $0x25f8] sm:$0xff]
    %v1293 = vld [vmem:[#allocation4 + $0x2600] sm:$0xff]
    %v1294 = vld [vmem:[#allocation4 + $0x2608] sm:$0xff]
    %v1295 = vld [vmem:[#allocation4 + $0x2610] sm:$0xff]
    %v1296 = vld [vmem:[#allocation4 + $0x2618] sm:$0xff]
    %v1297 = vld [vmem:[#allocation4 + $0x2620] sm:$0xff]
    %v1298 = vld [vmem:[#allocation4 + $0x2628] sm:$0xff]
    %v1299 = vld [vmem:[#allocation4 + $0x2630] sm:$0xff]
    %v1300 = vld [vmem:[#allocation4 + $0x2638] sm:$0xff]
    %v1301 = vld [vmem:[#allocation4 + $0x2640] sm:$0xff]
    %v1302 = vld [vmem:[#allocation4 + $0x2648] sm:$0xff]
    %v1303 = vld [vmem:[#allocation4 + $0x2650] sm:$0xff]
    %v1304 = vld [vmem:[#allocation4 + $0x2658] sm:$0xff]
    %v1305 = vld [vmem:[#allocation4 + $0x2660] sm:$0xff]
    %v1306 = vld [vmem:[#allocation4 + $0x2668] sm:$0xff]
    %v1307 = vld [vmem:[#allocation4 + $0x2670] sm:$0xff]
    %v1308 = vld [vmem:[#allocation4 + $0x2678] sm:$0xff]
    %v1309 = vld [vmem:[#allocation4 + $0x2680] sm:$0xff]
    %v1310 = vld [vmem:[#allocation4 + $0x2688] sm:$0xff]
    %v1311 = vld [vmem:[#allocation4 + $0x2690] sm:$0xff]
    %v1312 = vld [vmem:[#allocation4 + $0x2698] sm:$0xff]
    %v1313 = vld [vmem:[#allocation4 + $0x26a0] sm:$0xff]
    %v1314 = vld [vmem:[#allocation4 + $0x26a8] sm:$0xff]
    %v1315 = vld [vmem:[#allocation4 + $0x26b0] sm:$0xff]
    %v1316 = vld [vmem:[#allocation4 + $0x26b8] sm:$0xff]
    %v1317 = vld [vmem:[#allocation4 + $0x26c0] sm:$0xff]
    %v1318 = vld [vmem:[#allocation4 + $0x26c8] sm:$0xff]
    %v1319 = vld [vmem:[#allocation4 + $0x26d0] sm:$0xff]
    %v1320 = vld [vmem:[#allocation4 + $0x26d8] sm:$0xff]
    %v1321 = vld [vmem:[#allocation4 + $0x26e0] sm:$0xff]
    %v1322 = vld [vmem:[#allocation4 + $0x26e8] sm:$0xff]
    %v1323 = vld [vmem:[#allocation4 + $0x26f0] sm:$0xff]
    %v1324 = vld [vmem:[#allocation4 + $0x26f8] sm:$0xff]
    %v1325 = vld [vmem:[#allocation4 + $0x2700] sm:$0xff]
    %v1326 = vld [vmem:[#allocation4 + $0x2708] sm:$0xff]
    %v1327 = vld [vmem:[#allocation4 + $0x2710] sm:$0xff]
    %v1328 = vld [vmem:[#allocation4 + $0x2718] sm:$0xff]
    %v1329 = vld [vmem:[#allocation4 + $0x2720] sm:$0xff]
    %v1330 = vld [vmem:[#allocation4 + $0x2728] sm:$0xff]
    %v1331 = vld [vmem:[#allocation4 + $0x2730] sm:$0xff]
    %v1332 = vld [vmem:[#allocation4 + $0x2738] sm:$0xff]
    %v1333 = vld [vmem:[#allocation4 + $0x2740] sm:$0xff]
    %v1334 = vld [vmem:[#allocation4 + $0x2748] sm:$0xff]
    %v1335 = vld [vmem:[#allocation4 + $0x2750] sm:$0xff]
    %v1336 = vld [vmem:[#allocation4 + $0x2758] sm:$0xff]
    %v1337 = vld [vmem:[#allocation4 + $0x2760] sm:$0xff]
    %v1338 = vld [vmem:[#allocation4 + $0x2768] sm:$0xff]
    %v1339 = vld [vmem:[#allocation4 + $0x2770] sm:$0xff]
    %v1340 = vld [vmem:[#allocation4 + $0x2778] sm:$0xff]
    %v1341 = vld [vmem:[#allocation4 + $0x2780] sm:$0xff]
    %v1342 = vld [vmem:[#allocation4 + $0x2788] sm:$0xff]
    %v1343 = vld [vmem:[#allocation4 + $0x2790] sm:$0xff]
    %v1344 = vld [vmem:[#allocation4 + $0x2798] sm:$0xff]
    %v1345 = vld [vmem:[#allocation4 + $0x27a0] sm:$0xff]
    %v1346 = vld [vmem:[#allocation4 + $0x27a8] sm:$0xff]
    %v1347 = vld [vmem:[#allocation4 + $0x27b0] sm:$0xff]
    %v1348 = vld [vmem:[#allocation4 + $0x27b8] sm:$0xff]
    %v1349 = vld [vmem:[#allocation4 + $0x27c0] sm:$0xff]
    %v1350 = vld [vmem:[#allocation4 + $0x27c8] sm:$0xff]
    %v1351 = vld [vmem:[#allocation4 + $0x27d0] sm:$0xff]
    %v1352 = vld [vmem:[#allocation4 + $0x27d8] sm:$0xff]
    %v1353 = vld [vmem:[#allocation4 + $0x27e0] sm:$0xff]
    %v1354 = vld [vmem:[#allocation4 + $0x27e8] sm:$0xff]
    %v1355 = vld [vmem:[#allocation4 + $0x27f0] sm:$0xff]
    %v1356 = vld [vmem:[#allocation4 + $0x27f8] sm:$0xff]
    %v1357 = vld [vmem:[#allocation4 + $0x2800] sm:$0xff]
    %v1358 = vld [vmem:[#allocation4 + $0x2808] sm:$0xff]
    %v1359 = vld [vmem:[#allocation4 + $0x2810] sm:$0xff]
    %v1360 = vld [vmem:[#allocation4 + $0x2818] sm:$0xff]
    %v1361 = vld [vmem:[#allocation4 + $0x2820] sm:$0xff]
    %v1362 = vld [vmem:[#allocation4 + $0x2828] sm:$0xff]
    %v1363 = vld [vmem:[#allocation4 + $0x2830] sm:$0xff]
    %v1364 = vld [vmem:[#allocation4 + $0x2838] sm:$0xff]
    %v1365 = vld [vmem:[#allocation4 + $0x2840] sm:$0xff]
    %v1366 = vld [vmem:[#allocation4 + $0x2848] sm:$0xff]
    %v1367 = vld [vmem:[#allocation4 + $0x2850] sm:$0xff]
    %v1368 = vld [vmem:[#allocation4 + $0x2858] sm:$0xff]
    %v1369 = vld [vmem:[#allocation4 + $0x2860] sm:$0xff]
    %v1370 = vld [vmem:[#allocation4 + $0x2868] sm:$0xff]
    %v1371 = vld [vmem:[#allocation4 + $0x2870] sm:$0xff]
    %v1372 = vld [vmem:[#allocation4 + $0x2878] sm:$0xff]
    %v1373 = vld [vmem:[#allocation4 + $0x2880] sm:$0xff]
    %v1374 = vld [vmem:[#allocation4 + $0x2888] sm:$0xff]
    %v1375 = vld [vmem:[#allocation4 + $0x2890] sm:$0xff]
    %v1376 = vld [vmem:[#allocation4 + $0x2898] sm:$0xff]
    %v1377 = vld [vmem:[#allocation4 + $0x28a0] sm:$0xff]
    %v1378 = vld [vmem:[#allocation4 + $0x28a8] sm:$0xff]
    %v1379 = vld [vmem:[#allocation4 + $0x28b0] sm:$0xff]
    %v1380 = vld [vmem:[#allocation4 + $0x28b8] sm:$0xff]
    %v1381 = vld [vmem:[#allocation4 + $0x28c0] sm:$0xff]
    %v1382 = vld [vmem:[#allocation4 + $0x28c8] sm:$0xff]
    %v1383 = vld [vmem:[#allocation4 + $0x28d0] sm:$0xff]
    %v1384 = vld [vmem:[#allocation4 + $0x28d8] sm:$0xff]
    %v1385 = vld [vmem:[#allocation4 + $0x28e0] sm:$0xff]
    %v1386 = vld [vmem:[#allocation4 + $0x28e8] sm:$0xff]
    %v1387 = vld [vmem:[#allocation4 + $0x28f0] sm:$0xff]
    %v1388 = vld [vmem:[#allocation4 + $0x28f8] sm:$0xff]
    %v1389 = vld [vmem:[#allocation4 + $0x2900] sm:$0xff]
    %v1390 = vld [vmem:[#allocation4 + $0x2908] sm:$0xff]
    %v1391 = vld [vmem:[#allocation4 + $0x2910] sm:$0xff]
    %v1392 = vld [vmem:[#allocation4 + $0x2918] sm:$0xff]
    %v1393 = vld [vmem:[#allocation4 + $0x2920] sm:$0xff]
    %v1394 = vld [vmem:[#allocation4 + $0x2928] sm:$0xff]
    %v1395 = vld [vmem:[#allocation4 + $0x2930] sm:$0xff]
    %v1396 = vld [vmem:[#allocation4 + $0x2938] sm:$0xff]
    %v1397 = vld [vmem:[#allocation4 + $0x2940] sm:$0xff]
    %v1398 = vld [vmem:[#allocation4 + $0x2948] sm:$0xff]
    %v1399 = vld [vmem:[#allocation4 + $0x2950] sm:$0xff]
    %v1400 = vld [vmem:[#allocation4 + $0x2958] sm:$0xff]
    %v1401 = vld [vmem:[#allocation4 + $0x2960] sm:$0xff]
    %v1402 = vld [vmem:[#allocation4 + $0x2968] sm:$0xff]
    %v1403 = vld [vmem:[#allocation4 + $0x2970] sm:$0xff]
    %v1404 = vld [vmem:[#allocation4 + $0x2978] sm:$0xff]
    %v1405 = vld [vmem:[#allocation4 + $0x2980] sm:$0xff]
    %v1406 = vld [vmem:[#allocation4 + $0x2988] sm:$0xff]
    %v1407 = vld [vmem:[#allocation4 + $0x2990] sm:$0xff]
    %v1408 = vld [vmem:[#allocation4 + $0x2998] sm:$0xff]
    %v1409 = vld [vmem:[#allocation4 + $0x29a0] sm:$0xff]
    %v1410 = vld [vmem:[#allocation4 + $0x29a8] sm:$0xff]
    %v1411 = vld [vmem:[#allocation4 + $0x29b0] sm:$0xff]
    %v1412 = vld [vmem:[#allocation4 + $0x29b8] sm:$0xff]
    %v1413 = vld [vmem:[#allocation4 + $0x29c0] sm:$0xff]
    %v1414 = vld [vmem:[#allocation4 + $0x29c8] sm:$0xff]
    %v1415 = vld [vmem:[#allocation4 + $0x29d0] sm:$0xff]
    %v1416 = vld [vmem:[#allocation4 + $0x29d8] sm:$0xff]
    %v1417 = vld [vmem:[#allocation4 + $0x29e0] sm:$0xff]
    %v1418 = vld [vmem:[#allocation4 + $0x29e8] sm:$0xff]
    %v1419 = vld [vmem:[#allocation4 + $0x29f0] sm:$0xff]
    %v1420 = vld [vmem:[#allocation4 + $0x29f8] sm:$0xff]
    %v1421 = vld [vmem:[#allocation4 + $0x2a00] sm:$0xff]
    %v1422 = vld [vmem:[#allocation4 + $0x2a08] sm:$0xff]
    %v1423 = vld [vmem:[#allocation4 + $0x2a10] sm:$0xff]
    %v1424 = vld [vmem:[#allocation4 + $0x2a18] sm:$0xff]
    %v1425 = vld [vmem:[#allocation4 + $0x2a20] sm:$0xff]
    %v1426 = vld [vmem:[#allocation4 + $0x2a28] sm:$0xff]
    %v1427 = vld [vmem:[#allocation4 + $0x2a30] sm:$0xff]
    %v1428 = vld [vmem:[#allocation4 + $0x2a38] sm:$0xff]
    %v1429 = vld [vmem:[#allocation4 + $0x2a40] sm:$0xff]
    %v1430 = vld [vmem:[#allocation4 + $0x2a48] sm:$0xff]
    %v1431 = vld [vmem:[#allocation4 + $0x2a50] sm:$0xff]
    %v1432 = vld [vmem:[#allocation4 + $0x2a58] sm:$0xff]
    %v1433 = vld [vmem:[#allocation4 + $0x2a60] sm:$0xff]
    %v1434 = vld [vmem:[#allocation4 + $0x2a68] sm:$0xff]
    %v1435 = vld [vmem:[#allocation4 + $0x2a70] sm:$0xff]
    %v1436 = vld [vmem:[#allocation4 + $0x2a78] sm:$0xff]
    %v1437 = vld [vmem:[#allocation4 + $0x2a80] sm:$0xff]
    %v1438 = vld [vmem:[#allocation4 + $0x2a88] sm:$0xff]
    %v1439 = vld [vmem:[#allocation4 + $0x2a90] sm:$0xff]
    %v1440 = vld [vmem:[#allocation4 + $0x2a98] sm:$0xff]
    %v1441 = vld [vmem:[#allocation4 + $0x2aa0] sm:$0xff]
    %v1442 = vld [vmem:[#allocation4 + $0x2aa8] sm:$0xff]
    %v1443 = vld [vmem:[#allocation4 + $0x2ab0] sm:$0xff]
    %v1444 = vld [vmem:[#allocation4 + $0x2ab8] sm:$0xff]
    %v1445 = vld [vmem:[#allocation4 + $0x2ac0] sm:$0xff]
    %v1446 = vld [vmem:[#allocation4 + $0x2ac8] sm:$0xff]
    %v1447 = vld [vmem:[#allocation4 + $0x2ad0] sm:$0xff]
    %v1448 = vld [vmem:[#allocation4 + $0x2ad8] sm:$0xff]
    %v1449 = vld [vmem:[#allocation4 + $0x2ae0] sm:$0xff]
    %v1450 = vld [vmem:[#allocation4 + $0x2ae8] sm:$0xff]
    %v1451 = vld [vmem:[#allocation4 + $0x2af0] sm:$0xff]
    %v1452 = vld [vmem:[#allocation4 + $0x2af8] sm:$0xff]
    %v1453 = vld [vmem:[#allocation4 + $0x2b00] sm:$0xff]
    %v1454 = vld [vmem:[#allocation4 + $0x2b08] sm:$0xff]
    %v1455 = vld [vmem:[#allocation4 + $0x2b10] sm:$0xff]
    %v1456 = vld [vmem:[#allocation4 + $0x2b18] sm:$0xff]
    %v1457 = vld [vmem:[#allocation4 + $0x2b20] sm:$0xff]
    %v1458 = vld [vmem:[#allocation4 + $0x2b28] sm:$0xff]
    %v1459 = vld [vmem:[#allocation4 + $0x2b30] sm:$0xff]
    %v1460 = vld [vmem:[#allocation4 + $0x2b38] sm:$0xff]
    %v1461 = vld [vmem:[#allocation4 + $0x2b40] sm:$0xff]
    %v1462 = vld [vmem:[#allocation4 + $0x2b48] sm:$0xff]
    %v1463 = vld [vmem:[#allocation4 + $0x2b50] sm:$0xff]
    %v1464 = vld [vmem:[#allocation4 + $0x2b58] sm:$0xff]
    %v1465 = vld [vmem:[#allocation4 + $0x2b60] sm:$0xff]
    %v1466 = vld [vmem:[#allocation4 + $0x2b68] sm:$0xff]
    %v1467 = vld [vmem:[#allocation4 + $0x2b70] sm:$0xff]
    %v1468 = vld [vmem:[#allocation4 + $0x2b78] sm:$0xff]
    %v1469 = vld [vmem:[#allocation4 + $0x2b80] sm:$0xff]
    %v1470 = vld [vmem:[#allocation4 + $0x2b88] sm:$0xff]
    %v1471 = vld [vmem:[#allocation4 + $0x2b90] sm:$0xff]
    %v1472 = vld [vmem:[#allocation4 + $0x2b98] sm:$0xff]
    %v1473 = vld [vmem:[#allocation4 + $0x2ba0] sm:$0xff]
    %v1474 = vld [vmem:[#allocation4 + $0x2ba8] sm:$0xff]
    %v1475 = vld [vmem:[#allocation4 + $0x2bb0] sm:$0xff]
    %v1476 = vld [vmem:[#allocation4 + $0x2bb8] sm:$0xff]
    %v1477 = vld [vmem:[#allocation4 + $0x2bc0] sm:$0xff]
    %v1478 = vld [vmem:[#allocation4 + $0x2bc8] sm:$0xff]
    %v1479 = vld [vmem:[#allocation4 + $0x2bd0] sm:$0xff]
    %v1480 = vld [vmem:[#allocation4 + $0x2bd8] sm:$0xff]
    %v1481 = vld [vmem:[#allocation4 + $0x2be0] sm:$0xff]
    %v1482 = vld [vmem:[#allocation4 + $0x2be8] sm:$0xff]
    %v1483 = vld [vmem:[#allocation4 + $0x2bf0] sm:$0xff]
    %v1484 = vld [vmem:[#allocation4 + $0x2bf8] sm:$0xff]
    %v1485 = vld [vmem:[#allocation4 + $0x2c00] sm:$0xff]
    %v1486 = vld [vmem:[#allocation4 + $0x2c08] sm:$0xff]
    %v1487 = vld [vmem:[#allocation4 + $0x2c10] sm:$0xff]
    %v1488 = vld [vmem:[#allocation4 + $0x2c18] sm:$0xff]
    %v1489 = vld [vmem:[#allocation4 + $0x2c20] sm:$0xff]
    %v1490 = vld [vmem:[#allocation4 + $0x2c28] sm:$0xff]
    %v1491 = vld [vmem:[#allocation4 + $0x2c30] sm:$0xff]
    %v1492 = vld [vmem:[#allocation4 + $0x2c38] sm:$0xff]
    %v1493 = vld [vmem:[#allocation4 + $0x2c40] sm:$0xff]
    %v1494 = vld [vmem:[#allocation4 + $0x2c48] sm:$0xff]
    %v1495 = vld [vmem:[#allocation4 + $0x2c50] sm:$0xff]
    %v1496 = vld [vmem:[#allocation4 + $0x2c58] sm:$0xff]
    %v1497 = vld [vmem:[#allocation4 + $0x2c60] sm:$0xff]
    %v1498 = vld [vmem:[#allocation4 + $0x2c68] sm:$0xff]
    %v1499 = vld [vmem:[#allocation4 + $0x2c70] sm:$0xff]
    %v1500 = vld [vmem:[#allocation4 + $0x2c78] sm:$0xff]
    %v1501 = vld [vmem:[#allocation4 + $0x2c80] sm:$0xff]
    %v1502 = vld [vmem:[#allocation4 + $0x2c88] sm:$0xff]
    %v1503 = vld [vmem:[#allocation4 + $0x2c90] sm:$0xff]
    %v1504 = vld [vmem:[#allocation4 + $0x2c98] sm:$0xff]
    %v1505 = vld [vmem:[#allocation4 + $0x2ca0] sm:$0xff]
    %v1506 = vld [vmem:[#allocation4 + $0x2ca8] sm:$0xff]
    %v1507 = vld [vmem:[#allocation4 + $0x2cb0] sm:$0xff]
    %v1508 = vld [vmem:[#allocation4 + $0x2cb8] sm:$0xff]
    %v1509 = vld [vmem:[#allocation4 + $0x2cc0] sm:$0xff]
    %v1510 = vld [vmem:[#allocation4 + $0x2cc8] sm:$0xff]
    %v1511 = vld [vmem:[#allocation4 + $0x2cd0] sm:$0xff]
    %v1512 = vld [vmem:[#allocation4 + $0x2cd8] sm:$0xff]
    %v1513 = vld [vmem:[#allocation4 + $0x2ce0] sm:$0xff]
    %v1514 = vld [vmem:[#allocation4 + $0x2ce8] sm:$0xff]
    %v1515 = vld [vmem:[#allocation4 + $0x2cf0] sm:$0xff]
    %v1516 = vld [vmem:[#allocation4 + $0x2cf8] sm:$0xff]
    %v1517 = vld [vmem:[#allocation4 + $0x2d00] sm:$0xff]
    %v1518 = vld [vmem:[#allocation4 + $0x2d08] sm:$0xff]
    %v1519 = vld [vmem:[#allocation4 + $0x2d10] sm:$0xff]
    %v1520 = vld [vmem:[#allocation4 + $0x2d18] sm:$0xff]
    %v1521 = vld [vmem:[#allocation4 + $0x2d20] sm:$0xff]
    %v1522 = vld [vmem:[#allocation4 + $0x2d28] sm:$0xff]
    %v1523 = vld [vmem:[#allocation4 + $0x2d30] sm:$0xff]
    %v1524 = vld [vmem:[#allocation4 + $0x2d38] sm:$0xff]
    %v1525 = vld [vmem:[#allocation4 + $0x2d40] sm:$0xff]
    %v1526 = vld [vmem:[#allocation4 + $0x2d48] sm:$0xff]
    %v1527 = vld [vmem:[#allocation4 + $0x2d50] sm:$0xff]
    %v1528 = vld [vmem:[#allocation4 + $0x2d58] sm:$0xff]
    %v1529 = vld [vmem:[#allocation4 + $0x2d60] sm:$0xff]
    %v1530 = vld [vmem:[#allocation4 + $0x2d68] sm:$0xff]
    %v1531 = vld [vmem:[#allocation4 + $0x2d70] sm:$0xff]
    %v1532 = vld [vmem:[#allocation4 + $0x2d78] sm:$0xff]
    %v1533 = vld [vmem:[#allocation4 + $0x2d80] sm:$0xff]
    %v1534 = vld [vmem:[#allocation4 + $0x2d88] sm:$0xff]
    %v1535 = vld [vmem:[#allocation4 + $0x2d90] sm:$0xff]
    %v1536 = vld [vmem:[#allocation4 + $0x2d98] sm:$0xff]
    %v1537 = vld [vmem:[#allocation4 + $0x2da0] sm:$0xff]
    %v1538 = vld [vmem:[#allocation4 + $0x2da8] sm:$0xff]
    %v1539 = vld [vmem:[#allocation4 + $0x2db0] sm:$0xff]
    %v1540 = vld [vmem:[#allocation4 + $0x2db8] sm:$0xff]
    %v1541 = vld [vmem:[#allocation4 + $0x2dc0] sm:$0xff]
    %v1542 = vld [vmem:[#allocation4 + $0x2dc8] sm:$0xff]
    %v1543 = vld [vmem:[#allocation4 + $0x2dd0] sm:$0xff]
    %v1544 = vld [vmem:[#allocation4 + $0x2dd8] sm:$0xff]
    %v1545 = vld [vmem:[#allocation4 + $0x2de0] sm:$0xff]
    %v1546 = vld [vmem:[#allocation4 + $0x2de8] sm:$0xff]
    %v1547 = vld [vmem:[#allocation4 + $0x2df0] sm:$0xff]
    %v1548 = vld [vmem:[#allocation4 + $0x2df8] sm:$0xff]
    %v1549 = vld [vmem:[#allocation4 + $0x2e00] sm:$0xff]
    %v1550 = vld [vmem:[#allocation4 + $0x2e08] sm:$0xff]
    %v1551 = vld [vmem:[#allocation4 + $0x2e10] sm:$0xff]
    %v1552 = vld [vmem:[#allocation4 + $0x2e18] sm:$0xff]
    %v1553 = vld [vmem:[#allocation4 + $0x2e20] sm:$0xff]
    %v1554 = vld [vmem:[#allocation4 + $0x2e28] sm:$0xff]
    %v1555 = vld [vmem:[#allocation4 + $0x2e30] sm:$0xff]
    %v1556 = vld [vmem:[#allocation4 + $0x2e38] sm:$0xff]
    %v1557 = vld [vmem:[#allocation4 + $0x2e40] sm:$0xff]
    %v1558 = vld [vmem:[#allocation4 + $0x2e48] sm:$0xff]
    %v1559 = vld [vmem:[#allocation4 + $0x2e50] sm:$0xff]
    %v1560 = vld [vmem:[#allocation4 + $0x2e58] sm:$0xff]
    %v1561 = vld [vmem:[#allocation4 + $0x2e60] sm:$0xff]
    %v1562 = vld [vmem:[#allocation4 + $0x2e68] sm:$0xff]
    %v1563 = vld [vmem:[#allocation4 + $0x2e70] sm:$0xff]
    %v1564 = vld [vmem:[#allocation4 + $0x2e78] sm:$0xff]
    %v1565 = vld [vmem:[#allocation4 + $0x2e80] sm:$0xff]
    %v1566 = vld [vmem:[#allocation4 + $0x2e88] sm:$0xff]
    %v1567 = vld [vmem:[#allocation4 + $0x2e90] sm:$0xff]
    %v1568 = vld [vmem:[#allocation4 + $0x2e98] sm:$0xff]
    %v1569 = vld [vmem:[#allocation4 + $0x2ea0] sm:$0xff]
    %v1570 = vld [vmem:[#allocation4 + $0x2ea8] sm:$0xff]
    %v1571 = vld [vmem:[#allocation4 + $0x2eb0] sm:$0xff]
    %v1572 = vld [vmem:[#allocation4 + $0x2eb8] sm:$0xff]
    %v1573 = vld [vmem:[#allocation4 + $0x2ec0] sm:$0xff]
    %v1574 = vld [vmem:[#allocation4 + $0x2ec8] sm:$0xff]
    %v1575 = vld [vmem:[#allocation4 + $0x2ed0] sm:$0xff]
    %v1576 = vld [vmem:[#allocation4 + $0x2ed8] sm:$0xff]
    %v1577 = vld [vmem:[#allocation4 + $0x2ee0] sm:$0xff]
    %v1578 = vld [vmem:[#allocation4 + $0x2ee8] sm:$0xff]
    %v1579 = vld [vmem:[#allocation4 + $0x2ef0] sm:$0xff]
    %v1580 = vld [vmem:[#allocation4 + $0x2ef8] sm:$0xff]
    %v1581 = vld [vmem:[#allocation4 + $0x2f00] sm:$0xff]
    %v1582 = vld [vmem:[#allocation4 + $0x2f08] sm:$0xff]
    %v1583 = vld [vmem:[#allocation4 + $0x2f10] sm:$0xff]
    %v1584 = vld [vmem:[#allocation4 + $0x2f18] sm:$0xff]
    %v1585 = vld [vmem:[#allocation4 + $0x2f20] sm:$0xff]
    %v1586 = vld [vmem:[#allocation4 + $0x2f28] sm:$0xff]
    %v1587 = vld [vmem:[#allocation4 + $0x2f30] sm:$0xff]
    %v1588 = vld [vmem:[#allocation4 + $0x2f38] sm:$0xff]
    %v1589 = vld [vmem:[#allocation4 + $0x2f40] sm:$0xff]
    %v1590 = vld [vmem:[#allocation4 + $0x2f48] sm:$0xff]
    %v1591 = vld [vmem:[#allocation4 + $0x2f50] sm:$0xff]
    %v1592 = vld [vmem:[#allocation4 + $0x2f58] sm:$0xff]
    %v1593 = vld [vmem:[#allocation4 + $0x2f60] sm:$0xff]
    %v1594 = vld [vmem:[#allocation4 + $0x2f68] sm:$0xff]
    %v1595 = vld [vmem:[#allocation4 + $0x2f70] sm:$0xff]
    %v1596 = vld [vmem:[#allocation4 + $0x2f78] sm:$0xff]
    %v1597 = vld [vmem:[#allocation4 + $0x2f80] sm:$0xff]
    %v1598 = vld [vmem:[#allocation4 + $0x2f88] sm:$0xff]
    %v1599 = vld [vmem:[#allocation4 + $0x2f90] sm:$0xff]
    %v1600 = vld [vmem:[#allocation4 + $0x2f98] sm:$0xff]
    %v1601 = vld [vmem:[#allocation4 + $0x2fa0] sm:$0xff]
    %v1602 = vld [vmem:[#allocation4 + $0x2fa8] sm:$0xff]
    %v1603 = vld [vmem:[#allocation4 + $0x2fb0] sm:$0xff]
    %v1604 = vld [vmem:[#allocation4 + $0x2fb8] sm:$0xff]
    %v1605 = vld [vmem:[#allocation4 + $0x2fc0] sm:$0xff]
    %v1606 = vld [vmem:[#allocation4 + $0x2fc8] sm:$0xff]
    %v1607 = vld [vmem:[#allocation4 + $0x2fd0] sm:$0xff]
    %v1608 = vld [vmem:[#allocation4 + $0x2fd8] sm:$0xff]
    %v1609 = vld [vmem:[#allocation4 + $0x2fe0] sm:$0xff]
    %v1610 = vld [vmem:[#allocation4 + $0x2fe8] sm:$0xff]
    %v1611 = vld [vmem:[#allocation4 + $0x2ff0] sm:$0xff]
    %v1612 = vld [vmem:[#allocation4 + $0x2ff8] sm:$0xff]
    %v1613 = vld [vmem:[#allocation6] sm:$0xff]
    %v1614 = vld [vmem:[#allocation6 + $0x8] sm:$0xff]
    %v1615 = vld [vmem:[#allocation6 + $0x10] sm:$0xff]
    %v1619 = vlaneseq
    %v1620 = vshrl.u32 %v1619, 7
    %v1621 = vsub.s32 0, %v1620
    %v1622 = vrot.slane %v1613, %v1621
    %v1623 = vlaneseq
    %v1624 = vshrl.u32 %v1623, 7
    %v1625 = vsub.s32 1, %v1624
    %v1626 = vrot.slane %v1613, %v1625
    %v1627 = vlaneseq
    %v1628 = vshrl.u32 %v1627, 7
    %v1629 = vsub.s32 2, %v1628
    %v1630 = vrot.slane %v1613, %v1629
    %v1631 = vlaneseq
    %v1632 = vshrl.u32 %v1631, 7
    %v1633 = vsub.s32 3, %v1632
    %v1634 = vrot.slane %v1613, %v1633
    %v1635 = vlaneseq
    %v1636 = vshrl.u32 %v1635, 7
    %v1637 = vsub.s32 4, %v1636
    %v1638 = vrot.slane %v1613, %v1637
    %v1639 = vlaneseq
    %v1640 = vshrl.u32 %v1639, 7
    %v1641 = vsub.s32 5, %v1640
    %v1642 = vrot.slane %v1613, %v1641
    %v1643 = vlaneseq
    %v1644 = vshrl.u32 %v1643, 7
    %v1645 = vsub.s32 6, %v1644
    %v1646 = vrot.slane %v1613, %v1645
    %v1647 = vlaneseq
    %v1648 = vshrl.u32 %v1647, 7
    %v1649 = vsub.s32 7, %v1648
    %v1650 = vrot.slane %v1613, %v1649
    %v1651 = vlaneseq
    %v1652 = vshrl.u32 %v1651, 7
    %v1653 = vsub.s32 0, %v1652
    %v1654 = vrot.slane %v1614, %v1653
    %v1655 = vlaneseq
    %v1656 = vshrl.u32 %v1655, 7
    %v1657 = vsub.s32 1, %v1656
    %v1658 = vrot.slane %v1614, %v1657
    %v1659 = vlaneseq
    %v1660 = vshrl.u32 %v1659, 7
    %v1661 = vsub.s32 2, %v1660
    %v1662 = vrot.slane %v1614, %v1661
    %v1663 = vlaneseq
    %v1664 = vshrl.u32 %v1663, 7
    %v1665 = vsub.s32 3, %v1664
    %v1666 = vrot.slane %v1614, %v1665
    %v1667 = vlaneseq
    %v1668 = vshrl.u32 %v1667, 7
    %v1669 = vsub.s32 4, %v1668
    %v1670 = vrot.slane %v1614, %v1669
    %v1671 = vlaneseq
    %v1672 = vshrl.u32 %v1671, 7
    %v1673 = vsub.s32 5, %v1672
    %v1674 = vrot.slane %v1614, %v1673
    %v1675 = vlaneseq
    %v1676 = vshrl.u32 %v1675, 7
    %v1677 = vsub.s32 6, %v1676
    %v1678 = vrot.slane %v1614, %v1677
    %v1679 = vlaneseq
    %v1680 = vshrl.u32 %v1679, 7
    %v1681 = vsub.s32 7, %v1680
    %v1682 = vrot.slane %v1614, %v1681
    %v1683 = vlaneseq
    %v1684 = vshrl.u32 %v1683, 7
    %v1685 = vsub.s32 0, %v1684
    %v1686 = vrot.slane %v1615, %v1685
    %v1687 = vlaneseq
    %v1688 = vshrl.u32 %v1687, 7
    %v1689 = vsub.s32 1, %v1688
    %v1690 = vrot.slane %v1615, %v1689
    %v1691 = vlaneseq
    %v1692 = vshrl.u32 %v1691, 7
    %v1693 = vsub.s32 2, %v1692
    %v1694 = vrot.slane %v1615, %v1693
    %v1695 = vlaneseq
    %v1696 = vshrl.u32 %v1695, 7
    %v1697 = vsub.s32 3, %v1696
    %v1698 = vrot.slane %v1615, %v1697
    %v1699 = vlaneseq
    %v1700 = vshrl.u32 %v1699, 7
    %v1701 = vsub.s32 4, %v1700
    %v1702 = vrot.slane %v1615, %v1701
    %v1703 = vlaneseq
    %v1704 = vshrl.u32 %v1703, 7
    %v1705 = vsub.s32 5, %v1704
    %v1706 = vrot.slane %v1615, %v1705
    %v1707 = vlaneseq
    %v1708 = vshrl.u32 %v1707, 7
    %v1709 = vsub.s32 6, %v1708
    %v1710 = vrot.slane %v1615, %v1709
    %v1711 = vlaneseq
    %v1712 = vshrl.u32 %v1711, 7
    %v1713 = vsub.s32 7, %v1712
    %v1714 = vrot.slane %v1615, %v1713
    %v3275 = vunpack.c.l.b16 %v77
    %v3276 = vunpack.c.h.b16 %v77
    %v3277 = vunpack.c.l.b16 %v78
    %v3278 = vunpack.c.h.b16 %v78
    %v3279 = vunpack.c.l.b16 %v79
    %v3280 = vunpack.c.h.b16 %v79
    %v3281 = vunpack.c.l.b16 %v80
    %v3282 = vunpack.c.h.b16 %v80
    %v3283 = vunpack.c.l.b16 %v81
    %v3284 = vunpack.c.h.b16 %v81
    %v3285 = vunpack.c.l.b16 %v82
    %v3286 = vunpack.c.h.b16 %v82
    %v3287 = vunpack.c.l.b16 %v83
    %v3288 = vunpack.c.h.b16 %v83
    %v3289 = vunpack.c.l.b16 %v84
    %v3290 = vunpack.c.h.b16 %v84
    %v3291 = vunpack.c.l.b16 %v85
    %v3292 = vunpack.c.h.b16 %v85
    %v3293 = vunpack.c.l.b16 %v86
    %v3294 = vunpack.c.h.b16 %v86
    %v3295 = vunpack.c.l.b16 %v87
    %v3296 = vunpack.c.h.b16 %v87
    %v3297 = vunpack.c.l.b16 %v88
    %v3298 = vunpack.c.h.b16 %v88
    %v3299 = vunpack.c.l.b16 %v89
    %v3300 = vunpack.c.h.b16 %v89
    %v3301 = vunpack.c.l.b16 %v90
    %v3302 = vunpack.c.h.b16 %v90
    %v3303 = vunpack.c.l.b16 %v91
    %v3304 = vunpack.c.h.b16 %v91
    %v3305 = vunpack.c.l.b16 %v92
    %v3306 = vunpack.c.h.b16 %v92
    %v3307 = vunpack.c.l.b16 %v93
    %v3308 = vunpack.c.h.b16 %v93
    %v3309 = vunpack.c.l.b16 %v94
    %v3310 = vunpack.c.h.b16 %v94
    %v3311 = vunpack.c.l.b16 %v95
    %v3312 = vunpack.c.h.b16 %v95
    %v3313 = vunpack.c.l.b16 %v96
    %v3314 = vunpack.c.h.b16 %v96
    %v3315 = vunpack.c.l.b16 %v97
    %v3316 = vunpack.c.h.b16 %v97
    %v3317 = vunpack.c.l.b16 %v98
    %v3318 = vunpack.c.h.b16 %v98
    %v3319 = vunpack.c.l.b16 %v99
    %v3320 = vunpack.c.h.b16 %v99
    %v3321 = vunpack.c.l.b16 %v100
    %v3322 = vunpack.c.h.b16 %v100
    %v3323 = vunpack.c.l.b16 %v101
    %v3324 = vunpack.c.h.b16 %v101
    %v3325 = vunpack.c.l.b16 %v102
    %v3326 = vunpack.c.h.b16 %v102
    %v3327 = vunpack.c.l.b16 %v103
    %v3328 = vunpack.c.h.b16 %v103
    %v3329 = vunpack.c.l.b16 %v104
    %v3330 = vunpack.c.h.b16 %v104
    %v3331 = vunpack.c.l.b16 %v105
    %v3332 = vunpack.c.h.b16 %v105
    %v3333 = vunpack.c.l.b16 %v106
    %v3334 = vunpack.c.h.b16 %v106
    %v3335 = vunpack.c.l.b16 %v107
    %v3336 = vunpack.c.h.b16 %v107
    %v3337 = vunpack.c.l.b16 %v108
    %v3338 = vunpack.c.h.b16 %v108
    %v3339 = vunpack.c.l.b16 %v109
    %v3340 = vunpack.c.h.b16 %v109
    %v3341 = vunpack.c.l.b16 %v110
    %v3342 = vunpack.c.h.b16 %v110
    %v3343 = vunpack.c.l.b16 %v111
    %v3344 = vunpack.c.h.b16 %v111
    %v3345 = vunpack.c.l.b16 %v112
    %v3346 = vunpack.c.h.b16 %v112
    %v3347 = vunpack.c.l.b16 %v113
    %v3348 = vunpack.c.h.b16 %v113
    %v3349 = vunpack.c.l.b16 %v114
    %v3350 = vunpack.c.h.b16 %v114
    %v3351 = vunpack.c.l.b16 %v115
    %v3352 = vunpack.c.h.b16 %v115
    %v3353 = vunpack.c.l.b16 %v116
    %v3354 = vunpack.c.h.b16 %v116
    %v3355 = vunpack.c.l.b16 %v117
    %v3356 = vunpack.c.h.b16 %v117
    %v3357 = vunpack.c.l.b16 %v118
    %v3358 = vunpack.c.h.b16 %v118
    %v3359 = vunpack.c.l.b16 %v119
    %v3360 = vunpack.c.h.b16 %v119
    %v3361 = vunpack.c.l.b16 %v120
    %v3362 = vunpack.c.h.b16 %v120
    %v3363 = vunpack.c.l.b16 %v121
    %v3364 = vunpack.c.h.b16 %v121
    %v3365 = vunpack.c.l.b16 %v122
    %v3366 = vunpack.c.h.b16 %v122
    %v3367 = vunpack.c.l.b16 %v123
    %v3368 = vunpack.c.h.b16 %v123
    %v3369 = vunpack.c.l.b16 %v124
    %v3370 = vunpack.c.h.b16 %v124
    %v3371 = vunpack.c.l.b16 %v125
    %v3372 = vunpack.c.h.b16 %v125
    %v3373 = vunpack.c.l.b16 %v126
    %v3374 = vunpack.c.h.b16 %v126
    %v3375 = vunpack.c.l.b16 %v127
    %v3376 = vunpack.c.h.b16 %v127
    %v3377 = vunpack.c.l.b16 %v128
    %v3378 = vunpack.c.h.b16 %v128
    %v3379 = vunpack.c.l.b16 %v129
    %v3380 = vunpack.c.h.b16 %v129
    %v3381 = vunpack.c.l.b16 %v130
    %v3382 = vunpack.c.h.b16 %v130
    %v3383 = vunpack.c.l.b16 %v131
    %v3384 = vunpack.c.h.b16 %v131
    %v3385 = vunpack.c.l.b16 %v132
    %v3386 = vunpack.c.h.b16 %v132
    %v3387 = vunpack.c.l.b16 %v133
    %v3388 = vunpack.c.h.b16 %v133
    %v3389 = vunpack.c.l.b16 %v134
    %v3390 = vunpack.c.h.b16 %v134
    %v3391 = vunpack.c.l.b16 %v135
    %v3392 = vunpack.c.h.b16 %v135
    %v3393 = vunpack.c.l.b16 %v136
    %v3394 = vunpack.c.h.b16 %v136
    %v3395 = vunpack.c.l.b16 %v137
    %v3396 = vunpack.c.h.b16 %v137
    %v3397 = vunpack.c.l.b16 %v138
    %v3398 = vunpack.c.h.b16 %v138
    %v3399 = vunpack.c.l.b16 %v139
    %v3400 = vunpack.c.h.b16 %v139
    %v3401 = vunpack.c.l.b16 %v140
    %v3402 = vunpack.c.h.b16 %v140
    %v3403 = vunpack.c.l.b16 %v141
    %v3404 = vunpack.c.h.b16 %v141
    %v3405 = vunpack.c.l.b16 %v142
    %v3406 = vunpack.c.h.b16 %v142
    %v3407 = vunpack.c.l.b16 %v143
    %v3408 = vunpack.c.h.b16 %v143
    %v3409 = vunpack.c.l.b16 %v144
    %v3410 = vunpack.c.h.b16 %v144
    %v3411 = vunpack.c.l.b16 %v145
    %v3412 = vunpack.c.h.b16 %v145
    %v3413 = vunpack.c.l.b16 %v146
    %v3414 = vunpack.c.h.b16 %v146
    %v3415 = vunpack.c.l.b16 %v147
    %v3416 = vunpack.c.h.b16 %v147
    %v3417 = vunpack.c.l.b16 %v148
    %v3418 = vunpack.c.h.b16 %v148
    %v3419 = vunpack.c.l.b16 %v149
    %v3420 = vunpack.c.h.b16 %v149
    %v3421 = vunpack.c.l.b16 %v150
    %v3422 = vunpack.c.h.b16 %v150
    %v3423 = vunpack.c.l.b16 %v151
    %v3424 = vunpack.c.h.b16 %v151
    %v3425 = vunpack.c.l.b16 %v152
    %v3426 = vunpack.c.h.b16 %v152
    %v3427 = vunpack.c.l.b16 %v153
    %v3428 = vunpack.c.h.b16 %v153
    %v3429 = vunpack.c.l.b16 %v154
    %v3430 = vunpack.c.h.b16 %v154
    %v3431 = vunpack.c.l.b16 %v155
    %v3432 = vunpack.c.h.b16 %v155
    %v3433 = vunpack.c.l.b16 %v156
    %v3434 = vunpack.c.h.b16 %v156
    %v3435 = vunpack.c.l.b16 %v157
    %v3436 = vunpack.c.h.b16 %v157
    %v3437 = vunpack.c.l.b16 %v158
    %v3438 = vunpack.c.h.b16 %v158
    %v3439 = vunpack.c.l.b16 %v159
    %v3440 = vunpack.c.h.b16 %v159
    %v3441 = vunpack.c.l.b16 %v160
    %v3442 = vunpack.c.h.b16 %v160
    %v3443 = vunpack.c.l.b16 %v161
    %v3444 = vunpack.c.h.b16 %v161
    %v3445 = vunpack.c.l.b16 %v162
    %v3446 = vunpack.c.h.b16 %v162
    %v3447 = vunpack.c.l.b16 %v163
    %v3448 = vunpack.c.h.b16 %v163
    %v3449 = vunpack.c.l.b16 %v164
    %v3450 = vunpack.c.h.b16 %v164
    %v3451 = vunpack.c.l.b16 %v165
    %v3452 = vunpack.c.h.b16 %v165
    %v3453 = vunpack.c.l.b16 %v166
    %v3454 = vunpack.c.h.b16 %v166
    %v3455 = vunpack.c.l.b16 %v167
    %v3456 = vunpack.c.h.b16 %v167
    %v3457 = vunpack.c.l.b16 %v168
    %v3458 = vunpack.c.h.b16 %v168
    %v3459 = vunpack.c.l.b16 %v169
    %v3460 = vunpack.c.h.b16 %v169
    %v3461 = vunpack.c.l.b16 %v170
    %v3462 = vunpack.c.h.b16 %v170
    %v3463 = vunpack.c.l.b16 %v171
    %v3464 = vunpack.c.h.b16 %v171
    %v3465 = vunpack.c.l.b16 %v172
    %v3466 = vunpack.c.h.b16 %v172
    %v3467 = vunpack.c.l.b16 %v173
    %v3468 = vunpack.c.h.b16 %v173
    %v3469 = vunpack.c.l.b16 %v174
    %v3470 = vunpack.c.h.b16 %v174
    %v3471 = vunpack.c.l.b16 %v175
    %v3472 = vunpack.c.h.b16 %v175
    %v3473 = vunpack.c.l.b16 %v176
    %v3474 = vunpack.c.h.b16 %v176
    %v3475 = vunpack.c.l.b16 %v177
    %v3476 = vunpack.c.h.b16 %v177
    %v3477 = vunpack.c.l.b16 %v178
    %v3478 = vunpack.c.h.b16 %v178
    %v3479 = vunpack.c.l.b16 %v179
    %v3480 = vunpack.c.h.b16 %v179
    %v3481 = vunpack.c.l.b16 %v180
    %v3482 = vunpack.c.h.b16 %v180
    %v3483 = vunpack.c.l.b16 %v181
    %v3484 = vunpack.c.h.b16 %v181
    %v3485 = vunpack.c.l.b16 %v182
    %v3486 = vunpack.c.h.b16 %v182
    %v3487 = vunpack.c.l.b16 %v183
    %v3488 = vunpack.c.h.b16 %v183
    %v3489 = vunpack.c.l.b16 %v184
    %v3490 = vunpack.c.h.b16 %v184
    %v3491 = vunpack.c.l.b16 %v185
    %v3492 = vunpack.c.h.b16 %v185
    %v3493 = vunpack.c.l.b16 %v186
    %v3494 = vunpack.c.h.b16 %v186
    %v3495 = vunpack.c.l.b16 %v187
    %v3496 = vunpack.c.h.b16 %v187
    %v3497 = vunpack.c.l.b16 %v188
    %v3498 = vunpack.c.h.b16 %v188
    %v3499 = vunpack.c.l.b16 %v189
    %v3500 = vunpack.c.h.b16 %v189
    %v3501 = vunpack.c.l.b16 %v190
    %v3502 = vunpack.c.h.b16 %v190
    %v3503 = vunpack.c.l.b16 %v191
    %v3504 = vunpack.c.h.b16 %v191
    %v3505 = vunpack.c.l.b16 %v192
    %v3506 = vunpack.c.h.b16 %v192
    %v3507 = vunpack.c.l.b16 %v193
    %v3508 = vunpack.c.h.b16 %v193
    %v3509 = vunpack.c.l.b16 %v194
    %v3510 = vunpack.c.h.b16 %v194
    %v3511 = vunpack.c.l.b16 %v195
    %v3512 = vunpack.c.h.b16 %v195
    %v3513 = vunpack.c.l.b16 %v196
    %v3514 = vunpack.c.h.b16 %v196
    %v3515 = vunpack.c.l.b16 %v197
    %v3516 = vunpack.c.h.b16 %v197
    %v3517 = vunpack.c.l.b16 %v198
    %v3518 = vunpack.c.h.b16 %v198
    %v3519 = vunpack.c.l.b16 %v199
    %v3520 = vunpack.c.h.b16 %v199
    %v3521 = vunpack.c.l.b16 %v200
    %v3522 = vunpack.c.h.b16 %v200
    %v3523 = vunpack.c.l.b16 %v201
    %v3524 = vunpack.c.h.b16 %v201
    %v3525 = vunpack.c.l.b16 %v202
    %v3526 = vunpack.c.h.b16 %v202
    %v3527 = vunpack.c.l.b16 %v203
    %v3528 = vunpack.c.h.b16 %v203
    %v3529 = vunpack.c.l.b16 %v204
    %v3530 = vunpack.c.h.b16 %v204
    %v3531 = vunpack.c.l.b16 %v205
    %v3532 = vunpack.c.h.b16 %v205
    %v3533 = vunpack.c.l.b16 %v206
    %v3534 = vunpack.c.h.b16 %v206
    %v3535 = vunpack.c.l.b16 %v207
    %v3536 = vunpack.c.h.b16 %v207
    %v3537 = vunpack.c.l.b16 %v208
    %v3538 = vunpack.c.h.b16 %v208
    %v3539 = vunpack.c.l.b16 %v209
    %v3540 = vunpack.c.h.b16 %v209
    %v3541 = vunpack.c.l.b16 %v210
    %v3542 = vunpack.c.h.b16 %v210
    %v3543 = vunpack.c.l.b16 %v211
    %v3544 = vunpack.c.h.b16 %v211
    %v3545 = vunpack.c.l.b16 %v212
    %v3546 = vunpack.c.h.b16 %v212
    %v3547 = vunpack.c.l.b16 %v213
    %v3548 = vunpack.c.h.b16 %v213
    %v3549 = vunpack.c.l.b16 %v214
    %v3550 = vunpack.c.h.b16 %v214
    %v3551 = vunpack.c.l.b16 %v215
    %v3552 = vunpack.c.h.b16 %v215
    %v3553 = vunpack.c.l.b16 %v216
    %v3554 = vunpack.c.h.b16 %v216
    %v3555 = vunpack.c.l.b16 %v217
    %v3556 = vunpack.c.h.b16 %v217
    %v3557 = vunpack.c.l.b16 %v218
    %v3558 = vunpack.c.h.b16 %v218
    %v3559 = vunpack.c.l.b16 %v219
    %v3560 = vunpack.c.h.b16 %v219
    %v3561 = vunpack.c.l.b16 %v220
    %v3562 = vunpack.c.h.b16 %v220
    %v3563 = vunpack.c.l.b16 %v221
    %v3564 = vunpack.c.h.b16 %v221
    %v3565 = vunpack.c.l.b16 %v222
    %v3566 = vunpack.c.h.b16 %v222
    %v3567 = vunpack.c.l.b16 %v223
    %v3568 = vunpack.c.h.b16 %v223
    %v3569 = vunpack.c.l.b16 %v224
    %v3570 = vunpack.c.h.b16 %v224
    %v3571 = vunpack.c.l.b16 %v225
    %v3572 = vunpack.c.h.b16 %v225
    %v3573 = vunpack.c.l.b16 %v226
    %v3574 = vunpack.c.h.b16 %v226
    %v3575 = vunpack.c.l.b16 %v227
    %v3576 = vunpack.c.h.b16 %v227
    %v3577 = vunpack.c.l.b16 %v228
    %v3578 = vunpack.c.h.b16 %v228
    %v3579 = vunpack.c.l.b16 %v229
    %v3580 = vunpack.c.h.b16 %v229
    %v3581 = vunpack.c.l.b16 %v230
    %v3582 = vunpack.c.h.b16 %v230
    %v3583 = vunpack.c.l.b16 %v231
    %v3584 = vunpack.c.h.b16 %v231
    %v3585 = vunpack.c.l.b16 %v232
    %v3586 = vunpack.c.h.b16 %v232
    %v3587 = vunpack.c.l.b16 %v233
    %v3588 = vunpack.c.h.b16 %v233
    %v3589 = vunpack.c.l.b16 %v234
    %v3590 = vunpack.c.h.b16 %v234
    %v3591 = vunpack.c.l.b16 %v235
    %v3592 = vunpack.c.h.b16 %v235
    %v3593 = vunpack.c.l.b16 %v236
    %v3594 = vunpack.c.h.b16 %v236
    %v3595 = vunpack.c.l.b16 %v237
    %v3596 = vunpack.c.h.b16 %v237
    %v3597 = vunpack.c.l.b16 %v238
    %v3598 = vunpack.c.h.b16 %v238
    %v3599 = vunpack.c.l.b16 %v239
    %v3600 = vunpack.c.h.b16 %v239
    %v3601 = vunpack.c.l.b16 %v240
    %v3602 = vunpack.c.h.b16 %v240
    %v3603 = vunpack.c.l.b16 %v241
    %v3604 = vunpack.c.h.b16 %v241
    %v3605 = vunpack.c.l.b16 %v242
    %v3606 = vunpack.c.h.b16 %v242
    %v3607 = vunpack.c.l.b16 %v243
    %v3608 = vunpack.c.h.b16 %v243
    %v3609 = vunpack.c.l.b16 %v244
    %v3610 = vunpack.c.h.b16 %v244
    %v3611 = vunpack.c.l.b16 %v245
    %v3612 = vunpack.c.h.b16 %v245
    %v3613 = vunpack.c.l.b16 %v246
    %v3614 = vunpack.c.h.b16 %v246
    %v3615 = vunpack.c.l.b16 %v247
    %v3616 = vunpack.c.h.b16 %v247
    %v3617 = vunpack.c.l.b16 %v248
    %v3618 = vunpack.c.h.b16 %v248
    %v3619 = vunpack.c.l.b16 %v249
    %v3620 = vunpack.c.h.b16 %v249
    %v3621 = vunpack.c.l.b16 %v250
    %v3622 = vunpack.c.h.b16 %v250
    %v3623 = vunpack.c.l.b16 %v251
    %v3624 = vunpack.c.h.b16 %v251
    %v3625 = vunpack.c.l.b16 %v252
    %v3626 = vunpack.c.h.b16 %v252
    %v3627 = vunpack.c.l.b16 %v253
    %v3628 = vunpack.c.h.b16 %v253
    %v3629 = vunpack.c.l.b16 %v254
    %v3630 = vunpack.c.h.b16 %v254
    %v3631 = vunpack.c.l.b16 %v255
    %v3632 = vunpack.c.h.b16 %v255
    %v3633 = vunpack.c.l.b16 %v256
    %v3634 = vunpack.c.h.b16 %v256
    %v3635 = vunpack.c.l.b16 %v257
    %v3636 = vunpack.c.h.b16 %v257
    %v3637 = vunpack.c.l.b16 %v258
    %v3638 = vunpack.c.h.b16 %v258
    %v3639 = vunpack.c.l.b16 %v259
    %v3640 = vunpack.c.h.b16 %v259
    %v3641 = vunpack.c.l.b16 %v260
    %v3642 = vunpack.c.h.b16 %v260
    %v3643 = vunpack.c.l.b16 %v261
    %v3644 = vunpack.c.h.b16 %v261
    %v3645 = vunpack.c.l.b16 %v262
    %v3646 = vunpack.c.h.b16 %v262
    %v3647 = vunpack.c.l.b16 %v263
    %v3648 = vunpack.c.h.b16 %v263
    %v3649 = vunpack.c.l.b16 %v264
    %v3650 = vunpack.c.h.b16 %v264
    %v3651 = vunpack.c.l.b16 %v265
    %v3652 = vunpack.c.h.b16 %v265
    %v3653 = vunpack.c.l.b16 %v266
    %v3654 = vunpack.c.h.b16 %v266
    %v3655 = vunpack.c.l.b16 %v267
    %v3656 = vunpack.c.h.b16 %v267
    %v3657 = vunpack.c.l.b16 %v268
    %v3658 = vunpack.c.h.b16 %v268
    %v3659 = vunpack.c.l.b16 %v269
    %v3660 = vunpack.c.h.b16 %v269
    %v3661 = vunpack.c.l.b16 %v270
    %v3662 = vunpack.c.h.b16 %v270
    %v3663 = vunpack.c.l.b16 %v271
    %v3664 = vunpack.c.h.b16 %v271
    %v3665 = vunpack.c.l.b16 %v272
    %v3666 = vunpack.c.h.b16 %v272
    %v3667 = vunpack.c.l.b16 %v273
    %v3668 = vunpack.c.h.b16 %v273
    %v3669 = vunpack.c.l.b16 %v274
    %v3670 = vunpack.c.h.b16 %v274
    %v3671 = vunpack.c.l.b16 %v275
    %v3672 = vunpack.c.h.b16 %v275
    %v3673 = vunpack.c.l.b16 %v276
    %v3674 = vunpack.c.h.b16 %v276
    %v3675 = vunpack.c.l.b16 %v277
    %v3676 = vunpack.c.h.b16 %v277
    %v3677 = vunpack.c.l.b16 %v278
    %v3678 = vunpack.c.h.b16 %v278
    %v3679 = vunpack.c.l.b16 %v279
    %v3680 = vunpack.c.h.b16 %v279
    %v3681 = vunpack.c.l.b16 %v280
    %v3682 = vunpack.c.h.b16 %v280
    %v3683 = vunpack.c.l.b16 %v281
    %v3684 = vunpack.c.h.b16 %v281
    %v3685 = vunpack.c.l.b16 %v282
    %v3686 = vunpack.c.h.b16 %v282
    %v3687 = vunpack.c.l.b16 %v283
    %v3688 = vunpack.c.h.b16 %v283
    %v3689 = vunpack.c.l.b16 %v284
    %v3690 = vunpack.c.h.b16 %v284
    %v3691 = vunpack.c.l.b16 %v285
    %v3692 = vunpack.c.h.b16 %v285
    %v3693 = vunpack.c.l.b16 %v286
    %v3694 = vunpack.c.h.b16 %v286
    %v3695 = vunpack.c.l.b16 %v287
    %v3696 = vunpack.c.h.b16 %v287
    %v3697 = vunpack.c.l.b16 %v288
    %v3698 = vunpack.c.h.b16 %v288
    %v3699 = vunpack.c.l.b16 %v289
    %v3700 = vunpack.c.h.b16 %v289
    %v3701 = vunpack.c.l.b16 %v290
    %v3702 = vunpack.c.h.b16 %v290
    %v3703 = vunpack.c.l.b16 %v291
    %v3704 = vunpack.c.h.b16 %v291
    %v3705 = vunpack.c.l.b16 %v292
    %v3706 = vunpack.c.h.b16 %v292
    %v3707 = vunpack.c.l.b16 %v293
    %v3708 = vunpack.c.h.b16 %v293
    %v3709 = vunpack.c.l.b16 %v294
    %v3710 = vunpack.c.h.b16 %v294
    %v3711 = vunpack.c.l.b16 %v295
    %v3712 = vunpack.c.h.b16 %v295
    %v3713 = vunpack.c.l.b16 %v296
    %v3714 = vunpack.c.h.b16 %v296
    %v3715 = vunpack.c.l.b16 %v297
    %v3716 = vunpack.c.h.b16 %v297
    %v3717 = vunpack.c.l.b16 %v298
    %v3718 = vunpack.c.h.b16 %v298
    %v3719 = vunpack.c.l.b16 %v299
    %v3720 = vunpack.c.h.b16 %v299
    %v3721 = vunpack.c.l.b16 %v300
    %v3722 = vunpack.c.h.b16 %v300
    %v3723 = vunpack.c.l.b16 %v301
    %v3724 = vunpack.c.h.b16 %v301
    %v3725 = vunpack.c.l.b16 %v302
    %v3726 = vunpack.c.h.b16 %v302
    %v3727 = vunpack.c.l.b16 %v303
    %v3728 = vunpack.c.h.b16 %v303
    %v3729 = vunpack.c.l.b16 %v304
    %v3730 = vunpack.c.h.b16 %v304
    %v3731 = vunpack.c.l.b16 %v305
    %v3732 = vunpack.c.h.b16 %v305
    %v3733 = vunpack.c.l.b16 %v306
    %v3734 = vunpack.c.h.b16 %v306
    %v3735 = vunpack.c.l.b16 %v307
    %v3736 = vunpack.c.h.b16 %v307
    %v3737 = vunpack.c.l.b16 %v308
    %v3738 = vunpack.c.h.b16 %v308
    %v3739 = vunpack.c.l.b16 %v309
    %v3740 = vunpack.c.h.b16 %v309
    %v3741 = vunpack.c.l.b16 %v310
    %v3742 = vunpack.c.h.b16 %v310
    %v3743 = vunpack.c.l.b16 %v311
    %v3744 = vunpack.c.h.b16 %v311
    %v3745 = vunpack.c.l.b16 %v312
    %v3746 = vunpack.c.h.b16 %v312
    %v3747 = vunpack.c.l.b16 %v313
    %v3748 = vunpack.c.h.b16 %v313
    %v3749 = vunpack.c.l.b16 %v314
    %v3750 = vunpack.c.h.b16 %v314
    %v3751 = vunpack.c.l.b16 %v315
    %v3752 = vunpack.c.h.b16 %v315
    %v3753 = vunpack.c.l.b16 %v316
    %v3754 = vunpack.c.h.b16 %v316
    %v3755 = vunpack.c.l.b16 %v317
    %v3756 = vunpack.c.h.b16 %v317
    %v3757 = vunpack.c.l.b16 %v318
    %v3758 = vunpack.c.h.b16 %v318
    %v3759 = vunpack.c.l.b16 %v319
    %v3760 = vunpack.c.h.b16 %v319
    %v3761 = vunpack.c.l.b16 %v320
    %v3762 = vunpack.c.h.b16 %v320
    %v3763 = vunpack.c.l.b16 %v321
    %v3764 = vunpack.c.h.b16 %v321
    %v3765 = vunpack.c.l.b16 %v322
    %v3766 = vunpack.c.h.b16 %v322
    %v3767 = vunpack.c.l.b16 %v323
    %v3768 = vunpack.c.h.b16 %v323
    %v3769 = vunpack.c.l.b16 %v324
    %v3770 = vunpack.c.h.b16 %v324
    %v3771 = vunpack.c.l.b16 %v325
    %v3772 = vunpack.c.h.b16 %v325
    %v3773 = vunpack.c.l.b16 %v326
    %v3774 = vunpack.c.h.b16 %v326
    %v3775 = vunpack.c.l.b16 %v327
    %v3776 = vunpack.c.h.b16 %v327
    %v3777 = vunpack.c.l.b16 %v328
    %v3778 = vunpack.c.h.b16 %v328
    %v3779 = vunpack.c.l.b16 %v329
    %v3780 = vunpack.c.h.b16 %v329
    %v3781 = vunpack.c.l.b16 %v330
    %v3782 = vunpack.c.h.b16 %v330
    %v3783 = vunpack.c.l.b16 %v331
    %v3784 = vunpack.c.h.b16 %v331
    %v3785 = vunpack.c.l.b16 %v332
    %v3786 = vunpack.c.h.b16 %v332
    %v3787 = vunpack.c.l.b16 %v333
    %v3788 = vunpack.c.h.b16 %v333
    %v3789 = vunpack.c.l.b16 %v334
    %v3790 = vunpack.c.h.b16 %v334
    %v3791 = vunpack.c.l.b16 %v335
    %v3792 = vunpack.c.h.b16 %v335
    %v3793 = vunpack.c.l.b16 %v336
    %v3794 = vunpack.c.h.b16 %v336
    %v3795 = vunpack.c.l.b16 %v337
    %v3796 = vunpack.c.h.b16 %v337
    %v3797 = vunpack.c.l.b16 %v338
    %v3798 = vunpack.c.h.b16 %v338
    %v3799 = vunpack.c.l.b16 %v339
    %v3800 = vunpack.c.h.b16 %v339
    %v3801 = vunpack.c.l.b16 %v340
    %v3802 = vunpack.c.h.b16 %v340
    %v3803 = vunpack.c.l.b16 %v341
    %v3804 = vunpack.c.h.b16 %v341
    %v3805 = vunpack.c.l.b16 %v342
    %v3806 = vunpack.c.h.b16 %v342
    %v3807 = vunpack.c.l.b16 %v343
    %v3808 = vunpack.c.h.b16 %v343
    %v3809 = vunpack.c.l.b16 %v344
    %v3810 = vunpack.c.h.b16 %v344
    %v3811 = vunpack.c.l.b16 %v345
    %v3812 = vunpack.c.h.b16 %v345
    %v3813 = vunpack.c.l.b16 %v346
    %v3814 = vunpack.c.h.b16 %v346
    %v3815 = vunpack.c.l.b16 %v347
    %v3816 = vunpack.c.h.b16 %v347
    %v3817 = vunpack.c.l.b16 %v348
    %v3818 = vunpack.c.h.b16 %v348
    %v3819 = vunpack.c.l.b16 %v349
    %v3820 = vunpack.c.h.b16 %v349
    %v3821 = vunpack.c.l.b16 %v350
    %v3822 = vunpack.c.h.b16 %v350
    %v3823 = vunpack.c.l.b16 %v351
    %v3824 = vunpack.c.h.b16 %v351
    %v3825 = vunpack.c.l.b16 %v352
    %v3826 = vunpack.c.h.b16 %v352
    %v3827 = vunpack.c.l.b16 %v353
    %v3828 = vunpack.c.h.b16 %v353
    %v3829 = vunpack.c.l.b16 %v354
    %v3830 = vunpack.c.h.b16 %v354
    %v3831 = vunpack.c.l.b16 %v355
    %v3832 = vunpack.c.h.b16 %v355
    %v3833 = vunpack.c.l.b16 %v356
    %v3834 = vunpack.c.h.b16 %v356
    %v3835 = vunpack.c.l.b16 %v357
    %v3836 = vunpack.c.h.b16 %v357
    %v3837 = vunpack.c.l.b16 %v358
    %v3838 = vunpack.c.h.b16 %v358
    %v3839 = vunpack.c.l.b16 %v359
    %v3840 = vunpack.c.h.b16 %v359
    %v3841 = vunpack.c.l.b16 %v360
    %v3842 = vunpack.c.h.b16 %v360
    %v3843 = vunpack.c.l.b16 %v361
    %v3844 = vunpack.c.h.b16 %v361
    %v3845 = vunpack.c.l.b16 %v362
    %v3846 = vunpack.c.h.b16 %v362
    %v3847 = vunpack.c.l.b16 %v363
    %v3848 = vunpack.c.h.b16 %v363
    %v3849 = vunpack.c.l.b16 %v364
    %v3850 = vunpack.c.h.b16 %v364
    %v3851 = vunpack.c.l.b16 %v365
    %v3852 = vunpack.c.h.b16 %v365
    %v3853 = vunpack.c.l.b16 %v366
    %v3854 = vunpack.c.h.b16 %v366
    %v3855 = vunpack.c.l.b16 %v367
    %v3856 = vunpack.c.h.b16 %v367
    %v3857 = vunpack.c.l.b16 %v368
    %v3858 = vunpack.c.h.b16 %v368
    %v3859 = vunpack.c.l.b16 %v369
    %v3860 = vunpack.c.h.b16 %v369
    %v3861 = vunpack.c.l.b16 %v370
    %v3862 = vunpack.c.h.b16 %v370
    %v3863 = vunpack.c.l.b16 %v371
    %v3864 = vunpack.c.h.b16 %v371
    %v3865 = vunpack.c.l.b16 %v372
    %v3866 = vunpack.c.h.b16 %v372
    %v3867 = vunpack.c.l.b16 %v373
    %v3868 = vunpack.c.h.b16 %v373
    %v3869 = vunpack.c.l.b16 %v374
    %v3870 = vunpack.c.h.b16 %v374
    %v3871 = vunpack.c.l.b16 %v375
    %v3872 = vunpack.c.h.b16 %v375
    %v3873 = vunpack.c.l.b16 %v376
    %v3874 = vunpack.c.h.b16 %v376
    %v3875 = vunpack.c.l.b16 %v377
    %v3876 = vunpack.c.h.b16 %v377
    %v3877 = vunpack.c.l.b16 %v378
    %v3878 = vunpack.c.h.b16 %v378
    %v3879 = vunpack.c.l.b16 %v379
    %v3880 = vunpack.c.h.b16 %v379
    %v3881 = vunpack.c.l.b16 %v380
    %v3882 = vunpack.c.h.b16 %v380
    %v3883 = vunpack.c.l.b16 %v381
    %v3884 = vunpack.c.h.b16 %v381
    %v3885 = vunpack.c.l.b16 %v382
    %v3886 = vunpack.c.h.b16 %v382
    %v3887 = vunpack.c.l.b16 %v383
    %v3888 = vunpack.c.h.b16 %v383
    %v3889 = vunpack.c.l.b16 %v384
    %v3890 = vunpack.c.h.b16 %v384
    %v3891 = vunpack.c.l.b16 %v385
    %v3892 = vunpack.c.h.b16 %v385
    %v3893 = vunpack.c.l.b16 %v386
    %v3894 = vunpack.c.h.b16 %v386
    %v3895 = vunpack.c.l.b16 %v387
    %v3896 = vunpack.c.h.b16 %v387
    %v3897 = vunpack.c.l.b16 %v388
    %v3898 = vunpack.c.h.b16 %v388
    %v3899 = vunpack.c.l.b16 %v389
    %v3900 = vunpack.c.h.b16 %v389
    %v3901 = vunpack.c.l.b16 %v390
    %v3902 = vunpack.c.h.b16 %v390
    %v3903 = vunpack.c.l.b16 %v391
    %v3904 = vunpack.c.h.b16 %v391
    %v3905 = vunpack.c.l.b16 %v392
    %v3906 = vunpack.c.h.b16 %v392
    %v3907 = vunpack.c.l.b16 %v393
    %v3908 = vunpack.c.h.b16 %v393
    %v3909 = vunpack.c.l.b16 %v394
    %v3910 = vunpack.c.h.b16 %v394
    %v3911 = vunpack.c.l.b16 %v395
    %v3912 = vunpack.c.h.b16 %v395
    %v3913 = vunpack.c.l.b16 %v396
    %v3914 = vunpack.c.h.b16 %v396
    %v3915 = vunpack.c.l.b16 %v397
    %v3916 = vunpack.c.h.b16 %v397
    %v3917 = vunpack.c.l.b16 %v398
    %v3918 = vunpack.c.h.b16 %v398
    %v3919 = vunpack.c.l.b16 %v399
    %v3920 = vunpack.c.h.b16 %v399
    %v3921 = vunpack.c.l.b16 %v400
    %v3922 = vunpack.c.h.b16 %v400
    %v3923 = vunpack.c.l.b16 %v401
    %v3924 = vunpack.c.h.b16 %v401
    %v3925 = vunpack.c.l.b16 %v402
    %v3926 = vunpack.c.h.b16 %v402
    %v3927 = vunpack.c.l.b16 %v403
    %v3928 = vunpack.c.h.b16 %v403
    %v3929 = vunpack.c.l.b16 %v404
    %v3930 = vunpack.c.h.b16 %v404
    %v3931 = vunpack.c.l.b16 %v405
    %v3932 = vunpack.c.h.b16 %v405
    %v3933 = vunpack.c.l.b16 %v406
    %v3934 = vunpack.c.h.b16 %v406
    %v3935 = vunpack.c.l.b16 %v407
    %v3936 = vunpack.c.h.b16 %v407
    %v3937 = vunpack.c.l.b16 %v408
    %v3938 = vunpack.c.h.b16 %v408
    %v3939 = vunpack.c.l.b16 %v409
    %v3940 = vunpack.c.h.b16 %v409
    %v3941 = vunpack.c.l.b16 %v410
    %v3942 = vunpack.c.h.b16 %v410
    %v3943 = vunpack.c.l.b16 %v411
    %v3944 = vunpack.c.h.b16 %v411
    %v3945 = vunpack.c.l.b16 %v412
    %v3946 = vunpack.c.h.b16 %v412
    %v3947 = vunpack.c.l.b16 %v413
    %v3948 = vunpack.c.h.b16 %v413
    %v3949 = vunpack.c.l.b16 %v414
    %v3950 = vunpack.c.h.b16 %v414
    %v3951 = vunpack.c.l.b16 %v415
    %v3952 = vunpack.c.h.b16 %v415
    %v3953 = vunpack.c.l.b16 %v416
    %v3954 = vunpack.c.h.b16 %v416
    %v3955 = vunpack.c.l.b16 %v417
    %v3956 = vunpack.c.h.b16 %v417
    %v3957 = vunpack.c.l.b16 %v418
    %v3958 = vunpack.c.h.b16 %v418
    %v3959 = vunpack.c.l.b16 %v419
    %v3960 = vunpack.c.h.b16 %v419
    %v3961 = vunpack.c.l.b16 %v420
    %v3962 = vunpack.c.h.b16 %v420
    %v3963 = vunpack.c.l.b16 %v421
    %v3964 = vunpack.c.h.b16 %v421
    %v3965 = vunpack.c.l.b16 %v422
    %v3966 = vunpack.c.h.b16 %v422
    %v3967 = vunpack.c.l.b16 %v423
    %v3968 = vunpack.c.h.b16 %v423
    %v3969 = vunpack.c.l.b16 %v424
    %v3970 = vunpack.c.h.b16 %v424
    %v3971 = vunpack.c.l.b16 %v425
    %v3972 = vunpack.c.h.b16 %v425
    %v3973 = vunpack.c.l.b16 %v426
    %v3974 = vunpack.c.h.b16 %v426
    %v3975 = vunpack.c.l.b16 %v427
    %v3976 = vunpack.c.h.b16 %v427
    %v3977 = vunpack.c.l.b16 %v428
    %v3978 = vunpack.c.h.b16 %v428
    %v3979 = vunpack.c.l.b16 %v429
    %v3980 = vunpack.c.h.b16 %v429
    %v3981 = vunpack.c.l.b16 %v430
    %v3982 = vunpack.c.h.b16 %v430
    %v3983 = vunpack.c.l.b16 %v431
    %v3984 = vunpack.c.h.b16 %v431
    %v3985 = vunpack.c.l.b16 %v432
    %v3986 = vunpack.c.h.b16 %v432
    %v3987 = vunpack.c.l.b16 %v433
    %v3988 = vunpack.c.h.b16 %v433
    %v3989 = vunpack.c.l.b16 %v434
    %v3990 = vunpack.c.h.b16 %v434
    %v3991 = vunpack.c.l.b16 %v435
    %v3992 = vunpack.c.h.b16 %v435
    %v3993 = vunpack.c.l.b16 %v436
    %v3994 = vunpack.c.h.b16 %v436
    %v3995 = vunpack.c.l.b16 %v437
    %v3996 = vunpack.c.h.b16 %v437
    %v3997 = vunpack.c.l.b16 %v438
    %v3998 = vunpack.c.h.b16 %v438
    %v3999 = vunpack.c.l.b16 %v439
    %v4000 = vunpack.c.h.b16 %v439
    %v4001 = vunpack.c.l.b16 %v440
    %v4002 = vunpack.c.h.b16 %v440
    %v4003 = vunpack.c.l.b16 %v441
    %v4004 = vunpack.c.h.b16 %v441
    %v4005 = vunpack.c.l.b16 %v442
    %v4006 = vunpack.c.h.b16 %v442
    %v4007 = vunpack.c.l.b16 %v443
    %v4008 = vunpack.c.h.b16 %v443
    %v4009 = vunpack.c.l.b16 %v444
    %v4010 = vunpack.c.h.b16 %v444
    %v4011 = vunpack.c.l.b16 %v445
    %v4012 = vunpack.c.h.b16 %v445
    %v4013 = vunpack.c.l.b16 %v446
    %v4014 = vunpack.c.h.b16 %v446
    %v4015 = vunpack.c.l.b16 %v447
    %v4016 = vunpack.c.h.b16 %v447
    %v4017 = vunpack.c.l.b16 %v448
    %v4018 = vunpack.c.h.b16 %v448
    %v4019 = vunpack.c.l.b16 %v449
    %v4020 = vunpack.c.h.b16 %v449
    %v4021 = vunpack.c.l.b16 %v450
    %v4022 = vunpack.c.h.b16 %v450
    %v4023 = vunpack.c.l.b16 %v451
    %v4024 = vunpack.c.h.b16 %v451
    %v4025 = vunpack.c.l.b16 %v452
    %v4026 = vunpack.c.h.b16 %v452
    %v4027 = vunpack.c.l.b16 %v453
    %v4028 = vunpack.c.h.b16 %v453
    %v4029 = vunpack.c.l.b16 %v454
    %v4030 = vunpack.c.h.b16 %v454
    %v4031 = vunpack.c.l.b16 %v455
    %v4032 = vunpack.c.h.b16 %v455
    %v4033 = vunpack.c.l.b16 %v456
    %v4034 = vunpack.c.h.b16 %v456
    %v4035 = vunpack.c.l.b16 %v457
    %v4036 = vunpack.c.h.b16 %v457
    %v4037 = vunpack.c.l.b16 %v458
    %v4038 = vunpack.c.h.b16 %v458
    %v4039 = vunpack.c.l.b16 %v459
    %v4040 = vunpack.c.h.b16 %v459
    %v4041 = vunpack.c.l.b16 %v460
    %v4042 = vunpack.c.h.b16 %v460
    %v4043 = vunpack.c.l.b16 %v461
    %v4044 = vunpack.c.h.b16 %v461
    %v4045 = vunpack.c.l.b16 %v462
    %v4046 = vunpack.c.h.b16 %v462
    %v4047 = vunpack.c.l.b16 %v463
    %v4048 = vunpack.c.h.b16 %v463
    %v4049 = vunpack.c.l.b16 %v464
    %v4050 = vunpack.c.h.b16 %v464
    %v4051 = vunpack.c.l.b16 %v465
    %v4052 = vunpack.c.h.b16 %v465
    %v4053 = vunpack.c.l.b16 %v466
    %v4054 = vunpack.c.h.b16 %v466
    %v4055 = vunpack.c.l.b16 %v467
    %v4056 = vunpack.c.h.b16 %v467
    %v4057 = vunpack.c.l.b16 %v468
    %v4058 = vunpack.c.h.b16 %v468
    %v4059 = vunpack.c.l.b16 %v469
    %v4060 = vunpack.c.h.b16 %v469
    %v4061 = vunpack.c.l.b16 %v470
    %v4062 = vunpack.c.h.b16 %v470
    %v4063 = vunpack.c.l.b16 %v471
    %v4064 = vunpack.c.h.b16 %v471
    %v4065 = vunpack.c.l.b16 %v472
    %v4066 = vunpack.c.h.b16 %v472
    %v4067 = vunpack.c.l.b16 %v473
    %v4068 = vunpack.c.h.b16 %v473
    %v4069 = vunpack.c.l.b16 %v474
    %v4070 = vunpack.c.h.b16 %v474
    %v4071 = vunpack.c.l.b16 %v475
    %v4072 = vunpack.c.h.b16 %v475
    %v4073 = vunpack.c.l.b16 %v476
    %v4074 = vunpack.c.h.b16 %v476
    %v4075 = vunpack.c.l.b16 %v477
    %v4076 = vunpack.c.h.b16 %v477
    %v4077 = vunpack.c.l.b16 %v478
    %v4078 = vunpack.c.h.b16 %v478
    %v4079 = vunpack.c.l.b16 %v479
    %v4080 = vunpack.c.h.b16 %v479
    %v4081 = vunpack.c.l.b16 %v480
    %v4082 = vunpack.c.h.b16 %v480
    %v4083 = vunpack.c.l.b16 %v481
    %v4084 = vunpack.c.h.b16 %v481
    %v4085 = vunpack.c.l.b16 %v482
    %v4086 = vunpack.c.h.b16 %v482
    %v4087 = vunpack.c.l.b16 %v483
    %v4088 = vunpack.c.h.b16 %v483
    %v4089 = vunpack.c.l.b16 %v484
    %v4090 = vunpack.c.h.b16 %v484
    %v4091 = vunpack.c.l.b16 %v485
    %v4092 = vunpack.c.h.b16 %v485
    %v4093 = vunpack.c.l.b16 %v486
    %v4094 = vunpack.c.h.b16 %v486
    %v4095 = vunpack.c.l.b16 %v487
    %v4096 = vunpack.c.h.b16 %v487
    %v4097 = vunpack.c.l.b16 %v488
    %v4098 = vunpack.c.h.b16 %v488
    %v4099 = vunpack.c.l.b16 %v489
    %v4100 = vunpack.c.h.b16 %v489
    %v4101 = vunpack.c.l.b16 %v490
    %v4102 = vunpack.c.h.b16 %v490
    %v4103 = vunpack.c.l.b16 %v491
    %v4104 = vunpack.c.h.b16 %v491
    %v4105 = vunpack.c.l.b16 %v492
    %v4106 = vunpack.c.h.b16 %v492
    %v4107 = vunpack.c.l.b16 %v493
    %v4108 = vunpack.c.h.b16 %v493
    %v4109 = vunpack.c.l.b16 %v494
    %v4110 = vunpack.c.h.b16 %v494
    %v4111 = vunpack.c.l.b16 %v495
    %v4112 = vunpack.c.h.b16 %v495
    %v4113 = vunpack.c.l.b16 %v496
    %v4114 = vunpack.c.h.b16 %v496
    %v4115 = vunpack.c.l.b16 %v497
    %v4116 = vunpack.c.h.b16 %v497
    %v4117 = vunpack.c.l.b16 %v498
    %v4118 = vunpack.c.h.b16 %v498
    %v4119 = vunpack.c.l.b16 %v499
    %v4120 = vunpack.c.h.b16 %v499
    %v4121 = vunpack.c.l.b16 %v500
    %v4122 = vunpack.c.h.b16 %v500
    %v4123 = vunpack.c.l.b16 %v501
    %v4124 = vunpack.c.h.b16 %v501
    %v4125 = vunpack.c.l.b16 %v502
    %v4126 = vunpack.c.h.b16 %v502
    %v4127 = vunpack.c.l.b16 %v503
    %v4128 = vunpack.c.h.b16 %v503
    %v4129 = vunpack.c.l.b16 %v504
    %v4130 = vunpack.c.h.b16 %v504
    %v4131 = vunpack.c.l.b16 %v505
    %v4132 = vunpack.c.h.b16 %v505
    %v4133 = vunpack.c.l.b16 %v506
    %v4134 = vunpack.c.h.b16 %v506
    %v4135 = vunpack.c.l.b16 %v507
    %v4136 = vunpack.c.h.b16 %v507
    %v4137 = vunpack.c.l.b16 %v508
    %v4138 = vunpack.c.h.b16 %v508
    %v4139 = vunpack.c.l.b16 %v509
    %v4140 = vunpack.c.h.b16 %v509
    %v4141 = vunpack.c.l.b16 %v510
    %v4142 = vunpack.c.h.b16 %v510
    %v4143 = vunpack.c.l.b16 %v511
    %v4144 = vunpack.c.h.b16 %v511
    %v4145 = vunpack.c.l.b16 %v512
    %v4146 = vunpack.c.h.b16 %v512
    %v4147 = vunpack.c.l.b16 %v513
    %v4148 = vunpack.c.h.b16 %v513
    %v4149 = vunpack.c.l.b16 %v514
    %v4150 = vunpack.c.h.b16 %v514
    %v4151 = vunpack.c.l.b16 %v515
    %v4152 = vunpack.c.h.b16 %v515
    %v4153 = vunpack.c.l.b16 %v516
    %v4154 = vunpack.c.h.b16 %v516
    %v4155 = vunpack.c.l.b16 %v517
    %v4156 = vunpack.c.h.b16 %v517
    %v4157 = vunpack.c.l.b16 %v518
    %v4158 = vunpack.c.h.b16 %v518
    %v4159 = vunpack.c.l.b16 %v519
    %v4160 = vunpack.c.h.b16 %v519
    %v4161 = vunpack.c.l.b16 %v520
    %v4162 = vunpack.c.h.b16 %v520
    %v4163 = vunpack.c.l.b16 %v521
    %v4164 = vunpack.c.h.b16 %v521
    %v4165 = vunpack.c.l.b16 %v522
    %v4166 = vunpack.c.h.b16 %v522
    %v4167 = vunpack.c.l.b16 %v523
    %v4168 = vunpack.c.h.b16 %v523
    %v4169 = vunpack.c.l.b16 %v524
    %v4170 = vunpack.c.h.b16 %v524
    %v4171 = vunpack.c.l.b16 %v525
    %v4172 = vunpack.c.h.b16 %v525
    %v4173 = vunpack.c.l.b16 %v526
    %v4174 = vunpack.c.h.b16 %v526
    %v4175 = vunpack.c.l.b16 %v527
    %v4176 = vunpack.c.h.b16 %v527
    %v4177 = vunpack.c.l.b16 %v528
    %v4178 = vunpack.c.h.b16 %v528
    %v4179 = vunpack.c.l.b16 %v529
    %v4180 = vunpack.c.h.b16 %v529
    %v4181 = vunpack.c.l.b16 %v530
    %v4182 = vunpack.c.h.b16 %v530
    %v4183 = vunpack.c.l.b16 %v531
    %v4184 = vunpack.c.h.b16 %v531
    %v4185 = vunpack.c.l.b16 %v532
    %v4186 = vunpack.c.h.b16 %v532
    %v4187 = vunpack.c.l.b16 %v533
    %v4188 = vunpack.c.h.b16 %v533
    %v4189 = vunpack.c.l.b16 %v534
    %v4190 = vunpack.c.h.b16 %v534
    %v4191 = vunpack.c.l.b16 %v535
    %v4192 = vunpack.c.h.b16 %v535
    %v4193 = vunpack.c.l.b16 %v536
    %v4194 = vunpack.c.h.b16 %v536
    %v4195 = vunpack.c.l.b16 %v537
    %v4196 = vunpack.c.h.b16 %v537
    %v4197 = vunpack.c.l.b16 %v538
    %v4198 = vunpack.c.h.b16 %v538
    %v4199 = vunpack.c.l.b16 %v539
    %v4200 = vunpack.c.h.b16 %v539
    %v4201 = vunpack.c.l.b16 %v540
    %v4202 = vunpack.c.h.b16 %v540
    %v4203 = vunpack.c.l.b16 %v541
    %v4204 = vunpack.c.h.b16 %v541
    %v4205 = vunpack.c.l.b16 %v542
    %v4206 = vunpack.c.h.b16 %v542
    %v4207 = vunpack.c.l.b16 %v543
    %v4208 = vunpack.c.h.b16 %v543
    %v4209 = vunpack.c.l.b16 %v544
    %v4210 = vunpack.c.h.b16 %v544
    %v4211 = vunpack.c.l.b16 %v545
    %v4212 = vunpack.c.h.b16 %v545
    %v4213 = vunpack.c.l.b16 %v546
    %v4214 = vunpack.c.h.b16 %v546
    %v4215 = vunpack.c.l.b16 %v547
    %v4216 = vunpack.c.h.b16 %v547
    %v4217 = vunpack.c.l.b16 %v548
    %v4218 = vunpack.c.h.b16 %v548
    %v4219 = vunpack.c.l.b16 %v549
    %v4220 = vunpack.c.h.b16 %v549
    %v4221 = vunpack.c.l.b16 %v550
    %v4222 = vunpack.c.h.b16 %v550
    %v4223 = vunpack.c.l.b16 %v551
    %v4224 = vunpack.c.h.b16 %v551
    %v4225 = vunpack.c.l.b16 %v552
    %v4226 = vunpack.c.h.b16 %v552
    %v4227 = vunpack.c.l.b16 %v553
    %v4228 = vunpack.c.h.b16 %v553
    %v4229 = vunpack.c.l.b16 %v554
    %v4230 = vunpack.c.h.b16 %v554
    %v4231 = vunpack.c.l.b16 %v555
    %v4232 = vunpack.c.h.b16 %v555
    %v4233 = vunpack.c.l.b16 %v556
    %v4234 = vunpack.c.h.b16 %v556
    %v4235 = vunpack.c.l.b16 %v557
    %v4236 = vunpack.c.h.b16 %v557
    %v4237 = vunpack.c.l.b16 %v558
    %v4238 = vunpack.c.h.b16 %v558
    %v4239 = vunpack.c.l.b16 %v559
    %v4240 = vunpack.c.h.b16 %v559
    %v4241 = vunpack.c.l.b16 %v560
    %v4242 = vunpack.c.h.b16 %v560
    %v4243 = vunpack.c.l.b16 %v561
    %v4244 = vunpack.c.h.b16 %v561
    %v4245 = vunpack.c.l.b16 %v562
    %v4246 = vunpack.c.h.b16 %v562
    %v4247 = vunpack.c.l.b16 %v563
    %v4248 = vunpack.c.h.b16 %v563
    %v4249 = vunpack.c.l.b16 %v564
    %v4250 = vunpack.c.h.b16 %v564
    %v4251 = vunpack.c.l.b16 %v565
    %v4252 = vunpack.c.h.b16 %v565
    %v4253 = vunpack.c.l.b16 %v566
    %v4254 = vunpack.c.h.b16 %v566
    %v4255 = vunpack.c.l.b16 %v567
    %v4256 = vunpack.c.h.b16 %v567
    %v4257 = vunpack.c.l.b16 %v568
    %v4258 = vunpack.c.h.b16 %v568
    %v4259 = vunpack.c.l.b16 %v569
    %v4260 = vunpack.c.h.b16 %v569
    %v4261 = vunpack.c.l.b16 %v570
    %v4262 = vunpack.c.h.b16 %v570
    %v4263 = vunpack.c.l.b16 %v571
    %v4264 = vunpack.c.h.b16 %v571
    %v4265 = vunpack.c.l.b16 %v572
    %v4266 = vunpack.c.h.b16 %v572
    %v4267 = vunpack.c.l.b16 %v573
    %v4268 = vunpack.c.h.b16 %v573
    %v4269 = vunpack.c.l.b16 %v574
    %v4270 = vunpack.c.h.b16 %v574
    %v4271 = vunpack.c.l.b16 %v575
    %v4272 = vunpack.c.h.b16 %v575
    %v4273 = vunpack.c.l.b16 %v576
    %v4274 = vunpack.c.h.b16 %v576
    %v4275 = vunpack.c.l.b16 %v577
    %v4276 = vunpack.c.h.b16 %v577
    %v4277 = vunpack.c.l.b16 %v578
    %v4278 = vunpack.c.h.b16 %v578
    %v4279 = vunpack.c.l.b16 %v579
    %v4280 = vunpack.c.h.b16 %v579
    %v4281 = vunpack.c.l.b16 %v580
    %v4282 = vunpack.c.h.b16 %v580
    %v4283 = vunpack.c.l.b16 %v581
    %v4284 = vunpack.c.h.b16 %v581
    %v4285 = vunpack.c.l.b16 %v582
    %v4286 = vunpack.c.h.b16 %v582
    %v4287 = vunpack.c.l.b16 %v583
    %v4288 = vunpack.c.h.b16 %v583
    %v4289 = vunpack.c.l.b16 %v584
    %v4290 = vunpack.c.h.b16 %v584
    %v4291 = vunpack.c.l.b16 %v585
    %v4292 = vunpack.c.h.b16 %v585
    %v4293 = vunpack.c.l.b16 %v586
    %v4294 = vunpack.c.h.b16 %v586
    %v4295 = vunpack.c.l.b16 %v587
    %v4296 = vunpack.c.h.b16 %v587
    %v4297 = vunpack.c.l.b16 %v588
    %v4298 = vunpack.c.h.b16 %v588
    %v4299 = vunpack.c.l.b16 %v589
    %v4300 = vunpack.c.h.b16 %v589
    %v4301 = vunpack.c.l.b16 %v590
    %v4302 = vunpack.c.h.b16 %v590
    %v4303 = vunpack.c.l.b16 %v591
    %v4304 = vunpack.c.h.b16 %v591
    %v4305 = vunpack.c.l.b16 %v592
    %v4306 = vunpack.c.h.b16 %v592
    %v4307 = vunpack.c.l.b16 %v593
    %v4308 = vunpack.c.h.b16 %v593
    %v4309 = vunpack.c.l.b16 %v594
    %v4310 = vunpack.c.h.b16 %v594
    %v4311 = vunpack.c.l.b16 %v595
    %v4312 = vunpack.c.h.b16 %v595
    %v4313 = vunpack.c.l.b16 %v596
    %v4314 = vunpack.c.h.b16 %v596
    %v4315 = vunpack.c.l.b16 %v597
    %v4316 = vunpack.c.h.b16 %v597
    %v4317 = vunpack.c.l.b16 %v598
    %v4318 = vunpack.c.h.b16 %v598
    %v4319 = vunpack.c.l.b16 %v599
    %v4320 = vunpack.c.h.b16 %v599
    %v4321 = vunpack.c.l.b16 %v600
    %v4322 = vunpack.c.h.b16 %v600
    %v4323 = vunpack.c.l.b16 %v601
    %v4324 = vunpack.c.h.b16 %v601
    %v4325 = vunpack.c.l.b16 %v602
    %v4326 = vunpack.c.h.b16 %v602
    %v4327 = vunpack.c.l.b16 %v603
    %v4328 = vunpack.c.h.b16 %v603
    %v4329 = vunpack.c.l.b16 %v604
    %v4330 = vunpack.c.h.b16 %v604
    %v4331 = vunpack.c.l.b16 %v605
    %v4332 = vunpack.c.h.b16 %v605
    %v4333 = vunpack.c.l.b16 %v606
    %v4334 = vunpack.c.h.b16 %v606
    %v4335 = vunpack.c.l.b16 %v607
    %v4336 = vunpack.c.h.b16 %v607
    %v4337 = vunpack.c.l.b16 %v608
    %v4338 = vunpack.c.h.b16 %v608
    %v4339 = vunpack.c.l.b16 %v609
    %v4340 = vunpack.c.h.b16 %v609
    %v4341 = vunpack.c.l.b16 %v610
    %v4342 = vunpack.c.h.b16 %v610
    %v4343 = vunpack.c.l.b16 %v611
    %v4344 = vunpack.c.h.b16 %v611
    %v4345 = vunpack.c.l.b16 %v612
    %v4346 = vunpack.c.h.b16 %v612
    %v4347 = vunpack.c.l.b16 %v613
    %v4348 = vunpack.c.h.b16 %v613
    %v4349 = vunpack.c.l.b16 %v614
    %v4350 = vunpack.c.h.b16 %v614
    %v4351 = vunpack.c.l.b16 %v615
    %v4352 = vunpack.c.h.b16 %v615
    %v4353 = vunpack.c.l.b16 %v616
    %v4354 = vunpack.c.h.b16 %v616
    %v4355 = vunpack.c.l.b16 %v617
    %v4356 = vunpack.c.h.b16 %v617
    %v4357 = vunpack.c.l.b16 %v618
    %v4358 = vunpack.c.h.b16 %v618
    %v4359 = vunpack.c.l.b16 %v619
    %v4360 = vunpack.c.h.b16 %v619
    %v4361 = vunpack.c.l.b16 %v620
    %v4362 = vunpack.c.h.b16 %v620
    %v4363 = vunpack.c.l.b16 %v621
    %v4364 = vunpack.c.h.b16 %v621
    %v4365 = vunpack.c.l.b16 %v622
    %v4366 = vunpack.c.h.b16 %v622
    %v4367 = vunpack.c.l.b16 %v623
    %v4368 = vunpack.c.h.b16 %v623
    %v4369 = vunpack.c.l.b16 %v624
    %v4370 = vunpack.c.h.b16 %v624
    %v4371 = vunpack.c.l.b16 %v625
    %v4372 = vunpack.c.h.b16 %v625
    %v4373 = vunpack.c.l.b16 %v626
    %v4374 = vunpack.c.h.b16 %v626
    %v4375 = vunpack.c.l.b16 %v627
    %v4376 = vunpack.c.h.b16 %v627
    %v4377 = vunpack.c.l.b16 %v628
    %v4378 = vunpack.c.h.b16 %v628
    %v4379 = vunpack.c.l.b16 %v629
    %v4380 = vunpack.c.h.b16 %v629
    %v4381 = vunpack.c.l.b16 %v630
    %v4382 = vunpack.c.h.b16 %v630
    %v4383 = vunpack.c.l.b16 %v631
    %v4384 = vunpack.c.h.b16 %v631
    %v4385 = vunpack.c.l.b16 %v632
    %v4386 = vunpack.c.h.b16 %v632
    %v4387 = vunpack.c.l.b16 %v633
    %v4388 = vunpack.c.h.b16 %v633
    %v4389 = vunpack.c.l.b16 %v634
    %v4390 = vunpack.c.h.b16 %v634
    %v4391 = vunpack.c.l.b16 %v635
    %v4392 = vunpack.c.h.b16 %v635
    %v4393 = vunpack.c.l.b16 %v636
    %v4394 = vunpack.c.h.b16 %v636
    %v4395 = vunpack.c.l.b16 %v637
    %v4396 = vunpack.c.h.b16 %v637
    %v4397 = vunpack.c.l.b16 %v638
    %v4398 = vunpack.c.h.b16 %v638
    %v4399 = vunpack.c.l.b16 %v639
    %v4400 = vunpack.c.h.b16 %v639
    %v4401 = vunpack.c.l.b16 %v640
    %v4402 = vunpack.c.h.b16 %v640
    %v4403 = vunpack.c.l.b16 %v641
    %v4404 = vunpack.c.h.b16 %v641
    %v4405 = vunpack.c.l.b16 %v642
    %v4406 = vunpack.c.h.b16 %v642
    %v4407 = vunpack.c.l.b16 %v643
    %v4408 = vunpack.c.h.b16 %v643
    %v4409 = vunpack.c.l.b16 %v644
    %v4410 = vunpack.c.h.b16 %v644
    %v4411 = vunpack.c.l.b16 %v645
    %v4412 = vunpack.c.h.b16 %v645
    %v4413 = vunpack.c.l.b16 %v646
    %v4414 = vunpack.c.h.b16 %v646
    %v4415 = vunpack.c.l.b16 %v647
    %v4416 = vunpack.c.h.b16 %v647
    %v4417 = vunpack.c.l.b16 %v648
    %v4418 = vunpack.c.h.b16 %v648
    %v4419 = vunpack.c.l.b16 %v649
    %v4420 = vunpack.c.h.b16 %v649
    %v4421 = vunpack.c.l.b16 %v650
    %v4422 = vunpack.c.h.b16 %v650
    %v4423 = vunpack.c.l.b16 %v651
    %v4424 = vunpack.c.h.b16 %v651
    %v4425 = vunpack.c.l.b16 %v652
    %v4426 = vunpack.c.h.b16 %v652
    %v4427 = vunpack.c.l.b16 %v653
    %v4428 = vunpack.c.h.b16 %v653
    %v4429 = vunpack.c.l.b16 %v654
    %v4430 = vunpack.c.h.b16 %v654
    %v4431 = vunpack.c.l.b16 %v655
    %v4432 = vunpack.c.h.b16 %v655
    %v4433 = vunpack.c.l.b16 %v656
    %v4434 = vunpack.c.h.b16 %v656
    %v4435 = vunpack.c.l.b16 %v657
    %v4436 = vunpack.c.h.b16 %v657
    %v4437 = vunpack.c.l.b16 %v658
    %v4438 = vunpack.c.h.b16 %v658
    %v4439 = vunpack.c.l.b16 %v659
    %v4440 = vunpack.c.h.b16 %v659
    %v4441 = vunpack.c.l.b16 %v660
    %v4442 = vunpack.c.h.b16 %v660
    %v4443 = vunpack.c.l.b16 %v661
    %v4444 = vunpack.c.h.b16 %v661
    %v4445 = vunpack.c.l.b16 %v662
    %v4446 = vunpack.c.h.b16 %v662
    %v4447 = vunpack.c.l.b16 %v663
    %v4448 = vunpack.c.h.b16 %v663
    %v4449 = vunpack.c.l.b16 %v664
    %v4450 = vunpack.c.h.b16 %v664
    %v4451 = vunpack.c.l.b16 %v665
    %v4452 = vunpack.c.h.b16 %v665
    %v4453 = vunpack.c.l.b16 %v666
    %v4454 = vunpack.c.h.b16 %v666
    %v4455 = vunpack.c.l.b16 %v667
    %v4456 = vunpack.c.h.b16 %v667
    %v4457 = vunpack.c.l.b16 %v668
    %v4458 = vunpack.c.h.b16 %v668
    %v4459 = vunpack.c.l.b16 %v669
    %v4460 = vunpack.c.h.b16 %v669
    %v4461 = vunpack.c.l.b16 %v670
    %v4462 = vunpack.c.h.b16 %v670
    %v4463 = vunpack.c.l.b16 %v671
    %v4464 = vunpack.c.h.b16 %v671
    %v4465 = vunpack.c.l.b16 %v672
    %v4466 = vunpack.c.h.b16 %v672
    %v4467 = vunpack.c.l.b16 %v673
    %v4468 = vunpack.c.h.b16 %v673
    %v4469 = vunpack.c.l.b16 %v674
    %v4470 = vunpack.c.h.b16 %v674
    %v4471 = vunpack.c.l.b16 %v675
    %v4472 = vunpack.c.h.b16 %v675
    %v4473 = vunpack.c.l.b16 %v676
    %v4474 = vunpack.c.h.b16 %v676
    %v4475 = vunpack.c.l.b16 %v677
    %v4476 = vunpack.c.h.b16 %v677
    %v4477 = vunpack.c.l.b16 %v678
    %v4478 = vunpack.c.h.b16 %v678
    %v4479 = vunpack.c.l.b16 %v679
    %v4480 = vunpack.c.h.b16 %v679
    %v4481 = vunpack.c.l.b16 %v680
    %v4482 = vunpack.c.h.b16 %v680
    %v4483 = vunpack.c.l.b16 %v681
    %v4484 = vunpack.c.h.b16 %v681
    %v4485 = vunpack.c.l.b16 %v682
    %v4486 = vunpack.c.h.b16 %v682
    %v4487 = vunpack.c.l.b16 %v683
    %v4488 = vunpack.c.h.b16 %v683
    %v4489 = vunpack.c.l.b16 %v684
    %v4490 = vunpack.c.h.b16 %v684
    %v4491 = vunpack.c.l.b16 %v685
    %v4492 = vunpack.c.h.b16 %v685
    %v4493 = vunpack.c.l.b16 %v686
    %v4494 = vunpack.c.h.b16 %v686
    %v4495 = vunpack.c.l.b16 %v687
    %v4496 = vunpack.c.h.b16 %v687
    %v4497 = vunpack.c.l.b16 %v688
    %v4498 = vunpack.c.h.b16 %v688
    %v4499 = vunpack.c.l.b16 %v689
    %v4500 = vunpack.c.h.b16 %v689
    %v4501 = vunpack.c.l.b16 %v690
    %v4502 = vunpack.c.h.b16 %v690
    %v4503 = vunpack.c.l.b16 %v691
    %v4504 = vunpack.c.h.b16 %v691
    %v4505 = vunpack.c.l.b16 %v692
    %v4506 = vunpack.c.h.b16 %v692
    %v4507 = vunpack.c.l.b16 %v693
    %v4508 = vunpack.c.h.b16 %v693
    %v4509 = vunpack.c.l.b16 %v694
    %v4510 = vunpack.c.h.b16 %v694
    %v4511 = vunpack.c.l.b16 %v695
    %v4512 = vunpack.c.h.b16 %v695
    %v4513 = vunpack.c.l.b16 %v696
    %v4514 = vunpack.c.h.b16 %v696
    %v4515 = vunpack.c.l.b16 %v697
    %v4516 = vunpack.c.h.b16 %v697
    %v4517 = vunpack.c.l.b16 %v698
    %v4518 = vunpack.c.h.b16 %v698
    %v4519 = vunpack.c.l.b16 %v699
    %v4520 = vunpack.c.h.b16 %v699
    %v4521 = vunpack.c.l.b16 %v700
    %v4522 = vunpack.c.h.b16 %v700
    %v4523 = vunpack.c.l.b16 %v701
    %v4524 = vunpack.c.h.b16 %v701
    %v4525 = vunpack.c.l.b16 %v702
    %v4526 = vunpack.c.h.b16 %v702
    %v4527 = vunpack.c.l.b16 %v703
    %v4528 = vunpack.c.h.b16 %v703
    %v4529 = vunpack.c.l.b16 %v704
    %v4530 = vunpack.c.h.b16 %v704
    %v4531 = vunpack.c.l.b16 %v705
    %v4532 = vunpack.c.h.b16 %v705
    %v4533 = vunpack.c.l.b16 %v706
    %v4534 = vunpack.c.h.b16 %v706
    %v4535 = vunpack.c.l.b16 %v707
    %v4536 = vunpack.c.h.b16 %v707
    %v4537 = vunpack.c.l.b16 %v708
    %v4538 = vunpack.c.h.b16 %v708
    %v4539 = vunpack.c.l.b16 %v709
    %v4540 = vunpack.c.h.b16 %v709
    %v4541 = vunpack.c.l.b16 %v710
    %v4542 = vunpack.c.h.b16 %v710
    %v4543 = vunpack.c.l.b16 %v711
    %v4544 = vunpack.c.h.b16 %v711
    %v4545 = vunpack.c.l.b16 %v712
    %v4546 = vunpack.c.h.b16 %v712
    %v4547 = vunpack.c.l.b16 %v713
    %v4548 = vunpack.c.h.b16 %v713
    %v4549 = vunpack.c.l.b16 %v714
    %v4550 = vunpack.c.h.b16 %v714
    %v4551 = vunpack.c.l.b16 %v715
    %v4552 = vunpack.c.h.b16 %v715
    %v4553 = vunpack.c.l.b16 %v716
    %v4554 = vunpack.c.h.b16 %v716
    %v4555 = vunpack.c.l.b16 %v717
    %v4556 = vunpack.c.h.b16 %v717
    %v4557 = vunpack.c.l.b16 %v718
    %v4558 = vunpack.c.h.b16 %v718
    %v4559 = vunpack.c.l.b16 %v719
    %v4560 = vunpack.c.h.b16 %v719
    %v4561 = vunpack.c.l.b16 %v720
    %v4562 = vunpack.c.h.b16 %v720
    %v4563 = vunpack.c.l.b16 %v721
    %v4564 = vunpack.c.h.b16 %v721
    %v4565 = vunpack.c.l.b16 %v722
    %v4566 = vunpack.c.h.b16 %v722
    %v4567 = vunpack.c.l.b16 %v723
    %v4568 = vunpack.c.h.b16 %v723
    %v4569 = vunpack.c.l.b16 %v724
    %v4570 = vunpack.c.h.b16 %v724
    %v4571 = vunpack.c.l.b16 %v725
    %v4572 = vunpack.c.h.b16 %v725
    %v4573 = vunpack.c.l.b16 %v726
    %v4574 = vunpack.c.h.b16 %v726
    %v4575 = vunpack.c.l.b16 %v727
    %v4576 = vunpack.c.h.b16 %v727
    %v4577 = vunpack.c.l.b16 %v728
    %v4578 = vunpack.c.h.b16 %v728
    %v4579 = vunpack.c.l.b16 %v729
    %v4580 = vunpack.c.h.b16 %v729
    %v4581 = vunpack.c.l.b16 %v730
    %v4582 = vunpack.c.h.b16 %v730
    %v4583 = vunpack.c.l.b16 %v731
    %v4584 = vunpack.c.h.b16 %v731
    %v4585 = vunpack.c.l.b16 %v732
    %v4586 = vunpack.c.h.b16 %v732
    %v4587 = vunpack.c.l.b16 %v733
    %v4588 = vunpack.c.h.b16 %v733
    %v4589 = vunpack.c.l.b16 %v734
    %v4590 = vunpack.c.h.b16 %v734
    %v4591 = vunpack.c.l.b16 %v735
    %v4592 = vunpack.c.h.b16 %v735
    %v4593 = vunpack.c.l.b16 %v736
    %v4594 = vunpack.c.h.b16 %v736
    %v4595 = vunpack.c.l.b16 %v737
    %v4596 = vunpack.c.h.b16 %v737
    %v4597 = vunpack.c.l.b16 %v738
    %v4598 = vunpack.c.h.b16 %v738
    %v4599 = vunpack.c.l.b16 %v739
    %v4600 = vunpack.c.h.b16 %v739
    %v4601 = vunpack.c.l.b16 %v740
    %v4602 = vunpack.c.h.b16 %v740
    %v4603 = vunpack.c.l.b16 %v741
    %v4604 = vunpack.c.h.b16 %v741
    %v4605 = vunpack.c.l.b16 %v742
    %v4606 = vunpack.c.h.b16 %v742
    %v4607 = vunpack.c.l.b16 %v743
    %v4608 = vunpack.c.h.b16 %v743
    %v4609 = vunpack.c.l.b16 %v744
    %v4610 = vunpack.c.h.b16 %v744
    %v4611 = vunpack.c.l.b16 %v745
    %v4612 = vunpack.c.h.b16 %v745
    %v4613 = vunpack.c.l.b16 %v746
    %v4614 = vunpack.c.h.b16 %v746
    %v4615 = vunpack.c.l.b16 %v747
    %v4616 = vunpack.c.h.b16 %v747
    %v4617 = vunpack.c.l.b16 %v748
    %v4618 = vunpack.c.h.b16 %v748
    %v4619 = vunpack.c.l.b16 %v749
    %v4620 = vunpack.c.h.b16 %v749
    %v4621 = vunpack.c.l.b16 %v750
    %v4622 = vunpack.c.h.b16 %v750
    %v4623 = vunpack.c.l.b16 %v751
    %v4624 = vunpack.c.h.b16 %v751
    %v4625 = vunpack.c.l.b16 %v752
    %v4626 = vunpack.c.h.b16 %v752
    %v4627 = vunpack.c.l.b16 %v753
    %v4628 = vunpack.c.h.b16 %v753
    %v4629 = vunpack.c.l.b16 %v754
    %v4630 = vunpack.c.h.b16 %v754
    %v4631 = vunpack.c.l.b16 %v755
    %v4632 = vunpack.c.h.b16 %v755
    %v4633 = vunpack.c.l.b16 %v756
    %v4634 = vunpack.c.h.b16 %v756
    %v4635 = vunpack.c.l.b16 %v757
    %v4636 = vunpack.c.h.b16 %v757
    %v4637 = vunpack.c.l.b16 %v758
    %v4638 = vunpack.c.h.b16 %v758
    %v4639 = vunpack.c.l.b16 %v759
    %v4640 = vunpack.c.h.b16 %v759
    %v4641 = vunpack.c.l.b16 %v760
    %v4642 = vunpack.c.h.b16 %v760
    %v4643 = vunpack.c.l.b16 %v761
    %v4644 = vunpack.c.h.b16 %v761
    %v4645 = vunpack.c.l.b16 %v762
    %v4646 = vunpack.c.h.b16 %v762
    %v4647 = vunpack.c.l.b16 %v763
    %v4648 = vunpack.c.h.b16 %v763
    %v4649 = vunpack.c.l.b16 %v764
    %v4650 = vunpack.c.h.b16 %v764
    %v4651 = vunpack.c.l.b16 %v765
    %v4652 = vunpack.c.h.b16 %v765
    %v4653 = vunpack.c.l.b16 %v766
    %v4654 = vunpack.c.h.b16 %v766
    %v4655 = vunpack.c.l.b16 %v767
    %v4656 = vunpack.c.h.b16 %v767
    %v4657 = vunpack.c.l.b16 %v768
    %v4658 = vunpack.c.h.b16 %v768
    %v4659 = vunpack.c.l.b16 %v769
    %v4660 = vunpack.c.h.b16 %v769
    %v4661 = vunpack.c.l.b16 %v770
    %v4662 = vunpack.c.h.b16 %v770
    %v4663 = vunpack.c.l.b16 %v771
    %v4664 = vunpack.c.h.b16 %v771
    %v4665 = vunpack.c.l.b16 %v772
    %v4666 = vunpack.c.h.b16 %v772
    %v4667 = vunpack.c.l.b16 %v773
    %v4668 = vunpack.c.h.b16 %v773
    %v4669 = vunpack.c.l.b16 %v774
    %v4670 = vunpack.c.h.b16 %v774
    %v4671 = vunpack.c.l.b16 %v775
    %v4672 = vunpack.c.h.b16 %v775
    %v4673 = vunpack.c.l.b16 %v776
    %v4674 = vunpack.c.h.b16 %v776
    %v4675 = vunpack.c.l.b16 %v777
    %v4676 = vunpack.c.h.b16 %v777
    %v4677 = vunpack.c.l.b16 %v778
    %v4678 = vunpack.c.h.b16 %v778
    %v4679 = vunpack.c.l.b16 %v779
    %v4680 = vunpack.c.h.b16 %v779
    %v4681 = vunpack.c.l.b16 %v780
    %v4682 = vunpack.c.h.b16 %v780
    %v4683 = vunpack.c.l.b16 %v781
    %v4684 = vunpack.c.h.b16 %v781
    %v4685 = vunpack.c.l.b16 %v782
    %v4686 = vunpack.c.h.b16 %v782
    %v4687 = vunpack.c.l.b16 %v783
    %v4688 = vunpack.c.h.b16 %v783
    %v4689 = vunpack.c.l.b16 %v784
    %v4690 = vunpack.c.h.b16 %v784
    %v4691 = vunpack.c.l.b16 %v785
    %v4692 = vunpack.c.h.b16 %v785
    %v4693 = vunpack.c.l.b16 %v786
    %v4694 = vunpack.c.h.b16 %v786
    %v4695 = vunpack.c.l.b16 %v787
    %v4696 = vunpack.c.h.b16 %v787
    %v4697 = vunpack.c.l.b16 %v788
    %v4698 = vunpack.c.h.b16 %v788
    %v4699 = vunpack.c.l.b16 %v789
    %v4700 = vunpack.c.h.b16 %v789
    %v4701 = vunpack.c.l.b16 %v790
    %v4702 = vunpack.c.h.b16 %v790
    %v4703 = vunpack.c.l.b16 %v791
    %v4704 = vunpack.c.h.b16 %v791
    %v4705 = vunpack.c.l.b16 %v792
    %v4706 = vunpack.c.h.b16 %v792
    %v4707 = vunpack.c.l.b16 %v793
    %v4708 = vunpack.c.h.b16 %v793
    %v4709 = vunpack.c.l.b16 %v794
    %v4710 = vunpack.c.h.b16 %v794
    %v4711 = vunpack.c.l.b16 %v795
    %v4712 = vunpack.c.h.b16 %v795
    %v4713 = vunpack.c.l.b16 %v796
    %v4714 = vunpack.c.h.b16 %v796
    %v4715 = vunpack.c.l.b16 %v797
    %v4716 = vunpack.c.h.b16 %v797
    %v4717 = vunpack.c.l.b16 %v798
    %v4718 = vunpack.c.h.b16 %v798
    %v4719 = vunpack.c.l.b16 %v799
    %v4720 = vunpack.c.h.b16 %v799
    %v4721 = vunpack.c.l.b16 %v800
    %v4722 = vunpack.c.h.b16 %v800
    %v4723 = vunpack.c.l.b16 %v801
    %v4724 = vunpack.c.h.b16 %v801
    %v4725 = vunpack.c.l.b16 %v802
    %v4726 = vunpack.c.h.b16 %v802
    %v4727 = vunpack.c.l.b16 %v803
    %v4728 = vunpack.c.h.b16 %v803
    %v4729 = vunpack.c.l.b16 %v804
    %v4730 = vunpack.c.h.b16 %v804
    %v4731 = vunpack.c.l.b16 %v805
    %v4732 = vunpack.c.h.b16 %v805
    %v4733 = vunpack.c.l.b16 %v806
    %v4734 = vunpack.c.h.b16 %v806
    %v4735 = vunpack.c.l.b16 %v807
    %v4736 = vunpack.c.h.b16 %v807
    %v4737 = vunpack.c.l.b16 %v808
    %v4738 = vunpack.c.h.b16 %v808
    %v4739 = vunpack.c.l.b16 %v809
    %v4740 = vunpack.c.h.b16 %v809
    %v4741 = vunpack.c.l.b16 %v810
    %v4742 = vunpack.c.h.b16 %v810
    %v4743 = vunpack.c.l.b16 %v811
    %v4744 = vunpack.c.h.b16 %v811
    %v4745 = vunpack.c.l.b16 %v812
    %v4746 = vunpack.c.h.b16 %v812
    %v4747 = vunpack.c.l.b16 %v813
    %v4748 = vunpack.c.h.b16 %v813
    %v4749 = vunpack.c.l.b16 %v814
    %v4750 = vunpack.c.h.b16 %v814
    %v4751 = vunpack.c.l.b16 %v815
    %v4752 = vunpack.c.h.b16 %v815
    %v4753 = vunpack.c.l.b16 %v816
    %v4754 = vunpack.c.h.b16 %v816
    %v4755 = vunpack.c.l.b16 %v817
    %v4756 = vunpack.c.h.b16 %v817
    %v4757 = vunpack.c.l.b16 %v818
    %v4758 = vunpack.c.h.b16 %v818
    %v4759 = vunpack.c.l.b16 %v819
    %v4760 = vunpack.c.h.b16 %v819
    %v4761 = vunpack.c.l.b16 %v820
    %v4762 = vunpack.c.h.b16 %v820
    %v4763 = vunpack.c.l.b16 %v821
    %v4764 = vunpack.c.h.b16 %v821
    %v4765 = vunpack.c.l.b16 %v822
    %v4766 = vunpack.c.h.b16 %v822
    %v4767 = vunpack.c.l.b16 %v823
    %v4768 = vunpack.c.h.b16 %v823
    %v4769 = vunpack.c.l.b16 %v824
    %v4770 = vunpack.c.h.b16 %v824
    %v4771 = vunpack.c.l.b16 %v825
    %v4772 = vunpack.c.h.b16 %v825
    %v4773 = vunpack.c.l.b16 %v826
    %v4774 = vunpack.c.h.b16 %v826
    %v4775 = vunpack.c.l.b16 %v827
    %v4776 = vunpack.c.h.b16 %v827
    %v4777 = vunpack.c.l.b16 %v828
    %v4778 = vunpack.c.h.b16 %v828
    %v4779 = vunpack.c.l.b16 %v829
    %v4780 = vunpack.c.h.b16 %v829
    %v4781 = vunpack.c.l.b16 %v830
    %v4782 = vunpack.c.h.b16 %v830
    %v4783 = vunpack.c.l.b16 %v831
    %v4784 = vunpack.c.h.b16 %v831
    %v4785 = vunpack.c.l.b16 %v832
    %v4786 = vunpack.c.h.b16 %v832
    %v4787 = vunpack.c.l.b16 %v833
    %v4788 = vunpack.c.h.b16 %v833
    %v4789 = vunpack.c.l.b16 %v834
    %v4790 = vunpack.c.h.b16 %v834
    %v4791 = vunpack.c.l.b16 %v835
    %v4792 = vunpack.c.h.b16 %v835
    %v4793 = vunpack.c.l.b16 %v836
    %v4794 = vunpack.c.h.b16 %v836
    %v4795 = vunpack.c.l.b16 %v837
    %v4796 = vunpack.c.h.b16 %v837
    %v4797 = vunpack.c.l.b16 %v838
    %v4798 = vunpack.c.h.b16 %v838
    %v4799 = vunpack.c.l.b16 %v839
    %v4800 = vunpack.c.h.b16 %v839
    %v4801 = vunpack.c.l.b16 %v840
    %v4802 = vunpack.c.h.b16 %v840
    %v4803 = vunpack.c.l.b16 %v841
    %v4804 = vunpack.c.h.b16 %v841
    %v4805 = vunpack.c.l.b16 %v842
    %v4806 = vunpack.c.h.b16 %v842
    %v4807 = vunpack.c.l.b16 %v843
    %v4808 = vunpack.c.h.b16 %v843
    %v4809 = vunpack.c.l.b16 %v844
    %v4810 = vunpack.c.h.b16 %v844
    %v4811 = vunpack.c.l.b16 %v845
    %v4812 = vunpack.c.h.b16 %v845
    %v4813 = vunpack.c.l.b16 %v846
    %v4814 = vunpack.c.h.b16 %v846
    %v4815 = vunpack.c.l.b16 %v847
    %v4816 = vunpack.c.h.b16 %v847
    %v4817 = vunpack.c.l.b16 %v848
    %v4818 = vunpack.c.h.b16 %v848
    %v4819 = vunpack.c.l.b16 %v849
    %v4820 = vunpack.c.h.b16 %v849
    %v4821 = vunpack.c.l.b16 %v850
    %v4822 = vunpack.c.h.b16 %v850
    %v4823 = vunpack.c.l.b16 %v851
    %v4824 = vunpack.c.h.b16 %v851
    %v4825 = vunpack.c.l.b16 %v852
    %v4826 = vunpack.c.h.b16 %v852
    %v4827 = vunpack.c.l.b16 %v853
    %v4828 = vunpack.c.h.b16 %v853
    %v4829 = vunpack.c.l.b16 %v854
    %v4830 = vunpack.c.h.b16 %v854
    %v4831 = vunpack.c.l.b16 %v855
    %v4832 = vunpack.c.h.b16 %v855
    %v4833 = vunpack.c.l.b16 %v856
    %v4834 = vunpack.c.h.b16 %v856
    %v4835 = vunpack.c.l.b16 %v857
    %v4836 = vunpack.c.h.b16 %v857
    %v4837 = vunpack.c.l.b16 %v858
    %v4838 = vunpack.c.h.b16 %v858
    %v4839 = vunpack.c.l.b16 %v859
    %v4840 = vunpack.c.h.b16 %v859
    %v4841 = vunpack.c.l.b16 %v860
    %v4842 = vunpack.c.h.b16 %v860
    %v4843 = vunpack.c.l.b16 %v861
    %v4844 = vunpack.c.h.b16 %v861
    %v4845 = vunpack.c.l.b16 %v862
    %v4846 = vunpack.c.h.b16 %v862
    %v4847 = vunpack.c.l.b16 %v863
    %v4848 = vunpack.c.h.b16 %v863
    %v4849 = vunpack.c.l.b16 %v864
    %v4850 = vunpack.c.h.b16 %v864
    %v4851 = vunpack.c.l.b16 %v865
    %v4852 = vunpack.c.h.b16 %v865
    %v4853 = vunpack.c.l.b16 %v866
    %v4854 = vunpack.c.h.b16 %v866
    %v4855 = vunpack.c.l.b16 %v867
    %v4856 = vunpack.c.h.b16 %v867
    %v4857 = vunpack.c.l.b16 %v868
    %v4858 = vunpack.c.h.b16 %v868
    %v4859 = vunpack.c.l.b16 %v869
    %v4860 = vunpack.c.h.b16 %v869
    %v4861 = vunpack.c.l.b16 %v870
    %v4862 = vunpack.c.h.b16 %v870
    %v4863 = vunpack.c.l.b16 %v871
    %v4864 = vunpack.c.h.b16 %v871
    %v4865 = vunpack.c.l.b16 %v872
    %v4866 = vunpack.c.h.b16 %v872
    %v4867 = vunpack.c.l.b16 %v873
    %v4868 = vunpack.c.h.b16 %v873
    %v4869 = vunpack.c.l.b16 %v874
    %v4870 = vunpack.c.h.b16 %v874
    %v4871 = vunpack.c.l.b16 %v875
    %v4872 = vunpack.c.h.b16 %v875
    %v4873 = vunpack.c.l.b16 %v876
    %v4874 = vunpack.c.h.b16 %v876
    %v4875 = vunpack.c.l.b16 %v877
    %v4876 = vunpack.c.h.b16 %v877
    %v4877 = vunpack.c.l.b16 %v878
    %v4878 = vunpack.c.h.b16 %v878
    %v4879 = vunpack.c.l.b16 %v879
    %v4880 = vunpack.c.h.b16 %v879
    %v4881 = vunpack.c.l.b16 %v880
    %v4882 = vunpack.c.h.b16 %v880
    %v4883 = vunpack.c.l.b16 %v881
    %v4884 = vunpack.c.h.b16 %v881
    %v4885 = vunpack.c.l.b16 %v882
    %v4886 = vunpack.c.h.b16 %v882
    %v4887 = vunpack.c.l.b16 %v883
    %v4888 = vunpack.c.h.b16 %v883
    %v4889 = vunpack.c.l.b16 %v884
    %v4890 = vunpack.c.h.b16 %v884
    %v4891 = vunpack.c.l.b16 %v885
    %v4892 = vunpack.c.h.b16 %v885
    %v4893 = vunpack.c.l.b16 %v886
    %v4894 = vunpack.c.h.b16 %v886
    %v4895 = vunpack.c.l.b16 %v887
    %v4896 = vunpack.c.h.b16 %v887
    %v4897 = vunpack.c.l.b16 %v888
    %v4898 = vunpack.c.h.b16 %v888
    %v4899 = vunpack.c.l.b16 %v889
    %v4900 = vunpack.c.h.b16 %v889
    %v4901 = vunpack.c.l.b16 %v890
    %v4902 = vunpack.c.h.b16 %v890
    %v4903 = vunpack.c.l.b16 %v891
    %v4904 = vunpack.c.h.b16 %v891
    %v4905 = vunpack.c.l.b16 %v892
    %v4906 = vunpack.c.h.b16 %v892
    %v4907 = vunpack.c.l.b16 %v893
    %v4908 = vunpack.c.h.b16 %v893
    %v4909 = vunpack.c.l.b16 %v894
    %v4910 = vunpack.c.h.b16 %v894
    %v4911 = vunpack.c.l.b16 %v895
    %v4912 = vunpack.c.h.b16 %v895
    %v4913 = vunpack.c.l.b16 %v896
    %v4914 = vunpack.c.h.b16 %v896
    %v4915 = vunpack.c.l.b16 %v897
    %v4916 = vunpack.c.h.b16 %v897
    %v4917 = vunpack.c.l.b16 %v898
    %v4918 = vunpack.c.h.b16 %v898
    %v4919 = vunpack.c.l.b16 %v899
    %v4920 = vunpack.c.h.b16 %v899
    %v4921 = vunpack.c.l.b16 %v900
    %v4922 = vunpack.c.h.b16 %v900
    %v4923 = vunpack.c.l.b16 %v901
    %v4924 = vunpack.c.h.b16 %v901
    %v4925 = vunpack.c.l.b16 %v902
    %v4926 = vunpack.c.h.b16 %v902
    %v4927 = vunpack.c.l.b16 %v903
    %v4928 = vunpack.c.h.b16 %v903
    %v4929 = vunpack.c.l.b16 %v904
    %v4930 = vunpack.c.h.b16 %v904
    %v4931 = vunpack.c.l.b16 %v905
    %v4932 = vunpack.c.h.b16 %v905
    %v4933 = vunpack.c.l.b16 %v906
    %v4934 = vunpack.c.h.b16 %v906
    %v4935 = vunpack.c.l.b16 %v907
    %v4936 = vunpack.c.h.b16 %v907
    %v4937 = vunpack.c.l.b16 %v908
    %v4938 = vunpack.c.h.b16 %v908
    %v4939 = vunpack.c.l.b16 %v909
    %v4940 = vunpack.c.h.b16 %v909
    %v4941 = vunpack.c.l.b16 %v910
    %v4942 = vunpack.c.h.b16 %v910
    %v4943 = vunpack.c.l.b16 %v911
    %v4944 = vunpack.c.h.b16 %v911
    %v4945 = vunpack.c.l.b16 %v912
    %v4946 = vunpack.c.h.b16 %v912
    %v4947 = vunpack.c.l.b16 %v913
    %v4948 = vunpack.c.h.b16 %v913
    %v4949 = vunpack.c.l.b16 %v914
    %v4950 = vunpack.c.h.b16 %v914
    %v4951 = vunpack.c.l.b16 %v915
    %v4952 = vunpack.c.h.b16 %v915
    %v4953 = vunpack.c.l.b16 %v916
    %v4954 = vunpack.c.h.b16 %v916
    %v4955 = vunpack.c.l.b16 %v917
    %v4956 = vunpack.c.h.b16 %v917
    %v4957 = vunpack.c.l.b16 %v918
    %v4958 = vunpack.c.h.b16 %v918
    %v4959 = vunpack.c.l.b16 %v919
    %v4960 = vunpack.c.h.b16 %v919
    %v4961 = vunpack.c.l.b16 %v920
    %v4962 = vunpack.c.h.b16 %v920
    %v4963 = vunpack.c.l.b16 %v921
    %v4964 = vunpack.c.h.b16 %v921
    %v4965 = vunpack.c.l.b16 %v922
    %v4966 = vunpack.c.h.b16 %v922
    %v4967 = vunpack.c.l.b16 %v923
    %v4968 = vunpack.c.h.b16 %v923
    %v4969 = vunpack.c.l.b16 %v924
    %v4970 = vunpack.c.h.b16 %v924
    %v4971 = vunpack.c.l.b16 %v925
    %v4972 = vunpack.c.h.b16 %v925
    %v4973 = vunpack.c.l.b16 %v926
    %v4974 = vunpack.c.h.b16 %v926
    %v4975 = vunpack.c.l.b16 %v927
    %v4976 = vunpack.c.h.b16 %v927
    %v4977 = vunpack.c.l.b16 %v928
    %v4978 = vunpack.c.h.b16 %v928
    %v4979 = vunpack.c.l.b16 %v929
    %v4980 = vunpack.c.h.b16 %v929
    %v4981 = vunpack.c.l.b16 %v930
    %v4982 = vunpack.c.h.b16 %v930
    %v4983 = vunpack.c.l.b16 %v931
    %v4984 = vunpack.c.h.b16 %v931
    %v4985 = vunpack.c.l.b16 %v932
    %v4986 = vunpack.c.h.b16 %v932
    %v4987 = vunpack.c.l.b16 %v933
    %v4988 = vunpack.c.h.b16 %v933
    %v4989 = vunpack.c.l.b16 %v934
    %v4990 = vunpack.c.h.b16 %v934
    %v4991 = vunpack.c.l.b16 %v935
    %v4992 = vunpack.c.h.b16 %v935
    %v4993 = vunpack.c.l.b16 %v936
    %v4994 = vunpack.c.h.b16 %v936
    %v4995 = vunpack.c.l.b16 %v937
    %v4996 = vunpack.c.h.b16 %v937
    %v4997 = vunpack.c.l.b16 %v938
    %v4998 = vunpack.c.h.b16 %v938
    %v4999 = vunpack.c.l.b16 %v939
    %v5000 = vunpack.c.h.b16 %v939
    %v5001 = vunpack.c.l.b16 %v940
    %v5002 = vunpack.c.h.b16 %v940
    %v5003 = vunpack.c.l.b16 %v941
    %v5004 = vunpack.c.h.b16 %v941
    %v5005 = vunpack.c.l.b16 %v942
    %v5006 = vunpack.c.h.b16 %v942
    %v5007 = vunpack.c.l.b16 %v943
    %v5008 = vunpack.c.h.b16 %v943
    %v5009 = vunpack.c.l.b16 %v944
    %v5010 = vunpack.c.h.b16 %v944
    %v5011 = vunpack.c.l.b16 %v945
    %v5012 = vunpack.c.h.b16 %v945
    %v5013 = vunpack.c.l.b16 %v946
    %v5014 = vunpack.c.h.b16 %v946
    %v5015 = vunpack.c.l.b16 %v947
    %v5016 = vunpack.c.h.b16 %v947
    %v5017 = vunpack.c.l.b16 %v948
    %v5018 = vunpack.c.h.b16 %v948
    %v5019 = vunpack.c.l.b16 %v949
    %v5020 = vunpack.c.h.b16 %v949
    %v5021 = vunpack.c.l.b16 %v950
    %v5022 = vunpack.c.h.b16 %v950
    %v5023 = vunpack.c.l.b16 %v951
    %v5024 = vunpack.c.h.b16 %v951
    %v5025 = vunpack.c.l.b16 %v952
    %v5026 = vunpack.c.h.b16 %v952
    %v5027 = vunpack.c.l.b16 %v953
    %v5028 = vunpack.c.h.b16 %v953
    %v5029 = vunpack.c.l.b16 %v954
    %v5030 = vunpack.c.h.b16 %v954
    %v5031 = vunpack.c.l.b16 %v955
    %v5032 = vunpack.c.h.b16 %v955
    %v5033 = vunpack.c.l.b16 %v956
    %v5034 = vunpack.c.h.b16 %v956
    %v5035 = vunpack.c.l.b16 %v957
    %v5036 = vunpack.c.h.b16 %v957
    %v5037 = vunpack.c.l.b16 %v958
    %v5038 = vunpack.c.h.b16 %v958
    %v5039 = vunpack.c.l.b16 %v959
    %v5040 = vunpack.c.h.b16 %v959
    %v5041 = vunpack.c.l.b16 %v960
    %v5042 = vunpack.c.h.b16 %v960
    %v5043 = vunpack.c.l.b16 %v961
    %v5044 = vunpack.c.h.b16 %v961
    %v5045 = vunpack.c.l.b16 %v962
    %v5046 = vunpack.c.h.b16 %v962
    %v5047 = vunpack.c.l.b16 %v963
    %v5048 = vunpack.c.h.b16 %v963
    %v5049 = vunpack.c.l.b16 %v964
    %v5050 = vunpack.c.h.b16 %v964
    %v5051 = vunpack.c.l.b16 %v965
    %v5052 = vunpack.c.h.b16 %v965
    %v5053 = vunpack.c.l.b16 %v966
    %v5054 = vunpack.c.h.b16 %v966
    %v5055 = vunpack.c.l.b16 %v967
    %v5056 = vunpack.c.h.b16 %v967
    %v5057 = vunpack.c.l.b16 %v968
    %v5058 = vunpack.c.h.b16 %v968
    %v5059 = vunpack.c.l.b16 %v969
    %v5060 = vunpack.c.h.b16 %v969
    %v5061 = vunpack.c.l.b16 %v970
    %v5062 = vunpack.c.h.b16 %v970
    %v5063 = vunpack.c.l.b16 %v971
    %v5064 = vunpack.c.h.b16 %v971
    %v5065 = vunpack.c.l.b16 %v972
    %v5066 = vunpack.c.h.b16 %v972
    %v5067 = vunpack.c.l.b16 %v973
    %v5068 = vunpack.c.h.b16 %v973
    %v5069 = vunpack.c.l.b16 %v974
    %v5070 = vunpack.c.h.b16 %v974
    %v5071 = vunpack.c.l.b16 %v975
    %v5072 = vunpack.c.h.b16 %v975
    %v5073 = vunpack.c.l.b16 %v976
    %v5074 = vunpack.c.h.b16 %v976
    %v5075 = vunpack.c.l.b16 %v977
    %v5076 = vunpack.c.h.b16 %v977
    %v5077 = vunpack.c.l.b16 %v978
    %v5078 = vunpack.c.h.b16 %v978
    %v5079 = vunpack.c.l.b16 %v979
    %v5080 = vunpack.c.h.b16 %v979
    %v5081 = vunpack.c.l.b16 %v980
    %v5082 = vunpack.c.h.b16 %v980
    %v5083 = vunpack.c.l.b16 %v981
    %v5084 = vunpack.c.h.b16 %v981
    %v5085 = vunpack.c.l.b16 %v982
    %v5086 = vunpack.c.h.b16 %v982
    %v5087 = vunpack.c.l.b16 %v983
    %v5088 = vunpack.c.h.b16 %v983
    %v5089 = vunpack.c.l.b16 %v984
    %v5090 = vunpack.c.h.b16 %v984
    %v5091 = vunpack.c.l.b16 %v985
    %v5092 = vunpack.c.h.b16 %v985
    %v5093 = vunpack.c.l.b16 %v986
    %v5094 = vunpack.c.h.b16 %v986
    %v5095 = vunpack.c.l.b16 %v987
    %v5096 = vunpack.c.h.b16 %v987
    %v5097 = vunpack.c.l.b16 %v988
    %v5098 = vunpack.c.h.b16 %v988
    %v5099 = vunpack.c.l.b16 %v989
    %v5100 = vunpack.c.h.b16 %v989
    %v5101 = vunpack.c.l.b16 %v990
    %v5102 = vunpack.c.h.b16 %v990
    %v5103 = vunpack.c.l.b16 %v991
    %v5104 = vunpack.c.h.b16 %v991
    %v5105 = vunpack.c.l.b16 %v992
    %v5106 = vunpack.c.h.b16 %v992
    %v5107 = vunpack.c.l.b16 %v993
    %v5108 = vunpack.c.h.b16 %v993
    %v5109 = vunpack.c.l.b16 %v994
    %v5110 = vunpack.c.h.b16 %v994
    %v5111 = vunpack.c.l.b16 %v995
    %v5112 = vunpack.c.h.b16 %v995
    %v5113 = vunpack.c.l.b16 %v996
    %v5114 = vunpack.c.h.b16 %v996
    %v5115 = vunpack.c.l.b16 %v997
    %v5116 = vunpack.c.h.b16 %v997
    %v5117 = vunpack.c.l.b16 %v998
    %v5118 = vunpack.c.h.b16 %v998
    %v5119 = vunpack.c.l.b16 %v999
    %v5120 = vunpack.c.h.b16 %v999
    %v5121 = vunpack.c.l.b16 %v1000
    %v5122 = vunpack.c.h.b16 %v1000
    %v5123 = vunpack.c.l.b16 %v1001
    %v5124 = vunpack.c.h.b16 %v1001
    %v5125 = vunpack.c.l.b16 %v1002
    %v5126 = vunpack.c.h.b16 %v1002
    %v5127 = vunpack.c.l.b16 %v1003
    %v5128 = vunpack.c.h.b16 %v1003
    %v5129 = vunpack.c.l.b16 %v1004
    %v5130 = vunpack.c.h.b16 %v1004
    %v5131 = vunpack.c.l.b16 %v1005
    %v5132 = vunpack.c.h.b16 %v1005
    %v5133 = vunpack.c.l.b16 %v1006
    %v5134 = vunpack.c.h.b16 %v1006
    %v5135 = vunpack.c.l.b16 %v1007
    %v5136 = vunpack.c.h.b16 %v1007
    %v5137 = vunpack.c.l.b16 %v1008
    %v5138 = vunpack.c.h.b16 %v1008
    %v5139 = vunpack.c.l.b16 %v1009
    %v5140 = vunpack.c.h.b16 %v1009
    %v5141 = vunpack.c.l.b16 %v1010
    %v5142 = vunpack.c.h.b16 %v1010
    %v5143 = vunpack.c.l.b16 %v1011
    %v5144 = vunpack.c.h.b16 %v1011
    %v5145 = vunpack.c.l.b16 %v1012
    %v5146 = vunpack.c.h.b16 %v1012
    %v5147 = vunpack.c.l.b16 %v1013
    %v5148 = vunpack.c.h.b16 %v1013
    %v5149 = vunpack.c.l.b16 %v1014
    %v5150 = vunpack.c.h.b16 %v1014
    %v5151 = vunpack.c.l.b16 %v1015
    %v5152 = vunpack.c.h.b16 %v1015
    %v5153 = vunpack.c.l.b16 %v1016
    %v5154 = vunpack.c.h.b16 %v1016
    %v5155 = vunpack.c.l.b16 %v1017
    %v5156 = vunpack.c.h.b16 %v1017
    %v5157 = vunpack.c.l.b16 %v1018
    %v5158 = vunpack.c.h.b16 %v1018
    %v5159 = vunpack.c.l.b16 %v1019
    %v5160 = vunpack.c.h.b16 %v1019
    %v5161 = vunpack.c.l.b16 %v1020
    %v5162 = vunpack.c.h.b16 %v1020
    %v5163 = vunpack.c.l.b16 %v1021
    %v5164 = vunpack.c.h.b16 %v1021
    %v5165 = vunpack.c.l.b16 %v1022
    %v5166 = vunpack.c.h.b16 %v1022
    %v5167 = vunpack.c.l.b16 %v1023
    %v5168 = vunpack.c.h.b16 %v1023
    %v5169 = vunpack.c.l.b16 %v1024
    %v5170 = vunpack.c.h.b16 %v1024
    %v5171 = vunpack.c.l.b16 %v1025
    %v5172 = vunpack.c.h.b16 %v1025
    %v5173 = vunpack.c.l.b16 %v1026
    %v5174 = vunpack.c.h.b16 %v1026
    %v5175 = vunpack.c.l.b16 %v1027
    %v5176 = vunpack.c.h.b16 %v1027
    %v5177 = vunpack.c.l.b16 %v1028
    %v5178 = vunpack.c.h.b16 %v1028
    %v5179 = vunpack.c.l.b16 %v1029
    %v5180 = vunpack.c.h.b16 %v1029
    %v5181 = vunpack.c.l.b16 %v1030
    %v5182 = vunpack.c.h.b16 %v1030
    %v5183 = vunpack.c.l.b16 %v1031
    %v5184 = vunpack.c.h.b16 %v1031
    %v5185 = vunpack.c.l.b16 %v1032
    %v5186 = vunpack.c.h.b16 %v1032
    %v5187 = vunpack.c.l.b16 %v1033
    %v5188 = vunpack.c.h.b16 %v1033
    %v5189 = vunpack.c.l.b16 %v1034
    %v5190 = vunpack.c.h.b16 %v1034
    %v5191 = vunpack.c.l.b16 %v1035
    %v5192 = vunpack.c.h.b16 %v1035
    %v5193 = vunpack.c.l.b16 %v1036
    %v5194 = vunpack.c.h.b16 %v1036
    %v5195 = vunpack.c.l.b16 %v1037
    %v5196 = vunpack.c.h.b16 %v1037
    %v5197 = vunpack.c.l.b16 %v1038
    %v5198 = vunpack.c.h.b16 %v1038
    %v5199 = vunpack.c.l.b16 %v1039
    %v5200 = vunpack.c.h.b16 %v1039
    %v5201 = vunpack.c.l.b16 %v1040
    %v5202 = vunpack.c.h.b16 %v1040
    %v5203 = vunpack.c.l.b16 %v1041
    %v5204 = vunpack.c.h.b16 %v1041
    %v5205 = vunpack.c.l.b16 %v1042
    %v5206 = vunpack.c.h.b16 %v1042
    %v5207 = vunpack.c.l.b16 %v1043
    %v5208 = vunpack.c.h.b16 %v1043
    %v5209 = vunpack.c.l.b16 %v1044
    %v5210 = vunpack.c.h.b16 %v1044
    %v5211 = vunpack.c.l.b16 %v1045
    %v5212 = vunpack.c.h.b16 %v1045
    %v5213 = vunpack.c.l.b16 %v1046
    %v5214 = vunpack.c.h.b16 %v1046
    %v5215 = vunpack.c.l.b16 %v1047
    %v5216 = vunpack.c.h.b16 %v1047
    %v5217 = vunpack.c.l.b16 %v1048
    %v5218 = vunpack.c.h.b16 %v1048
    %v5219 = vunpack.c.l.b16 %v1049
    %v5220 = vunpack.c.h.b16 %v1049
    %v5221 = vunpack.c.l.b16 %v1050
    %v5222 = vunpack.c.h.b16 %v1050
    %v5223 = vunpack.c.l.b16 %v1051
    %v5224 = vunpack.c.h.b16 %v1051
    %v5225 = vunpack.c.l.b16 %v1052
    %v5226 = vunpack.c.h.b16 %v1052
    %v5227 = vunpack.c.l.b16 %v1053
    %v5228 = vunpack.c.h.b16 %v1053
    %v5229 = vunpack.c.l.b16 %v1054
    %v5230 = vunpack.c.h.b16 %v1054
    %v5231 = vunpack.c.l.b16 %v1055
    %v5232 = vunpack.c.h.b16 %v1055
    %v5233 = vunpack.c.l.b16 %v1056
    %v5234 = vunpack.c.h.b16 %v1056
    %v5235 = vunpack.c.l.b16 %v1057
    %v5236 = vunpack.c.h.b16 %v1057
    %v5237 = vunpack.c.l.b16 %v1058
    %v5238 = vunpack.c.h.b16 %v1058
    %v5239 = vunpack.c.l.b16 %v1059
    %v5240 = vunpack.c.h.b16 %v1059
    %v5241 = vunpack.c.l.b16 %v1060
    %v5242 = vunpack.c.h.b16 %v1060
    %v5243 = vunpack.c.l.b16 %v1061
    %v5244 = vunpack.c.h.b16 %v1061
    %v5245 = vunpack.c.l.b16 %v1062
    %v5246 = vunpack.c.h.b16 %v1062
    %v5247 = vunpack.c.l.b16 %v1063
    %v5248 = vunpack.c.h.b16 %v1063
    %v5249 = vunpack.c.l.b16 %v1064
    %v5250 = vunpack.c.h.b16 %v1064
    %v5251 = vunpack.c.l.b16 %v1065
    %v5252 = vunpack.c.h.b16 %v1065
    %v5253 = vunpack.c.l.b16 %v1066
    %v5254 = vunpack.c.h.b16 %v1066
    %v5255 = vunpack.c.l.b16 %v1067
    %v5256 = vunpack.c.h.b16 %v1067
    %v5257 = vunpack.c.l.b16 %v1068
    %v5258 = vunpack.c.h.b16 %v1068
    %v5259 = vunpack.c.l.b16 %v1069
    %v5260 = vunpack.c.h.b16 %v1069
    %v5261 = vunpack.c.l.b16 %v1070
    %v5262 = vunpack.c.h.b16 %v1070
    %v5263 = vunpack.c.l.b16 %v1071
    %v5264 = vunpack.c.h.b16 %v1071
    %v5265 = vunpack.c.l.b16 %v1072
    %v5266 = vunpack.c.h.b16 %v1072
    %v5267 = vunpack.c.l.b16 %v1073
    %v5268 = vunpack.c.h.b16 %v1073
    %v5269 = vunpack.c.l.b16 %v1074
    %v5270 = vunpack.c.h.b16 %v1074
    %v5271 = vunpack.c.l.b16 %v1075
    %v5272 = vunpack.c.h.b16 %v1075
    %v5273 = vunpack.c.l.b16 %v1076
    %v5274 = vunpack.c.h.b16 %v1076
    %v5275 = vunpack.c.l.b16 %v1077
    %v5276 = vunpack.c.h.b16 %v1077
    %v5277 = vunpack.c.l.b16 %v1078
    %v5278 = vunpack.c.h.b16 %v1078
    %v5279 = vunpack.c.l.b16 %v1079
    %v5280 = vunpack.c.h.b16 %v1079
    %v5281 = vunpack.c.l.b16 %v1080
    %v5282 = vunpack.c.h.b16 %v1080
    %v5283 = vunpack.c.l.b16 %v1081
    %v5284 = vunpack.c.h.b16 %v1081
    %v5285 = vunpack.c.l.b16 %v1082
    %v5286 = vunpack.c.h.b16 %v1082
    %v5287 = vunpack.c.l.b16 %v1083
    %v5288 = vunpack.c.h.b16 %v1083
    %v5289 = vunpack.c.l.b16 %v1084
    %v5290 = vunpack.c.h.b16 %v1084
    %v5291 = vunpack.c.l.b16 %v1085
    %v5292 = vunpack.c.h.b16 %v1085
    %v5293 = vunpack.c.l.b16 %v1086
    %v5294 = vunpack.c.h.b16 %v1086
    %v5295 = vunpack.c.l.b16 %v1087
    %v5296 = vunpack.c.h.b16 %v1087
    %v5297 = vunpack.c.l.b16 %v1088
    %v5298 = vunpack.c.h.b16 %v1088
    %v5299 = vunpack.c.l.b16 %v1089
    %v5300 = vunpack.c.h.b16 %v1089
    %v5301 = vunpack.c.l.b16 %v1090
    %v5302 = vunpack.c.h.b16 %v1090
    %v5303 = vunpack.c.l.b16 %v1091
    %v5304 = vunpack.c.h.b16 %v1091
    %v5305 = vunpack.c.l.b16 %v1092
    %v5306 = vunpack.c.h.b16 %v1092
    %v5307 = vunpack.c.l.b16 %v1093
    %v5308 = vunpack.c.h.b16 %v1093
    %v5309 = vunpack.c.l.b16 %v1094
    %v5310 = vunpack.c.h.b16 %v1094
    %v5311 = vunpack.c.l.b16 %v1095
    %v5312 = vunpack.c.h.b16 %v1095
    %v5313 = vunpack.c.l.b16 %v1096
    %v5314 = vunpack.c.h.b16 %v1096
    %v5315 = vunpack.c.l.b16 %v1097
    %v5316 = vunpack.c.h.b16 %v1097
    %v5317 = vunpack.c.l.b16 %v1098
    %v5318 = vunpack.c.h.b16 %v1098
    %v5319 = vunpack.c.l.b16 %v1099
    %v5320 = vunpack.c.h.b16 %v1099
    %v5321 = vunpack.c.l.b16 %v1100
    %v5322 = vunpack.c.h.b16 %v1100
    %v5323 = vunpack.c.l.b16 %v1101
    %v5324 = vunpack.c.h.b16 %v1101
    %v5325 = vunpack.c.l.b16 %v1102
    %v5326 = vunpack.c.h.b16 %v1102
    %v5327 = vunpack.c.l.b16 %v1103
    %v5328 = vunpack.c.h.b16 %v1103
    %v5329 = vunpack.c.l.b16 %v1104
    %v5330 = vunpack.c.h.b16 %v1104
    %v5331 = vunpack.c.l.b16 %v1105
    %v5332 = vunpack.c.h.b16 %v1105
    %v5333 = vunpack.c.l.b16 %v1106
    %v5334 = vunpack.c.h.b16 %v1106
    %v5335 = vunpack.c.l.b16 %v1107
    %v5336 = vunpack.c.h.b16 %v1107
    %v5337 = vunpack.c.l.b16 %v1108
    %v5338 = vunpack.c.h.b16 %v1108
    %v5339 = vunpack.c.l.b16 %v1109
    %v5340 = vunpack.c.h.b16 %v1109
    %v5341 = vunpack.c.l.b16 %v1110
    %v5342 = vunpack.c.h.b16 %v1110
    %v5343 = vunpack.c.l.b16 %v1111
    %v5344 = vunpack.c.h.b16 %v1111
    %v5345 = vunpack.c.l.b16 %v1112
    %v5346 = vunpack.c.h.b16 %v1112
    %v5347 = vunpack.c.l.b16 %v1113
    %v5348 = vunpack.c.h.b16 %v1113
    %v5349 = vunpack.c.l.b16 %v1114
    %v5350 = vunpack.c.h.b16 %v1114
    %v5351 = vunpack.c.l.b16 %v1115
    %v5352 = vunpack.c.h.b16 %v1115
    %v5353 = vunpack.c.l.b16 %v1116
    %v5354 = vunpack.c.h.b16 %v1116
    %v5355 = vunpack.c.l.b16 %v1117
    %v5356 = vunpack.c.h.b16 %v1117
    %v5357 = vunpack.c.l.b16 %v1118
    %v5358 = vunpack.c.h.b16 %v1118
    %v5359 = vunpack.c.l.b16 %v1119
    %v5360 = vunpack.c.h.b16 %v1119
    %v5361 = vunpack.c.l.b16 %v1120
    %v5362 = vunpack.c.h.b16 %v1120
    %v5363 = vunpack.c.l.b16 %v1121
    %v5364 = vunpack.c.h.b16 %v1121
    %v5365 = vunpack.c.l.b16 %v1122
    %v5366 = vunpack.c.h.b16 %v1122
    %v5367 = vunpack.c.l.b16 %v1123
    %v5368 = vunpack.c.h.b16 %v1123
    %v5369 = vunpack.c.l.b16 %v1124
    %v5370 = vunpack.c.h.b16 %v1124
    %v5371 = vunpack.c.l.b16 %v1125
    %v5372 = vunpack.c.h.b16 %v1125
    %v5373 = vunpack.c.l.b16 %v1126
    %v5374 = vunpack.c.h.b16 %v1126
    %v5375 = vunpack.c.l.b16 %v1127
    %v5376 = vunpack.c.h.b16 %v1127
    %v5377 = vunpack.c.l.b16 %v1128
    %v5378 = vunpack.c.h.b16 %v1128
    %v5379 = vunpack.c.l.b16 %v1129
    %v5380 = vunpack.c.h.b16 %v1129
    %v5381 = vunpack.c.l.b16 %v1130
    %v5382 = vunpack.c.h.b16 %v1130
    %v5383 = vunpack.c.l.b16 %v1131
    %v5384 = vunpack.c.h.b16 %v1131
    %v5385 = vunpack.c.l.b16 %v1132
    %v5386 = vunpack.c.h.b16 %v1132
    %v5387 = vunpack.c.l.b16 %v1133
    %v5388 = vunpack.c.h.b16 %v1133
    %v5389 = vunpack.c.l.b16 %v1134
    %v5390 = vunpack.c.h.b16 %v1134
    %v5391 = vunpack.c.l.b16 %v1135
    %v5392 = vunpack.c.h.b16 %v1135
    %v5393 = vunpack.c.l.b16 %v1136
    %v5394 = vunpack.c.h.b16 %v1136
    %v5395 = vunpack.c.l.b16 %v1137
    %v5396 = vunpack.c.h.b16 %v1137
    %v5397 = vunpack.c.l.b16 %v1138
    %v5398 = vunpack.c.h.b16 %v1138
    %v5399 = vunpack.c.l.b16 %v1139
    %v5400 = vunpack.c.h.b16 %v1139
    %v5401 = vunpack.c.l.b16 %v1140
    %v5402 = vunpack.c.h.b16 %v1140
    %v5403 = vunpack.c.l.b16 %v1141
    %v5404 = vunpack.c.h.b16 %v1141
    %v5405 = vunpack.c.l.b16 %v1142
    %v5406 = vunpack.c.h.b16 %v1142
    %v5407 = vunpack.c.l.b16 %v1143
    %v5408 = vunpack.c.h.b16 %v1143
    %v5409 = vunpack.c.l.b16 %v1144
    %v5410 = vunpack.c.h.b16 %v1144
    %v5411 = vunpack.c.l.b16 %v1145
    %v5412 = vunpack.c.h.b16 %v1145
    %v5413 = vunpack.c.l.b16 %v1146
    %v5414 = vunpack.c.h.b16 %v1146
    %v5415 = vunpack.c.l.b16 %v1147
    %v5416 = vunpack.c.h.b16 %v1147
    %v5417 = vunpack.c.l.b16 %v1148
    %v5418 = vunpack.c.h.b16 %v1148
    %v5419 = vunpack.c.l.b16 %v1149
    %v5420 = vunpack.c.h.b16 %v1149
    %v5421 = vunpack.c.l.b16 %v1150
    %v5422 = vunpack.c.h.b16 %v1150
    %v5423 = vunpack.c.l.b16 %v1151
    %v5424 = vunpack.c.h.b16 %v1151
    %v5425 = vunpack.c.l.b16 %v1152
    %v5426 = vunpack.c.h.b16 %v1152
    %v5427 = vunpack.c.l.b16 %v1153
    %v5428 = vunpack.c.h.b16 %v1153
    %v5429 = vunpack.c.l.b16 %v1154
    %v5430 = vunpack.c.h.b16 %v1154
    %v5431 = vunpack.c.l.b16 %v1155
    %v5432 = vunpack.c.h.b16 %v1155
    %v5433 = vunpack.c.l.b16 %v1156
    %v5434 = vunpack.c.h.b16 %v1156
    %v5435 = vunpack.c.l.b16 %v1157
    %v5436 = vunpack.c.h.b16 %v1157
    %v5437 = vunpack.c.l.b16 %v1158
    %v5438 = vunpack.c.h.b16 %v1158
    %v5439 = vunpack.c.l.b16 %v1159
    %v5440 = vunpack.c.h.b16 %v1159
    %v5441 = vunpack.c.l.b16 %v1160
    %v5442 = vunpack.c.h.b16 %v1160
    %v5443 = vunpack.c.l.b16 %v1161
    %v5444 = vunpack.c.h.b16 %v1161
    %v5445 = vunpack.c.l.b16 %v1162
    %v5446 = vunpack.c.h.b16 %v1162
    %v5447 = vunpack.c.l.b16 %v1163
    %v5448 = vunpack.c.h.b16 %v1163
    %v5449 = vunpack.c.l.b16 %v1164
    %v5450 = vunpack.c.h.b16 %v1164
    %v5451 = vunpack.c.l.b16 %v1165
    %v5452 = vunpack.c.h.b16 %v1165
    %v5453 = vunpack.c.l.b16 %v1166
    %v5454 = vunpack.c.h.b16 %v1166
    %v5455 = vunpack.c.l.b16 %v1167
    %v5456 = vunpack.c.h.b16 %v1167
    %v5457 = vunpack.c.l.b16 %v1168
    %v5458 = vunpack.c.h.b16 %v1168
    %v5459 = vunpack.c.l.b16 %v1169
    %v5460 = vunpack.c.h.b16 %v1169
    %v5461 = vunpack.c.l.b16 %v1170
    %v5462 = vunpack.c.h.b16 %v1170
    %v5463 = vunpack.c.l.b16 %v1171
    %v5464 = vunpack.c.h.b16 %v1171
    %v5465 = vunpack.c.l.b16 %v1172
    %v5466 = vunpack.c.h.b16 %v1172
    %v5467 = vunpack.c.l.b16 %v1173
    %v5468 = vunpack.c.h.b16 %v1173
    %v5469 = vunpack.c.l.b16 %v1174
    %v5470 = vunpack.c.h.b16 %v1174
    %v5471 = vunpack.c.l.b16 %v1175
    %v5472 = vunpack.c.h.b16 %v1175
    %v5473 = vunpack.c.l.b16 %v1176
    %v5474 = vunpack.c.h.b16 %v1176
    %v5475 = vunpack.c.l.b16 %v1177
    %v5476 = vunpack.c.h.b16 %v1177
    %v5477 = vunpack.c.l.b16 %v1178
    %v5478 = vunpack.c.h.b16 %v1178
    %v5479 = vunpack.c.l.b16 %v1179
    %v5480 = vunpack.c.h.b16 %v1179
    %v5481 = vunpack.c.l.b16 %v1180
    %v5482 = vunpack.c.h.b16 %v1180
    %v5483 = vunpack.c.l.b16 %v1181
    %v5484 = vunpack.c.h.b16 %v1181
    %v5485 = vunpack.c.l.b16 %v1182
    %v5486 = vunpack.c.h.b16 %v1182
    %v5487 = vunpack.c.l.b16 %v1183
    %v5488 = vunpack.c.h.b16 %v1183
    %v5489 = vunpack.c.l.b16 %v1184
    %v5490 = vunpack.c.h.b16 %v1184
    %v5491 = vunpack.c.l.b16 %v1185
    %v5492 = vunpack.c.h.b16 %v1185
    %v5493 = vunpack.c.l.b16 %v1186
    %v5494 = vunpack.c.h.b16 %v1186
    %v5495 = vunpack.c.l.b16 %v1187
    %v5496 = vunpack.c.h.b16 %v1187
    %v5497 = vunpack.c.l.b16 %v1188
    %v5498 = vunpack.c.h.b16 %v1188
    %v5499 = vunpack.c.l.b16 %v1189
    %v5500 = vunpack.c.h.b16 %v1189
    %v5501 = vunpack.c.l.b16 %v1190
    %v5502 = vunpack.c.h.b16 %v1190
    %v5503 = vunpack.c.l.b16 %v1191
    %v5504 = vunpack.c.h.b16 %v1191
    %v5505 = vunpack.c.l.b16 %v1192
    %v5506 = vunpack.c.h.b16 %v1192
    %v5507 = vunpack.c.l.b16 %v1193
    %v5508 = vunpack.c.h.b16 %v1193
    %v5509 = vunpack.c.l.b16 %v1194
    %v5510 = vunpack.c.h.b16 %v1194
    %v5511 = vunpack.c.l.b16 %v1195
    %v5512 = vunpack.c.h.b16 %v1195
    %v5513 = vunpack.c.l.b16 %v1196
    %v5514 = vunpack.c.h.b16 %v1196
    %v5515 = vunpack.c.l.b16 %v1197
    %v5516 = vunpack.c.h.b16 %v1197
    %v5517 = vunpack.c.l.b16 %v1198
    %v5518 = vunpack.c.h.b16 %v1198
    %v5519 = vunpack.c.l.b16 %v1199
    %v5520 = vunpack.c.h.b16 %v1199
    %v5521 = vunpack.c.l.b16 %v1200
    %v5522 = vunpack.c.h.b16 %v1200
    %v5523 = vunpack.c.l.b16 %v1201
    %v5524 = vunpack.c.h.b16 %v1201
    %v5525 = vunpack.c.l.b16 %v1202
    %v5526 = vunpack.c.h.b16 %v1202
    %v5527 = vunpack.c.l.b16 %v1203
    %v5528 = vunpack.c.h.b16 %v1203
    %v5529 = vunpack.c.l.b16 %v1204
    %v5530 = vunpack.c.h.b16 %v1204
    %v5531 = vunpack.c.l.b16 %v1205
    %v5532 = vunpack.c.h.b16 %v1205
    %v5533 = vunpack.c.l.b16 %v1206
    %v5534 = vunpack.c.h.b16 %v1206
    %v5535 = vunpack.c.l.b16 %v1207
    %v5536 = vunpack.c.h.b16 %v1207
    %v5537 = vunpack.c.l.b16 %v1208
    %v5538 = vunpack.c.h.b16 %v1208
    %v5539 = vunpack.c.l.b16 %v1209
    %v5540 = vunpack.c.h.b16 %v1209
    %v5541 = vunpack.c.l.b16 %v1210
    %v5542 = vunpack.c.h.b16 %v1210
    %v5543 = vunpack.c.l.b16 %v1211
    %v5544 = vunpack.c.h.b16 %v1211
    %v5545 = vunpack.c.l.b16 %v1212
    %v5546 = vunpack.c.h.b16 %v1212
    %v5547 = vunpack.c.l.b16 %v1213
    %v5548 = vunpack.c.h.b16 %v1213
    %v5549 = vunpack.c.l.b16 %v1214
    %v5550 = vunpack.c.h.b16 %v1214
    %v5551 = vunpack.c.l.b16 %v1215
    %v5552 = vunpack.c.h.b16 %v1215
    %v5553 = vunpack.c.l.b16 %v1216
    %v5554 = vunpack.c.h.b16 %v1216
    %v5555 = vunpack.c.l.b16 %v1217
    %v5556 = vunpack.c.h.b16 %v1217
    %v5557 = vunpack.c.l.b16 %v1218
    %v5558 = vunpack.c.h.b16 %v1218
    %v5559 = vunpack.c.l.b16 %v1219
    %v5560 = vunpack.c.h.b16 %v1219
    %v5561 = vunpack.c.l.b16 %v1220
    %v5562 = vunpack.c.h.b16 %v1220
    %v5563 = vunpack.c.l.b16 %v1221
    %v5564 = vunpack.c.h.b16 %v1221
    %v5565 = vunpack.c.l.b16 %v1222
    %v5566 = vunpack.c.h.b16 %v1222
    %v5567 = vunpack.c.l.b16 %v1223
    %v5568 = vunpack.c.h.b16 %v1223
    %v5569 = vunpack.c.l.b16 %v1224
    %v5570 = vunpack.c.h.b16 %v1224
    %v5571 = vunpack.c.l.b16 %v1225
    %v5572 = vunpack.c.h.b16 %v1225
    %v5573 = vunpack.c.l.b16 %v1226
    %v5574 = vunpack.c.h.b16 %v1226
    %v5575 = vunpack.c.l.b16 %v1227
    %v5576 = vunpack.c.h.b16 %v1227
    %v5577 = vunpack.c.l.b16 %v1228
    %v5578 = vunpack.c.h.b16 %v1228
    %v5579 = vunpack.c.l.b16 %v1229
    %v5580 = vunpack.c.h.b16 %v1229
    %v5581 = vunpack.c.l.b16 %v1230
    %v5582 = vunpack.c.h.b16 %v1230
    %v5583 = vunpack.c.l.b16 %v1231
    %v5584 = vunpack.c.h.b16 %v1231
    %v5585 = vunpack.c.l.b16 %v1232
    %v5586 = vunpack.c.h.b16 %v1232
    %v5587 = vunpack.c.l.b16 %v1233
    %v5588 = vunpack.c.h.b16 %v1233
    %v5589 = vunpack.c.l.b16 %v1234
    %v5590 = vunpack.c.h.b16 %v1234
    %v5591 = vunpack.c.l.b16 %v1235
    %v5592 = vunpack.c.h.b16 %v1235
    %v5593 = vunpack.c.l.b16 %v1236
    %v5594 = vunpack.c.h.b16 %v1236
    %v5595 = vunpack.c.l.b16 %v1237
    %v5596 = vunpack.c.h.b16 %v1237
    %v5597 = vunpack.c.l.b16 %v1238
    %v5598 = vunpack.c.h.b16 %v1238
    %v5599 = vunpack.c.l.b16 %v1239
    %v5600 = vunpack.c.h.b16 %v1239
    %v5601 = vunpack.c.l.b16 %v1240
    %v5602 = vunpack.c.h.b16 %v1240
    %v5603 = vunpack.c.l.b16 %v1241
    %v5604 = vunpack.c.h.b16 %v1241
    %v5605 = vunpack.c.l.b16 %v1242
    %v5606 = vunpack.c.h.b16 %v1242
    %v5607 = vunpack.c.l.b16 %v1243
    %v5608 = vunpack.c.h.b16 %v1243
    %v5609 = vunpack.c.l.b16 %v1244
    %v5610 = vunpack.c.h.b16 %v1244
    %v5611 = vunpack.c.l.b16 %v1245
    %v5612 = vunpack.c.h.b16 %v1245
    %v5613 = vunpack.c.l.b16 %v1246
    %v5614 = vunpack.c.h.b16 %v1246
    %v5615 = vunpack.c.l.b16 %v1247
    %v5616 = vunpack.c.h.b16 %v1247
    %v5617 = vunpack.c.l.b16 %v1248
    %v5618 = vunpack.c.h.b16 %v1248
    %v5619 = vunpack.c.l.b16 %v1249
    %v5620 = vunpack.c.h.b16 %v1249
    %v5621 = vunpack.c.l.b16 %v1250
    %v5622 = vunpack.c.h.b16 %v1250
    %v5623 = vunpack.c.l.b16 %v1251
    %v5624 = vunpack.c.h.b16 %v1251
    %v5625 = vunpack.c.l.b16 %v1252
    %v5626 = vunpack.c.h.b16 %v1252
    %v5627 = vunpack.c.l.b16 %v1253
    %v5628 = vunpack.c.h.b16 %v1253
    %v5629 = vunpack.c.l.b16 %v1254
    %v5630 = vunpack.c.h.b16 %v1254
    %v5631 = vunpack.c.l.b16 %v1255
    %v5632 = vunpack.c.h.b16 %v1255
    %v5633 = vunpack.c.l.b16 %v1256
    %v5634 = vunpack.c.h.b16 %v1256
    %v5635 = vunpack.c.l.b16 %v1257
    %v5636 = vunpack.c.h.b16 %v1257
    %v5637 = vunpack.c.l.b16 %v1258
    %v5638 = vunpack.c.h.b16 %v1258
    %v5639 = vunpack.c.l.b16 %v1259
    %v5640 = vunpack.c.h.b16 %v1259
    %v5641 = vunpack.c.l.b16 %v1260
    %v5642 = vunpack.c.h.b16 %v1260
    %v5643 = vunpack.c.l.b16 %v1261
    %v5644 = vunpack.c.h.b16 %v1261
    %v5645 = vunpack.c.l.b16 %v1262
    %v5646 = vunpack.c.h.b16 %v1262
    %v5647 = vunpack.c.l.b16 %v1263
    %v5648 = vunpack.c.h.b16 %v1263
    %v5649 = vunpack.c.l.b16 %v1264
    %v5650 = vunpack.c.h.b16 %v1264
    %v5651 = vunpack.c.l.b16 %v1265
    %v5652 = vunpack.c.h.b16 %v1265
    %v5653 = vunpack.c.l.b16 %v1266
    %v5654 = vunpack.c.h.b16 %v1266
    %v5655 = vunpack.c.l.b16 %v1267
    %v5656 = vunpack.c.h.b16 %v1267
    %v5657 = vunpack.c.l.b16 %v1268
    %v5658 = vunpack.c.h.b16 %v1268
    %v5659 = vunpack.c.l.b16 %v1269
    %v5660 = vunpack.c.h.b16 %v1269
    %v5661 = vunpack.c.l.b16 %v1270
    %v5662 = vunpack.c.h.b16 %v1270
    %v5663 = vunpack.c.l.b16 %v1271
    %v5664 = vunpack.c.h.b16 %v1271
    %v5665 = vunpack.c.l.b16 %v1272
    %v5666 = vunpack.c.h.b16 %v1272
    %v5667 = vunpack.c.l.b16 %v1273
    %v5668 = vunpack.c.h.b16 %v1273
    %v5669 = vunpack.c.l.b16 %v1274
    %v5670 = vunpack.c.h.b16 %v1274
    %v5671 = vunpack.c.l.b16 %v1275
    %v5672 = vunpack.c.h.b16 %v1275
    %v5673 = vunpack.c.l.b16 %v1276
    %v5674 = vunpack.c.h.b16 %v1276
    %v5675 = vunpack.c.l.b16 %v1277
    %v5676 = vunpack.c.h.b16 %v1277
    %v5677 = vunpack.c.l.b16 %v1278
    %v5678 = vunpack.c.h.b16 %v1278
    %v5679 = vunpack.c.l.b16 %v1279
    %v5680 = vunpack.c.h.b16 %v1279
    %v5681 = vunpack.c.l.b16 %v1280
    %v5682 = vunpack.c.h.b16 %v1280
    %v5683 = vunpack.c.l.b16 %v1281
    %v5684 = vunpack.c.h.b16 %v1281
    %v5685 = vunpack.c.l.b16 %v1282
    %v5686 = vunpack.c.h.b16 %v1282
    %v5687 = vunpack.c.l.b16 %v1283
    %v5688 = vunpack.c.h.b16 %v1283
    %v5689 = vunpack.c.l.b16 %v1284
    %v5690 = vunpack.c.h.b16 %v1284
    %v5691 = vunpack.c.l.b16 %v1285
    %v5692 = vunpack.c.h.b16 %v1285
    %v5693 = vunpack.c.l.b16 %v1286
    %v5694 = vunpack.c.h.b16 %v1286
    %v5695 = vunpack.c.l.b16 %v1287
    %v5696 = vunpack.c.h.b16 %v1287
    %v5697 = vunpack.c.l.b16 %v1288
    %v5698 = vunpack.c.h.b16 %v1288
    %v5699 = vunpack.c.l.b16 %v1289
    %v5700 = vunpack.c.h.b16 %v1289
    %v5701 = vunpack.c.l.b16 %v1290
    %v5702 = vunpack.c.h.b16 %v1290
    %v5703 = vunpack.c.l.b16 %v1291
    %v5704 = vunpack.c.h.b16 %v1291
    %v5705 = vunpack.c.l.b16 %v1292
    %v5706 = vunpack.c.h.b16 %v1292
    %v5707 = vunpack.c.l.b16 %v1293
    %v5708 = vunpack.c.h.b16 %v1293
    %v5709 = vunpack.c.l.b16 %v1294
    %v5710 = vunpack.c.h.b16 %v1294
    %v5711 = vunpack.c.l.b16 %v1295
    %v5712 = vunpack.c.h.b16 %v1295
    %v5713 = vunpack.c.l.b16 %v1296
    %v5714 = vunpack.c.h.b16 %v1296
    %v5715 = vunpack.c.l.b16 %v1297
    %v5716 = vunpack.c.h.b16 %v1297
    %v5717 = vunpack.c.l.b16 %v1298
    %v5718 = vunpack.c.h.b16 %v1298
    %v5719 = vunpack.c.l.b16 %v1299
    %v5720 = vunpack.c.h.b16 %v1299
    %v5721 = vunpack.c.l.b16 %v1300
    %v5722 = vunpack.c.h.b16 %v1300
    %v5723 = vunpack.c.l.b16 %v1301
    %v5724 = vunpack.c.h.b16 %v1301
    %v5725 = vunpack.c.l.b16 %v1302
    %v5726 = vunpack.c.h.b16 %v1302
    %v5727 = vunpack.c.l.b16 %v1303
    %v5728 = vunpack.c.h.b16 %v1303
    %v5729 = vunpack.c.l.b16 %v1304
    %v5730 = vunpack.c.h.b16 %v1304
    %v5731 = vunpack.c.l.b16 %v1305
    %v5732 = vunpack.c.h.b16 %v1305
    %v5733 = vunpack.c.l.b16 %v1306
    %v5734 = vunpack.c.h.b16 %v1306
    %v5735 = vunpack.c.l.b16 %v1307
    %v5736 = vunpack.c.h.b16 %v1307
    %v5737 = vunpack.c.l.b16 %v1308
    %v5738 = vunpack.c.h.b16 %v1308
    %v5739 = vunpack.c.l.b16 %v1309
    %v5740 = vunpack.c.h.b16 %v1309
    %v5741 = vunpack.c.l.b16 %v1310
    %v5742 = vunpack.c.h.b16 %v1310
    %v5743 = vunpack.c.l.b16 %v1311
    %v5744 = vunpack.c.h.b16 %v1311
    %v5745 = vunpack.c.l.b16 %v1312
    %v5746 = vunpack.c.h.b16 %v1312
    %v5747 = vunpack.c.l.b16 %v1313
    %v5748 = vunpack.c.h.b16 %v1313
    %v5749 = vunpack.c.l.b16 %v1314
    %v5750 = vunpack.c.h.b16 %v1314
    %v5751 = vunpack.c.l.b16 %v1315
    %v5752 = vunpack.c.h.b16 %v1315
    %v5753 = vunpack.c.l.b16 %v1316
    %v5754 = vunpack.c.h.b16 %v1316
    %v5755 = vunpack.c.l.b16 %v1317
    %v5756 = vunpack.c.h.b16 %v1317
    %v5757 = vunpack.c.l.b16 %v1318
    %v5758 = vunpack.c.h.b16 %v1318
    %v5759 = vunpack.c.l.b16 %v1319
    %v5760 = vunpack.c.h.b16 %v1319
    %v5761 = vunpack.c.l.b16 %v1320
    %v5762 = vunpack.c.h.b16 %v1320
    %v5763 = vunpack.c.l.b16 %v1321
    %v5764 = vunpack.c.h.b16 %v1321
    %v5765 = vunpack.c.l.b16 %v1322
    %v5766 = vunpack.c.h.b16 %v1322
    %v5767 = vunpack.c.l.b16 %v1323
    %v5768 = vunpack.c.h.b16 %v1323
    %v5769 = vunpack.c.l.b16 %v1324
    %v5770 = vunpack.c.h.b16 %v1324
    %v5771 = vunpack.c.l.b16 %v1325
    %v5772 = vunpack.c.h.b16 %v1325
    %v5773 = vunpack.c.l.b16 %v1326
    %v5774 = vunpack.c.h.b16 %v1326
    %v5775 = vunpack.c.l.b16 %v1327
    %v5776 = vunpack.c.h.b16 %v1327
    %v5777 = vunpack.c.l.b16 %v1328
    %v5778 = vunpack.c.h.b16 %v1328
    %v5779 = vunpack.c.l.b16 %v1329
    %v5780 = vunpack.c.h.b16 %v1329
    %v5781 = vunpack.c.l.b16 %v1330
    %v5782 = vunpack.c.h.b16 %v1330
    %v5783 = vunpack.c.l.b16 %v1331
    %v5784 = vunpack.c.h.b16 %v1331
    %v5785 = vunpack.c.l.b16 %v1332
    %v5786 = vunpack.c.h.b16 %v1332
    %v5787 = vunpack.c.l.b16 %v1333
    %v5788 = vunpack.c.h.b16 %v1333
    %v5789 = vunpack.c.l.b16 %v1334
    %v5790 = vunpack.c.h.b16 %v1334
    %v5791 = vunpack.c.l.b16 %v1335
    %v5792 = vunpack.c.h.b16 %v1335
    %v5793 = vunpack.c.l.b16 %v1336
    %v5794 = vunpack.c.h.b16 %v1336
    %v5795 = vunpack.c.l.b16 %v1337
    %v5796 = vunpack.c.h.b16 %v1337
    %v5797 = vunpack.c.l.b16 %v1338
    %v5798 = vunpack.c.h.b16 %v1338
    %v5799 = vunpack.c.l.b16 %v1339
    %v5800 = vunpack.c.h.b16 %v1339
    %v5801 = vunpack.c.l.b16 %v1340
    %v5802 = vunpack.c.h.b16 %v1340
    %v5803 = vunpack.c.l.b16 %v1341
    %v5804 = vunpack.c.h.b16 %v1341
    %v5805 = vunpack.c.l.b16 %v1342
    %v5806 = vunpack.c.h.b16 %v1342
    %v5807 = vunpack.c.l.b16 %v1343
    %v5808 = vunpack.c.h.b16 %v1343
    %v5809 = vunpack.c.l.b16 %v1344
    %v5810 = vunpack.c.h.b16 %v1344
    %v5811 = vunpack.c.l.b16 %v1345
    %v5812 = vunpack.c.h.b16 %v1345
    %v5813 = vunpack.c.l.b16 %v1346
    %v5814 = vunpack.c.h.b16 %v1346
    %v5815 = vunpack.c.l.b16 %v1347
    %v5816 = vunpack.c.h.b16 %v1347
    %v5817 = vunpack.c.l.b16 %v1348
    %v5818 = vunpack.c.h.b16 %v1348
    %v5819 = vunpack.c.l.b16 %v1349
    %v5820 = vunpack.c.h.b16 %v1349
    %v5821 = vunpack.c.l.b16 %v1350
    %v5822 = vunpack.c.h.b16 %v1350
    %v5823 = vunpack.c.l.b16 %v1351
    %v5824 = vunpack.c.h.b16 %v1351
    %v5825 = vunpack.c.l.b16 %v1352
    %v5826 = vunpack.c.h.b16 %v1352
    %v5827 = vunpack.c.l.b16 %v1353
    %v5828 = vunpack.c.h.b16 %v1353
    %v5829 = vunpack.c.l.b16 %v1354
    %v5830 = vunpack.c.h.b16 %v1354
    %v5831 = vunpack.c.l.b16 %v1355
    %v5832 = vunpack.c.h.b16 %v1355
    %v5833 = vunpack.c.l.b16 %v1356
    %v5834 = vunpack.c.h.b16 %v1356
    %v5835 = vunpack.c.l.b16 %v1357
    %v5836 = vunpack.c.h.b16 %v1357
    %v5837 = vunpack.c.l.b16 %v1358
    %v5838 = vunpack.c.h.b16 %v1358
    %v5839 = vunpack.c.l.b16 %v1359
    %v5840 = vunpack.c.h.b16 %v1359
    %v5841 = vunpack.c.l.b16 %v1360
    %v5842 = vunpack.c.h.b16 %v1360
    %v5843 = vunpack.c.l.b16 %v1361
    %v5844 = vunpack.c.h.b16 %v1361
    %v5845 = vunpack.c.l.b16 %v1362
    %v5846 = vunpack.c.h.b16 %v1362
    %v5847 = vunpack.c.l.b16 %v1363
    %v5848 = vunpack.c.h.b16 %v1363
    %v5849 = vunpack.c.l.b16 %v1364
    %v5850 = vunpack.c.h.b16 %v1364
    %v5851 = vunpack.c.l.b16 %v1365
    %v5852 = vunpack.c.h.b16 %v1365
    %v5853 = vunpack.c.l.b16 %v1366
    %v5854 = vunpack.c.h.b16 %v1366
    %v5855 = vunpack.c.l.b16 %v1367
    %v5856 = vunpack.c.h.b16 %v1367
    %v5857 = vunpack.c.l.b16 %v1368
    %v5858 = vunpack.c.h.b16 %v1368
    %v5859 = vunpack.c.l.b16 %v1369
    %v5860 = vunpack.c.h.b16 %v1369
    %v5861 = vunpack.c.l.b16 %v1370
    %v5862 = vunpack.c.h.b16 %v1370
    %v5863 = vunpack.c.l.b16 %v1371
    %v5864 = vunpack.c.h.b16 %v1371
    %v5865 = vunpack.c.l.b16 %v1372
    %v5866 = vunpack.c.h.b16 %v1372
    %v5867 = vunpack.c.l.b16 %v1373
    %v5868 = vunpack.c.h.b16 %v1373
    %v5869 = vunpack.c.l.b16 %v1374
    %v5870 = vunpack.c.h.b16 %v1374
    %v5871 = vunpack.c.l.b16 %v1375
    %v5872 = vunpack.c.h.b16 %v1375
    %v5873 = vunpack.c.l.b16 %v1376
    %v5874 = vunpack.c.h.b16 %v1376
    %v5875 = vunpack.c.l.b16 %v1377
    %v5876 = vunpack.c.h.b16 %v1377
    %v5877 = vunpack.c.l.b16 %v1378
    %v5878 = vunpack.c.h.b16 %v1378
    %v5879 = vunpack.c.l.b16 %v1379
    %v5880 = vunpack.c.h.b16 %v1379
    %v5881 = vunpack.c.l.b16 %v1380
    %v5882 = vunpack.c.h.b16 %v1380
    %v5883 = vunpack.c.l.b16 %v1381
    %v5884 = vunpack.c.h.b16 %v1381
    %v5885 = vunpack.c.l.b16 %v1382
    %v5886 = vunpack.c.h.b16 %v1382
    %v5887 = vunpack.c.l.b16 %v1383
    %v5888 = vunpack.c.h.b16 %v1383
    %v5889 = vunpack.c.l.b16 %v1384
    %v5890 = vunpack.c.h.b16 %v1384
    %v5891 = vunpack.c.l.b16 %v1385
    %v5892 = vunpack.c.h.b16 %v1385
    %v5893 = vunpack.c.l.b16 %v1386
    %v5894 = vunpack.c.h.b16 %v1386
    %v5895 = vunpack.c.l.b16 %v1387
    %v5896 = vunpack.c.h.b16 %v1387
    %v5897 = vunpack.c.l.b16 %v1388
    %v5898 = vunpack.c.h.b16 %v1388
    %v5899 = vunpack.c.l.b16 %v1389
    %v5900 = vunpack.c.h.b16 %v1389
    %v5901 = vunpack.c.l.b16 %v1390
    %v5902 = vunpack.c.h.b16 %v1390
    %v5903 = vunpack.c.l.b16 %v1391
    %v5904 = vunpack.c.h.b16 %v1391
    %v5905 = vunpack.c.l.b16 %v1392
    %v5906 = vunpack.c.h.b16 %v1392
    %v5907 = vunpack.c.l.b16 %v1393
    %v5908 = vunpack.c.h.b16 %v1393
    %v5909 = vunpack.c.l.b16 %v1394
    %v5910 = vunpack.c.h.b16 %v1394
    %v5911 = vunpack.c.l.b16 %v1395
    %v5912 = vunpack.c.h.b16 %v1395
    %v5913 = vunpack.c.l.b16 %v1396
    %v5914 = vunpack.c.h.b16 %v1396
    %v5915 = vunpack.c.l.b16 %v1397
    %v5916 = vunpack.c.h.b16 %v1397
    %v5917 = vunpack.c.l.b16 %v1398
    %v5918 = vunpack.c.h.b16 %v1398
    %v5919 = vunpack.c.l.b16 %v1399
    %v5920 = vunpack.c.h.b16 %v1399
    %v5921 = vunpack.c.l.b16 %v1400
    %v5922 = vunpack.c.h.b16 %v1400
    %v5923 = vunpack.c.l.b16 %v1401
    %v5924 = vunpack.c.h.b16 %v1401
    %v5925 = vunpack.c.l.b16 %v1402
    %v5926 = vunpack.c.h.b16 %v1402
    %v5927 = vunpack.c.l.b16 %v1403
    %v5928 = vunpack.c.h.b16 %v1403
    %v5929 = vunpack.c.l.b16 %v1404
    %v5930 = vunpack.c.h.b16 %v1404
    %v5931 = vunpack.c.l.b16 %v1405
    %v5932 = vunpack.c.h.b16 %v1405
    %v5933 = vunpack.c.l.b16 %v1406
    %v5934 = vunpack.c.h.b16 %v1406
    %v5935 = vunpack.c.l.b16 %v1407
    %v5936 = vunpack.c.h.b16 %v1407
    %v5937 = vunpack.c.l.b16 %v1408
    %v5938 = vunpack.c.h.b16 %v1408
    %v5939 = vunpack.c.l.b16 %v1409
    %v5940 = vunpack.c.h.b16 %v1409
    %v5941 = vunpack.c.l.b16 %v1410
    %v5942 = vunpack.c.h.b16 %v1410
    %v5943 = vunpack.c.l.b16 %v1411
    %v5944 = vunpack.c.h.b16 %v1411
    %v5945 = vunpack.c.l.b16 %v1412
    %v5946 = vunpack.c.h.b16 %v1412
    %v5947 = vunpack.c.l.b16 %v1413
    %v5948 = vunpack.c.h.b16 %v1413
    %v5949 = vunpack.c.l.b16 %v1414
    %v5950 = vunpack.c.h.b16 %v1414
    %v5951 = vunpack.c.l.b16 %v1415
    %v5952 = vunpack.c.h.b16 %v1415
    %v5953 = vunpack.c.l.b16 %v1416
    %v5954 = vunpack.c.h.b16 %v1416
    %v5955 = vunpack.c.l.b16 %v1417
    %v5956 = vunpack.c.h.b16 %v1417
    %v5957 = vunpack.c.l.b16 %v1418
    %v5958 = vunpack.c.h.b16 %v1418
    %v5959 = vunpack.c.l.b16 %v1419
    %v5960 = vunpack.c.h.b16 %v1419
    %v5961 = vunpack.c.l.b16 %v1420
    %v5962 = vunpack.c.h.b16 %v1420
    %v5963 = vunpack.c.l.b16 %v1421
    %v5964 = vunpack.c.h.b16 %v1421
    %v5965 = vunpack.c.l.b16 %v1422
    %v5966 = vunpack.c.h.b16 %v1422
    %v5967 = vunpack.c.l.b16 %v1423
    %v5968 = vunpack.c.h.b16 %v1423
    %v5969 = vunpack.c.l.b16 %v1424
    %v5970 = vunpack.c.h.b16 %v1424
    %v5971 = vunpack.c.l.b16 %v1425
    %v5972 = vunpack.c.h.b16 %v1425
    %v5973 = vunpack.c.l.b16 %v1426
    %v5974 = vunpack.c.h.b16 %v1426
    %v5975 = vunpack.c.l.b16 %v1427
    %v5976 = vunpack.c.h.b16 %v1427
    %v5977 = vunpack.c.l.b16 %v1428
    %v5978 = vunpack.c.h.b16 %v1428
    %v5979 = vunpack.c.l.b16 %v1429
    %v5980 = vunpack.c.h.b16 %v1429
    %v5981 = vunpack.c.l.b16 %v1430
    %v5982 = vunpack.c.h.b16 %v1430
    %v5983 = vunpack.c.l.b16 %v1431
    %v5984 = vunpack.c.h.b16 %v1431
    %v5985 = vunpack.c.l.b16 %v1432
    %v5986 = vunpack.c.h.b16 %v1432
    %v5987 = vunpack.c.l.b16 %v1433
    %v5988 = vunpack.c.h.b16 %v1433
    %v5989 = vunpack.c.l.b16 %v1434
    %v5990 = vunpack.c.h.b16 %v1434
    %v5991 = vunpack.c.l.b16 %v1435
    %v5992 = vunpack.c.h.b16 %v1435
    %v5993 = vunpack.c.l.b16 %v1436
    %v5994 = vunpack.c.h.b16 %v1436
    %v5995 = vunpack.c.l.b16 %v1437
    %v5996 = vunpack.c.h.b16 %v1437
    %v5997 = vunpack.c.l.b16 %v1438
    %v5998 = vunpack.c.h.b16 %v1438
    %v5999 = vunpack.c.l.b16 %v1439
    %v6000 = vunpack.c.h.b16 %v1439
    %v6001 = vunpack.c.l.b16 %v1440
    %v6002 = vunpack.c.h.b16 %v1440
    %v6003 = vunpack.c.l.b16 %v1441
    %v6004 = vunpack.c.h.b16 %v1441
    %v6005 = vunpack.c.l.b16 %v1442
    %v6006 = vunpack.c.h.b16 %v1442
    %v6007 = vunpack.c.l.b16 %v1443
    %v6008 = vunpack.c.h.b16 %v1443
    %v6009 = vunpack.c.l.b16 %v1444
    %v6010 = vunpack.c.h.b16 %v1444
    %v6011 = vunpack.c.l.b16 %v1445
    %v6012 = vunpack.c.h.b16 %v1445
    %v6013 = vunpack.c.l.b16 %v1446
    %v6014 = vunpack.c.h.b16 %v1446
    %v6015 = vunpack.c.l.b16 %v1447
    %v6016 = vunpack.c.h.b16 %v1447
    %v6017 = vunpack.c.l.b16 %v1448
    %v6018 = vunpack.c.h.b16 %v1448
    %v6019 = vunpack.c.l.b16 %v1449
    %v6020 = vunpack.c.h.b16 %v1449
    %v6021 = vunpack.c.l.b16 %v1450
    %v6022 = vunpack.c.h.b16 %v1450
    %v6023 = vunpack.c.l.b16 %v1451
    %v6024 = vunpack.c.h.b16 %v1451
    %v6025 = vunpack.c.l.b16 %v1452
    %v6026 = vunpack.c.h.b16 %v1452
    %v6027 = vunpack.c.l.b16 %v1453
    %v6028 = vunpack.c.h.b16 %v1453
    %v6029 = vunpack.c.l.b16 %v1454
    %v6030 = vunpack.c.h.b16 %v1454
    %v6031 = vunpack.c.l.b16 %v1455
    %v6032 = vunpack.c.h.b16 %v1455
    %v6033 = vunpack.c.l.b16 %v1456
    %v6034 = vunpack.c.h.b16 %v1456
    %v6035 = vunpack.c.l.b16 %v1457
    %v6036 = vunpack.c.h.b16 %v1457
    %v6037 = vunpack.c.l.b16 %v1458
    %v6038 = vunpack.c.h.b16 %v1458
    %v6039 = vunpack.c.l.b16 %v1459
    %v6040 = vunpack.c.h.b16 %v1459
    %v6041 = vunpack.c.l.b16 %v1460
    %v6042 = vunpack.c.h.b16 %v1460
    %v6043 = vunpack.c.l.b16 %v1461
    %v6044 = vunpack.c.h.b16 %v1461
    %v6045 = vunpack.c.l.b16 %v1462
    %v6046 = vunpack.c.h.b16 %v1462
    %v6047 = vunpack.c.l.b16 %v1463
    %v6048 = vunpack.c.h.b16 %v1463
    %v6049 = vunpack.c.l.b16 %v1464
    %v6050 = vunpack.c.h.b16 %v1464
    %v6051 = vunpack.c.l.b16 %v1465
    %v6052 = vunpack.c.h.b16 %v1465
    %v6053 = vunpack.c.l.b16 %v1466
    %v6054 = vunpack.c.h.b16 %v1466
    %v6055 = vunpack.c.l.b16 %v1467
    %v6056 = vunpack.c.h.b16 %v1467
    %v6057 = vunpack.c.l.b16 %v1468
    %v6058 = vunpack.c.h.b16 %v1468
    %v6059 = vunpack.c.l.b16 %v1469
    %v6060 = vunpack.c.h.b16 %v1469
    %v6061 = vunpack.c.l.b16 %v1470
    %v6062 = vunpack.c.h.b16 %v1470
    %v6063 = vunpack.c.l.b16 %v1471
    %v6064 = vunpack.c.h.b16 %v1471
    %v6065 = vunpack.c.l.b16 %v1472
    %v6066 = vunpack.c.h.b16 %v1472
    %v6067 = vunpack.c.l.b16 %v1473
    %v6068 = vunpack.c.h.b16 %v1473
    %v6069 = vunpack.c.l.b16 %v1474
    %v6070 = vunpack.c.h.b16 %v1474
    %v6071 = vunpack.c.l.b16 %v1475
    %v6072 = vunpack.c.h.b16 %v1475
    %v6073 = vunpack.c.l.b16 %v1476
    %v6074 = vunpack.c.h.b16 %v1476
    %v6075 = vunpack.c.l.b16 %v1477
    %v6076 = vunpack.c.h.b16 %v1477
    %v6077 = vunpack.c.l.b16 %v1478
    %v6078 = vunpack.c.h.b16 %v1478
    %v6079 = vunpack.c.l.b16 %v1479
    %v6080 = vunpack.c.h.b16 %v1479
    %v6081 = vunpack.c.l.b16 %v1480
    %v6082 = vunpack.c.h.b16 %v1480
    %v6083 = vunpack.c.l.b16 %v1481
    %v6084 = vunpack.c.h.b16 %v1481
    %v6085 = vunpack.c.l.b16 %v1482
    %v6086 = vunpack.c.h.b16 %v1482
    %v6087 = vunpack.c.l.b16 %v1483
    %v6088 = vunpack.c.h.b16 %v1483
    %v6089 = vunpack.c.l.b16 %v1484
    %v6090 = vunpack.c.h.b16 %v1484
    %v6091 = vunpack.c.l.b16 %v1485
    %v6092 = vunpack.c.h.b16 %v1485
    %v6093 = vunpack.c.l.b16 %v1486
    %v6094 = vunpack.c.h.b16 %v1486
    %v6095 = vunpack.c.l.b16 %v1487
    %v6096 = vunpack.c.h.b16 %v1487
    %v6097 = vunpack.c.l.b16 %v1488
    %v6098 = vunpack.c.h.b16 %v1488
    %v6099 = vunpack.c.l.b16 %v1489
    %v6100 = vunpack.c.h.b16 %v1489
    %v6101 = vunpack.c.l.b16 %v1490
    %v6102 = vunpack.c.h.b16 %v1490
    %v6103 = vunpack.c.l.b16 %v1491
    %v6104 = vunpack.c.h.b16 %v1491
    %v6105 = vunpack.c.l.b16 %v1492
    %v6106 = vunpack.c.h.b16 %v1492
    %v6107 = vunpack.c.l.b16 %v1493
    %v6108 = vunpack.c.h.b16 %v1493
    %v6109 = vunpack.c.l.b16 %v1494
    %v6110 = vunpack.c.h.b16 %v1494
    %v6111 = vunpack.c.l.b16 %v1495
    %v6112 = vunpack.c.h.b16 %v1495
    %v6113 = vunpack.c.l.b16 %v1496
    %v6114 = vunpack.c.h.b16 %v1496
    %v6115 = vunpack.c.l.b16 %v1497
    %v6116 = vunpack.c.h.b16 %v1497
    %v6117 = vunpack.c.l.b16 %v1498
    %v6118 = vunpack.c.h.b16 %v1498
    %v6119 = vunpack.c.l.b16 %v1499
    %v6120 = vunpack.c.h.b16 %v1499
    %v6121 = vunpack.c.l.b16 %v1500
    %v6122 = vunpack.c.h.b16 %v1500
    %v6123 = vunpack.c.l.b16 %v1501
    %v6124 = vunpack.c.h.b16 %v1501
    %v6125 = vunpack.c.l.b16 %v1502
    %v6126 = vunpack.c.h.b16 %v1502
    %v6127 = vunpack.c.l.b16 %v1503
    %v6128 = vunpack.c.h.b16 %v1503
    %v6129 = vunpack.c.l.b16 %v1504
    %v6130 = vunpack.c.h.b16 %v1504
    %v6131 = vunpack.c.l.b16 %v1505
    %v6132 = vunpack.c.h.b16 %v1505
    %v6133 = vunpack.c.l.b16 %v1506
    %v6134 = vunpack.c.h.b16 %v1506
    %v6135 = vunpack.c.l.b16 %v1507
    %v6136 = vunpack.c.h.b16 %v1507
    %v6137 = vunpack.c.l.b16 %v1508
    %v6138 = vunpack.c.h.b16 %v1508
    %v6139 = vunpack.c.l.b16 %v1509
    %v6140 = vunpack.c.h.b16 %v1509
    %v6141 = vunpack.c.l.b16 %v1510
    %v6142 = vunpack.c.h.b16 %v1510
    %v6143 = vunpack.c.l.b16 %v1511
    %v6144 = vunpack.c.h.b16 %v1511
    %v6145 = vunpack.c.l.b16 %v1512
    %v6146 = vunpack.c.h.b16 %v1512
    %v6147 = vunpack.c.l.b16 %v1513
    %v6148 = vunpack.c.h.b16 %v1513
    %v6149 = vunpack.c.l.b16 %v1514
    %v6150 = vunpack.c.h.b16 %v1514
    %v6151 = vunpack.c.l.b16 %v1515
    %v6152 = vunpack.c.h.b16 %v1515
    %v6153 = vunpack.c.l.b16 %v1516
    %v6154 = vunpack.c.h.b16 %v1516
    %v6155 = vunpack.c.l.b16 %v1517
    %v6156 = vunpack.c.h.b16 %v1517
    %v6157 = vunpack.c.l.b16 %v1518
    %v6158 = vunpack.c.h.b16 %v1518
    %v6159 = vunpack.c.l.b16 %v1519
    %v6160 = vunpack.c.h.b16 %v1519
    %v6161 = vunpack.c.l.b16 %v1520
    %v6162 = vunpack.c.h.b16 %v1520
    %v6163 = vunpack.c.l.b16 %v1521
    %v6164 = vunpack.c.h.b16 %v1521
    %v6165 = vunpack.c.l.b16 %v1522
    %v6166 = vunpack.c.h.b16 %v1522
    %v6167 = vunpack.c.l.b16 %v1523
    %v6168 = vunpack.c.h.b16 %v1523
    %v6169 = vunpack.c.l.b16 %v1524
    %v6170 = vunpack.c.h.b16 %v1524
    %v6171 = vunpack.c.l.b16 %v1525
    %v6172 = vunpack.c.h.b16 %v1525
    %v6173 = vunpack.c.l.b16 %v1526
    %v6174 = vunpack.c.h.b16 %v1526
    %v6175 = vunpack.c.l.b16 %v1527
    %v6176 = vunpack.c.h.b16 %v1527
    %v6177 = vunpack.c.l.b16 %v1528
    %v6178 = vunpack.c.h.b16 %v1528
    %v6179 = vunpack.c.l.b16 %v1529
    %v6180 = vunpack.c.h.b16 %v1529
    %v6181 = vunpack.c.l.b16 %v1530
    %v6182 = vunpack.c.h.b16 %v1530
    %v6183 = vunpack.c.l.b16 %v1531
    %v6184 = vunpack.c.h.b16 %v1531
    %v6185 = vunpack.c.l.b16 %v1532
    %v6186 = vunpack.c.h.b16 %v1532
    %v6187 = vunpack.c.l.b16 %v1533
    %v6188 = vunpack.c.h.b16 %v1533
    %v6189 = vunpack.c.l.b16 %v1534
    %v6190 = vunpack.c.h.b16 %v1534
    %v6191 = vunpack.c.l.b16 %v1535
    %v6192 = vunpack.c.h.b16 %v1535
    %v6193 = vunpack.c.l.b16 %v1536
    %v6194 = vunpack.c.h.b16 %v1536
    %v6195 = vunpack.c.l.b16 %v1537
    %v6196 = vunpack.c.h.b16 %v1537
    %v6197 = vunpack.c.l.b16 %v1538
    %v6198 = vunpack.c.h.b16 %v1538
    %v6199 = vunpack.c.l.b16 %v1539
    %v6200 = vunpack.c.h.b16 %v1539
    %v6201 = vunpack.c.l.b16 %v1540
    %v6202 = vunpack.c.h.b16 %v1540
    %v6203 = vunpack.c.l.b16 %v1541
    %v6204 = vunpack.c.h.b16 %v1541
    %v6205 = vunpack.c.l.b16 %v1542
    %v6206 = vunpack.c.h.b16 %v1542
    %v6207 = vunpack.c.l.b16 %v1543
    %v6208 = vunpack.c.h.b16 %v1543
    %v6209 = vunpack.c.l.b16 %v1544
    %v6210 = vunpack.c.h.b16 %v1544
    %v6211 = vunpack.c.l.b16 %v1545
    %v6212 = vunpack.c.h.b16 %v1545
    %v6213 = vunpack.c.l.b16 %v1546
    %v6214 = vunpack.c.h.b16 %v1546
    %v6215 = vunpack.c.l.b16 %v1547
    %v6216 = vunpack.c.h.b16 %v1547
    %v6217 = vunpack.c.l.b16 %v1548
    %v6218 = vunpack.c.h.b16 %v1548
    %v6219 = vunpack.c.l.b16 %v1549
    %v6220 = vunpack.c.h.b16 %v1549
    %v6221 = vunpack.c.l.b16 %v1550
    %v6222 = vunpack.c.h.b16 %v1550
    %v6223 = vunpack.c.l.b16 %v1551
    %v6224 = vunpack.c.h.b16 %v1551
    %v6225 = vunpack.c.l.b16 %v1552
    %v6226 = vunpack.c.h.b16 %v1552
    %v6227 = vunpack.c.l.b16 %v1553
    %v6228 = vunpack.c.h.b16 %v1553
    %v6229 = vunpack.c.l.b16 %v1554
    %v6230 = vunpack.c.h.b16 %v1554
    %v6231 = vunpack.c.l.b16 %v1555
    %v6232 = vunpack.c.h.b16 %v1555
    %v6233 = vunpack.c.l.b16 %v1556
    %v6234 = vunpack.c.h.b16 %v1556
    %v6235 = vunpack.c.l.b16 %v1557
    %v6236 = vunpack.c.h.b16 %v1557
    %v6237 = vunpack.c.l.b16 %v1558
    %v6238 = vunpack.c.h.b16 %v1558
    %v6239 = vunpack.c.l.b16 %v1559
    %v6240 = vunpack.c.h.b16 %v1559
    %v6241 = vunpack.c.l.b16 %v1560
    %v6242 = vunpack.c.h.b16 %v1560
    %v6243 = vunpack.c.l.b16 %v1561
    %v6244 = vunpack.c.h.b16 %v1561
    %v6245 = vunpack.c.l.b16 %v1562
    %v6246 = vunpack.c.h.b16 %v1562
    %v6247 = vunpack.c.l.b16 %v1563
    %v6248 = vunpack.c.h.b16 %v1563
    %v6249 = vunpack.c.l.b16 %v1564
    %v6250 = vunpack.c.h.b16 %v1564
    %v6251 = vunpack.c.l.b16 %v1565
    %v6252 = vunpack.c.h.b16 %v1565
    %v6253 = vunpack.c.l.b16 %v1566
    %v6254 = vunpack.c.h.b16 %v1566
    %v6255 = vunpack.c.l.b16 %v1567
    %v6256 = vunpack.c.h.b16 %v1567
    %v6257 = vunpack.c.l.b16 %v1568
    %v6258 = vunpack.c.h.b16 %v1568
    %v6259 = vunpack.c.l.b16 %v1569
    %v6260 = vunpack.c.h.b16 %v1569
    %v6261 = vunpack.c.l.b16 %v1570
    %v6262 = vunpack.c.h.b16 %v1570
    %v6263 = vunpack.c.l.b16 %v1571
    %v6264 = vunpack.c.h.b16 %v1571
    %v6265 = vunpack.c.l.b16 %v1572
    %v6266 = vunpack.c.h.b16 %v1572
    %v6267 = vunpack.c.l.b16 %v1573
    %v6268 = vunpack.c.h.b16 %v1573
    %v6269 = vunpack.c.l.b16 %v1574
    %v6270 = vunpack.c.h.b16 %v1574
    %v6271 = vunpack.c.l.b16 %v1575
    %v6272 = vunpack.c.h.b16 %v1575
    %v6273 = vunpack.c.l.b16 %v1576
    %v6274 = vunpack.c.h.b16 %v1576
    %v6275 = vunpack.c.l.b16 %v1577
    %v6276 = vunpack.c.h.b16 %v1577
    %v6277 = vunpack.c.l.b16 %v1578
    %v6278 = vunpack.c.h.b16 %v1578
    %v6279 = vunpack.c.l.b16 %v1579
    %v6280 = vunpack.c.h.b16 %v1579
    %v6281 = vunpack.c.l.b16 %v1580
    %v6282 = vunpack.c.h.b16 %v1580
    %v6283 = vunpack.c.l.b16 %v1581
    %v6284 = vunpack.c.h.b16 %v1581
    %v6285 = vunpack.c.l.b16 %v1582
    %v6286 = vunpack.c.h.b16 %v1582
    %v6287 = vunpack.c.l.b16 %v1583
    %v6288 = vunpack.c.h.b16 %v1583
    %v6289 = vunpack.c.l.b16 %v1584
    %v6290 = vunpack.c.h.b16 %v1584
    %v6291 = vunpack.c.l.b16 %v1585
    %v6292 = vunpack.c.h.b16 %v1585
    %v6293 = vunpack.c.l.b16 %v1586
    %v6294 = vunpack.c.h.b16 %v1586
    %v6295 = vunpack.c.l.b16 %v1587
    %v6296 = vunpack.c.h.b16 %v1587
    %v6297 = vunpack.c.l.b16 %v1588
    %v6298 = vunpack.c.h.b16 %v1588
    %v6299 = vunpack.c.l.b16 %v1589
    %v6300 = vunpack.c.h.b16 %v1589
    %v6301 = vunpack.c.l.b16 %v1590
    %v6302 = vunpack.c.h.b16 %v1590
    %v6303 = vunpack.c.l.b16 %v1591
    %v6304 = vunpack.c.h.b16 %v1591
    %v6305 = vunpack.c.l.b16 %v1592
    %v6306 = vunpack.c.h.b16 %v1592
    %v6307 = vunpack.c.l.b16 %v1593
    %v6308 = vunpack.c.h.b16 %v1593
    %v6309 = vunpack.c.l.b16 %v1594
    %v6310 = vunpack.c.h.b16 %v1594
    %v6311 = vunpack.c.l.b16 %v1595
    %v6312 = vunpack.c.h.b16 %v1595
    %v6313 = vunpack.c.l.b16 %v1596
    %v6314 = vunpack.c.h.b16 %v1596
    %v6315 = vunpack.c.l.b16 %v1597
    %v6316 = vunpack.c.h.b16 %v1597
    %v6317 = vunpack.c.l.b16 %v1598
    %v6318 = vunpack.c.h.b16 %v1598
    %v6319 = vunpack.c.l.b16 %v1599
    %v6320 = vunpack.c.h.b16 %v1599
    %v6321 = vunpack.c.l.b16 %v1600
    %v6322 = vunpack.c.h.b16 %v1600
    %v6323 = vunpack.c.l.b16 %v1601
    %v6324 = vunpack.c.h.b16 %v1601
    %v6325 = vunpack.c.l.b16 %v1602
    %v6326 = vunpack.c.h.b16 %v1602
    %v6327 = vunpack.c.l.b16 %v1603
    %v6328 = vunpack.c.h.b16 %v1603
    %v6329 = vunpack.c.l.b16 %v1604
    %v6330 = vunpack.c.h.b16 %v1604
    %v6331 = vunpack.c.l.b16 %v1605
    %v6332 = vunpack.c.h.b16 %v1605
    %v6333 = vunpack.c.l.b16 %v1606
    %v6334 = vunpack.c.h.b16 %v1606
    %v6335 = vunpack.c.l.b16 %v1607
    %v6336 = vunpack.c.h.b16 %v1607
    %v6337 = vunpack.c.l.b16 %v1608
    %v6338 = vunpack.c.h.b16 %v1608
    %v6339 = vunpack.c.l.b16 %v1609
    %v6340 = vunpack.c.h.b16 %v1609
    %v6341 = vunpack.c.l.b16 %v1610
    %v6342 = vunpack.c.h.b16 %v1610
    %v6343 = vunpack.c.l.b16 %v1611
    %v6344 = vunpack.c.h.b16 %v1611
    %v6345 = vunpack.c.l.b16 %v1612
    %v6346 = vunpack.c.h.b16 %v1612
    %v6347 = vpack.c.b16 %v3283, %v3275
    %v6348 = vpack.c.b16 %v3284, %v3276
    %v6349 = vpack.c.b16 %v3285, %v3277
    %v6350 = vpack.c.b16 %v3286, %v3278
    %v6351 = vpack.c.b16 %v3287, %v3279
    %v6352 = vpack.c.b16 %v3288, %v3280
    %v6353 = vpack.c.b16 %v3289, %v3281
    %v6354 = vpack.c.b16 %v3290, %v3282
    %v6355 = vpack.c.b16 %v3299, %v3291
    %v6356 = vpack.c.b16 %v3300, %v3292
    %v6357 = vpack.c.b16 %v3301, %v3293
    %v6358 = vpack.c.b16 %v3302, %v3294
    %v6359 = vpack.c.b16 %v3303, %v3295
    %v6360 = vpack.c.b16 %v3304, %v3296
    %v6361 = vpack.c.b16 %v3305, %v3297
    %v6362 = vpack.c.b16 %v3306, %v3298
    %v6363 = vpack.c.b16 %v3315, %v3307
    %v6364 = vpack.c.b16 %v3316, %v3308
    %v6365 = vpack.c.b16 %v3317, %v3309
    %v6366 = vpack.c.b16 %v3318, %v3310
    %v6367 = vpack.c.b16 %v3319, %v3311
    %v6368 = vpack.c.b16 %v3320, %v3312
    %v6369 = vpack.c.b16 %v3321, %v3313
    %v6370 = vpack.c.b16 %v3322, %v3314
    %v6371 = vpack.c.b16 %v3331, %v3323
    %v6372 = vpack.c.b16 %v3332, %v3324
    %v6373 = vpack.c.b16 %v3333, %v3325
    %v6374 = vpack.c.b16 %v3334, %v3326
    %v6375 = vpack.c.b16 %v3335, %v3327
    %v6376 = vpack.c.b16 %v3336, %v3328
    %v6377 = vpack.c.b16 %v3337, %v3329
    %v6378 = vpack.c.b16 %v3338, %v3330
    %v6379 = vpack.c.b16 %v3347, %v3339
    %v6380 = vpack.c.b16 %v3348, %v3340
    %v6381 = vpack.c.b16 %v3349, %v3341
    %v6382 = vpack.c.b16 %v3350, %v3342
    %v6383 = vpack.c.b16 %v3351, %v3343
    %v6384 = vpack.c.b16 %v3352, %v3344
    %v6385 = vpack.c.b16 %v3353, %v3345
    %v6386 = vpack.c.b16 %v3354, %v3346
    %v6387 = vpack.c.b16 %v3363, %v3355
    %v6388 = vpack.c.b16 %v3364, %v3356
    %v6389 = vpack.c.b16 %v3365, %v3357
    %v6390 = vpack.c.b16 %v3366, %v3358
    %v6391 = vpack.c.b16 %v3367, %v3359
    %v6392 = vpack.c.b16 %v3368, %v3360
    %v6393 = vpack.c.b16 %v3369, %v3361
    %v6394 = vpack.c.b16 %v3370, %v3362
    %v6395 = vpack.c.b16 %v3379, %v3371
    %v6396 = vpack.c.b16 %v3380, %v3372
    %v6397 = vpack.c.b16 %v3381, %v3373
    %v6398 = vpack.c.b16 %v3382, %v3374
    %v6399 = vpack.c.b16 %v3383, %v3375
    %v6400 = vpack.c.b16 %v3384, %v3376
    %v6401 = vpack.c.b16 %v3385, %v3377
    %v6402 = vpack.c.b16 %v3386, %v3378
    %v6403 = vpack.c.b16 %v3395, %v3387
    %v6404 = vpack.c.b16 %v3396, %v3388
    %v6405 = vpack.c.b16 %v3397, %v3389
    %v6406 = vpack.c.b16 %v3398, %v3390
    %v6407 = vpack.c.b16 %v3399, %v3391
    %v6408 = vpack.c.b16 %v3400, %v3392
    %v6409 = vpack.c.b16 %v3401, %v3393
    %v6410 = vpack.c.b16 %v3402, %v3394
    %v6411 = vpack.c.b16 %v3411, %v3403
    %v6412 = vpack.c.b16 %v3412, %v3404
    %v6413 = vpack.c.b16 %v3413, %v3405
    %v6414 = vpack.c.b16 %v3414, %v3406
    %v6415 = vpack.c.b16 %v3415, %v3407
    %v6416 = vpack.c.b16 %v3416, %v3408
    %v6417 = vpack.c.b16 %v3417, %v3409
    %v6418 = vpack.c.b16 %v3418, %v3410
    %v6419 = vpack.c.b16 %v3427, %v3419
    %v6420 = vpack.c.b16 %v3428, %v3420
    %v6421 = vpack.c.b16 %v3429, %v3421
    %v6422 = vpack.c.b16 %v3430, %v3422
    %v6423 = vpack.c.b16 %v3431, %v3423
    %v6424 = vpack.c.b16 %v3432, %v3424
    %v6425 = vpack.c.b16 %v3433, %v3425
    %v6426 = vpack.c.b16 %v3434, %v3426
    %v6427 = vpack.c.b16 %v3443, %v3435
    %v6428 = vpack.c.b16 %v3444, %v3436
    %v6429 = vpack.c.b16 %v3445, %v3437
    %v6430 = vpack.c.b16 %v3446, %v3438
    %v6431 = vpack.c.b16 %v3447, %v3439
    %v6432 = vpack.c.b16 %v3448, %v3440
    %v6433 = vpack.c.b16 %v3449, %v3441
    %v6434 = vpack.c.b16 %v3450, %v3442
    %v6435 = vpack.c.b16 %v3459, %v3451
    %v6436 = vpack.c.b16 %v3460, %v3452
    %v6437 = vpack.c.b16 %v3461, %v3453
    %v6438 = vpack.c.b16 %v3462, %v3454
    %v6439 = vpack.c.b16 %v3463, %v3455
    %v6440 = vpack.c.b16 %v3464, %v3456
    %v6441 = vpack.c.b16 %v3465, %v3457
    %v6442 = vpack.c.b16 %v3466, %v3458
    %v6443 = vpack.c.b16 %v3475, %v3467
    %v6444 = vpack.c.b16 %v3476, %v3468
    %v6445 = vpack.c.b16 %v3477, %v3469
    %v6446 = vpack.c.b16 %v3478, %v3470
    %v6447 = vpack.c.b16 %v3479, %v3471
    %v6448 = vpack.c.b16 %v3480, %v3472
    %v6449 = vpack.c.b16 %v3481, %v3473
    %v6450 = vpack.c.b16 %v3482, %v3474
    %v6451 = vpack.c.b16 %v3491, %v3483
    %v6452 = vpack.c.b16 %v3492, %v3484
    %v6453 = vpack.c.b16 %v3493, %v3485
    %v6454 = vpack.c.b16 %v3494, %v3486
    %v6455 = vpack.c.b16 %v3495, %v3487
    %v6456 = vpack.c.b16 %v3496, %v3488
    %v6457 = vpack.c.b16 %v3497, %v3489
    %v6458 = vpack.c.b16 %v3498, %v3490
    %v6459 = vpack.c.b16 %v3507, %v3499
    %v6460 = vpack.c.b16 %v3508, %v3500
    %v6461 = vpack.c.b16 %v3509, %v3501
    %v6462 = vpack.c.b16 %v3510, %v3502
    %v6463 = vpack.c.b16 %v3511, %v3503
    %v6464 = vpack.c.b16 %v3512, %v3504
    %v6465 = vpack.c.b16 %v3513, %v3505
    %v6466 = vpack.c.b16 %v3514, %v3506
    %v6467 = vpack.c.b16 %v3523, %v3515
    %v6468 = vpack.c.b16 %v3524, %v3516
    %v6469 = vpack.c.b16 %v3525, %v3517
    %v6470 = vpack.c.b16 %v3526, %v3518
    %v6471 = vpack.c.b16 %v3527, %v3519
    %v6472 = vpack.c.b16 %v3528, %v3520
    %v6473 = vpack.c.b16 %v3529, %v3521
    %v6474 = vpack.c.b16 %v3530, %v3522
    %v6475 = vpack.c.b16 %v3539, %v3531
    %v6476 = vpack.c.b16 %v3540, %v3532
    %v6477 = vpack.c.b16 %v3541, %v3533
    %v6478 = vpack.c.b16 %v3542, %v3534
    %v6479 = vpack.c.b16 %v3543, %v3535
    %v6480 = vpack.c.b16 %v3544, %v3536
    %v6481 = vpack.c.b16 %v3545, %v3537
    %v6482 = vpack.c.b16 %v3546, %v3538
    %v6483 = vpack.c.b16 %v3555, %v3547
    %v6484 = vpack.c.b16 %v3556, %v3548
    %v6485 = vpack.c.b16 %v3557, %v3549
    %v6486 = vpack.c.b16 %v3558, %v3550
    %v6487 = vpack.c.b16 %v3559, %v3551
    %v6488 = vpack.c.b16 %v3560, %v3552
    %v6489 = vpack.c.b16 %v3561, %v3553
    %v6490 = vpack.c.b16 %v3562, %v3554
    %v6491 = vpack.c.b16 %v3571, %v3563
    %v6492 = vpack.c.b16 %v3572, %v3564
    %v6493 = vpack.c.b16 %v3573, %v3565
    %v6494 = vpack.c.b16 %v3574, %v3566
    %v6495 = vpack.c.b16 %v3575, %v3567
    %v6496 = vpack.c.b16 %v3576, %v3568
    %v6497 = vpack.c.b16 %v3577, %v3569
    %v6498 = vpack.c.b16 %v3578, %v3570
    %v6499 = vpack.c.b16 %v3587, %v3579
    %v6500 = vpack.c.b16 %v3588, %v3580
    %v6501 = vpack.c.b16 %v3589, %v3581
    %v6502 = vpack.c.b16 %v3590, %v3582
    %v6503 = vpack.c.b16 %v3591, %v3583
    %v6504 = vpack.c.b16 %v3592, %v3584
    %v6505 = vpack.c.b16 %v3593, %v3585
    %v6506 = vpack.c.b16 %v3594, %v3586
    %v6507 = vpack.c.b16 %v3603, %v3595
    %v6508 = vpack.c.b16 %v3604, %v3596
    %v6509 = vpack.c.b16 %v3605, %v3597
    %v6510 = vpack.c.b16 %v3606, %v3598
    %v6511 = vpack.c.b16 %v3607, %v3599
    %v6512 = vpack.c.b16 %v3608, %v3600
    %v6513 = vpack.c.b16 %v3609, %v3601
    %v6514 = vpack.c.b16 %v3610, %v3602
    %v6515 = vpack.c.b16 %v3619, %v3611
    %v6516 = vpack.c.b16 %v3620, %v3612
    %v6517 = vpack.c.b16 %v3621, %v3613
    %v6518 = vpack.c.b16 %v3622, %v3614
    %v6519 = vpack.c.b16 %v3623, %v3615
    %v6520 = vpack.c.b16 %v3624, %v3616
    %v6521 = vpack.c.b16 %v3625, %v3617
    %v6522 = vpack.c.b16 %v3626, %v3618
    %v6523 = vpack.c.b16 %v3635, %v3627
    %v6524 = vpack.c.b16 %v3636, %v3628
    %v6525 = vpack.c.b16 %v3637, %v3629
    %v6526 = vpack.c.b16 %v3638, %v3630
    %v6527 = vpack.c.b16 %v3639, %v3631
    %v6528 = vpack.c.b16 %v3640, %v3632
    %v6529 = vpack.c.b16 %v3641, %v3633
    %v6530 = vpack.c.b16 %v3642, %v3634
    %v6531 = vpack.c.b16 %v3651, %v3643
    %v6532 = vpack.c.b16 %v3652, %v3644
    %v6533 = vpack.c.b16 %v3653, %v3645
    %v6534 = vpack.c.b16 %v3654, %v3646
    %v6535 = vpack.c.b16 %v3655, %v3647
    %v6536 = vpack.c.b16 %v3656, %v3648
    %v6537 = vpack.c.b16 %v3657, %v3649
    %v6538 = vpack.c.b16 %v3658, %v3650
    %v6539 = vpack.c.b16 %v3667, %v3659
    %v6540 = vpack.c.b16 %v3668, %v3660
    %v6541 = vpack.c.b16 %v3669, %v3661
    %v6542 = vpack.c.b16 %v3670, %v3662
    %v6543 = vpack.c.b16 %v3671, %v3663
    %v6544 = vpack.c.b16 %v3672, %v3664
    %v6545 = vpack.c.b16 %v3673, %v3665
    %v6546 = vpack.c.b16 %v3674, %v3666
    %v6547 = vpack.c.b16 %v3683, %v3675
    %v6548 = vpack.c.b16 %v3684, %v3676
    %v6549 = vpack.c.b16 %v3685, %v3677
    %v6550 = vpack.c.b16 %v3686, %v3678
    %v6551 = vpack.c.b16 %v3687, %v3679
    %v6552 = vpack.c.b16 %v3688, %v3680
    %v6553 = vpack.c.b16 %v3689, %v3681
    %v6554 = vpack.c.b16 %v3690, %v3682
    %v6555 = vpack.c.b16 %v3699, %v3691
    %v6556 = vpack.c.b16 %v3700, %v3692
    %v6557 = vpack.c.b16 %v3701, %v3693
    %v6558 = vpack.c.b16 %v3702, %v3694
    %v6559 = vpack.c.b16 %v3703, %v3695
    %v6560 = vpack.c.b16 %v3704, %v3696
    %v6561 = vpack.c.b16 %v3705, %v3697
    %v6562 = vpack.c.b16 %v3706, %v3698
    %v6563 = vpack.c.b16 %v3715, %v3707
    %v6564 = vpack.c.b16 %v3716, %v3708
    %v6565 = vpack.c.b16 %v3717, %v3709
    %v6566 = vpack.c.b16 %v3718, %v3710
    %v6567 = vpack.c.b16 %v3719, %v3711
    %v6568 = vpack.c.b16 %v3720, %v3712
    %v6569 = vpack.c.b16 %v3721, %v3713
    %v6570 = vpack.c.b16 %v3722, %v3714
    %v6571 = vpack.c.b16 %v3731, %v3723
    %v6572 = vpack.c.b16 %v3732, %v3724
    %v6573 = vpack.c.b16 %v3733, %v3725
    %v6574 = vpack.c.b16 %v3734, %v3726
    %v6575 = vpack.c.b16 %v3735, %v3727
    %v6576 = vpack.c.b16 %v3736, %v3728
    %v6577 = vpack.c.b16 %v3737, %v3729
    %v6578 = vpack.c.b16 %v3738, %v3730
    %v6579 = vpack.c.b16 %v3747, %v3739
    %v6580 = vpack.c.b16 %v3748, %v3740
    %v6581 = vpack.c.b16 %v3749, %v3741
    %v6582 = vpack.c.b16 %v3750, %v3742
    %v6583 = vpack.c.b16 %v3751, %v3743
    %v6584 = vpack.c.b16 %v3752, %v3744
    %v6585 = vpack.c.b16 %v3753, %v3745
    %v6586 = vpack.c.b16 %v3754, %v3746
    %v6587 = vpack.c.b16 %v3763, %v3755
    %v6588 = vpack.c.b16 %v3764, %v3756
    %v6589 = vpack.c.b16 %v3765, %v3757
    %v6590 = vpack.c.b16 %v3766, %v3758
    %v6591 = vpack.c.b16 %v3767, %v3759
    %v6592 = vpack.c.b16 %v3768, %v3760
    %v6593 = vpack.c.b16 %v3769, %v3761
    %v6594 = vpack.c.b16 %v3770, %v3762
    %v6595 = vpack.c.b16 %v3779, %v3771
    %v6596 = vpack.c.b16 %v3780, %v3772
    %v6597 = vpack.c.b16 %v3781, %v3773
    %v6598 = vpack.c.b16 %v3782, %v3774
    %v6599 = vpack.c.b16 %v3783, %v3775
    %v6600 = vpack.c.b16 %v3784, %v3776
    %v6601 = vpack.c.b16 %v3785, %v3777
    %v6602 = vpack.c.b16 %v3786, %v3778
    %v6603 = vpack.c.b16 %v3795, %v3787
    %v6604 = vpack.c.b16 %v3796, %v3788
    %v6605 = vpack.c.b16 %v3797, %v3789
    %v6606 = vpack.c.b16 %v3798, %v3790
    %v6607 = vpack.c.b16 %v3799, %v3791
    %v6608 = vpack.c.b16 %v3800, %v3792
    %v6609 = vpack.c.b16 %v3801, %v3793
    %v6610 = vpack.c.b16 %v3802, %v3794
    %v6611 = vpack.c.b16 %v3811, %v3803
    %v6612 = vpack.c.b16 %v3812, %v3804
    %v6613 = vpack.c.b16 %v3813, %v3805
    %v6614 = vpack.c.b16 %v3814, %v3806
    %v6615 = vpack.c.b16 %v3815, %v3807
    %v6616 = vpack.c.b16 %v3816, %v3808
    %v6617 = vpack.c.b16 %v3817, %v3809
    %v6618 = vpack.c.b16 %v3818, %v3810
    %v6619 = vpack.c.b16 %v3827, %v3819
    %v6620 = vpack.c.b16 %v3828, %v3820
    %v6621 = vpack.c.b16 %v3829, %v3821
    %v6622 = vpack.c.b16 %v3830, %v3822
    %v6623 = vpack.c.b16 %v3831, %v3823
    %v6624 = vpack.c.b16 %v3832, %v3824
    %v6625 = vpack.c.b16 %v3833, %v3825
    %v6626 = vpack.c.b16 %v3834, %v3826
    %v6627 = vpack.c.b16 %v3843, %v3835
    %v6628 = vpack.c.b16 %v3844, %v3836
    %v6629 = vpack.c.b16 %v3845, %v3837
    %v6630 = vpack.c.b16 %v3846, %v3838
    %v6631 = vpack.c.b16 %v3847, %v3839
    %v6632 = vpack.c.b16 %v3848, %v3840
    %v6633 = vpack.c.b16 %v3849, %v3841
    %v6634 = vpack.c.b16 %v3850, %v3842
    %v6635 = vpack.c.b16 %v3859, %v3851
    %v6636 = vpack.c.b16 %v3860, %v3852
    %v6637 = vpack.c.b16 %v3861, %v3853
    %v6638 = vpack.c.b16 %v3862, %v3854
    %v6639 = vpack.c.b16 %v3863, %v3855
    %v6640 = vpack.c.b16 %v3864, %v3856
    %v6641 = vpack.c.b16 %v3865, %v3857
    %v6642 = vpack.c.b16 %v3866, %v3858
    %v6643 = vpack.c.b16 %v3875, %v3867
    %v6644 = vpack.c.b16 %v3876, %v3868
    %v6645 = vpack.c.b16 %v3877, %v3869
    %v6646 = vpack.c.b16 %v3878, %v3870
    %v6647 = vpack.c.b16 %v3879, %v3871
    %v6648 = vpack.c.b16 %v3880, %v3872
    %v6649 = vpack.c.b16 %v3881, %v3873
    %v6650 = vpack.c.b16 %v3882, %v3874
    %v6651 = vpack.c.b16 %v3891, %v3883
    %v6652 = vpack.c.b16 %v3892, %v3884
    %v6653 = vpack.c.b16 %v3893, %v3885
    %v6654 = vpack.c.b16 %v3894, %v3886
    %v6655 = vpack.c.b16 %v3895, %v3887
    %v6656 = vpack.c.b16 %v3896, %v3888
    %v6657 = vpack.c.b16 %v3897, %v3889
    %v6658 = vpack.c.b16 %v3898, %v3890
    %v6659 = vpack.c.b16 %v3907, %v3899
    %v6660 = vpack.c.b16 %v3908, %v3900
    %v6661 = vpack.c.b16 %v3909, %v3901
    %v6662 = vpack.c.b16 %v3910, %v3902
    %v6663 = vpack.c.b16 %v3911, %v3903
    %v6664 = vpack.c.b16 %v3912, %v3904
    %v6665 = vpack.c.b16 %v3913, %v3905
    %v6666 = vpack.c.b16 %v3914, %v3906
    %v6667 = vpack.c.b16 %v3923, %v3915
    %v6668 = vpack.c.b16 %v3924, %v3916
    %v6669 = vpack.c.b16 %v3925, %v3917
    %v6670 = vpack.c.b16 %v3926, %v3918
    %v6671 = vpack.c.b16 %v3927, %v3919
    %v6672 = vpack.c.b16 %v3928, %v3920
    %v6673 = vpack.c.b16 %v3929, %v3921
    %v6674 = vpack.c.b16 %v3930, %v3922
    %v6675 = vpack.c.b16 %v3939, %v3931
    %v6676 = vpack.c.b16 %v3940, %v3932
    %v6677 = vpack.c.b16 %v3941, %v3933
    %v6678 = vpack.c.b16 %v3942, %v3934
    %v6679 = vpack.c.b16 %v3943, %v3935
    %v6680 = vpack.c.b16 %v3944, %v3936
    %v6681 = vpack.c.b16 %v3945, %v3937
    %v6682 = vpack.c.b16 %v3946, %v3938
    %v6683 = vpack.c.b16 %v3955, %v3947
    %v6684 = vpack.c.b16 %v3956, %v3948
    %v6685 = vpack.c.b16 %v3957, %v3949
    %v6686 = vpack.c.b16 %v3958, %v3950
    %v6687 = vpack.c.b16 %v3959, %v3951
    %v6688 = vpack.c.b16 %v3960, %v3952
    %v6689 = vpack.c.b16 %v3961, %v3953
    %v6690 = vpack.c.b16 %v3962, %v3954
    %v6691 = vpack.c.b16 %v3971, %v3963
    %v6692 = vpack.c.b16 %v3972, %v3964
    %v6693 = vpack.c.b16 %v3973, %v3965
    %v6694 = vpack.c.b16 %v3974, %v3966
    %v6695 = vpack.c.b16 %v3975, %v3967
    %v6696 = vpack.c.b16 %v3976, %v3968
    %v6697 = vpack.c.b16 %v3977, %v3969
    %v6698 = vpack.c.b16 %v3978, %v3970
    %v6699 = vpack.c.b16 %v3987, %v3979
    %v6700 = vpack.c.b16 %v3988, %v3980
    %v6701 = vpack.c.b16 %v3989, %v3981
    %v6702 = vpack.c.b16 %v3990, %v3982
    %v6703 = vpack.c.b16 %v3991, %v3983
    %v6704 = vpack.c.b16 %v3992, %v3984
    %v6705 = vpack.c.b16 %v3993, %v3985
    %v6706 = vpack.c.b16 %v3994, %v3986
    %v6707 = vpack.c.b16 %v4003, %v3995
    %v6708 = vpack.c.b16 %v4004, %v3996
    %v6709 = vpack.c.b16 %v4005, %v3997
    %v6710 = vpack.c.b16 %v4006, %v3998
    %v6711 = vpack.c.b16 %v4007, %v3999
    %v6712 = vpack.c.b16 %v4008, %v4000
    %v6713 = vpack.c.b16 %v4009, %v4001
    %v6714 = vpack.c.b16 %v4010, %v4002
    %v6715 = vpack.c.b16 %v4019, %v4011
    %v6716 = vpack.c.b16 %v4020, %v4012
    %v6717 = vpack.c.b16 %v4021, %v4013
    %v6718 = vpack.c.b16 %v4022, %v4014
    %v6719 = vpack.c.b16 %v4023, %v4015
    %v6720 = vpack.c.b16 %v4024, %v4016
    %v6721 = vpack.c.b16 %v4025, %v4017
    %v6722 = vpack.c.b16 %v4026, %v4018
    %v6723 = vpack.c.b16 %v4035, %v4027
    %v6724 = vpack.c.b16 %v4036, %v4028
    %v6725 = vpack.c.b16 %v4037, %v4029
    %v6726 = vpack.c.b16 %v4038, %v4030
    %v6727 = vpack.c.b16 %v4039, %v4031
    %v6728 = vpack.c.b16 %v4040, %v4032
    %v6729 = vpack.c.b16 %v4041, %v4033
    %v6730 = vpack.c.b16 %v4042, %v4034
    %v6731 = vpack.c.b16 %v4051, %v4043
    %v6732 = vpack.c.b16 %v4052, %v4044
    %v6733 = vpack.c.b16 %v4053, %v4045
    %v6734 = vpack.c.b16 %v4054, %v4046
    %v6735 = vpack.c.b16 %v4055, %v4047
    %v6736 = vpack.c.b16 %v4056, %v4048
    %v6737 = vpack.c.b16 %v4057, %v4049
    %v6738 = vpack.c.b16 %v4058, %v4050
    %v6739 = vpack.c.b16 %v4067, %v4059
    %v6740 = vpack.c.b16 %v4068, %v4060
    %v6741 = vpack.c.b16 %v4069, %v4061
    %v6742 = vpack.c.b16 %v4070, %v4062
    %v6743 = vpack.c.b16 %v4071, %v4063
    %v6744 = vpack.c.b16 %v4072, %v4064
    %v6745 = vpack.c.b16 %v4073, %v4065
    %v6746 = vpack.c.b16 %v4074, %v4066
    %v6747 = vpack.c.b16 %v4083, %v4075
    %v6748 = vpack.c.b16 %v4084, %v4076
    %v6749 = vpack.c.b16 %v4085, %v4077
    %v6750 = vpack.c.b16 %v4086, %v4078
    %v6751 = vpack.c.b16 %v4087, %v4079
    %v6752 = vpack.c.b16 %v4088, %v4080
    %v6753 = vpack.c.b16 %v4089, %v4081
    %v6754 = vpack.c.b16 %v4090, %v4082
    %v6755 = vpack.c.b16 %v4099, %v4091
    %v6756 = vpack.c.b16 %v4100, %v4092
    %v6757 = vpack.c.b16 %v4101, %v4093
    %v6758 = vpack.c.b16 %v4102, %v4094
    %v6759 = vpack.c.b16 %v4103, %v4095
    %v6760 = vpack.c.b16 %v4104, %v4096
    %v6761 = vpack.c.b16 %v4105, %v4097
    %v6762 = vpack.c.b16 %v4106, %v4098
    %v6763 = vpack.c.b16 %v4115, %v4107
    %v6764 = vpack.c.b16 %v4116, %v4108
    %v6765 = vpack.c.b16 %v4117, %v4109
    %v6766 = vpack.c.b16 %v4118, %v4110
    %v6767 = vpack.c.b16 %v4119, %v4111
    %v6768 = vpack.c.b16 %v4120, %v4112
    %v6769 = vpack.c.b16 %v4121, %v4113
    %v6770 = vpack.c.b16 %v4122, %v4114
    %v6771 = vpack.c.b16 %v4131, %v4123
    %v6772 = vpack.c.b16 %v4132, %v4124
    %v6773 = vpack.c.b16 %v4133, %v4125
    %v6774 = vpack.c.b16 %v4134, %v4126
    %v6775 = vpack.c.b16 %v4135, %v4127
    %v6776 = vpack.c.b16 %v4136, %v4128
    %v6777 = vpack.c.b16 %v4137, %v4129
    %v6778 = vpack.c.b16 %v4138, %v4130
    %v6779 = vpack.c.b16 %v4147, %v4139
    %v6780 = vpack.c.b16 %v4148, %v4140
    %v6781 = vpack.c.b16 %v4149, %v4141
    %v6782 = vpack.c.b16 %v4150, %v4142
    %v6783 = vpack.c.b16 %v4151, %v4143
    %v6784 = vpack.c.b16 %v4152, %v4144
    %v6785 = vpack.c.b16 %v4153, %v4145
    %v6786 = vpack.c.b16 %v4154, %v4146
    %v6787 = vpack.c.b16 %v4163, %v4155
    %v6788 = vpack.c.b16 %v4164, %v4156
    %v6789 = vpack.c.b16 %v4165, %v4157
    %v6790 = vpack.c.b16 %v4166, %v4158
    %v6791 = vpack.c.b16 %v4167, %v4159
    %v6792 = vpack.c.b16 %v4168, %v4160
    %v6793 = vpack.c.b16 %v4169, %v4161
    %v6794 = vpack.c.b16 %v4170, %v4162
    %v6795 = vpack.c.b16 %v4179, %v4171
    %v6796 = vpack.c.b16 %v4180, %v4172
    %v6797 = vpack.c.b16 %v4181, %v4173
    %v6798 = vpack.c.b16 %v4182, %v4174
    %v6799 = vpack.c.b16 %v4183, %v4175
    %v6800 = vpack.c.b16 %v4184, %v4176
    %v6801 = vpack.c.b16 %v4185, %v4177
    %v6802 = vpack.c.b16 %v4186, %v4178
    %v6803 = vpack.c.b16 %v4195, %v4187
    %v6804 = vpack.c.b16 %v4196, %v4188
    %v6805 = vpack.c.b16 %v4197, %v4189
    %v6806 = vpack.c.b16 %v4198, %v4190
    %v6807 = vpack.c.b16 %v4199, %v4191
    %v6808 = vpack.c.b16 %v4200, %v4192
    %v6809 = vpack.c.b16 %v4201, %v4193
    %v6810 = vpack.c.b16 %v4202, %v4194
    %v6811 = vpack.c.b16 %v4211, %v4203
    %v6812 = vpack.c.b16 %v4212, %v4204
    %v6813 = vpack.c.b16 %v4213, %v4205
    %v6814 = vpack.c.b16 %v4214, %v4206
    %v6815 = vpack.c.b16 %v4215, %v4207
    %v6816 = vpack.c.b16 %v4216, %v4208
    %v6817 = vpack.c.b16 %v4217, %v4209
    %v6818 = vpack.c.b16 %v4218, %v4210
    %v6819 = vpack.c.b16 %v4227, %v4219
    %v6820 = vpack.c.b16 %v4228, %v4220
    %v6821 = vpack.c.b16 %v4229, %v4221
    %v6822 = vpack.c.b16 %v4230, %v4222
    %v6823 = vpack.c.b16 %v4231, %v4223
    %v6824 = vpack.c.b16 %v4232, %v4224
    %v6825 = vpack.c.b16 %v4233, %v4225
    %v6826 = vpack.c.b16 %v4234, %v4226
    %v6827 = vpack.c.b16 %v4243, %v4235
    %v6828 = vpack.c.b16 %v4244, %v4236
    %v6829 = vpack.c.b16 %v4245, %v4237
    %v6830 = vpack.c.b16 %v4246, %v4238
    %v6831 = vpack.c.b16 %v4247, %v4239
    %v6832 = vpack.c.b16 %v4248, %v4240
    %v6833 = vpack.c.b16 %v4249, %v4241
    %v6834 = vpack.c.b16 %v4250, %v4242
    %v6835 = vpack.c.b16 %v4259, %v4251
    %v6836 = vpack.c.b16 %v4260, %v4252
    %v6837 = vpack.c.b16 %v4261, %v4253
    %v6838 = vpack.c.b16 %v4262, %v4254
    %v6839 = vpack.c.b16 %v4263, %v4255
    %v6840 = vpack.c.b16 %v4264, %v4256
    %v6841 = vpack.c.b16 %v4265, %v4257
    %v6842 = vpack.c.b16 %v4266, %v4258
    %v6843 = vpack.c.b16 %v4275, %v4267
    %v6844 = vpack.c.b16 %v4276, %v4268
    %v6845 = vpack.c.b16 %v4277, %v4269
    %v6846 = vpack.c.b16 %v4278, %v4270
    %v6847 = vpack.c.b16 %v4279, %v4271
    %v6848 = vpack.c.b16 %v4280, %v4272
    %v6849 = vpack.c.b16 %v4281, %v4273
    %v6850 = vpack.c.b16 %v4282, %v4274
    %v6851 = vpack.c.b16 %v4291, %v4283
    %v6852 = vpack.c.b16 %v4292, %v4284
    %v6853 = vpack.c.b16 %v4293, %v4285
    %v6854 = vpack.c.b16 %v4294, %v4286
    %v6855 = vpack.c.b16 %v4295, %v4287
    %v6856 = vpack.c.b16 %v4296, %v4288
    %v6857 = vpack.c.b16 %v4297, %v4289
    %v6858 = vpack.c.b16 %v4298, %v4290
    %v6859 = vpack.c.b16 %v4307, %v4299
    %v6860 = vpack.c.b16 %v4308, %v4300
    %v6861 = vpack.c.b16 %v4309, %v4301
    %v6862 = vpack.c.b16 %v4310, %v4302
    %v6863 = vpack.c.b16 %v4311, %v4303
    %v6864 = vpack.c.b16 %v4312, %v4304
    %v6865 = vpack.c.b16 %v4313, %v4305
    %v6866 = vpack.c.b16 %v4314, %v4306
    %v6867 = vpack.c.b16 %v4323, %v4315
    %v6868 = vpack.c.b16 %v4324, %v4316
    %v6869 = vpack.c.b16 %v4325, %v4317
    %v6870 = vpack.c.b16 %v4326, %v4318
    %v6871 = vpack.c.b16 %v4327, %v4319
    %v6872 = vpack.c.b16 %v4328, %v4320
    %v6873 = vpack.c.b16 %v4329, %v4321
    %v6874 = vpack.c.b16 %v4330, %v4322
    %v6875 = vpack.c.b16 %v4339, %v4331
    %v6876 = vpack.c.b16 %v4340, %v4332
    %v6877 = vpack.c.b16 %v4341, %v4333
    %v6878 = vpack.c.b16 %v4342, %v4334
    %v6879 = vpack.c.b16 %v4343, %v4335
    %v6880 = vpack.c.b16 %v4344, %v4336
    %v6881 = vpack.c.b16 %v4345, %v4337
    %v6882 = vpack.c.b16 %v4346, %v4338
    %v6883 = vpack.c.b16 %v4355, %v4347
    %v6884 = vpack.c.b16 %v4356, %v4348
    %v6885 = vpack.c.b16 %v4357, %v4349
    %v6886 = vpack.c.b16 %v4358, %v4350
    %v6887 = vpack.c.b16 %v4359, %v4351
    %v6888 = vpack.c.b16 %v4360, %v4352
    %v6889 = vpack.c.b16 %v4361, %v4353
    %v6890 = vpack.c.b16 %v4362, %v4354
    %v6891 = vpack.c.b16 %v4371, %v4363
    %v6892 = vpack.c.b16 %v4372, %v4364
    %v6893 = vpack.c.b16 %v4373, %v4365
    %v6894 = vpack.c.b16 %v4374, %v4366
    %v6895 = vpack.c.b16 %v4375, %v4367
    %v6896 = vpack.c.b16 %v4376, %v4368
    %v6897 = vpack.c.b16 %v4377, %v4369
    %v6898 = vpack.c.b16 %v4378, %v4370
    %v6899 = vpack.c.b16 %v4387, %v4379
    %v6900 = vpack.c.b16 %v4388, %v4380
    %v6901 = vpack.c.b16 %v4389, %v4381
    %v6902 = vpack.c.b16 %v4390, %v4382
    %v6903 = vpack.c.b16 %v4391, %v4383
    %v6904 = vpack.c.b16 %v4392, %v4384
    %v6905 = vpack.c.b16 %v4393, %v4385
    %v6906 = vpack.c.b16 %v4394, %v4386
    %v6907 = vpack.c.b16 %v4403, %v4395
    %v6908 = vpack.c.b16 %v4404, %v4396
    %v6909 = vpack.c.b16 %v4405, %v4397
    %v6910 = vpack.c.b16 %v4406, %v4398
    %v6911 = vpack.c.b16 %v4407, %v4399
    %v6912 = vpack.c.b16 %v4408, %v4400
    %v6913 = vpack.c.b16 %v4409, %v4401
    %v6914 = vpack.c.b16 %v4410, %v4402
    %v6915 = vpack.c.b16 %v4419, %v4411
    %v6916 = vpack.c.b16 %v4420, %v4412
    %v6917 = vpack.c.b16 %v4421, %v4413
    %v6918 = vpack.c.b16 %v4422, %v4414
    %v6919 = vpack.c.b16 %v4423, %v4415
    %v6920 = vpack.c.b16 %v4424, %v4416
    %v6921 = vpack.c.b16 %v4425, %v4417
    %v6922 = vpack.c.b16 %v4426, %v4418
    %v6923 = vpack.c.b16 %v4435, %v4427
    %v6924 = vpack.c.b16 %v4436, %v4428
    %v6925 = vpack.c.b16 %v4437, %v4429
    %v6926 = vpack.c.b16 %v4438, %v4430
    %v6927 = vpack.c.b16 %v4439, %v4431
    %v6928 = vpack.c.b16 %v4440, %v4432
    %v6929 = vpack.c.b16 %v4441, %v4433
    %v6930 = vpack.c.b16 %v4442, %v4434
    %v6931 = vpack.c.b16 %v4451, %v4443
    %v6932 = vpack.c.b16 %v4452, %v4444
    %v6933 = vpack.c.b16 %v4453, %v4445
    %v6934 = vpack.c.b16 %v4454, %v4446
    %v6935 = vpack.c.b16 %v4455, %v4447
    %v6936 = vpack.c.b16 %v4456, %v4448
    %v6937 = vpack.c.b16 %v4457, %v4449
    %v6938 = vpack.c.b16 %v4458, %v4450
    %v6939 = vpack.c.b16 %v4467, %v4459
    %v6940 = vpack.c.b16 %v4468, %v4460
    %v6941 = vpack.c.b16 %v4469, %v4461
    %v6942 = vpack.c.b16 %v4470, %v4462
    %v6943 = vpack.c.b16 %v4471, %v4463
    %v6944 = vpack.c.b16 %v4472, %v4464
    %v6945 = vpack.c.b16 %v4473, %v4465
    %v6946 = vpack.c.b16 %v4474, %v4466
    %v6947 = vpack.c.b16 %v4483, %v4475
    %v6948 = vpack.c.b16 %v4484, %v4476
    %v6949 = vpack.c.b16 %v4485, %v4477
    %v6950 = vpack.c.b16 %v4486, %v4478
    %v6951 = vpack.c.b16 %v4487, %v4479
    %v6952 = vpack.c.b16 %v4488, %v4480
    %v6953 = vpack.c.b16 %v4489, %v4481
    %v6954 = vpack.c.b16 %v4490, %v4482
    %v6955 = vpack.c.b16 %v4499, %v4491
    %v6956 = vpack.c.b16 %v4500, %v4492
    %v6957 = vpack.c.b16 %v4501, %v4493
    %v6958 = vpack.c.b16 %v4502, %v4494
    %v6959 = vpack.c.b16 %v4503, %v4495
    %v6960 = vpack.c.b16 %v4504, %v4496
    %v6961 = vpack.c.b16 %v4505, %v4497
    %v6962 = vpack.c.b16 %v4506, %v4498
    %v6963 = vpack.c.b16 %v4515, %v4507
    %v6964 = vpack.c.b16 %v4516, %v4508
    %v6965 = vpack.c.b16 %v4517, %v4509
    %v6966 = vpack.c.b16 %v4518, %v4510
    %v6967 = vpack.c.b16 %v4519, %v4511
    %v6968 = vpack.c.b16 %v4520, %v4512
    %v6969 = vpack.c.b16 %v4521, %v4513
    %v6970 = vpack.c.b16 %v4522, %v4514
    %v6971 = vpack.c.b16 %v4531, %v4523
    %v6972 = vpack.c.b16 %v4532, %v4524
    %v6973 = vpack.c.b16 %v4533, %v4525
    %v6974 = vpack.c.b16 %v4534, %v4526
    %v6975 = vpack.c.b16 %v4535, %v4527
    %v6976 = vpack.c.b16 %v4536, %v4528
    %v6977 = vpack.c.b16 %v4537, %v4529
    %v6978 = vpack.c.b16 %v4538, %v4530
    %v6979 = vpack.c.b16 %v4547, %v4539
    %v6980 = vpack.c.b16 %v4548, %v4540
    %v6981 = vpack.c.b16 %v4549, %v4541
    %v6982 = vpack.c.b16 %v4550, %v4542
    %v6983 = vpack.c.b16 %v4551, %v4543
    %v6984 = vpack.c.b16 %v4552, %v4544
    %v6985 = vpack.c.b16 %v4553, %v4545
    %v6986 = vpack.c.b16 %v4554, %v4546
    %v6987 = vpack.c.b16 %v4563, %v4555
    %v6988 = vpack.c.b16 %v4564, %v4556
    %v6989 = vpack.c.b16 %v4565, %v4557
    %v6990 = vpack.c.b16 %v4566, %v4558
    %v6991 = vpack.c.b16 %v4567, %v4559
    %v6992 = vpack.c.b16 %v4568, %v4560
    %v6993 = vpack.c.b16 %v4569, %v4561
    %v6994 = vpack.c.b16 %v4570, %v4562
    %v6995 = vpack.c.b16 %v4579, %v4571
    %v6996 = vpack.c.b16 %v4580, %v4572
    %v6997 = vpack.c.b16 %v4581, %v4573
    %v6998 = vpack.c.b16 %v4582, %v4574
    %v6999 = vpack.c.b16 %v4583, %v4575
    %v7000 = vpack.c.b16 %v4584, %v4576
    %v7001 = vpack.c.b16 %v4585, %v4577
    %v7002 = vpack.c.b16 %v4586, %v4578
    %v7003 = vpack.c.b16 %v4595, %v4587
    %v7004 = vpack.c.b16 %v4596, %v4588
    %v7005 = vpack.c.b16 %v4597, %v4589
    %v7006 = vpack.c.b16 %v4598, %v4590
    %v7007 = vpack.c.b16 %v4599, %v4591
    %v7008 = vpack.c.b16 %v4600, %v4592
    %v7009 = vpack.c.b16 %v4601, %v4593
    %v7010 = vpack.c.b16 %v4602, %v4594
    %v7011 = vpack.c.b16 %v4611, %v4603
    %v7012 = vpack.c.b16 %v4612, %v4604
    %v7013 = vpack.c.b16 %v4613, %v4605
    %v7014 = vpack.c.b16 %v4614, %v4606
    %v7015 = vpack.c.b16 %v4615, %v4607
    %v7016 = vpack.c.b16 %v4616, %v4608
    %v7017 = vpack.c.b16 %v4617, %v4609
    %v7018 = vpack.c.b16 %v4618, %v4610
    %v7019 = vpack.c.b16 %v4627, %v4619
    %v7020 = vpack.c.b16 %v4628, %v4620
    %v7021 = vpack.c.b16 %v4629, %v4621
    %v7022 = vpack.c.b16 %v4630, %v4622
    %v7023 = vpack.c.b16 %v4631, %v4623
    %v7024 = vpack.c.b16 %v4632, %v4624
    %v7025 = vpack.c.b16 %v4633, %v4625
    %v7026 = vpack.c.b16 %v4634, %v4626
    %v7027 = vpack.c.b16 %v4643, %v4635
    %v7028 = vpack.c.b16 %v4644, %v4636
    %v7029 = vpack.c.b16 %v4645, %v4637
    %v7030 = vpack.c.b16 %v4646, %v4638
    %v7031 = vpack.c.b16 %v4647, %v4639
    %v7032 = vpack.c.b16 %v4648, %v4640
    %v7033 = vpack.c.b16 %v4649, %v4641
    %v7034 = vpack.c.b16 %v4650, %v4642
    %v7035 = vpack.c.b16 %v4659, %v4651
    %v7036 = vpack.c.b16 %v4660, %v4652
    %v7037 = vpack.c.b16 %v4661, %v4653
    %v7038 = vpack.c.b16 %v4662, %v4654
    %v7039 = vpack.c.b16 %v4663, %v4655
    %v7040 = vpack.c.b16 %v4664, %v4656
    %v7041 = vpack.c.b16 %v4665, %v4657
    %v7042 = vpack.c.b16 %v4666, %v4658
    %v7043 = vpack.c.b16 %v4675, %v4667
    %v7044 = vpack.c.b16 %v4676, %v4668
    %v7045 = vpack.c.b16 %v4677, %v4669
    %v7046 = vpack.c.b16 %v4678, %v4670
    %v7047 = vpack.c.b16 %v4679, %v4671
    %v7048 = vpack.c.b16 %v4680, %v4672
    %v7049 = vpack.c.b16 %v4681, %v4673
    %v7050 = vpack.c.b16 %v4682, %v4674
    %v7051 = vpack.c.b16 %v4691, %v4683
    %v7052 = vpack.c.b16 %v4692, %v4684
    %v7053 = vpack.c.b16 %v4693, %v4685
    %v7054 = vpack.c.b16 %v4694, %v4686
    %v7055 = vpack.c.b16 %v4695, %v4687
    %v7056 = vpack.c.b16 %v4696, %v4688
    %v7057 = vpack.c.b16 %v4697, %v4689
    %v7058 = vpack.c.b16 %v4698, %v4690
    %v7059 = vpack.c.b16 %v4707, %v4699
    %v7060 = vpack.c.b16 %v4708, %v4700
    %v7061 = vpack.c.b16 %v4709, %v4701
    %v7062 = vpack.c.b16 %v4710, %v4702
    %v7063 = vpack.c.b16 %v4711, %v4703
    %v7064 = vpack.c.b16 %v4712, %v4704
    %v7065 = vpack.c.b16 %v4713, %v4705
    %v7066 = vpack.c.b16 %v4714, %v4706
    %v7067 = vpack.c.b16 %v4723, %v4715
    %v7068 = vpack.c.b16 %v4724, %v4716
    %v7069 = vpack.c.b16 %v4725, %v4717
    %v7070 = vpack.c.b16 %v4726, %v4718
    %v7071 = vpack.c.b16 %v4727, %v4719
    %v7072 = vpack.c.b16 %v4728, %v4720
    %v7073 = vpack.c.b16 %v4729, %v4721
    %v7074 = vpack.c.b16 %v4730, %v4722
    %v7075 = vpack.c.b16 %v4739, %v4731
    %v7076 = vpack.c.b16 %v4740, %v4732
    %v7077 = vpack.c.b16 %v4741, %v4733
    %v7078 = vpack.c.b16 %v4742, %v4734
    %v7079 = vpack.c.b16 %v4743, %v4735
    %v7080 = vpack.c.b16 %v4744, %v4736
    %v7081 = vpack.c.b16 %v4745, %v4737
    %v7082 = vpack.c.b16 %v4746, %v4738
    %v7083 = vpack.c.b16 %v4755, %v4747
    %v7084 = vpack.c.b16 %v4756, %v4748
    %v7085 = vpack.c.b16 %v4757, %v4749
    %v7086 = vpack.c.b16 %v4758, %v4750
    %v7087 = vpack.c.b16 %v4759, %v4751
    %v7088 = vpack.c.b16 %v4760, %v4752
    %v7089 = vpack.c.b16 %v4761, %v4753
    %v7090 = vpack.c.b16 %v4762, %v4754
    %v7091 = vpack.c.b16 %v4771, %v4763
    %v7092 = vpack.c.b16 %v4772, %v4764
    %v7093 = vpack.c.b16 %v4773, %v4765
    %v7094 = vpack.c.b16 %v4774, %v4766
    %v7095 = vpack.c.b16 %v4775, %v4767
    %v7096 = vpack.c.b16 %v4776, %v4768
    %v7097 = vpack.c.b16 %v4777, %v4769
    %v7098 = vpack.c.b16 %v4778, %v4770
    %v7099 = vpack.c.b16 %v4787, %v4779
    %v7100 = vpack.c.b16 %v4788, %v4780
    %v7101 = vpack.c.b16 %v4789, %v4781
    %v7102 = vpack.c.b16 %v4790, %v4782
    %v7103 = vpack.c.b16 %v4791, %v4783
    %v7104 = vpack.c.b16 %v4792, %v4784
    %v7105 = vpack.c.b16 %v4793, %v4785
    %v7106 = vpack.c.b16 %v4794, %v4786
    %v7107 = vpack.c.b16 %v4803, %v4795
    %v7108 = vpack.c.b16 %v4804, %v4796
    %v7109 = vpack.c.b16 %v4805, %v4797
    %v7110 = vpack.c.b16 %v4806, %v4798
    %v7111 = vpack.c.b16 %v4807, %v4799
    %v7112 = vpack.c.b16 %v4808, %v4800
    %v7113 = vpack.c.b16 %v4809, %v4801
    %v7114 = vpack.c.b16 %v4810, %v4802
    %v7115 = vpack.c.b16 %v4819, %v4811
    %v7116 = vpack.c.b16 %v4820, %v4812
    %v7117 = vpack.c.b16 %v4821, %v4813
    %v7118 = vpack.c.b16 %v4822, %v4814
    %v7119 = vpack.c.b16 %v4823, %v4815
    %v7120 = vpack.c.b16 %v4824, %v4816
    %v7121 = vpack.c.b16 %v4825, %v4817
    %v7122 = vpack.c.b16 %v4826, %v4818
    %v7123 = vpack.c.b16 %v4835, %v4827
    %v7124 = vpack.c.b16 %v4836, %v4828
    %v7125 = vpack.c.b16 %v4837, %v4829
    %v7126 = vpack.c.b16 %v4838, %v4830
    %v7127 = vpack.c.b16 %v4839, %v4831
    %v7128 = vpack.c.b16 %v4840, %v4832
    %v7129 = vpack.c.b16 %v4841, %v4833
    %v7130 = vpack.c.b16 %v4842, %v4834
    %v7131 = vpack.c.b16 %v4851, %v4843
    %v7132 = vpack.c.b16 %v4852, %v4844
    %v7133 = vpack.c.b16 %v4853, %v4845
    %v7134 = vpack.c.b16 %v4854, %v4846
    %v7135 = vpack.c.b16 %v4855, %v4847
    %v7136 = vpack.c.b16 %v4856, %v4848
    %v7137 = vpack.c.b16 %v4857, %v4849
    %v7138 = vpack.c.b16 %v4858, %v4850
    %v7139 = vpack.c.b16 %v4867, %v4859
    %v7140 = vpack.c.b16 %v4868, %v4860
    %v7141 = vpack.c.b16 %v4869, %v4861
    %v7142 = vpack.c.b16 %v4870, %v4862
    %v7143 = vpack.c.b16 %v4871, %v4863
    %v7144 = vpack.c.b16 %v4872, %v4864
    %v7145 = vpack.c.b16 %v4873, %v4865
    %v7146 = vpack.c.b16 %v4874, %v4866
    %v7147 = vpack.c.b16 %v4883, %v4875
    %v7148 = vpack.c.b16 %v4884, %v4876
    %v7149 = vpack.c.b16 %v4885, %v4877
    %v7150 = vpack.c.b16 %v4886, %v4878
    %v7151 = vpack.c.b16 %v4887, %v4879
    %v7152 = vpack.c.b16 %v4888, %v4880
    %v7153 = vpack.c.b16 %v4889, %v4881
    %v7154 = vpack.c.b16 %v4890, %v4882
    %v7155 = vpack.c.b16 %v4899, %v4891
    %v7156 = vpack.c.b16 %v4900, %v4892
    %v7157 = vpack.c.b16 %v4901, %v4893
    %v7158 = vpack.c.b16 %v4902, %v4894
    %v7159 = vpack.c.b16 %v4903, %v4895
    %v7160 = vpack.c.b16 %v4904, %v4896
    %v7161 = vpack.c.b16 %v4905, %v4897
    %v7162 = vpack.c.b16 %v4906, %v4898
    %v7163 = vpack.c.b16 %v4915, %v4907
    %v7164 = vpack.c.b16 %v4916, %v4908
    %v7165 = vpack.c.b16 %v4917, %v4909
    %v7166 = vpack.c.b16 %v4918, %v4910
    %v7167 = vpack.c.b16 %v4919, %v4911
    %v7168 = vpack.c.b16 %v4920, %v4912
    %v7169 = vpack.c.b16 %v4921, %v4913
    %v7170 = vpack.c.b16 %v4922, %v4914
    %v7171 = vpack.c.b16 %v4931, %v4923
    %v7172 = vpack.c.b16 %v4932, %v4924
    %v7173 = vpack.c.b16 %v4933, %v4925
    %v7174 = vpack.c.b16 %v4934, %v4926
    %v7175 = vpack.c.b16 %v4935, %v4927
    %v7176 = vpack.c.b16 %v4936, %v4928
    %v7177 = vpack.c.b16 %v4937, %v4929
    %v7178 = vpack.c.b16 %v4938, %v4930
    %v7179 = vpack.c.b16 %v4947, %v4939
    %v7180 = vpack.c.b16 %v4948, %v4940
    %v7181 = vpack.c.b16 %v4949, %v4941
    %v7182 = vpack.c.b16 %v4950, %v4942
    %v7183 = vpack.c.b16 %v4951, %v4943
    %v7184 = vpack.c.b16 %v4952, %v4944
    %v7185 = vpack.c.b16 %v4953, %v4945
    %v7186 = vpack.c.b16 %v4954, %v4946
    %v7187 = vpack.c.b16 %v4963, %v4955
    %v7188 = vpack.c.b16 %v4964, %v4956
    %v7189 = vpack.c.b16 %v4965, %v4957
    %v7190 = vpack.c.b16 %v4966, %v4958
    %v7191 = vpack.c.b16 %v4967, %v4959
    %v7192 = vpack.c.b16 %v4968, %v4960
    %v7193 = vpack.c.b16 %v4969, %v4961
    %v7194 = vpack.c.b16 %v4970, %v4962
    %v7195 = vpack.c.b16 %v4979, %v4971
    %v7196 = vpack.c.b16 %v4980, %v4972
    %v7197 = vpack.c.b16 %v4981, %v4973
    %v7198 = vpack.c.b16 %v4982, %v4974
    %v7199 = vpack.c.b16 %v4983, %v4975
    %v7200 = vpack.c.b16 %v4984, %v4976
    %v7201 = vpack.c.b16 %v4985, %v4977
    %v7202 = vpack.c.b16 %v4986, %v4978
    %v7203 = vpack.c.b16 %v4995, %v4987
    %v7204 = vpack.c.b16 %v4996, %v4988
    %v7205 = vpack.c.b16 %v4997, %v4989
    %v7206 = vpack.c.b16 %v4998, %v4990
    %v7207 = vpack.c.b16 %v4999, %v4991
    %v7208 = vpack.c.b16 %v5000, %v4992
    %v7209 = vpack.c.b16 %v5001, %v4993
    %v7210 = vpack.c.b16 %v5002, %v4994
    %v7211 = vpack.c.b16 %v5011, %v5003
    %v7212 = vpack.c.b16 %v5012, %v5004
    %v7213 = vpack.c.b16 %v5013, %v5005
    %v7214 = vpack.c.b16 %v5014, %v5006
    %v7215 = vpack.c.b16 %v5015, %v5007
    %v7216 = vpack.c.b16 %v5016, %v5008
    %v7217 = vpack.c.b16 %v5017, %v5009
    %v7218 = vpack.c.b16 %v5018, %v5010
    %v7219 = vpack.c.b16 %v5027, %v5019
    %v7220 = vpack.c.b16 %v5028, %v5020
    %v7221 = vpack.c.b16 %v5029, %v5021
    %v7222 = vpack.c.b16 %v5030, %v5022
    %v7223 = vpack.c.b16 %v5031, %v5023
    %v7224 = vpack.c.b16 %v5032, %v5024
    %v7225 = vpack.c.b16 %v5033, %v5025
    %v7226 = vpack.c.b16 %v5034, %v5026
    %v7227 = vpack.c.b16 %v5043, %v5035
    %v7228 = vpack.c.b16 %v5044, %v5036
    %v7229 = vpack.c.b16 %v5045, %v5037
    %v7230 = vpack.c.b16 %v5046, %v5038
    %v7231 = vpack.c.b16 %v5047, %v5039
    %v7232 = vpack.c.b16 %v5048, %v5040
    %v7233 = vpack.c.b16 %v5049, %v5041
    %v7234 = vpack.c.b16 %v5050, %v5042
    %v7235 = vpack.c.b16 %v5059, %v5051
    %v7236 = vpack.c.b16 %v5060, %v5052
    %v7237 = vpack.c.b16 %v5061, %v5053
    %v7238 = vpack.c.b16 %v5062, %v5054
    %v7239 = vpack.c.b16 %v5063, %v5055
    %v7240 = vpack.c.b16 %v5064, %v5056
    %v7241 = vpack.c.b16 %v5065, %v5057
    %v7242 = vpack.c.b16 %v5066, %v5058
    %v7243 = vpack.c.b16 %v5075, %v5067
    %v7244 = vpack.c.b16 %v5076, %v5068
    %v7245 = vpack.c.b16 %v5077, %v5069
    %v7246 = vpack.c.b16 %v5078, %v5070
    %v7247 = vpack.c.b16 %v5079, %v5071
    %v7248 = vpack.c.b16 %v5080, %v5072
    %v7249 = vpack.c.b16 %v5081, %v5073
    %v7250 = vpack.c.b16 %v5082, %v5074
    %v7251 = vpack.c.b16 %v5091, %v5083
    %v7252 = vpack.c.b16 %v5092, %v5084
    %v7253 = vpack.c.b16 %v5093, %v5085
    %v7254 = vpack.c.b16 %v5094, %v5086
    %v7255 = vpack.c.b16 %v5095, %v5087
    %v7256 = vpack.c.b16 %v5096, %v5088
    %v7257 = vpack.c.b16 %v5097, %v5089
    %v7258 = vpack.c.b16 %v5098, %v5090
    %v7259 = vpack.c.b16 %v5107, %v5099
    %v7260 = vpack.c.b16 %v5108, %v5100
    %v7261 = vpack.c.b16 %v5109, %v5101
    %v7262 = vpack.c.b16 %v5110, %v5102
    %v7263 = vpack.c.b16 %v5111, %v5103
    %v7264 = vpack.c.b16 %v5112, %v5104
    %v7265 = vpack.c.b16 %v5113, %v5105
    %v7266 = vpack.c.b16 %v5114, %v5106
    %v7267 = vpack.c.b16 %v5123, %v5115
    %v7268 = vpack.c.b16 %v5124, %v5116
    %v7269 = vpack.c.b16 %v5125, %v5117
    %v7270 = vpack.c.b16 %v5126, %v5118
    %v7271 = vpack.c.b16 %v5127, %v5119
    %v7272 = vpack.c.b16 %v5128, %v5120
    %v7273 = vpack.c.b16 %v5129, %v5121
    %v7274 = vpack.c.b16 %v5130, %v5122
    %v7275 = vpack.c.b16 %v5139, %v5131
    %v7276 = vpack.c.b16 %v5140, %v5132
    %v7277 = vpack.c.b16 %v5141, %v5133
    %v7278 = vpack.c.b16 %v5142, %v5134
    %v7279 = vpack.c.b16 %v5143, %v5135
    %v7280 = vpack.c.b16 %v5144, %v5136
    %v7281 = vpack.c.b16 %v5145, %v5137
    %v7282 = vpack.c.b16 %v5146, %v5138
    %v7283 = vpack.c.b16 %v5155, %v5147
    %v7284 = vpack.c.b16 %v5156, %v5148
    %v7285 = vpack.c.b16 %v5157, %v5149
    %v7286 = vpack.c.b16 %v5158, %v5150
    %v7287 = vpack.c.b16 %v5159, %v5151
    %v7288 = vpack.c.b16 %v5160, %v5152
    %v7289 = vpack.c.b16 %v5161, %v5153
    %v7290 = vpack.c.b16 %v5162, %v5154
    %v7291 = vpack.c.b16 %v5171, %v5163
    %v7292 = vpack.c.b16 %v5172, %v5164
    %v7293 = vpack.c.b16 %v5173, %v5165
    %v7294 = vpack.c.b16 %v5174, %v5166
    %v7295 = vpack.c.b16 %v5175, %v5167
    %v7296 = vpack.c.b16 %v5176, %v5168
    %v7297 = vpack.c.b16 %v5177, %v5169
    %v7298 = vpack.c.b16 %v5178, %v5170
    %v7299 = vpack.c.b16 %v5187, %v5179
    %v7300 = vpack.c.b16 %v5188, %v5180
    %v7301 = vpack.c.b16 %v5189, %v5181
    %v7302 = vpack.c.b16 %v5190, %v5182
    %v7303 = vpack.c.b16 %v5191, %v5183
    %v7304 = vpack.c.b16 %v5192, %v5184
    %v7305 = vpack.c.b16 %v5193, %v5185
    %v7306 = vpack.c.b16 %v5194, %v5186
    %v7307 = vpack.c.b16 %v5203, %v5195
    %v7308 = vpack.c.b16 %v5204, %v5196
    %v7309 = vpack.c.b16 %v5205, %v5197
    %v7310 = vpack.c.b16 %v5206, %v5198
    %v7311 = vpack.c.b16 %v5207, %v5199
    %v7312 = vpack.c.b16 %v5208, %v5200
    %v7313 = vpack.c.b16 %v5209, %v5201
    %v7314 = vpack.c.b16 %v5210, %v5202
    %v7315 = vpack.c.b16 %v5219, %v5211
    %v7316 = vpack.c.b16 %v5220, %v5212
    %v7317 = vpack.c.b16 %v5221, %v5213
    %v7318 = vpack.c.b16 %v5222, %v5214
    %v7319 = vpack.c.b16 %v5223, %v5215
    %v7320 = vpack.c.b16 %v5224, %v5216
    %v7321 = vpack.c.b16 %v5225, %v5217
    %v7322 = vpack.c.b16 %v5226, %v5218
    %v7323 = vpack.c.b16 %v5235, %v5227
    %v7324 = vpack.c.b16 %v5236, %v5228
    %v7325 = vpack.c.b16 %v5237, %v5229
    %v7326 = vpack.c.b16 %v5238, %v5230
    %v7327 = vpack.c.b16 %v5239, %v5231
    %v7328 = vpack.c.b16 %v5240, %v5232
    %v7329 = vpack.c.b16 %v5241, %v5233
    %v7330 = vpack.c.b16 %v5242, %v5234
    %v7331 = vpack.c.b16 %v5251, %v5243
    %v7332 = vpack.c.b16 %v5252, %v5244
    %v7333 = vpack.c.b16 %v5253, %v5245
    %v7334 = vpack.c.b16 %v5254, %v5246
    %v7335 = vpack.c.b16 %v5255, %v5247
    %v7336 = vpack.c.b16 %v5256, %v5248
    %v7337 = vpack.c.b16 %v5257, %v5249
    %v7338 = vpack.c.b16 %v5258, %v5250
    %v7339 = vpack.c.b16 %v5267, %v5259
    %v7340 = vpack.c.b16 %v5268, %v5260
    %v7341 = vpack.c.b16 %v5269, %v5261
    %v7342 = vpack.c.b16 %v5270, %v5262
    %v7343 = vpack.c.b16 %v5271, %v5263
    %v7344 = vpack.c.b16 %v5272, %v5264
    %v7345 = vpack.c.b16 %v5273, %v5265
    %v7346 = vpack.c.b16 %v5274, %v5266
    %v7347 = vpack.c.b16 %v5283, %v5275
    %v7348 = vpack.c.b16 %v5284, %v5276
    %v7349 = vpack.c.b16 %v5285, %v5277
    %v7350 = vpack.c.b16 %v5286, %v5278
    %v7351 = vpack.c.b16 %v5287, %v5279
    %v7352 = vpack.c.b16 %v5288, %v5280
    %v7353 = vpack.c.b16 %v5289, %v5281
    %v7354 = vpack.c.b16 %v5290, %v5282
    %v7355 = vpack.c.b16 %v5299, %v5291
    %v7356 = vpack.c.b16 %v5300, %v5292
    %v7357 = vpack.c.b16 %v5301, %v5293
    %v7358 = vpack.c.b16 %v5302, %v5294
    %v7359 = vpack.c.b16 %v5303, %v5295
    %v7360 = vpack.c.b16 %v5304, %v5296
    %v7361 = vpack.c.b16 %v5305, %v5297
    %v7362 = vpack.c.b16 %v5306, %v5298
    %v7363 = vpack.c.b16 %v5315, %v5307
    %v7364 = vpack.c.b16 %v5316, %v5308
    %v7365 = vpack.c.b16 %v5317, %v5309
    %v7366 = vpack.c.b16 %v5318, %v5310
    %v7367 = vpack.c.b16 %v5319, %v5311
    %v7368 = vpack.c.b16 %v5320, %v5312
    %v7369 = vpack.c.b16 %v5321, %v5313
    %v7370 = vpack.c.b16 %v5322, %v5314
    %v7371 = vpack.c.b16 %v5331, %v5323
    %v7372 = vpack.c.b16 %v5332, %v5324
    %v7373 = vpack.c.b16 %v5333, %v5325
    %v7374 = vpack.c.b16 %v5334, %v5326
    %v7375 = vpack.c.b16 %v5335, %v5327
    %v7376 = vpack.c.b16 %v5336, %v5328
    %v7377 = vpack.c.b16 %v5337, %v5329
    %v7378 = vpack.c.b16 %v5338, %v5330
    %v7379 = vpack.c.b16 %v5347, %v5339
    %v7380 = vpack.c.b16 %v5348, %v5340
    %v7381 = vpack.c.b16 %v5349, %v5341
    %v7382 = vpack.c.b16 %v5350, %v5342
    %v7383 = vpack.c.b16 %v5351, %v5343
    %v7384 = vpack.c.b16 %v5352, %v5344
    %v7385 = vpack.c.b16 %v5353, %v5345
    %v7386 = vpack.c.b16 %v5354, %v5346
    %v7387 = vpack.c.b16 %v5363, %v5355
    %v7388 = vpack.c.b16 %v5364, %v5356
    %v7389 = vpack.c.b16 %v5365, %v5357
    %v7390 = vpack.c.b16 %v5366, %v5358
    %v7391 = vpack.c.b16 %v5367, %v5359
    %v7392 = vpack.c.b16 %v5368, %v5360
    %v7393 = vpack.c.b16 %v5369, %v5361
    %v7394 = vpack.c.b16 %v5370, %v5362
    %v7395 = vpack.c.b16 %v5379, %v5371
    %v7396 = vpack.c.b16 %v5380, %v5372
    %v7397 = vpack.c.b16 %v5381, %v5373
    %v7398 = vpack.c.b16 %v5382, %v5374
    %v7399 = vpack.c.b16 %v5383, %v5375
    %v7400 = vpack.c.b16 %v5384, %v5376
    %v7401 = vpack.c.b16 %v5385, %v5377
    %v7402 = vpack.c.b16 %v5386, %v5378
    %v7403 = vpack.c.b16 %v5395, %v5387
    %v7404 = vpack.c.b16 %v5396, %v5388
    %v7405 = vpack.c.b16 %v5397, %v5389
    %v7406 = vpack.c.b16 %v5398, %v5390
    %v7407 = vpack.c.b16 %v5399, %v5391
    %v7408 = vpack.c.b16 %v5400, %v5392
    %v7409 = vpack.c.b16 %v5401, %v5393
    %v7410 = vpack.c.b16 %v5402, %v5394
    %v7411 = vpack.c.b16 %v5411, %v5403
    %v7412 = vpack.c.b16 %v5412, %v5404
    %v7413 = vpack.c.b16 %v5413, %v5405
    %v7414 = vpack.c.b16 %v5414, %v5406
    %v7415 = vpack.c.b16 %v5415, %v5407
    %v7416 = vpack.c.b16 %v5416, %v5408
    %v7417 = vpack.c.b16 %v5417, %v5409
    %v7418 = vpack.c.b16 %v5418, %v5410
    %v7419 = vpack.c.b16 %v5427, %v5419
    %v7420 = vpack.c.b16 %v5428, %v5420
    %v7421 = vpack.c.b16 %v5429, %v5421
    %v7422 = vpack.c.b16 %v5430, %v5422
    %v7423 = vpack.c.b16 %v5431, %v5423
    %v7424 = vpack.c.b16 %v5432, %v5424
    %v7425 = vpack.c.b16 %v5433, %v5425
    %v7426 = vpack.c.b16 %v5434, %v5426
    %v7427 = vpack.c.b16 %v5443, %v5435
    %v7428 = vpack.c.b16 %v5444, %v5436
    %v7429 = vpack.c.b16 %v5445, %v5437
    %v7430 = vpack.c.b16 %v5446, %v5438
    %v7431 = vpack.c.b16 %v5447, %v5439
    %v7432 = vpack.c.b16 %v5448, %v5440
    %v7433 = vpack.c.b16 %v5449, %v5441
    %v7434 = vpack.c.b16 %v5450, %v5442
    %v7435 = vpack.c.b16 %v5459, %v5451
    %v7436 = vpack.c.b16 %v5460, %v5452
    %v7437 = vpack.c.b16 %v5461, %v5453
    %v7438 = vpack.c.b16 %v5462, %v5454
    %v7439 = vpack.c.b16 %v5463, %v5455
    %v7440 = vpack.c.b16 %v5464, %v5456
    %v7441 = vpack.c.b16 %v5465, %v5457
    %v7442 = vpack.c.b16 %v5466, %v5458
    %v7443 = vpack.c.b16 %v5475, %v5467
    %v7444 = vpack.c.b16 %v5476, %v5468
    %v7445 = vpack.c.b16 %v5477, %v5469
    %v7446 = vpack.c.b16 %v5478, %v5470
    %v7447 = vpack.c.b16 %v5479, %v5471
    %v7448 = vpack.c.b16 %v5480, %v5472
    %v7449 = vpack.c.b16 %v5481, %v5473
    %v7450 = vpack.c.b16 %v5482, %v5474
    %v7451 = vpack.c.b16 %v5491, %v5483
    %v7452 = vpack.c.b16 %v5492, %v5484
    %v7453 = vpack.c.b16 %v5493, %v5485
    %v7454 = vpack.c.b16 %v5494, %v5486
    %v7455 = vpack.c.b16 %v5495, %v5487
    %v7456 = vpack.c.b16 %v5496, %v5488
    %v7457 = vpack.c.b16 %v5497, %v5489
    %v7458 = vpack.c.b16 %v5498, %v5490
    %v7459 = vpack.c.b16 %v5507, %v5499
    %v7460 = vpack.c.b16 %v5508, %v5500
    %v7461 = vpack.c.b16 %v5509, %v5501
    %v7462 = vpack.c.b16 %v5510, %v5502
    %v7463 = vpack.c.b16 %v5511, %v5503
    %v7464 = vpack.c.b16 %v5512, %v5504
    %v7465 = vpack.c.b16 %v5513, %v5505
    %v7466 = vpack.c.b16 %v5514, %v5506
    %v7467 = vpack.c.b16 %v5523, %v5515
    %v7468 = vpack.c.b16 %v5524, %v5516
    %v7469 = vpack.c.b16 %v5525, %v5517
    %v7470 = vpack.c.b16 %v5526, %v5518
    %v7471 = vpack.c.b16 %v5527, %v5519
    %v7472 = vpack.c.b16 %v5528, %v5520
    %v7473 = vpack.c.b16 %v5529, %v5521
    %v7474 = vpack.c.b16 %v5530, %v5522
    %v7475 = vpack.c.b16 %v5539, %v5531
    %v7476 = vpack.c.b16 %v5540, %v5532
    %v7477 = vpack.c.b16 %v5541, %v5533
    %v7478 = vpack.c.b16 %v5542, %v5534
    %v7479 = vpack.c.b16 %v5543, %v5535
    %v7480 = vpack.c.b16 %v5544, %v5536
    %v7481 = vpack.c.b16 %v5545, %v5537
    %v7482 = vpack.c.b16 %v5546, %v5538
    %v7483 = vpack.c.b16 %v5555, %v5547
    %v7484 = vpack.c.b16 %v5556, %v5548
    %v7485 = vpack.c.b16 %v5557, %v5549
    %v7486 = vpack.c.b16 %v5558, %v5550
    %v7487 = vpack.c.b16 %v5559, %v5551
    %v7488 = vpack.c.b16 %v5560, %v5552
    %v7489 = vpack.c.b16 %v5561, %v5553
    %v7490 = vpack.c.b16 %v5562, %v5554
    %v7491 = vpack.c.b16 %v5571, %v5563
    %v7492 = vpack.c.b16 %v5572, %v5564
    %v7493 = vpack.c.b16 %v5573, %v5565
    %v7494 = vpack.c.b16 %v5574, %v5566
    %v7495 = vpack.c.b16 %v5575, %v5567
    %v7496 = vpack.c.b16 %v5576, %v5568
    %v7497 = vpack.c.b16 %v5577, %v5569
    %v7498 = vpack.c.b16 %v5578, %v5570
    %v7499 = vpack.c.b16 %v5587, %v5579
    %v7500 = vpack.c.b16 %v5588, %v5580
    %v7501 = vpack.c.b16 %v5589, %v5581
    %v7502 = vpack.c.b16 %v5590, %v5582
    %v7503 = vpack.c.b16 %v5591, %v5583
    %v7504 = vpack.c.b16 %v5592, %v5584
    %v7505 = vpack.c.b16 %v5593, %v5585
    %v7506 = vpack.c.b16 %v5594, %v5586
    %v7507 = vpack.c.b16 %v5603, %v5595
    %v7508 = vpack.c.b16 %v5604, %v5596
    %v7509 = vpack.c.b16 %v5605, %v5597
    %v7510 = vpack.c.b16 %v5606, %v5598
    %v7511 = vpack.c.b16 %v5607, %v5599
    %v7512 = vpack.c.b16 %v5608, %v5600
    %v7513 = vpack.c.b16 %v5609, %v5601
    %v7514 = vpack.c.b16 %v5610, %v5602
    %v7515 = vpack.c.b16 %v5619, %v5611
    %v7516 = vpack.c.b16 %v5620, %v5612
    %v7517 = vpack.c.b16 %v5621, %v5613
    %v7518 = vpack.c.b16 %v5622, %v5614
    %v7519 = vpack.c.b16 %v5623, %v5615
    %v7520 = vpack.c.b16 %v5624, %v5616
    %v7521 = vpack.c.b16 %v5625, %v5617
    %v7522 = vpack.c.b16 %v5626, %v5618
    %v7523 = vpack.c.b16 %v5635, %v5627
    %v7524 = vpack.c.b16 %v5636, %v5628
    %v7525 = vpack.c.b16 %v5637, %v5629
    %v7526 = vpack.c.b16 %v5638, %v5630
    %v7527 = vpack.c.b16 %v5639, %v5631
    %v7528 = vpack.c.b16 %v5640, %v5632
    %v7529 = vpack.c.b16 %v5641, %v5633
    %v7530 = vpack.c.b16 %v5642, %v5634
    %v7531 = vpack.c.b16 %v5651, %v5643
    %v7532 = vpack.c.b16 %v5652, %v5644
    %v7533 = vpack.c.b16 %v5653, %v5645
    %v7534 = vpack.c.b16 %v5654, %v5646
    %v7535 = vpack.c.b16 %v5655, %v5647
    %v7536 = vpack.c.b16 %v5656, %v5648
    %v7537 = vpack.c.b16 %v5657, %v5649
    %v7538 = vpack.c.b16 %v5658, %v5650
    %v7539 = vpack.c.b16 %v5667, %v5659
    %v7540 = vpack.c.b16 %v5668, %v5660
    %v7541 = vpack.c.b16 %v5669, %v5661
    %v7542 = vpack.c.b16 %v5670, %v5662
    %v7543 = vpack.c.b16 %v5671, %v5663
    %v7544 = vpack.c.b16 %v5672, %v5664
    %v7545 = vpack.c.b16 %v5673, %v5665
    %v7546 = vpack.c.b16 %v5674, %v5666
    %v7547 = vpack.c.b16 %v5683, %v5675
    %v7548 = vpack.c.b16 %v5684, %v5676
    %v7549 = vpack.c.b16 %v5685, %v5677
    %v7550 = vpack.c.b16 %v5686, %v5678
    %v7551 = vpack.c.b16 %v5687, %v5679
    %v7552 = vpack.c.b16 %v5688, %v5680
    %v7553 = vpack.c.b16 %v5689, %v5681
    %v7554 = vpack.c.b16 %v5690, %v5682
    %v7555 = vpack.c.b16 %v5699, %v5691
    %v7556 = vpack.c.b16 %v5700, %v5692
    %v7557 = vpack.c.b16 %v5701, %v5693
    %v7558 = vpack.c.b16 %v5702, %v5694
    %v7559 = vpack.c.b16 %v5703, %v5695
    %v7560 = vpack.c.b16 %v5704, %v5696
    %v7561 = vpack.c.b16 %v5705, %v5697
    %v7562 = vpack.c.b16 %v5706, %v5698
    %v7563 = vpack.c.b16 %v5715, %v5707
    %v7564 = vpack.c.b16 %v5716, %v5708
    %v7565 = vpack.c.b16 %v5717, %v5709
    %v7566 = vpack.c.b16 %v5718, %v5710
    %v7567 = vpack.c.b16 %v5719, %v5711
    %v7568 = vpack.c.b16 %v5720, %v5712
    %v7569 = vpack.c.b16 %v5721, %v5713
    %v7570 = vpack.c.b16 %v5722, %v5714
    %v7571 = vpack.c.b16 %v5731, %v5723
    %v7572 = vpack.c.b16 %v5732, %v5724
    %v7573 = vpack.c.b16 %v5733, %v5725
    %v7574 = vpack.c.b16 %v5734, %v5726
    %v7575 = vpack.c.b16 %v5735, %v5727
    %v7576 = vpack.c.b16 %v5736, %v5728
    %v7577 = vpack.c.b16 %v5737, %v5729
    %v7578 = vpack.c.b16 %v5738, %v5730
    %v7579 = vpack.c.b16 %v5747, %v5739
    %v7580 = vpack.c.b16 %v5748, %v5740
    %v7581 = vpack.c.b16 %v5749, %v5741
    %v7582 = vpack.c.b16 %v5750, %v5742
    %v7583 = vpack.c.b16 %v5751, %v5743
    %v7584 = vpack.c.b16 %v5752, %v5744
    %v7585 = vpack.c.b16 %v5753, %v5745
    %v7586 = vpack.c.b16 %v5754, %v5746
    %v7587 = vpack.c.b16 %v5763, %v5755
    %v7588 = vpack.c.b16 %v5764, %v5756
    %v7589 = vpack.c.b16 %v5765, %v5757
    %v7590 = vpack.c.b16 %v5766, %v5758
    %v7591 = vpack.c.b16 %v5767, %v5759
    %v7592 = vpack.c.b16 %v5768, %v5760
    %v7593 = vpack.c.b16 %v5769, %v5761
    %v7594 = vpack.c.b16 %v5770, %v5762
    %v7595 = vpack.c.b16 %v5779, %v5771
    %v7596 = vpack.c.b16 %v5780, %v5772
    %v7597 = vpack.c.b16 %v5781, %v5773
    %v7598 = vpack.c.b16 %v5782, %v5774
    %v7599 = vpack.c.b16 %v5783, %v5775
    %v7600 = vpack.c.b16 %v5784, %v5776
    %v7601 = vpack.c.b16 %v5785, %v5777
    %v7602 = vpack.c.b16 %v5786, %v5778
    %v7603 = vpack.c.b16 %v5795, %v5787
    %v7604 = vpack.c.b16 %v5796, %v5788
    %v7605 = vpack.c.b16 %v5797, %v5789
    %v7606 = vpack.c.b16 %v5798, %v5790
    %v7607 = vpack.c.b16 %v5799, %v5791
    %v7608 = vpack.c.b16 %v5800, %v5792
    %v7609 = vpack.c.b16 %v5801, %v5793
    %v7610 = vpack.c.b16 %v5802, %v5794
    %v7611 = vpack.c.b16 %v5811, %v5803
    %v7612 = vpack.c.b16 %v5812, %v5804
    %v7613 = vpack.c.b16 %v5813, %v5805
    %v7614 = vpack.c.b16 %v5814, %v5806
    %v7615 = vpack.c.b16 %v5815, %v5807
    %v7616 = vpack.c.b16 %v5816, %v5808
    %v7617 = vpack.c.b16 %v5817, %v5809
    %v7618 = vpack.c.b16 %v5818, %v5810
    %v7619 = vpack.c.b16 %v5827, %v5819
    %v7620 = vpack.c.b16 %v5828, %v5820
    %v7621 = vpack.c.b16 %v5829, %v5821
    %v7622 = vpack.c.b16 %v5830, %v5822
    %v7623 = vpack.c.b16 %v5831, %v5823
    %v7624 = vpack.c.b16 %v5832, %v5824
    %v7625 = vpack.c.b16 %v5833, %v5825
    %v7626 = vpack.c.b16 %v5834, %v5826
    %v7627 = vpack.c.b16 %v5843, %v5835
    %v7628 = vpack.c.b16 %v5844, %v5836
    %v7629 = vpack.c.b16 %v5845, %v5837
    %v7630 = vpack.c.b16 %v5846, %v5838
    %v7631 = vpack.c.b16 %v5847, %v5839
    %v7632 = vpack.c.b16 %v5848, %v5840
    %v7633 = vpack.c.b16 %v5849, %v5841
    %v7634 = vpack.c.b16 %v5850, %v5842
    %v7635 = vpack.c.b16 %v5859, %v5851
    %v7636 = vpack.c.b16 %v5860, %v5852
    %v7637 = vpack.c.b16 %v5861, %v5853
    %v7638 = vpack.c.b16 %v5862, %v5854
    %v7639 = vpack.c.b16 %v5863, %v5855
    %v7640 = vpack.c.b16 %v5864, %v5856
    %v7641 = vpack.c.b16 %v5865, %v5857
    %v7642 = vpack.c.b16 %v5866, %v5858
    %v7643 = vpack.c.b16 %v5875, %v5867
    %v7644 = vpack.c.b16 %v5876, %v5868
    %v7645 = vpack.c.b16 %v5877, %v5869
    %v7646 = vpack.c.b16 %v5878, %v5870
    %v7647 = vpack.c.b16 %v5879, %v5871
    %v7648 = vpack.c.b16 %v5880, %v5872
    %v7649 = vpack.c.b16 %v5881, %v5873
    %v7650 = vpack.c.b16 %v5882, %v5874
    %v7651 = vpack.c.b16 %v5891, %v5883
    %v7652 = vpack.c.b16 %v5892, %v5884
    %v7653 = vpack.c.b16 %v5893, %v5885
    %v7654 = vpack.c.b16 %v5894, %v5886
    %v7655 = vpack.c.b16 %v5895, %v5887
    %v7656 = vpack.c.b16 %v5896, %v5888
    %v7657 = vpack.c.b16 %v5897, %v5889
    %v7658 = vpack.c.b16 %v5898, %v5890
    %v7659 = vpack.c.b16 %v5907, %v5899
    %v7660 = vpack.c.b16 %v5908, %v5900
    %v7661 = vpack.c.b16 %v5909, %v5901
    %v7662 = vpack.c.b16 %v5910, %v5902
    %v7663 = vpack.c.b16 %v5911, %v5903
    %v7664 = vpack.c.b16 %v5912, %v5904
    %v7665 = vpack.c.b16 %v5913, %v5905
    %v7666 = vpack.c.b16 %v5914, %v5906
    %v7667 = vpack.c.b16 %v5923, %v5915
    %v7668 = vpack.c.b16 %v5924, %v5916
    %v7669 = vpack.c.b16 %v5925, %v5917
    %v7670 = vpack.c.b16 %v5926, %v5918
    %v7671 = vpack.c.b16 %v5927, %v5919
    %v7672 = vpack.c.b16 %v5928, %v5920
    %v7673 = vpack.c.b16 %v5929, %v5921
    %v7674 = vpack.c.b16 %v5930, %v5922
    %v7675 = vpack.c.b16 %v5939, %v5931
    %v7676 = vpack.c.b16 %v5940, %v5932
    %v7677 = vpack.c.b16 %v5941, %v5933
    %v7678 = vpack.c.b16 %v5942, %v5934
    %v7679 = vpack.c.b16 %v5943, %v5935
    %v7680 = vpack.c.b16 %v5944, %v5936
    %v7681 = vpack.c.b16 %v5945, %v5937
    %v7682 = vpack.c.b16 %v5946, %v5938
    %v7683 = vpack.c.b16 %v5955, %v5947
    %v7684 = vpack.c.b16 %v5956, %v5948
    %v7685 = vpack.c.b16 %v5957, %v5949
    %v7686 = vpack.c.b16 %v5958, %v5950
    %v7687 = vpack.c.b16 %v5959, %v5951
    %v7688 = vpack.c.b16 %v5960, %v5952
    %v7689 = vpack.c.b16 %v5961, %v5953
    %v7690 = vpack.c.b16 %v5962, %v5954
    %v7691 = vpack.c.b16 %v5971, %v5963
    %v7692 = vpack.c.b16 %v5972, %v5964
    %v7693 = vpack.c.b16 %v5973, %v5965
    %v7694 = vpack.c.b16 %v5974, %v5966
    %v7695 = vpack.c.b16 %v5975, %v5967
    %v7696 = vpack.c.b16 %v5976, %v5968
    %v7697 = vpack.c.b16 %v5977, %v5969
    %v7698 = vpack.c.b16 %v5978, %v5970
    %v7699 = vpack.c.b16 %v5987, %v5979
    %v7700 = vpack.c.b16 %v5988, %v5980
    %v7701 = vpack.c.b16 %v5989, %v5981
    %v7702 = vpack.c.b16 %v5990, %v5982
    %v7703 = vpack.c.b16 %v5991, %v5983
    %v7704 = vpack.c.b16 %v5992, %v5984
    %v7705 = vpack.c.b16 %v5993, %v5985
    %v7706 = vpack.c.b16 %v5994, %v5986
    %v7707 = vpack.c.b16 %v6003, %v5995
    %v7708 = vpack.c.b16 %v6004, %v5996
    %v7709 = vpack.c.b16 %v6005, %v5997
    %v7710 = vpack.c.b16 %v6006, %v5998
    %v7711 = vpack.c.b16 %v6007, %v5999
    %v7712 = vpack.c.b16 %v6008, %v6000
    %v7713 = vpack.c.b16 %v6009, %v6001
    %v7714 = vpack.c.b16 %v6010, %v6002
    %v7715 = vpack.c.b16 %v6019, %v6011
    %v7716 = vpack.c.b16 %v6020, %v6012
    %v7717 = vpack.c.b16 %v6021, %v6013
    %v7718 = vpack.c.b16 %v6022, %v6014
    %v7719 = vpack.c.b16 %v6023, %v6015
    %v7720 = vpack.c.b16 %v6024, %v6016
    %v7721 = vpack.c.b16 %v6025, %v6017
    %v7722 = vpack.c.b16 %v6026, %v6018
    %v7723 = vpack.c.b16 %v6035, %v6027
    %v7724 = vpack.c.b16 %v6036, %v6028
    %v7725 = vpack.c.b16 %v6037, %v6029
    %v7726 = vpack.c.b16 %v6038, %v6030
    %v7727 = vpack.c.b16 %v6039, %v6031
    %v7728 = vpack.c.b16 %v6040, %v6032
    %v7729 = vpack.c.b16 %v6041, %v6033
    %v7730 = vpack.c.b16 %v6042, %v6034
    %v7731 = vpack.c.b16 %v6051, %v6043
    %v7732 = vpack.c.b16 %v6052, %v6044
    %v7733 = vpack.c.b16 %v6053, %v6045
    %v7734 = vpack.c.b16 %v6054, %v6046
    %v7735 = vpack.c.b16 %v6055, %v6047
    %v7736 = vpack.c.b16 %v6056, %v6048
    %v7737 = vpack.c.b16 %v6057, %v6049
    %v7738 = vpack.c.b16 %v6058, %v6050
    %v7739 = vpack.c.b16 %v6067, %v6059
    %v7740 = vpack.c.b16 %v6068, %v6060
    %v7741 = vpack.c.b16 %v6069, %v6061
    %v7742 = vpack.c.b16 %v6070, %v6062
    %v7743 = vpack.c.b16 %v6071, %v6063
    %v7744 = vpack.c.b16 %v6072, %v6064
    %v7745 = vpack.c.b16 %v6073, %v6065
    %v7746 = vpack.c.b16 %v6074, %v6066
    %v7747 = vpack.c.b16 %v6083, %v6075
    %v7748 = vpack.c.b16 %v6084, %v6076
    %v7749 = vpack.c.b16 %v6085, %v6077
    %v7750 = vpack.c.b16 %v6086, %v6078
    %v7751 = vpack.c.b16 %v6087, %v6079
    %v7752 = vpack.c.b16 %v6088, %v6080
    %v7753 = vpack.c.b16 %v6089, %v6081
    %v7754 = vpack.c.b16 %v6090, %v6082
    %v7755 = vpack.c.b16 %v6099, %v6091
    %v7756 = vpack.c.b16 %v6100, %v6092
    %v7757 = vpack.c.b16 %v6101, %v6093
    %v7758 = vpack.c.b16 %v6102, %v6094
    %v7759 = vpack.c.b16 %v6103, %v6095
    %v7760 = vpack.c.b16 %v6104, %v6096
    %v7761 = vpack.c.b16 %v6105, %v6097
    %v7762 = vpack.c.b16 %v6106, %v6098
    %v7763 = vpack.c.b16 %v6115, %v6107
    %v7764 = vpack.c.b16 %v6116, %v6108
    %v7765 = vpack.c.b16 %v6117, %v6109
    %v7766 = vpack.c.b16 %v6118, %v6110
    %v7767 = vpack.c.b16 %v6119, %v6111
    %v7768 = vpack.c.b16 %v6120, %v6112
    %v7769 = vpack.c.b16 %v6121, %v6113
    %v7770 = vpack.c.b16 %v6122, %v6114
    %v7771 = vpack.c.b16 %v6131, %v6123
    %v7772 = vpack.c.b16 %v6132, %v6124
    %v7773 = vpack.c.b16 %v6133, %v6125
    %v7774 = vpack.c.b16 %v6134, %v6126
    %v7775 = vpack.c.b16 %v6135, %v6127
    %v7776 = vpack.c.b16 %v6136, %v6128
    %v7777 = vpack.c.b16 %v6137, %v6129
    %v7778 = vpack.c.b16 %v6138, %v6130
    %v7779 = vpack.c.b16 %v6147, %v6139
    %v7780 = vpack.c.b16 %v6148, %v6140
    %v7781 = vpack.c.b16 %v6149, %v6141
    %v7782 = vpack.c.b16 %v6150, %v6142
    %v7783 = vpack.c.b16 %v6151, %v6143
    %v7784 = vpack.c.b16 %v6152, %v6144
    %v7785 = vpack.c.b16 %v6153, %v6145
    %v7786 = vpack.c.b16 %v6154, %v6146
    %v7787 = vpack.c.b16 %v6163, %v6155
    %v7788 = vpack.c.b16 %v6164, %v6156
    %v7789 = vpack.c.b16 %v6165, %v6157
    %v7790 = vpack.c.b16 %v6166, %v6158
    %v7791 = vpack.c.b16 %v6167, %v6159
    %v7792 = vpack.c.b16 %v6168, %v6160
    %v7793 = vpack.c.b16 %v6169, %v6161
    %v7794 = vpack.c.b16 %v6170, %v6162
    %v7795 = vpack.c.b16 %v6179, %v6171
    %v7796 = vpack.c.b16 %v6180, %v6172
    %v7797 = vpack.c.b16 %v6181, %v6173
    %v7798 = vpack.c.b16 %v6182, %v6174
    %v7799 = vpack.c.b16 %v6183, %v6175
    %v7800 = vpack.c.b16 %v6184, %v6176
    %v7801 = vpack.c.b16 %v6185, %v6177
    %v7802 = vpack.c.b16 %v6186, %v6178
    %v7803 = vpack.c.b16 %v6195, %v6187
    %v7804 = vpack.c.b16 %v6196, %v6188
    %v7805 = vpack.c.b16 %v6197, %v6189
    %v7806 = vpack.c.b16 %v6198, %v6190
    %v7807 = vpack.c.b16 %v6199, %v6191
    %v7808 = vpack.c.b16 %v6200, %v6192
    %v7809 = vpack.c.b16 %v6201, %v6193
    %v7810 = vpack.c.b16 %v6202, %v6194
    %v7811 = vpack.c.b16 %v6211, %v6203
    %v7812 = vpack.c.b16 %v6212, %v6204
    %v7813 = vpack.c.b16 %v6213, %v6205
    %v7814 = vpack.c.b16 %v6214, %v6206
    %v7815 = vpack.c.b16 %v6215, %v6207
    %v7816 = vpack.c.b16 %v6216, %v6208
    %v7817 = vpack.c.b16 %v6217, %v6209
    %v7818 = vpack.c.b16 %v6218, %v6210
    %v7819 = vpack.c.b16 %v6227, %v6219
    %v7820 = vpack.c.b16 %v6228, %v6220
    %v7821 = vpack.c.b16 %v6229, %v6221
    %v7822 = vpack.c.b16 %v6230, %v6222
    %v7823 = vpack.c.b16 %v6231, %v6223
    %v7824 = vpack.c.b16 %v6232, %v6224
    %v7825 = vpack.c.b16 %v6233, %v6225
    %v7826 = vpack.c.b16 %v6234, %v6226
    %v7827 = vpack.c.b16 %v6243, %v6235
    %v7828 = vpack.c.b16 %v6244, %v6236
    %v7829 = vpack.c.b16 %v6245, %v6237
    %v7830 = vpack.c.b16 %v6246, %v6238
    %v7831 = vpack.c.b16 %v6247, %v6239
    %v7832 = vpack.c.b16 %v6248, %v6240
    %v7833 = vpack.c.b16 %v6249, %v6241
    %v7834 = vpack.c.b16 %v6250, %v6242
    %v7835 = vpack.c.b16 %v6259, %v6251
    %v7836 = vpack.c.b16 %v6260, %v6252
    %v7837 = vpack.c.b16 %v6261, %v6253
    %v7838 = vpack.c.b16 %v6262, %v6254
    %v7839 = vpack.c.b16 %v6263, %v6255
    %v7840 = vpack.c.b16 %v6264, %v6256
    %v7841 = vpack.c.b16 %v6265, %v6257
    %v7842 = vpack.c.b16 %v6266, %v6258
    %v7843 = vpack.c.b16 %v6275, %v6267
    %v7844 = vpack.c.b16 %v6276, %v6268
    %v7845 = vpack.c.b16 %v6277, %v6269
    %v7846 = vpack.c.b16 %v6278, %v6270
    %v7847 = vpack.c.b16 %v6279, %v6271
    %v7848 = vpack.c.b16 %v6280, %v6272
    %v7849 = vpack.c.b16 %v6281, %v6273
    %v7850 = vpack.c.b16 %v6282, %v6274
    %v7851 = vpack.c.b16 %v6291, %v6283
    %v7852 = vpack.c.b16 %v6292, %v6284
    %v7853 = vpack.c.b16 %v6293, %v6285
    %v7854 = vpack.c.b16 %v6294, %v6286
    %v7855 = vpack.c.b16 %v6295, %v6287
    %v7856 = vpack.c.b16 %v6296, %v6288
    %v7857 = vpack.c.b16 %v6297, %v6289
    %v7858 = vpack.c.b16 %v6298, %v6290
    %v7859 = vpack.c.b16 %v6307, %v6299
    %v7860 = vpack.c.b16 %v6308, %v6300
    %v7861 = vpack.c.b16 %v6309, %v6301
    %v7862 = vpack.c.b16 %v6310, %v6302
    %v7863 = vpack.c.b16 %v6311, %v6303
    %v7864 = vpack.c.b16 %v6312, %v6304
    %v7865 = vpack.c.b16 %v6313, %v6305
    %v7866 = vpack.c.b16 %v6314, %v6306
    %v7867 = vpack.c.b16 %v6323, %v6315
    %v7868 = vpack.c.b16 %v6324, %v6316
    %v7869 = vpack.c.b16 %v6325, %v6317
    %v7870 = vpack.c.b16 %v6326, %v6318
    %v7871 = vpack.c.b16 %v6327, %v6319
    %v7872 = vpack.c.b16 %v6328, %v6320
    %v7873 = vpack.c.b16 %v6329, %v6321
    %v7874 = vpack.c.b16 %v6330, %v6322
    %v7875 = vpack.c.b16 %v6339, %v6331
    %v7876 = vpack.c.b16 %v6340, %v6332
    %v7877 = vpack.c.b16 %v6341, %v6333
    %v7878 = vpack.c.b16 %v6342, %v6334
    %v7879 = vpack.c.b16 %v6343, %v6335
    %v7880 = vpack.c.b16 %v6344, %v6336
    %v7881 = vpack.c.b16 %v6345, %v6337
    %v7882 = vpack.c.b16 %v6346, %v6338
    %9419 = vmatprep.subr.bf16.mxu0 %v6348
    %9420 = vmatpush1.bf16.xpose.msra.mxu0 %v6347
    %9421 = vmatprep.subr.bf16.mxu0 %v6356
    %9422 = vmatpush1.bf16.xpose.msra.mxu0 %v6355
    %9423 = vmatprep.subr.bf16.mxu0 %v6364
    %9424 = vmatpush1.bf16.xpose.msra.mxu0 %v6363
    %9425 = vmatprep.subr.bf16.mxu0 %v6372
    %9426 = vmatpush1.bf16.xpose.msra.mxu0 %v6371
    %9427 = vmatprep.subr.bf16.mxu0 %v6380
    %9428 = vmatpush1.bf16.xpose.msra.mxu0 %v6379
    %9429 = vmatprep.subr.bf16.mxu0 %v6388
    %9430 = vmatpush1.bf16.xpose.msra.mxu0 %v6387
    %9431 = vmatprep.subr.bf16.mxu0 %v6396
    %9432 = vmatpush1.bf16.xpose.msra.mxu0 %v6395
    %9433 = vmatprep.subr.bf16.mxu0 %v6404
    %9434 = vmatpush1.bf16.xpose.msra.mxu0 %v6403
    %9435 = vmatprep.subr.bf16.mxu0 %v6412
    %9436 = vmatpush1.bf16.xpose.msra.mxu0 %v6411
    %9437 = vmatprep.subr.bf16.mxu0 %v6420
    %9438 = vmatpush1.bf16.xpose.msra.mxu0 %v6419
    %9439 = vmatprep.subr.bf16.mxu0 %v6428
    %9440 = vmatpush1.bf16.xpose.msra.mxu0 %v6427
    %9441 = vmatprep.subr.bf16.mxu0 %v6436
    %9442 = vmatpush1.bf16.xpose.msra.mxu0 %v6435
    %9443 = vmatprep.subr.bf16.mxu0 %v6444
    %9444 = vmatpush1.bf16.xpose.msra.mxu0 %v6443
    %9445 = vmatprep.subr.bf16.mxu0 %v6452
    %9446 = vmatpush1.bf16.xpose.msra.mxu0 %v6451
    %9447 = vmatprep.subr.bf16.mxu0 %v6460
    %9448 = vmatpush1.bf16.xpose.msra.mxu0 %v6459
    %9449 = vmatprep.subr.bf16.mxu0 %v6468
    %9450 = vmatpush1.bf16.xpose.msra.mxu0 %v6467
    %9451 = vmatprep.mubr.bf16.mxu0 %v70
    %9452 = vmatmul.mubr.bf16.gmra.mrb[0].mxu0 %v69
    %v9453 = vpop.f32.mrb[0].mxu0
    %v9454 = vadd.f32 %v1622, %v9453
    %v9455 = vpop.f32.mrb[0].mxu0
    %v9456 = vadd.f32 %v1626, %v9455
    %v9457 = vpop.f32.mrb[0].mxu0
    %v9458 = vadd.f32 %v1622, %v9457
    %v9459 = vpop.f32.mrb[0].mxu0
    %v9460 = vadd.f32 %v1626, %v9459
    %9461 = vdwg.mxu0
    %9462 = vmatprep.subr.bf16.mxu0 %v6350
    %9463 = vmatpush1.bf16.xpose.msra.mxu0 %v6349
    %9464 = vmatprep.subr.bf16.mxu0 %v6358
    %9465 = vmatpush1.bf16.xpose.msra.mxu0 %v6357
    %9466 = vmatprep.subr.bf16.mxu0 %v6366
    %9467 = vmatpush1.bf16.xpose.msra.mxu0 %v6365
    %9468 = vmatprep.subr.bf16.mxu0 %v6374
    %9469 = vmatpush1.bf16.xpose.msra.mxu0 %v6373
    %9470 = vmatprep.subr.bf16.mxu0 %v6382
    %9471 = vmatpush1.bf16.xpose.msra.mxu0 %v6381
    %9472 = vmatprep.subr.bf16.mxu0 %v6390
    %9473 = vmatpush1.bf16.xpose.msra.mxu0 %v6389
    %9474 = vmatprep.subr.bf16.mxu0 %v6398
    %9475 = vmatpush1.bf16.xpose.msra.mxu0 %v6397
    %9476 = vmatprep.subr.bf16.mxu0 %v6406
    %9477 = vmatpush1.bf16.xpose.msra.mxu0 %v6405
    %9478 = vmatprep.subr.bf16.mxu0 %v6414
    %9479 = vmatpush1.bf16.xpose.msra.mxu0 %v6413
    %9480 = vmatprep.subr.bf16.mxu0 %v6422
    %9481 = vmatpush1.bf16.xpose.msra.mxu0 %v6421
    %9482 = vmatprep.subr.bf16.mxu0 %v6430
    %9483 = vmatpush1.bf16.xpose.msra.mxu0 %v6429
    %9484 = vmatprep.subr.bf16.mxu0 %v6438
    %9485 = vmatpush1.bf16.xpose.msra.mxu0 %v6437
    %9486 = vmatprep.subr.bf16.mxu0 %v6446
    %9487 = vmatpush1.bf16.xpose.msra.mxu0 %v6445
    %9488 = vmatprep.subr.bf16.mxu0 %v6454
    %9489 = vmatpush1.bf16.xpose.msra.mxu0 %v6453
    %9490 = vmatprep.subr.bf16.mxu0 %v6462
    %9491 = vmatpush1.bf16.xpose.msra.mxu0 %v6461
    %9492 = vmatprep.subr.bf16.mxu0 %v6470
    %9493 = vmatpush1.bf16.xpose.msra.mxu0 %v6469
    %9494 = vmatprep.mubr.bf16.mxu0 %v72
    %9495 = vmatmul.mubr.bf16.gmra.mrb[0].mxu0 %v71
    %v9496 = vpop.f32.mrb[0].mxu0
    %v9497 = vadd.f32 %v9454, %v9496
    %v9498 = vpop.f32.mrb[0].mxu0
    %v9499 = vadd.f32 %v9456, %v9498
    %v9500 = vpop.f32.mrb[0].mxu0
    %v9501 = vadd.f32 %v9458, %v9500
    %v9502 = vpop.f32.mrb[0].mxu0
    %v9503 = vadd.f32 %v9460, %v9502
    %9504 = vdwg.mxu0
    %9505 = vmatprep.subr.bf16.mxu0 %v6352
    %9506 = vmatpush1.bf16.xpose.msra.mxu0 %v6351
    %9507 = vmatprep.subr.bf16.mxu0 %v6360
    %9508 = vmatpush1.bf16.xpose.msra.mxu0 %v6359
    %9509 = vmatprep.subr.bf16.mxu0 %v6368
    %9510 = vmatpush1.bf16.xpose.msra.mxu0 %v6367
    %9511 = vmatprep.subr.bf16.mxu0 %v6376
    %9512 = vmatpush1.bf16.xpose.msra.mxu0 %v6375
    %9513 = vmatprep.subr.bf16.mxu0 %v6384
    %9514 = vmatpush1.bf16.xpose.msra.mxu0 %v6383
    %9515 = vmatprep.subr.bf16.mxu0 %v6392
    %9516 = vmatpush1.bf16.xpose.msra.mxu0 %v6391
    %9517 = vmatprep.subr.bf16.mxu0 %v6400
    %9518 = vmatpush1.bf16.xpose.msra.mxu0 %v6399
    %9519 = vmatprep.subr.bf16.mxu0 %v6408
    %9520 = vmatpush1.bf16.xpose.msra.mxu0 %v6407
    %9521 = vmatprep.subr.bf16.mxu0 %v6416
    %9522 = vmatpush1.bf16.xpose.msra.mxu0 %v6415
    %9523 = vmatprep.subr.bf16.mxu0 %v6424
    %9524 = vmatpush1.bf16.xpose.msra.mxu0 %v6423
    %9525 = vmatprep.subr.bf16.mxu0 %v6432
    %9526 = vmatpush1.bf16.xpose.msra.mxu0 %v6431
    %9527 = vmatprep.subr.bf16.mxu0 %v6440
    %9528 = vmatpush1.bf16.xpose.msra.mxu0 %v6439
    %9529 = vmatprep.subr.bf16.mxu0 %v6448
    %9530 = vmatpush1.bf16.xpose.msra.mxu0 %v6447
    %9531 = vmatprep.subr.bf16.mxu0 %v6456
    %9532 = vmatpush1.bf16.xpose.msra.mxu0 %v6455
    %9533 = vmatprep.subr.bf16.mxu0 %v6464
    %9534 = vmatpush1.bf16.xpose.msra.mxu0 %v6463
    %9535 = vmatprep.subr.bf16.mxu0 %v6472
    %9536 = vmatpush1.bf16.xpose.msra.mxu0 %v6471
    %9537 = vmatprep.mubr.bf16.mxu0 %v74
    %9538 = vmatmul.mubr.bf16.gmra.mrb[0].mxu0 %v73
    %v9539 = vpop.f32.mrb[0].mxu0
    %v9540 = vadd.f32 %v9497, %v9539
    %v9541 = vpop.f32.mrb[0].mxu0
    %v9542 = vadd.f32 %v9499, %v9541
    %v9543 = vpop.f32.mrb[0].mxu0
    %v9544 = vadd.f32 %v9501, %v9543
    %v9545 = vpop.f32.mrb[0].mxu0
    %v9546 = vadd.f32 %v9503, %v9545
    %9547 = vdwg.mxu0
    %9548 = vmatprep.subr.bf16.mxu0 %v6354
    %9549 = vmatpush1.bf16.xpose.msra.mxu0 %v6353
    %9550 = vmatprep.subr.bf16.mxu0 %v6362
    %9551 = vmatpush1.bf16.xpose.msra.mxu0 %v6361
    %9552 = vmatprep.subr.bf16.mxu0 %v6370
    %9553 = vmatpush1.bf16.xpose.msra.mxu0 %v6369
    %9554 = vmatprep.subr.bf16.mxu0 %v6378
    %9555 = vmatpush1.bf16.xpose.msra.mxu0 %v6377
    %9556 = vmatprep.subr.bf16.mxu0 %v6386
    %9557 = vmatpush1.bf16.xpose.msra.mxu0 %v6385
    %9558 = vmatprep.subr.bf16.mxu0 %v6394
    %9559 = vmatpush1.bf16.xpose.msra.mxu0 %v6393
    %9560 = vmatprep.subr.bf16.mxu0 %v6402
    %9561 = vmatpush1.bf16.xpose.msra.mxu0 %v6401
    %9562 = vmatprep.subr.bf16.mxu0 %v6410
    %9563 = vmatpush1.bf16.xpose.msra.mxu0 %v6409
    %9564 = vmatprep.subr.bf16.mxu0 %v6418
    %9565 = vmatpush1.bf16.xpose.msra.mxu0 %v6417
    %9566 = vmatprep.subr.bf16.mxu0 %v6426
    %9567 = vmatpush1.bf16.xpose.msra.mxu0 %v6425
    %9568 = vmatprep.subr.bf16.mxu0 %v6434
    %9569 = vmatpush1.bf16.xpose.msra.mxu0 %v6433
    %9570 = vmatprep.subr.bf16.mxu0 %v6442
    %9571 = vmatpush1.bf16.xpose.msra.mxu0 %v6441
    %9572 = vmatprep.subr.bf16.mxu0 %v6450
    %9573 = vmatpush1.bf16.xpose.msra.mxu0 %v6449
    %9574 = vmatprep.subr.bf16.mxu0 %v6458
    %9575 = vmatpush1.bf16.xpose.msra.mxu0 %v6457
    %9576 = vmatprep.subr.bf16.mxu0 %v6466
    %9577 = vmatpush1.bf16.xpose.msra.mxu0 %v6465
    %9578 = vmatprep.subr.bf16.mxu0 %v6474
    %9579 = vmatpush1.bf16.xpose.msra.mxu0 %v6473
    %9580 = vmatprep.mubr.bf16.mxu0 %v76
    %9581 = vmatmul.mubr.bf16.gmra.mrb[0].mxu0 %v75
    %v9582 = vpop.f32.mrb[0].mxu0
    %v9583 = vadd.f32 %v9540, %v9582
    %v9584 = vpop.f32.mrb[0].mxu0
    %v9585 = vadd.f32 %v9542, %v9584
    %v9586 = vpop.f32.mrb[0].mxu0
    %v9587 = vadd.f32 %v9544, %v9586
    %v9588 = vpop.f32.mrb[0].mxu0
    %v9589 = vadd.f32 %v9546, %v9588
    %9590 = vdwg.mxu0
    %9591 = vmatprep.subr.bf16.mxu0 %v6476
    %9592 = vmatpush1.bf16.xpose.msra.mxu0 %v6475
    %9593 = vmatprep.subr.bf16.mxu0 %v6484
    %9594 = vmatpush1.bf16.xpose.msra.mxu0 %v6483
    %9595 = vmatprep.subr.bf16.mxu0 %v6492
    %9596 = vmatpush1.bf16.xpose.msra.mxu0 %v6491
    %9597 = vmatprep.subr.bf16.mxu0 %v6500
    %9598 = vmatpush1.bf16.xpose.msra.mxu0 %v6499
    %9599 = vmatprep.subr.bf16.mxu0 %v6508
    %9600 = vmatpush1.bf16.xpose.msra.mxu0 %v6507
    %9601 = vmatprep.subr.bf16.mxu0 %v6516
    %9602 = vmatpush1.bf16.xpose.msra.mxu0 %v6515
    %9603 = vmatprep.subr.bf16.mxu0 %v6524
    %9604 = vmatpush1.bf16.xpose.msra.mxu0 %v6523
    %9605 = vmatprep.subr.bf16.mxu0 %v6532
    %9606 = vmatpush1.bf16.xpose.msra.mxu0 %v6531
    %9607 = vmatprep.subr.bf16.mxu0 %v6540
    %9608 = vmatpush1.bf16.xpose.msra.mxu0 %v6539
    %9609 = vmatprep.subr.bf16.mxu0 %v6548
    %9610 = vmatpush1.bf16.xpose.msra.mxu0 %v6547
    %9611 = vmatprep.subr.bf16.mxu0 %v6556
    %9612 = vmatpush1.bf16.xpose.msra.mxu0 %v6555
    %9613 = vmatprep.subr.bf16.mxu0 %v6564
    %9614 = vmatpush1.bf16.xpose.msra.mxu0 %v6563
    %9615 = vmatprep.subr.bf16.mxu0 %v6572
    %9616 = vmatpush1.bf16.xpose.msra.mxu0 %v6571
    %9617 = vmatprep.subr.bf16.mxu0 %v6580
    %9618 = vmatpush1.bf16.xpose.msra.mxu0 %v6579
    %9619 = vmatprep.subr.bf16.mxu0 %v6588
    %9620 = vmatpush1.bf16.xpose.msra.mxu0 %v6587
    %9621 = vmatprep.subr.bf16.mxu0 %v6596
    %9622 = vmatpush1.bf16.xpose.msra.mxu0 %v6595
    %9623 = vmatprep.mubr.bf16.mxu0 %v70
    %9624 = vmatmul.mubr.bf16.gmra.mrb[0].mxu0 %v69
    %v9625 = vpop.f32.mrb[0].mxu0
    %v9626 = vadd.f32 %v1630, %v9625
    %v9627 = vpop.f32.mrb[0].mxu0
    %v9628 = vadd.f32 %v1634, %v9627
    %v9629 = vpop.f32.mrb[0].mxu0
    %v9630 = vadd.f32 %v1630, %v9629
    %v9631 = vpop.f32.mrb[0].mxu0
    %v9632 = vadd.f32 %v1634, %v9631
    %9633 = vdwg.mxu0
    %9634 = vmatprep.subr.bf16.mxu0 %v6478
    %9635 = vmatpush1.bf16.xpose.msra.mxu0 %v6477
    %9636 = vmatprep.subr.bf16.mxu0 %v6486
    %9637 = vmatpush1.bf16.xpose.msra.mxu0 %v6485
    %9638 = vmatprep.subr.bf16.mxu0 %v6494
    %9639 = vmatpush1.bf16.xpose.msra.mxu0 %v6493
    %9640 = vmatprep.subr.bf16.mxu0 %v6502
    %9641 = vmatpush1.bf16.xpose.msra.mxu0 %v6501
    %9642 = vmatprep.subr.bf16.mxu0 %v6510
    %9643 = vmatpush1.bf16.xpose.msra.mxu0 %v6509
    %9644 = vmatprep.subr.bf16.mxu0 %v6518
    %9645 = vmatpush1.bf16.xpose.msra.mxu0 %v6517
    %9646 = vmatprep.subr.bf16.mxu0 %v6526
    %9647 = vmatpush1.bf16.xpose.msra.mxu0 %v6525
    %9648 = vmatprep.subr.bf16.mxu0 %v6534
    %9649 = vmatpush1.bf16.xpose.msra.mxu0 %v6533
    %9650 = vmatprep.subr.bf16.mxu0 %v6542
    %9651 = vmatpush1.bf16.xpose.msra.mxu0 %v6541
    %9652 = vmatprep.subr.bf16.mxu0 %v6550
    %9653 = vmatpush1.bf16.xpose.msra.mxu0 %v6549
    %9654 = vmatprep.subr.bf16.mxu0 %v6558
    %9655 = vmatpush1.bf16.xpose.msra.mxu0 %v6557
    %9656 = vmatprep.subr.bf16.mxu0 %v6566
    %9657 = vmatpush1.bf16.xpose.msra.mxu0 %v6565
    %9658 = vmatprep.subr.bf16.mxu0 %v6574
    %9659 = vmatpush1.bf16.xpose.msra.mxu0 %v6573
    %9660 = vmatprep.subr.bf16.mxu0 %v6582
    %9661 = vmatpush1.bf16.xpose.msra.mxu0 %v6581
    %9662 = vmatprep.subr.bf16.mxu0 %v6590
    %9663 = vmatpush1.bf16.xpose.msra.mxu0 %v6589
    %9664 = vmatprep.subr.bf16.mxu0 %v6598
    %9665 = vmatpush1.bf16.xpose.msra.mxu0 %v6597
    %9666 = vmatprep.mubr.bf16.mxu0 %v72
    %9667 = vmatmul.mubr.bf16.gmra.mrb[0].mxu0 %v71
    %v9668 = vpop.f32.mrb[0].mxu0
    %v9669 = vadd.f32 %v9626, %v9668
    %v9670 = vpop.f32.mrb[0].mxu0
    %v9671 = vadd.f32 %v9628, %v9670
    %v9672 = vpop.f32.mrb[0].mxu0
    %v9673 = vadd.f32 %v9630, %v9672
    %v9674 = vpop.f32.mrb[0].mxu0
    %v9675 = vadd.f32 %v9632, %v9674
    %9676 = vdwg.mxu0
    %9677 = vmatprep.subr.bf16.mxu0 %v6480
    %9678 = vmatpush1.bf16.xpose.msra.mxu0 %v6479
    %9679 = vmatprep.subr.bf16.mxu0 %v6488
    %9680 = vmatpush1.bf16.xpose.msra.mxu0 %v6487
    %9681 = vmatprep.subr.bf16.mxu0 %v6496
    %9682 = vmatpush1.bf16.xpose.msra.mxu0 %v6495
    %9683 = vmatprep.subr.bf16.mxu0 %v6504
    %9684 = vmatpush1.bf16.xpose.msra.mxu0 %v6503
    %9685 = vmatprep.subr.bf16.mxu0 %v6512
    %9686 = vmatpush1.bf16.xpose.msra.mxu0 %v6511
    %9687 = vmatprep.subr.bf16.mxu0 %v6520
    %9688 = vmatpush1.bf16.xpose.msra.mxu0 %v6519
    %9689 = vmatprep.subr.bf16.mxu0 %v6528
    %9690 = vmatpush1.bf16.xpose.msra.mxu0 %v6527
    %9691 = vmatprep.subr.bf16.mxu0 %v6536
    %9692 = vmatpush1.bf16.xpose.msra.mxu0 %v6535
    %9693 = vmatprep.subr.bf16.mxu0 %v6544
    %9694 = vmatpush1.bf16.xpose.msra.mxu0 %v6543
    %9695 = vmatprep.subr.bf16.mxu0 %v6552
    %9696 = vmatpush1.bf16.xpose.msra.mxu0 %v6551
    %9697 = vmatprep.subr.bf16.mxu0 %v6560
    %9698 = vmatpush1.bf16.xpose.msra.mxu0 %v6559
    %9699 = vmatprep.subr.bf16.mxu0 %v6568
    %9700 = vmatpush1.bf16.xpose.msra.mxu0 %v6567
    %9701 = vmatprep.subr.bf16.mxu0 %v6576
    %9702 = vmatpush1.bf16.xpose.msra.mxu0 %v6575
    %9703 = vmatprep.subr.bf16.mxu0 %v6584
    %9704 = vmatpush1.bf16.xpose.msra.mxu0 %v6583
    %9705 = vmatprep.subr.bf16.mxu0 %v6592
    %9706 = vmatpush1.bf16.xpose.msra.mxu0 %v6591
    %9707 = vmatprep.subr.bf16.mxu0 %v6600
    %9708 = vmatpush1.bf16.xpose.msra.mxu0 %v6599
    %9709 = vmatprep.mubr.bf16.mxu0 %v74
    %9710 = vmatmul.mubr.bf16.gmra.mrb[0].mxu0 %v73
    %v9711 = vpop.f32.mrb[0].mxu0
    %v9712 = vadd.f32 %v9669, %v9711
    %v9713 = vpop.f32.mrb[0].mxu0
    %v9714 = vadd.f32 %v9671, %v9713
    %v9715 = vpop.f32.mrb[0].mxu0
    %v9716 = vadd.f32 %v9673, %v9715
    %v9717 = vpop.f32.mrb[0].mxu0
    %v9718 = vadd.f32 %v9675, %v9717
    %9719 = vdwg.mxu0
    %9720 = vmatprep.subr.bf16.mxu0 %v6482
    %9721 = vmatpush1.bf16.xpose.msra.mxu0 %v6481
    %9722 = vmatprep.subr.bf16.mxu0 %v6490
    %9723 = vmatpush1.bf16.xpose.msra.mxu0 %v6489
    %9724 = vmatprep.subr.bf16.mxu0 %v6498
    %9725 = vmatpush1.bf16.xpose.msra.mxu0 %v6497
    %9726 = vmatprep.subr.bf16.mxu0 %v6506
    %9727 = vmatpush1.bf16.xpose.msra.mxu0 %v6505
    %9728 = vmatprep.subr.bf16.mxu0 %v6514
    %9729 = vmatpush1.bf16.xpose.msra.mxu0 %v6513
    %9730 = vmatprep.subr.bf16.mxu0 %v6522
    %9731 = vmatpush1.bf16.xpose.msra.mxu0 %v6521
    %9732 = vmatprep.subr.bf16.mxu0 %v6530
    %9733 = vmatpush1.bf16.xpose.msra.mxu0 %v6529
    %9734 = vmatprep.subr.bf16.mxu0 %v6538
    %9735 = vmatpush1.bf16.xpose.msra.mxu0 %v6537
    %9736 = vmatprep.subr.bf16.mxu0 %v6546
    %9737 = vmatpush1.bf16.xpose.msra.mxu0 %v6545
    %9738 = vmatprep.subr.bf16.mxu0 %v6554
    %9739 = vmatpush1.bf16.xpose.msra.mxu0 %v6553
    %9740 = vmatprep.subr.bf16.mxu0 %v6562
    %9741 = vmatpush1.bf16.xpose.msra.mxu0 %v6561
    %9742 = vmatprep.subr.bf16.mxu0 %v6570
    %9743 = vmatpush1.bf16.xpose.msra.mxu0 %v6569
    %9744 = vmatprep.subr.bf16.mxu0 %v6578
    %9745 = vmatpush1.bf16.xpose.msra.mxu0 %v6577
    %9746 = vmatprep.subr.bf16.mxu0 %v6586
    %9747 = vmatpush1.bf16.xpose.msra.mxu0 %v6585
    %9748 = vmatprep.subr.bf16.mxu0 %v6594
    %9749 = vmatpush1.bf16.xpose.msra.mxu0 %v6593
    %9750 = vmatprep.subr.bf16.mxu0 %v6602
    %9751 = vmatpush1.bf16.xpose.msra.mxu0 %v6601
    %9752 = vmatprep.mubr.bf16.mxu0 %v76
    %9753 = vmatmul.mubr.bf16.gmra.mrb[0].mxu0 %v75
    %v9754 = vpop.f32.mrb[0].mxu0
    %v9755 = vadd.f32 %v9712, %v9754
    %v9756 = vpop.f32.mrb[0].mxu0
    %v9757 = vadd.f32 %v9714, %v9756
    %v9758 = vpop.f32.mrb[0].mxu0
    %v9759 = vadd.f32 %v9716, %v9758
    %v9760 = vpop.f32.mrb[0].mxu0
    %v9761 = vadd.f32 %v9718, %v9760
    %9762 = vdwg.mxu0
    %9763 = vmatprep.subr.bf16.mxu0 %v6604
    %9764 = vmatpush1.bf16.xpose.msra.mxu0 %v6603
    %9765 = vmatprep.subr.bf16.mxu0 %v6612
    %9766 = vmatpush1.bf16.xpose.msra.mxu0 %v6611
    %9767 = vmatprep.subr.bf16.mxu0 %v6620
    %9768 = vmatpush1.bf16.xpose.msra.mxu0 %v6619
    %9769 = vmatprep.subr.bf16.mxu0 %v6628
    %9770 = vmatpush1.bf16.xpose.msra.mxu0 %v6627
    %9771 = vmatprep.subr.bf16.mxu0 %v6636
    %9772 = vmatpush1.bf16.xpose.msra.mxu0 %v6635
    %9773 = vmatprep.subr.bf16.mxu0 %v6644
    %9774 = vmatpush1.bf16.xpose.msra.mxu0 %v6643
    %9775 = vmatprep.subr.bf16.mxu0 %v6652
    %9776 = vmatpush1.bf16.xpose.msra.mxu0 %v6651
    %9777 = vmatprep.subr.bf16.mxu0 %v6660
    %9778 = vmatpush1.bf16.xpose.msra.mxu0 %v6659
    %9779 = vmatprep.subr.bf16.mxu0 %v6668
    %9780 = vmatpush1.bf16.xpose.msra.mxu0 %v6667
    %9781 = vmatprep.subr.bf16.mxu0 %v6676
    %9782 = vmatpush1.bf16.xpose.msra.mxu0 %v6675
    %9783 = vmatprep.subr.bf16.mxu0 %v6684
    %9784 = vmatpush1.bf16.xpose.msra.mxu0 %v6683
    %9785 = vmatprep.subr.bf16.mxu0 %v6692
    %9786 = vmatpush1.bf16.xpose.msra.mxu0 %v6691
    %9787 = vmatprep.subr.bf16.mxu0 %v6700
    %9788 = vmatpush1.bf16.xpose.msra.mxu0 %v6699
    %9789 = vmatprep.subr.bf16.mxu0 %v6708
    %9790 = vmatpush1.bf16.xpose.msra.mxu0 %v6707
    %9791 = vmatprep.subr.bf16.mxu0 %v6716
    %9792 = vmatpush1.bf16.xpose.msra.mxu0 %v6715
    %9793 = vmatprep.subr.bf16.mxu0 %v6724
    %9794 = vmatpush1.bf16.xpose.msra.mxu0 %v6723
    %9795 = vmatprep.mubr.bf16.mxu0 %v70
    %9796 = vmatmul.mubr.bf16.gmra.mrb[0].mxu0 %v69
    %v9797 = vpop.f32.mrb[0].mxu0
    %v9798 = vadd.f32 %v1638, %v9797
    %v9799 = vpop.f32.mrb[0].mxu0
    %v9800 = vadd.f32 %v1642, %v9799
    %v9801 = vpop.f32.mrb[0].mxu0
    %v9802 = vadd.f32 %v1638, %v9801
    %v9803 = vpop.f32.mrb[0].mxu0
    %v9804 = vadd.f32 %v1642, %v9803
    %9805 = vdwg.mxu0
    %9806 = vmatprep.subr.bf16.mxu0 %v6606
    %9807 = vmatpush1.bf16.xpose.msra.mxu0 %v6605
    %9808 = vmatprep.subr.bf16.mxu0 %v6614
    %9809 = vmatpush1.bf16.xpose.msra.mxu0 %v6613
    %9810 = vmatprep.subr.bf16.mxu0 %v6622
    %9811 = vmatpush1.bf16.xpose.msra.mxu0 %v6621
    %9812 = vmatprep.subr.bf16.mxu0 %v6630
    %9813 = vmatpush1.bf16.xpose.msra.mxu0 %v6629
    %9814 = vmatprep.subr.bf16.mxu0 %v6638
    %9815 = vmatpush1.bf16.xpose.msra.mxu0 %v6637
    %9816 = vmatprep.subr.bf16.mxu0 %v6646
    %9817 = vmatpush1.bf16.xpose.msra.mxu0 %v6645
    %9818 = vmatprep.subr.bf16.mxu0 %v6654
    %9819 = vmatpush1.bf16.xpose.msra.mxu0 %v6653
    %9820 = vmatprep.subr.bf16.mxu0 %v6662
    %9821 = vmatpush1.bf16.xpose.msra.mxu0 %v6661
    %9822 = vmatprep.subr.bf16.mxu0 %v6670
    %9823 = vmatpush1.bf16.xpose.msra.mxu0 %v6669
    %9824 = vmatprep.subr.bf16.mxu0 %v6678
    %9825 = vmatpush1.bf16.xpose.msra.mxu0 %v6677
    %9826 = vmatprep.subr.bf16.mxu0 %v6686
    %9827 = vmatpush1.bf16.xpose.msra.mxu0 %v6685
    %9828 = vmatprep.subr.bf16.mxu0 %v6694
    %9829 = vmatpush1.bf16.xpose.msra.mxu0 %v6693
    %9830 = vmatprep.subr.bf16.mxu0 %v6702
    %9831 = vmatpush1.bf16.xpose.msra.mxu0 %v6701
    %9832 = vmatprep.subr.bf16.mxu0 %v6710
    %9833 = vmatpush1.bf16.xpose.msra.mxu0 %v6709
    %9834 = vmatprep.subr.bf16.mxu0 %v6718
    %9835 = vmatpush1.bf16.xpose.msra.mxu0 %v6717
    %9836 = vmatprep.subr.bf16.mxu0 %v6726
    %9837 = vmatpush1.bf16.xpose.msra.mxu0 %v6725
    %9838 = vmatprep.mubr.bf16.mxu0 %v72
    %9839 = vmatmul.mubr.bf16.gmra.mrb[0].mxu0 %v71
    %v9840 = vpop.f32.mrb[0].mxu0
    %v9841 = vadd.f32 %v9798, %v9840
    %v9842 = vpop.f32.mrb[0].mxu0
    %v9843 = vadd.f32 %v9800, %v9842
    %v9844 = vpop.f32.mrb[0].mxu0
    %v9845 = vadd.f32 %v9802, %v9844
    %v9846 = vpop.f32.mrb[0].mxu0
    %v9847 = vadd.f32 %v9804, %v9846
    %9848 = vdwg.mxu0
    %9849 = vmatprep.subr.bf16.mxu0 %v6608
    %9850 = vmatpush1.bf16.xpose.msra.mxu0 %v6607
    %9851 = vmatprep.subr.bf16.mxu0 %v6616
    %9852 = vmatpush1.bf16.xpose.msra.mxu0 %v6615
    %9853 = vmatprep.subr.bf16.mxu0 %v6624
    %9854 = vmatpush1.bf16.xpose.msra.mxu0 %v6623
    %9855 = vmatprep.subr.bf16.mxu0 %v6632
    %9856 = vmatpush1.bf16.xpose.msra.mxu0 %v6631
    %9857 = vmatprep.subr.bf16.mxu0 %v6640
    %9858 = vmatpush1.bf16.xpose.msra.mxu0 %v6639
    %9859 = vmatprep.subr.bf16.mxu0 %v6648
    %9860 = vmatpush1.bf16.xpose.msra.mxu0 %v6647
    %9861 = vmatprep.subr.bf16.mxu0 %v6656
    %9862 = vmatpush1.bf16.xpose.msra.mxu0 %v6655
    %9863 = vmatprep.subr.bf16.mxu0 %v6664
    %9864 = vmatpush1.bf16.xpose.msra.mxu0 %v6663
    %9865 = vmatprep.subr.bf16.mxu0 %v6672
    %9866 = vmatpush1.bf16.xpose.msra.mxu0 %v6671
    %9867 = vmatprep.subr.bf16.mxu0 %v6680
    %9868 = vmatpush1.bf16.xpose.msra.mxu0 %v6679
    %9869 = vmatprep.subr.bf16.mxu0 %v6688
    %9870 = vmatpush1.bf16.xpose.msra.mxu0 %v6687
    %9871 = vmatprep.subr.bf16.mxu0 %v6696
    %9872 = vmatpush1.bf16.xpose.msra.mxu0 %v6695
    %9873 = vmatprep.subr.bf16.mxu0 %v6704
    %9874 = vmatpush1.bf16.xpose.msra.mxu0 %v6703
    %9875 = vmatprep.subr.bf16.mxu0 %v6712
    %9876 = vmatpush1.bf16.xpose.msra.mxu0 %v6711
    %9877 = vmatprep.subr.bf16.mxu0 %v6720
    %9878 = vmatpush1.bf16.xpose.msra.mxu0 %v6719
    %9879 = vmatprep.subr.bf16.mxu0 %v6728
    %9880 = vmatpush1.bf16.xpose.msra.mxu0 %v6727
    %9881 = vmatprep.mubr.bf16.mxu0 %v74
    %9882 = vmatmul.mubr.bf16.gmra.mrb[0].mxu0 %v73
    %v9883 = vpop.f32.mrb[0].mxu0
    %v9884 = vadd.f32 %v9841, %v9883
    %v9885 = vpop.f32.mrb[0].mxu0
    %v9886 = vadd.f32 %v9843, %v9885
    %v9887 = vpop.f32.mrb[0].mxu0
    %v9888 = vadd.f32 %v9845, %v9887
    %v9889 = vpop.f32.mrb[0].mxu0
    %v9890 = vadd.f32 %v9847, %v9889
    %9891 = vdwg.mxu0
    %9892 = vmatprep.subr.bf16.mxu0 %v6610
    %9893 = vmatpush1.bf16.xpose.msra.mxu0 %v6609
    %9894 = vmatprep.subr.bf16.mxu0 %v6618
    %9895 = vmatpush1.bf16.xpose.msra.mxu0 %v6617
    %9896 = vmatprep.subr.bf16.mxu0 %v6626
    %9897 = vmatpush1.bf16.xpose.msra.mxu0 %v6625
    %9898 = vmatprep.subr.bf16.mxu0 %v6634
    %9899 = vmatpush1.bf16.xpose.msra.mxu0 %v6633
    %9900 = vmatprep.subr.bf16.mxu0 %v6642
    %9901 = vmatpush1.bf16.xpose.msra.mxu0 %v6641
    %9902 = vmatprep.subr.bf16.mxu0 %v6650
    %9903 = vmatpush1.bf16.xpose.msra.mxu0 %v6649
    %9904 = vmatprep.subr.bf16.mxu0 %v6658
    %9905 = vmatpush1.bf16.xpose.msra.mxu0 %v6657
    %9906 = vmatprep.subr.bf16.mxu0 %v6666
    %9907 = vmatpush1.bf16.xpose.msra.mxu0 %v6665
    %9908 = vmatprep.subr.bf16.mxu0 %v6674
    %9909 = vmatpush1.bf16.xpose.msra.mxu0 %v6673
    %9910 = vmatprep.subr.bf16.mxu0 %v6682
    %9911 = vmatpush1.bf16.xpose.msra.mxu0 %v6681
    %9912 = vmatprep.subr.bf16.mxu0 %v6690
    %9913 = vmatpush1.bf16.xpose.msra.mxu0 %v6689
    %9914 = vmatprep.subr.bf16.mxu0 %v6698
    %9915 = vmatpush1.bf16.xpose.msra.mxu0 %v6697
    %9916 = vmatprep.subr.bf16.mxu0 %v6706
    %9917 = vmatpush1.bf16.xpose.msra.mxu0 %v6705
    %9918 = vmatprep.subr.bf16.mxu0 %v6714
    %9919 = vmatpush1.bf16.xpose.msra.mxu0 %v6713
    %9920 = vmatprep.subr.bf16.mxu0 %v6722
    %9921 = vmatpush1.bf16.xpose.msra.mxu0 %v6721
    %9922 = vmatprep.subr.bf16.mxu0 %v6730
    %9923 = vmatpush1.bf16.xpose.msra.mxu0 %v6729
    %9924 = vmatprep.mubr.bf16.mxu0 %v76
    %9925 = vmatmul.mubr.bf16.gmra.mrb[0].mxu0 %v75
    %v9926 = vpop.f32.mrb[0].mxu0
    %v9927 = vadd.f32 %v9884, %v9926
    %v9928 = vpop.f32.mrb[0].mxu0
    %v9929 = vadd.f32 %v9886, %v9928
    %v9930 = vpop.f32.mrb[0].mxu0
    %v9931 = vadd.f32 %v9888, %v9930
    %v9932 = vpop.f32.mrb[0].mxu0
    %v9933 = vadd.f32 %v9890, %v9932
    %9934 = vdwg.mxu0
    %9935 = vmatprep.subr.bf16.mxu0 %v6732
    %9936 = vmatpush1.bf16.xpose.msra.mxu0 %v6731
    %9937 = vmatprep.subr.bf16.mxu0 %v6740
    %9938 = vmatpush1.bf16.xpose.msra.mxu0 %v6739
    %9939 = vmatprep.subr.bf16.mxu0 %v6748
    %9940 = vmatpush1.bf16.xpose.msra.mxu0 %v6747
    %9941 = vmatprep.subr.bf16.mxu0 %v6756
    %9942 = vmatpush1.bf16.xpose.msra.mxu0 %v6755
    %9943 = vmatprep.subr.bf16.mxu0 %v6764
    %9944 = vmatpush1.bf16.xpose.msra.mxu0 %v6763
    %9945 = vmatprep.subr.bf16.mxu0 %v6772
    %9946 = vmatpush1.bf16.xpose.msra.mxu0 %v6771
    %9947 = vmatprep.subr.bf16.mxu0 %v6780
    %9948 = vmatpush1.bf16.xpose.msra.mxu0 %v6779
    %9949 = vmatprep.subr.bf16.mxu0 %v6788
    %9950 = vmatpush1.bf16.xpose.msra.mxu0 %v6787
    %9951 = vmatprep.subr.bf16.mxu0 %v6796
    %9952 = vmatpush1.bf16.xpose.msra.mxu0 %v6795
    %9953 = vmatprep.subr.bf16.mxu0 %v6804
    %9954 = vmatpush1.bf16.xpose.msra.mxu0 %v6803
    %9955 = vmatprep.subr.bf16.mxu0 %v6812
    %9956 = vmatpush1.bf16.xpose.msra.mxu0 %v6811
    %9957 = vmatprep.subr.bf16.mxu0 %v6820
    %9958 = vmatpush1.bf16.xpose.msra.mxu0 %v6819
    %9959 = vmatprep.subr.bf16.mxu0 %v6828
    %9960 = vmatpush1.bf16.xpose.msra.mxu0 %v6827
    %9961 = vmatprep.subr.bf16.mxu0 %v6836
    %9962 = vmatpush1.bf16.xpose.msra.mxu0 %v6835
    %9963 = vmatprep.subr.bf16.mxu0 %v6844
    %9964 = vmatpush1.bf16.xpose.msra.mxu0 %v6843
    %9965 = vmatprep.subr.bf16.mxu0 %v6852
    %9966 = vmatpush1.bf16.xpose.msra.mxu0 %v6851
    %9967 = vmatprep.mubr.bf16.mxu0 %v70
    %9968 = vmatmul.mubr.bf16.gmra.mrb[0].mxu0 %v69
    %v9969 = vpop.f32.mrb[0].mxu0
    %v9970 = vadd.f32 %v1646, %v9969
    %v9971 = vpop.f32.mrb[0].mxu0
    %v9972 = vadd.f32 %v1650, %v9971
    %v9973 = vpop.f32.mrb[0].mxu0
    %v9974 = vadd.f32 %v1646, %v9973
    %v9975 = vpop.f32.mrb[0].mxu0
    %v9976 = vadd.f32 %v1650, %v9975
    %9977 = vdwg.mxu0
    %9978 = vmatprep.subr.bf16.mxu0 %v6734
    %9979 = vmatpush1.bf16.xpose.msra.mxu0 %v6733
    %9980 = vmatprep.subr.bf16.mxu0 %v6742
    %9981 = vmatpush1.bf16.xpose.msra.mxu0 %v6741
    %9982 = vmatprep.subr.bf16.mxu0 %v6750
    %9983 = vmatpush1.bf16.xpose.msra.mxu0 %v6749
    %9984 = vmatprep.subr.bf16.mxu0 %v6758
    %9985 = vmatpush1.bf16.xpose.msra.mxu0 %v6757
    %9986 = vmatprep.subr.bf16.mxu0 %v6766
    %9987 = vmatpush1.bf16.xpose.msra.mxu0 %v6765
    %9988 = vmatprep.subr.bf16.mxu0 %v6774
    %9989 = vmatpush1.bf16.xpose.msra.mxu0 %v6773
    %9990 = vmatprep.subr.bf16.mxu0 %v6782
    %9991 = vmatpush1.bf16.xpose.msra.mxu0 %v6781
    %9992 = vmatprep.subr.bf16.mxu0 %v6790
    %9993 = vmatpush1.bf16.xpose.msra.mxu0 %v6789
    %9994 = vmatprep.subr.bf16.mxu0 %v6798
    %9995 = vmatpush1.bf16.xpose.msra.mxu0 %v6797
    %9996 = vmatprep.subr.bf16.mxu0 %v6806
    %9997 = vmatpush1.bf16.xpose.msra.mxu0 %v6805
    %9998 = vmatprep.subr.bf16.mxu0 %v6814
    %9999 = vmatpush1.bf16.xpose.msra.mxu0 %v6813
    %10000 = vmatprep.subr.bf16.mxu0 %v6822
    %10001 = vmatpush1.bf16.xpose.msra.mxu0 %v6821
    %10002 = vmatprep.subr.bf16.mxu0 %v6830
    %10003 = vmatpush1.bf16.xpose.msra.mxu0 %v6829
    %10004 = vmatprep.subr.bf16.mxu0 %v6838
    %10005 = vmatpush1.bf16.xpose.msra.mxu0 %v6837
    %10006 = vmatprep.subr.bf16.mxu0 %v6846
    %10007 = vmatpush1.bf16.xpose.msra.mxu0 %v6845
    %10008 = vmatprep.subr.bf16.mxu0 %v6854
    %10009 = vmatpush1.bf16.xpose.msra.mxu0 %v6853
    %10010 = vmatprep.mubr.bf16.mxu0 %v72
    %10011 = vmatmul.mubr.bf16.gmra.mrb[0].mxu0 %v71
    %v10012 = vpop.f32.mrb[0].mxu0
    %v10013 = vadd.f32 %v9970, %v10012
    %v10014 = vpop.f32.mrb[0].mxu0
    %v10015 = vadd.f32 %v9972, %v10014
    %v10016 = vpop.f32.mrb[0].mxu0
    %v10017 = vadd.f32 %v9974, %v10016
    %v10018 = vpop.f32.mrb[0].mxu0
    %v10019 = vadd.f32 %v9976, %v10018
    %10020 = vdwg.mxu0
    %10021 = vmatprep.subr.bf16.mxu0 %v6736
    %10022 = vmatpush1.bf16.xpose.msra.mxu0 %v6735
    %10023 = vmatprep.subr.bf16.mxu0 %v6744
    %10024 = vmatpush1.bf16.xpose.msra.mxu0 %v6743
    %10025 = vmatprep.subr.bf16.mxu0 %v6752
    %10026 = vmatpush1.bf16.xpose.msra.mxu0 %v6751
    %10027 = vmatprep.subr.bf16.mxu0 %v6760
    %10028 = vmatpush1.bf16.xpose.msra.mxu0 %v6759
    %10029 = vmatprep.subr.bf16.mxu0 %v6768
    %10030 = vmatpush1.bf16.xpose.msra.mxu0 %v6767
    %10031 = vmatprep.subr.bf16.mxu0 %v6776
    %10032 = vmatpush1.bf16.xpose.msra.mxu0 %v6775
    %10033 = vmatprep.subr.bf16.mxu0 %v6784
    %10034 = vmatpush1.bf16.xpose.msra.mxu0 %v6783
    %10035 = vmatprep.subr.bf16.mxu0 %v6792
    %10036 = vmatpush1.bf16.xpose.msra.mxu0 %v6791
    %10037 = vmatprep.subr.bf16.mxu0 %v6800
    %10038 = vmatpush1.bf16.xpose.msra.mxu0 %v6799
    %10039 = vmatprep.subr.bf16.mxu0 %v6808
    %10040 = vmatpush1.bf16.xpose.msra.mxu0 %v6807
    %10041 = vmatprep.subr.bf16.mxu0 %v6816
    %10042 = vmatpush1.bf16.xpose.msra.mxu0 %v6815
    %10043 = vmatprep.subr.bf16.mxu0 %v6824
    %10044 = vmatpush1.bf16.xpose.msra.mxu0 %v6823
    %10045 = vmatprep.subr.bf16.mxu0 %v6832
    %10046 = vmatpush1.bf16.xpose.msra.mxu0 %v6831
    %10047 = vmatprep.subr.bf16.mxu0 %v6840
    %10048 = vmatpush1.bf16.xpose.msra.mxu0 %v6839
    %10049 = vmatprep.subr.bf16.mxu0 %v6848
    %10050 = vmatpush1.bf16.xpose.msra.mxu0 %v6847
    %10051 = vmatprep.subr.bf16.mxu0 %v6856
    %10052 = vmatpush1.bf16.xpose.msra.mxu0 %v6855
    %10053 = vmatprep.mubr.bf16.mxu0 %v74
    %10054 = vmatmul.mubr.bf16.gmra.mrb[0].mxu0 %v73
    %v10055 = vpop.f32.mrb[0].mxu0
    %v10056 = vadd.f32 %v10013, %v10055
    %v10057 = vpop.f32.mrb[0].mxu0
    %v10058 = vadd.f32 %v10015, %v10057
    %v10059 = vpop.f32.mrb[0].mxu0
    %v10060 = vadd.f32 %v10017, %v10059
    %v10061 = vpop.f32.mrb[0].mxu0
    %v10062 = vadd.f32 %v10019, %v10061
    %10063 = vdwg.mxu0
    %10064 = vmatprep.subr.bf16.mxu0 %v6738
    %10065 = vmatpush1.bf16.xpose.msra.mxu0 %v6737
    %10066 = vmatprep.subr.bf16.mxu0 %v6746
    %10067 = vmatpush1.bf16.xpose.msra.mxu0 %v6745
    %10068 = vmatprep.subr.bf16.mxu0 %v6754
    %10069 = vmatpush1.bf16.xpose.msra.mxu0 %v6753
    %10070 = vmatprep.subr.bf16.mxu0 %v6762
    %10071 = vmatpush1.bf16.xpose.msra.mxu0 %v6761
    %10072 = vmatprep.subr.bf16.mxu0 %v6770
    %10073 = vmatpush1.bf16.xpose.msra.mxu0 %v6769
    %10074 = vmatprep.subr.bf16.mxu0 %v6778
    %10075 = vmatpush1.bf16.xpose.msra.mxu0 %v6777
    %10076 = vmatprep.subr.bf16.mxu0 %v6786
    %10077 = vmatpush1.bf16.xpose.msra.mxu0 %v6785
    %10078 = vmatprep.subr.bf16.mxu0 %v6794
    %10079 = vmatpush1.bf16.xpose.msra.mxu0 %v6793
    %10080 = vmatprep.subr.bf16.mxu0 %v6802
    %10081 = vmatpush1.bf16.xpose.msra.mxu0 %v6801
    %10082 = vmatprep.subr.bf16.mxu0 %v6810
    %10083 = vmatpush1.bf16.xpose.msra.mxu0 %v6809
    %10084 = vmatprep.subr.bf16.mxu0 %v6818
    %10085 = vmatpush1.bf16.xpose.msra.mxu0 %v6817
    %10086 = vmatprep.subr.bf16.mxu0 %v6826
    %10087 = vmatpush1.bf16.xpose.msra.mxu0 %v6825
    %10088 = vmatprep.subr.bf16.mxu0 %v6834
    %10089 = vmatpush1.bf16.xpose.msra.mxu0 %v6833
    %10090 = vmatprep.subr.bf16.mxu0 %v6842
    %10091 = vmatpush1.bf16.xpose.msra.mxu0 %v6841
    %10092 = vmatprep.subr.bf16.mxu0 %v6850
    %10093 = vmatpush1.bf16.xpose.msra.mxu0 %v6849
    %10094 = vmatprep.subr.bf16.mxu0 %v6858
    %10095 = vmatpush1.bf16.xpose.msra.mxu0 %v6857
    %10096 = vmatprep.mubr.bf16.mxu0 %v76
    %10097 = vmatmul.mubr.bf16.gmra.mrb[0].mxu0 %v75
    %v10098 = vpop.f32.mrb[0].mxu0
    %v10099 = vadd.f32 %v10056, %v10098
    %v10100 = vpop.f32.mrb[0].mxu0
    %v10101 = vadd.f32 %v10058, %v10100
    %v10102 = vpop.f32.mrb[0].mxu0
    %v10103 = vadd.f32 %v10060, %v10102
    %v10104 = vpop.f32.mrb[0].mxu0
    %v10105 = vadd.f32 %v10062, %v10104
    %10106 = vdwg.mxu0
    %10107 = vmatprep.subr.bf16.mxu0 %v6860
    %10108 = vmatpush1.bf16.xpose.msra.mxu0 %v6859
    %10109 = vmatprep.subr.bf16.mxu0 %v6868
    %10110 = vmatpush1.bf16.xpose.msra.mxu0 %v6867
    %10111 = vmatprep.subr.bf16.mxu0 %v6876
    %10112 = vmatpush1.bf16.xpose.msra.mxu0 %v6875
    %10113 = vmatprep.subr.bf16.mxu0 %v6884
    %10114 = vmatpush1.bf16.xpose.msra.mxu0 %v6883
    %10115 = vmatprep.subr.bf16.mxu0 %v6892
    %10116 = vmatpush1.bf16.xpose.msra.mxu0 %v6891
    %10117 = vmatprep.subr.bf16.mxu0 %v6900
    %10118 = vmatpush1.bf16.xpose.msra.mxu0 %v6899
    %10119 = vmatprep.subr.bf16.mxu0 %v6908
    %10120 = vmatpush1.bf16.xpose.msra.mxu0 %v6907
    %10121 = vmatprep.subr.bf16.mxu0 %v6916
    %10122 = vmatpush1.bf16.xpose.msra.mxu0 %v6915
    %10123 = vmatprep.subr.bf16.mxu0 %v6924
    %10124 = vmatpush1.bf16.xpose.msra.mxu0 %v6923
    %10125 = vmatprep.subr.bf16.mxu0 %v6932
    %10126 = vmatpush1.bf16.xpose.msra.mxu0 %v6931
    %10127 = vmatprep.subr.bf16.mxu0 %v6940
    %10128 = vmatpush1.bf16.xpose.msra.mxu0 %v6939
    %10129 = vmatprep.subr.bf16.mxu0 %v6948
    %10130 = vmatpush1.bf16.xpose.msra.mxu0 %v6947
    %10131 = vmatprep.subr.bf16.mxu0 %v6956
    %10132 = vmatpush1.bf16.xpose.msra.mxu0 %v6955
    %10133 = vmatprep.subr.bf16.mxu0 %v6964
    %10134 = vmatpush1.bf16.xpose.msra.mxu0 %v6963
    %10135 = vmatprep.subr.bf16.mxu0 %v6972
    %10136 = vmatpush1.bf16.xpose.msra.mxu0 %v6971
    %10137 = vmatprep.subr.bf16.mxu0 %v6980
    %10138 = vmatpush1.bf16.xpose.msra.mxu0 %v6979
    %10139 = vmatprep.mubr.bf16.mxu0 %v70
    %10140 = vmatmul.mubr.bf16.gmra.mrb[0].mxu0 %v69
    %v10141 = vpop.f32.mrb[0].mxu0
    %v10142 = vadd.f32 %v1654, %v10141
    %v10143 = vpop.f32.mrb[0].mxu0
    %v10144 = vadd.f32 %v1658, %v10143
    %v10145 = vpop.f32.mrb[0].mxu0
    %v10146 = vadd.f32 %v1654, %v10145
    %v10147 = vpop.f32.mrb[0].mxu0
    %v10148 = vadd.f32 %v1658, %v10147
    %10149 = vdwg.mxu0
    %10150 = vmatprep.subr.bf16.mxu0 %v6862
    %10151 = vmatpush1.bf16.xpose.msra.mxu0 %v6861
    %10152 = vmatprep.subr.bf16.mxu0 %v6870
    %10153 = vmatpush1.bf16.xpose.msra.mxu0 %v6869
    %10154 = vmatprep.subr.bf16.mxu0 %v6878
    %10155 = vmatpush1.bf16.xpose.msra.mxu0 %v6877
    %10156 = vmatprep.subr.bf16.mxu0 %v6886
    %10157 = vmatpush1.bf16.xpose.msra.mxu0 %v6885
    %10158 = vmatprep.subr.bf16.mxu0 %v6894
    %10159 = vmatpush1.bf16.xpose.msra.mxu0 %v6893
    %10160 = vmatprep.subr.bf16.mxu0 %v6902
    %10161 = vmatpush1.bf16.xpose.msra.mxu0 %v6901
    %10162 = vmatprep.subr.bf16.mxu0 %v6910
    %10163 = vmatpush1.bf16.xpose.msra.mxu0 %v6909
    %10164 = vmatprep.subr.bf16.mxu0 %v6918
    %10165 = vmatpush1.bf16.xpose.msra.mxu0 %v6917
    %10166 = vmatprep.subr.bf16.mxu0 %v6926
    %10167 = vmatpush1.bf16.xpose.msra.mxu0 %v6925
    %10168 = vmatprep.subr.bf16.mxu0 %v6934
    %10169 = vmatpush1.bf16.xpose.msra.mxu0 %v6933
    %10170 = vmatprep.subr.bf16.mxu0 %v6942
    %10171 = vmatpush1.bf16.xpose.msra.mxu0 %v6941
    %10172 = vmatprep.subr.bf16.mxu0 %v6950
    %10173 = vmatpush1.bf16.xpose.msra.mxu0 %v6949
    %10174 = vmatprep.subr.bf16.mxu0 %v6958
    %10175 = vmatpush1.bf16.xpose.msra.mxu0 %v6957
    %10176 = vmatprep.subr.bf16.mxu0 %v6966
    %10177 = vmatpush1.bf16.xpose.msra.mxu0 %v6965
    %10178 = vmatprep.subr.bf16.mxu0 %v6974
    %10179 = vmatpush1.bf16.xpose.msra.mxu0 %v6973
    %10180 = vmatprep.subr.bf16.mxu0 %v6982
    %10181 = vmatpush1.bf16.xpose.msra.mxu0 %v6981
    %10182 = vmatprep.mubr.bf16.mxu0 %v72
    %10183 = vmatmul.mubr.bf16.gmra.mrb[0].mxu0 %v71
    %v10184 = vpop.f32.mrb[0].mxu0
    %v10185 = vadd.f32 %v10142, %v10184
    %v10186 = vpop.f32.mrb[0].mxu0
    %v10187 = vadd.f32 %v10144, %v10186
    %v10188 = vpop.f32.mrb[0].mxu0
    %v10189 = vadd.f32 %v10146, %v10188
    %v10190 = vpop.f32.mrb[0].mxu0
    %v10191 = vadd.f32 %v10148, %v10190
    %10192 = vdwg.mxu0
    %10193 = vmatprep.subr.bf16.mxu0 %v6864
    %10194 = vmatpush1.bf16.xpose.msra.mxu0 %v6863
    %10195 = vmatprep.subr.bf16.mxu0 %v6872
    %10196 = vmatpush1.bf16.xpose.msra.mxu0 %v6871
    %10197 = vmatprep.subr.bf16.mxu0 %v6880
    %10198 = vmatpush1.bf16.xpose.msra.mxu0 %v6879
    %10199 = vmatprep.subr.bf16.mxu0 %v6888
    %10200 = vmatpush1.bf16.xpose.msra.mxu0 %v6887
    %10201 = vmatprep.subr.bf16.mxu0 %v6896
    %10202 = vmatpush1.bf16.xpose.msra.mxu0 %v6895
    %10203 = vmatprep.subr.bf16.mxu0 %v6904
    %10204 = vmatpush1.bf16.xpose.msra.mxu0 %v6903
    %10205 = vmatprep.subr.bf16.mxu0 %v6912
    %10206 = vmatpush1.bf16.xpose.msra.mxu0 %v6911
    %10207 = vmatprep.subr.bf16.mxu0 %v6920
    %10208 = vmatpush1.bf16.xpose.msra.mxu0 %v6919
    %10209 = vmatprep.subr.bf16.mxu0 %v6928
    %10210 = vmatpush1.bf16.xpose.msra.mxu0 %v6927
    %10211 = vmatprep.subr.bf16.mxu0 %v6936
    %10212 = vmatpush1.bf16.xpose.msra.mxu0 %v6935
    %10213 = vmatprep.subr.bf16.mxu0 %v6944
    %10214 = vmatpush1.bf16.xpose.msra.mxu0 %v6943
    %10215 = vmatprep.subr.bf16.mxu0 %v6952
    %10216 = vmatpush1.bf16.xpose.msra.mxu0 %v6951
    %10217 = vmatprep.subr.bf16.mxu0 %v6960
    %10218 = vmatpush1.bf16.xpose.msra.mxu0 %v6959
    %10219 = vmatprep.subr.bf16.mxu0 %v6968
    %10220 = vmatpush1.bf16.xpose.msra.mxu0 %v6967
    %10221 = vmatprep.subr.bf16.mxu0 %v6976
    %10222 = vmatpush1.bf16.xpose.msra.mxu0 %v6975
    %10223 = vmatprep.subr.bf16.mxu0 %v6984
    %10224 = vmatpush1.bf16.xpose.msra.mxu0 %v6983
    %10225 = vmatprep.mubr.bf16.mxu0 %v74
    %10226 = vmatmul.mubr.bf16.gmra.mrb[0].mxu0 %v73
    %v10227 = vpop.f32.mrb[0].mxu0
    %v10228 = vadd.f32 %v10185, %v10227
    %v10229 = vpop.f32.mrb[0].mxu0
    %v10230 = vadd.f32 %v10187, %v10229
    %v10231 = vpop.f32.mrb[0].mxu0
    %v10232 = vadd.f32 %v10189, %v10231
    %v10233 = vpop.f32.mrb[0].mxu0
    %v10234 = vadd.f32 %v10191, %v10233
    %10235 = vdwg.mxu0
    %10236 = vmatprep.subr.bf16.mxu0 %v6866
    %10237 = vmatpush1.bf16.xpose.msra.mxu0 %v6865
    %10238 = vmatprep.subr.bf16.mxu0 %v6874
    %10239 = vmatpush1.bf16.xpose.msra.mxu0 %v6873
    %10240 = vmatprep.subr.bf16.mxu0 %v6882
    %10241 = vmatpush1.bf16.xpose.msra.mxu0 %v6881
    %10242 = vmatprep.subr.bf16.mxu0 %v6890
    %10243 = vmatpush1.bf16.xpose.msra.mxu0 %v6889
    %10244 = vmatprep.subr.bf16.mxu0 %v6898
    %10245 = vmatpush1.bf16.xpose.msra.mxu0 %v6897
    %10246 = vmatprep.subr.bf16.mxu0 %v6906
    %10247 = vmatpush1.bf16.xpose.msra.mxu0 %v6905
    %10248 = vmatprep.subr.bf16.mxu0 %v6914
    %10249 = vmatpush1.bf16.xpose.msra.mxu0 %v6913
    %10250 = vmatprep.subr.bf16.mxu0 %v6922
    %10251 = vmatpush1.bf16.xpose.msra.mxu0 %v6921
    %10252 = vmatprep.subr.bf16.mxu0 %v6930
    %10253 = vmatpush1.bf16.xpose.msra.mxu0 %v6929
    %10254 = vmatprep.subr.bf16.mxu0 %v6938
    %10255 = vmatpush1.bf16.xpose.msra.mxu0 %v6937
    %10256 = vmatprep.subr.bf16.mxu0 %v6946
    %10257 = vmatpush1.bf16.xpose.msra.mxu0 %v6945
    %10258 = vmatprep.subr.bf16.mxu0 %v6954
    %10259 = vmatpush1.bf16.xpose.msra.mxu0 %v6953
    %10260 = vmatprep.subr.bf16.mxu0 %v6962
    %10261 = vmatpush1.bf16.xpose.msra.mxu0 %v6961
    %10262 = vmatprep.subr.bf16.mxu0 %v6970
    %10263 = vmatpush1.bf16.xpose.msra.mxu0 %v6969
    %10264 = vmatprep.subr.bf16.mxu0 %v6978
    %10265 = vmatpush1.bf16.xpose.msra.mxu0 %v6977
    %10266 = vmatprep.subr.bf16.mxu0 %v6986
    %10267 = vmatpush1.bf16.xpose.msra.mxu0 %v6985
    %10268 = vmatprep.mubr.bf16.mxu0 %v76
    %10269 = vmatmul.mubr.bf16.gmra.mrb[0].mxu0 %v75
    %v10270 = vpop.f32.mrb[0].mxu0
    %v10271 = vadd.f32 %v10228, %v10270
    %v10272 = vpop.f32.mrb[0].mxu0
    %v10273 = vadd.f32 %v10230, %v10272
    %v10274 = vpop.f32.mrb[0].mxu0
    %v10275 = vadd.f32 %v10232, %v10274
    %v10276 = vpop.f32.mrb[0].mxu0
    %v10277 = vadd.f32 %v10234, %v10276
    %10278 = vdwg.mxu0
    %10279 = vmatprep.subr.bf16.mxu0 %v6988
    %10280 = vmatpush1.bf16.xpose.msra.mxu0 %v6987
    %10281 = vmatprep.subr.bf16.mxu0 %v6996
    %10282 = vmatpush1.bf16.xpose.msra.mxu0 %v6995
    %10283 = vmatprep.subr.bf16.mxu0 %v7004
    %10284 = vmatpush1.bf16.xpose.msra.mxu0 %v7003
    %10285 = vmatprep.subr.bf16.mxu0 %v7012
    %10286 = vmatpush1.bf16.xpose.msra.mxu0 %v7011
    %10287 = vmatprep.subr.bf16.mxu0 %v7020
    %10288 = vmatpush1.bf16.xpose.msra.mxu0 %v7019
    %10289 = vmatprep.subr.bf16.mxu0 %v7028
    %10290 = vmatpush1.bf16.xpose.msra.mxu0 %v7027
    %10291 = vmatprep.subr.bf16.mxu0 %v7036
    %10292 = vmatpush1.bf16.xpose.msra.mxu0 %v7035
    %10293 = vmatprep.subr.bf16.mxu0 %v7044
    %10294 = vmatpush1.bf16.xpose.msra.mxu0 %v7043
    %10295 = vmatprep.subr.bf16.mxu0 %v7052
    %10296 = vmatpush1.bf16.xpose.msra.mxu0 %v7051
    %10297 = vmatprep.subr.bf16.mxu0 %v7060
    %10298 = vmatpush1.bf16.xpose.msra.mxu0 %v7059
    %10299 = vmatprep.subr.bf16.mxu0 %v7068
    %10300 = vmatpush1.bf16.xpose.msra.mxu0 %v7067
    %10301 = vmatprep.subr.bf16.mxu0 %v7076
    %10302 = vmatpush1.bf16.xpose.msra.mxu0 %v7075
    %10303 = vmatprep.subr.bf16.mxu0 %v7084
    %10304 = vmatpush1.bf16.xpose.msra.mxu0 %v7083
    %10305 = vmatprep.subr.bf16.mxu0 %v7092
    %10306 = vmatpush1.bf16.xpose.msra.mxu0 %v7091
    %10307 = vmatprep.subr.bf16.mxu0 %v7100
    %10308 = vmatpush1.bf16.xpose.msra.mxu0 %v7099
    %10309 = vmatprep.subr.bf16.mxu0 %v7108
    %10310 = vmatpush1.bf16.xpose.msra.mxu0 %v7107
    %10311 = vmatprep.mubr.bf16.mxu0 %v70
    %10312 = vmatmul.mubr.bf16.gmra.mrb[0].mxu0 %v69
    %v10313 = vpop.f32.mrb[0].mxu0
    %v10314 = vadd.f32 %v1662, %v10313
    %v10315 = vpop.f32.mrb[0].mxu0
    %v10316 = vadd.f32 %v1666, %v10315
    %v10317 = vpop.f32.mrb[0].mxu0
    %v10318 = vadd.f32 %v1662, %v10317
    %v10319 = vpop.f32.mrb[0].mxu0
    %v10320 = vadd.f32 %v1666, %v10319
    %10321 = vdwg.mxu0
    %10322 = vmatprep.subr.bf16.mxu0 %v6990
    %10323 = vmatpush1.bf16.xpose.msra.mxu0 %v6989
    %10324 = vmatprep.subr.bf16.mxu0 %v6998
    %10325 = vmatpush1.bf16.xpose.msra.mxu0 %v6997
    %10326 = vmatprep.subr.bf16.mxu0 %v7006
    %10327 = vmatpush1.bf16.xpose.msra.mxu0 %v7005
    %10328 = vmatprep.subr.bf16.mxu0 %v7014
    %10329 = vmatpush1.bf16.xpose.msra.mxu0 %v7013
    %10330 = vmatprep.subr.bf16.mxu0 %v7022
    %10331 = vmatpush1.bf16.xpose.msra.mxu0 %v7021
    %10332 = vmatprep.subr.bf16.mxu0 %v7030
    %10333 = vmatpush1.bf16.xpose.msra.mxu0 %v7029
    %10334 = vmatprep.subr.bf16.mxu0 %v7038
    %10335 = vmatpush1.bf16.xpose.msra.mxu0 %v7037
    %10336 = vmatprep.subr.bf16.mxu0 %v7046
    %10337 = vmatpush1.bf16.xpose.msra.mxu0 %v7045
    %10338 = vmatprep.subr.bf16.mxu0 %v7054
    %10339 = vmatpush1.bf16.xpose.msra.mxu0 %v7053
    %10340 = vmatprep.subr.bf16.mxu0 %v7062
    %10341 = vmatpush1.bf16.xpose.msra.mxu0 %v7061
    %10342 = vmatprep.subr.bf16.mxu0 %v7070
    %10343 = vmatpush1.bf16.xpose.msra.mxu0 %v7069
    %10344 = vmatprep.subr.bf16.mxu0 %v7078
    %10345 = vmatpush1.bf16.xpose.msra.mxu0 %v7077
    %10346 = vmatprep.subr.bf16.mxu0 %v7086
    %10347 = vmatpush1.bf16.xpose.msra.mxu0 %v7085
    %10348 = vmatprep.subr.bf16.mxu0 %v7094
    %10349 = vmatpush1.bf16.xpose.msra.mxu0 %v7093
    %10350 = vmatprep.subr.bf16.mxu0 %v7102
    %10351 = vmatpush1.bf16.xpose.msra.mxu0 %v7101
    %10352 = vmatprep.subr.bf16.mxu0 %v7110
    %10353 = vmatpush1.bf16.xpose.msra.mxu0 %v7109
    %10354 = vmatprep.mubr.bf16.mxu0 %v72
    %10355 = vmatmul.mubr.bf16.gmra.mrb[0].mxu0 %v71
    %v10356 = vpop.f32.mrb[0].mxu0
    %v10357 = vadd.f32 %v10314, %v10356
    %v10358 = vpop.f32.mrb[0].mxu0
    %v10359 = vadd.f32 %v10316, %v10358
    %v10360 = vpop.f32.mrb[0].mxu0
    %v10361 = vadd.f32 %v10318, %v10360
    %v10362 = vpop.f32.mrb[0].mxu0
    %v10363 = vadd.f32 %v10320, %v10362
    %10364 = vdwg.mxu0
    %10365 = vmatprep.subr.bf16.mxu0 %v6992
    %10366 = vmatpush1.bf16.xpose.msra.mxu0 %v6991
    %10367 = vmatprep.subr.bf16.mxu0 %v7000
    %10368 = vmatpush1.bf16.xpose.msra.mxu0 %v6999
    %10369 = vmatprep.subr.bf16.mxu0 %v7008
    %10370 = vmatpush1.bf16.xpose.msra.mxu0 %v7007
    %10371 = vmatprep.subr.bf16.mxu0 %v7016
    %10372 = vmatpush1.bf16.xpose.msra.mxu0 %v7015
    %10373 = vmatprep.subr.bf16.mxu0 %v7024
    %10374 = vmatpush1.bf16.xpose.msra.mxu0 %v7023
    %10375 = vmatprep.subr.bf16.mxu0 %v7032
    %10376 = vmatpush1.bf16.xpose.msra.mxu0 %v7031
    %10377 = vmatprep.subr.bf16.mxu0 %v7040
    %10378 = vmatpush1.bf16.xpose.msra.mxu0 %v7039
    %10379 = vmatprep.subr.bf16.mxu0 %v7048
    %10380 = vmatpush1.bf16.xpose.msra.mxu0 %v7047
    %10381 = vmatprep.subr.bf16.mxu0 %v7056
    %10382 = vmatpush1.bf16.xpose.msra.mxu0 %v7055
    %10383 = vmatprep.subr.bf16.mxu0 %v7064
    %10384 = vmatpush1.bf16.xpose.msra.mxu0 %v7063
    %10385 = vmatprep.subr.bf16.mxu0 %v7072
    %10386 = vmatpush1.bf16.xpose.msra.mxu0 %v7071
    %10387 = vmatprep.subr.bf16.mxu0 %v7080
    %10388 = vmatpush1.bf16.xpose.msra.mxu0 %v7079
    %10389 = vmatprep.subr.bf16.mxu0 %v7088
    %10390 = vmatpush1.bf16.xpose.msra.mxu0 %v7087
    %10391 = vmatprep.subr.bf16.mxu0 %v7096
    %10392 = vmatpush1.bf16.xpose.msra.mxu0 %v7095
    %10393 = vmatprep.subr.bf16.mxu0 %v7104
    %10394 = vmatpush1.bf16.xpose.msra.mxu0 %v7103
    %10395 = vmatprep.subr.bf16.mxu0 %v7112
    %10396 = vmatpush1.bf16.xpose.msra.mxu0 %v7111
    %10397 = vmatprep.mubr.bf16.mxu0 %v74
    %10398 = vmatmul.mubr.bf16.gmra.mrb[0].mxu0 %v73
    %v10399 = vpop.f32.mrb[0].mxu0
    %v10400 = vadd.f32 %v10357, %v10399
    %v10401 = vpop.f32.mrb[0].mxu0
    %v10402 = vadd.f32 %v10359, %v10401
    %v10403 = vpop.f32.mrb[0].mxu0
    %v10404 = vadd.f32 %v10361, %v10403
    %v10405 = vpop.f32.mrb[0].mxu0
    %v10406 = vadd.f32 %v10363, %v10405
    %10407 = vdwg.mxu0
    %10408 = vmatprep.subr.bf16.mxu0 %v6994
    %10409 = vmatpush1.bf16.xpose.msra.mxu0 %v6993
    %10410 = vmatprep.subr.bf16.mxu0 %v7002
    %10411 = vmatpush1.bf16.xpose.msra.mxu0 %v7001
    %10412 = vmatprep.subr.bf16.mxu0 %v7010
    %10413 = vmatpush1.bf16.xpose.msra.mxu0 %v7009
    %10414 = vmatprep.subr.bf16.mxu0 %v7018
    %10415 = vmatpush1.bf16.xpose.msra.mxu0 %v7017
    %10416 = vmatprep.subr.bf16.mxu0 %v7026
    %10417 = vmatpush1.bf16.xpose.msra.mxu0 %v7025
    %10418 = vmatprep.subr.bf16.mxu0 %v7034
    %10419 = vmatpush1.bf16.xpose.msra.mxu0 %v7033
    %10420 = vmatprep.subr.bf16.mxu0 %v7042
    %10421 = vmatpush1.bf16.xpose.msra.mxu0 %v7041
    %10422 = vmatprep.subr.bf16.mxu0 %v7050
    %10423 = vmatpush1.bf16.xpose.msra.mxu0 %v7049
    %10424 = vmatprep.subr.bf16.mxu0 %v7058
    %10425 = vmatpush1.bf16.xpose.msra.mxu0 %v7057
    %10426 = vmatprep.subr.bf16.mxu0 %v7066
    %10427 = vmatpush1.bf16.xpose.msra.mxu0 %v7065
    %10428 = vmatprep.subr.bf16.mxu0 %v7074
    %10429 = vmatpush1.bf16.xpose.msra.mxu0 %v7073
    %10430 = vmatprep.subr.bf16.mxu0 %v7082
    %10431 = vmatpush1.bf16.xpose.msra.mxu0 %v7081
    %10432 = vmatprep.subr.bf16.mxu0 %v7090
    %10433 = vmatpush1.bf16.xpose.msra.mxu0 %v7089
    %10434 = vmatprep.subr.bf16.mxu0 %v7098
    %10435 = vmatpush1.bf16.xpose.msra.mxu0 %v7097
    %10436 = vmatprep.subr.bf16.mxu0 %v7106
    %10437 = vmatpush1.bf16.xpose.msra.mxu0 %v7105
    %10438 = vmatprep.subr.bf16.mxu0 %v7114
    %10439 = vmatpush1.bf16.xpose.msra.mxu0 %v7113
    %10440 = vmatprep.mubr.bf16.mxu0 %v76
    %10441 = vmatmul.mubr.bf16.gmra.mrb[0].mxu0 %v75
    %v10442 = vpop.f32.mrb[0].mxu0
    %v10443 = vadd.f32 %v10400, %v10442
    %v10444 = vpop.f32.mrb[0].mxu0
    %v10445 = vadd.f32 %v10402, %v10444
    %v10446 = vpop.f32.mrb[0].mxu0
    %v10447 = vadd.f32 %v10404, %v10446
    %v10448 = vpop.f32.mrb[0].mxu0
    %v10449 = vadd.f32 %v10406, %v10448
    %10450 = vdwg.mxu0
    %10451 = vmatprep.subr.bf16.mxu0 %v7116
    %10452 = vmatpush1.bf16.xpose.msra.mxu0 %v7115
    %10453 = vmatprep.subr.bf16.mxu0 %v7124
    %10454 = vmatpush1.bf16.xpose.msra.mxu0 %v7123
    %10455 = vmatprep.subr.bf16.mxu0 %v7132
    %10456 = vmatpush1.bf16.xpose.msra.mxu0 %v7131
    %10457 = vmatprep.subr.bf16.mxu0 %v7140
    %10458 = vmatpush1.bf16.xpose.msra.mxu0 %v7139
    %10459 = vmatprep.subr.bf16.mxu0 %v7148
    %10460 = vmatpush1.bf16.xpose.msra.mxu0 %v7147
    %10461 = vmatprep.subr.bf16.mxu0 %v7156
    %10462 = vmatpush1.bf16.xpose.msra.mxu0 %v7155
    %10463 = vmatprep.subr.bf16.mxu0 %v7164
    %10464 = vmatpush1.bf16.xpose.msra.mxu0 %v7163
    %10465 = vmatprep.subr.bf16.mxu0 %v7172
    %10466 = vmatpush1.bf16.xpose.msra.mxu0 %v7171
    %10467 = vmatprep.subr.bf16.mxu0 %v7180
    %10468 = vmatpush1.bf16.xpose.msra.mxu0 %v7179
    %10469 = vmatprep.subr.bf16.mxu0 %v7188
    %10470 = vmatpush1.bf16.xpose.msra.mxu0 %v7187
    %10471 = vmatprep.subr.bf16.mxu0 %v7196
    %10472 = vmatpush1.bf16.xpose.msra.mxu0 %v7195
    %10473 = vmatprep.subr.bf16.mxu0 %v7204
    %10474 = vmatpush1.bf16.xpose.msra.mxu0 %v7203
    %10475 = vmatprep.subr.bf16.mxu0 %v7212
    %10476 = vmatpush1.bf16.xpose.msra.mxu0 %v7211
    %10477 = vmatprep.subr.bf16.mxu0 %v7220
    %10478 = vmatpush1.bf16.xpose.msra.mxu0 %v7219
    %10479 = vmatprep.subr.bf16.mxu0 %v7228
    %10480 = vmatpush1.bf16.xpose.msra.mxu0 %v7227
    %10481 = vmatprep.subr.bf16.mxu0 %v7236
    %10482 = vmatpush1.bf16.xpose.msra.mxu0 %v7235
    %10483 = vmatprep.mubr.bf16.mxu0 %v70
    %10484 = vmatmul.mubr.bf16.gmra.mrb[0].mxu0 %v69
    %v10485 = vpop.f32.mrb[0].mxu0
    %v10486 = vadd.f32 %v1670, %v10485
    %v10487 = vpop.f32.mrb[0].mxu0
    %v10488 = vadd.f32 %v1674, %v10487
    %v10489 = vpop.f32.mrb[0].mxu0
    %v10490 = vadd.f32 %v1670, %v10489
    %v10491 = vpop.f32.mrb[0].mxu0
    %v10492 = vadd.f32 %v1674, %v10491
    %10493 = vdwg.mxu0
    %10494 = vmatprep.subr.bf16.mxu0 %v7118
    %10495 = vmatpush1.bf16.xpose.msra.mxu0 %v7117
    %10496 = vmatprep.subr.bf16.mxu0 %v7126
    %10497 = vmatpush1.bf16.xpose.msra.mxu0 %v7125
    %10498 = vmatprep.subr.bf16.mxu0 %v7134
    %10499 = vmatpush1.bf16.xpose.msra.mxu0 %v7133
    %10500 = vmatprep.subr.bf16.mxu0 %v7142
    %10501 = vmatpush1.bf16.xpose.msra.mxu0 %v7141
    %10502 = vmatprep.subr.bf16.mxu0 %v7150
    %10503 = vmatpush1.bf16.xpose.msra.mxu0 %v7149
    %10504 = vmatprep.subr.bf16.mxu0 %v7158
    %10505 = vmatpush1.bf16.xpose.msra.mxu0 %v7157
    %10506 = vmatprep.subr.bf16.mxu0 %v7166
    %10507 = vmatpush1.bf16.xpose.msra.mxu0 %v7165
    %10508 = vmatprep.subr.bf16.mxu0 %v7174
    %10509 = vmatpush1.bf16.xpose.msra.mxu0 %v7173
    %10510 = vmatprep.subr.bf16.mxu0 %v7182
    %10511 = vmatpush1.bf16.xpose.msra.mxu0 %v7181
    %10512 = vmatprep.subr.bf16.mxu0 %v7190
    %10513 = vmatpush1.bf16.xpose.msra.mxu0 %v7189
    %10514 = vmatprep.subr.bf16.mxu0 %v7198
    %10515 = vmatpush1.bf16.xpose.msra.mxu0 %v7197
    %10516 = vmatprep.subr.bf16.mxu0 %v7206
    %10517 = vmatpush1.bf16.xpose.msra.mxu0 %v7205
    %10518 = vmatprep.subr.bf16.mxu0 %v7214
    %10519 = vmatpush1.bf16.xpose.msra.mxu0 %v7213
    %10520 = vmatprep.subr.bf16.mxu0 %v7222
    %10521 = vmatpush1.bf16.xpose.msra.mxu0 %v7221
    %10522 = vmatprep.subr.bf16.mxu0 %v7230
    %10523 = vmatpush1.bf16.xpose.msra.mxu0 %v7229
    %10524 = vmatprep.subr.bf16.mxu0 %v7238
    %10525 = vmatpush1.bf16.xpose.msra.mxu0 %v7237
    %10526 = vmatprep.mubr.bf16.mxu0 %v72
    %10527 = vmatmul.mubr.bf16.gmra.mrb[0].mxu0 %v71
    %v10528 = vpop.f32.mrb[0].mxu0
    %v10529 = vadd.f32 %v10486, %v10528
    %v10530 = vpop.f32.mrb[0].mxu0
    %v10531 = vadd.f32 %v10488, %v10530
    %v10532 = vpop.f32.mrb[0].mxu0
    %v10533 = vadd.f32 %v10490, %v10532
    %v10534 = vpop.f32.mrb[0].mxu0
    %v10535 = vadd.f32 %v10492, %v10534
    %10536 = vdwg.mxu0
    %10537 = vmatprep.subr.bf16.mxu0 %v7120
    %10538 = vmatpush1.bf16.xpose.msra.mxu0 %v7119
    %10539 = vmatprep.subr.bf16.mxu0 %v7128
    %10540 = vmatpush1.bf16.xpose.msra.mxu0 %v7127
    %10541 = vmatprep.subr.bf16.mxu0 %v7136
    %10542 = vmatpush1.bf16.xpose.msra.mxu0 %v7135
    %10543 = vmatprep.subr.bf16.mxu0 %v7144
    %10544 = vmatpush1.bf16.xpose.msra.mxu0 %v7143
    %10545 = vmatprep.subr.bf16.mxu0 %v7152
    %10546 = vmatpush1.bf16.xpose.msra.mxu0 %v7151
    %10547 = vmatprep.subr.bf16.mxu0 %v7160
    %10548 = vmatpush1.bf16.xpose.msra.mxu0 %v7159
    %10549 = vmatprep.subr.bf16.mxu0 %v7168
    %10550 = vmatpush1.bf16.xpose.msra.mxu0 %v7167
    %10551 = vmatprep.subr.bf16.mxu0 %v7176
    %10552 = vmatpush1.bf16.xpose.msra.mxu0 %v7175
    %10553 = vmatprep.subr.bf16.mxu0 %v7184
    %10554 = vmatpush1.bf16.xpose.msra.mxu0 %v7183
    %10555 = vmatprep.subr.bf16.mxu0 %v7192
    %10556 = vmatpush1.bf16.xpose.msra.mxu0 %v7191
    %10557 = vmatprep.subr.bf16.mxu0 %v7200
    %10558 = vmatpush1.bf16.xpose.msra.mxu0 %v7199
    %10559 = vmatprep.subr.bf16.mxu0 %v7208
    %10560 = vmatpush1.bf16.xpose.msra.mxu0 %v7207
    %10561 = vmatprep.subr.bf16.mxu0 %v7216
    %10562 = vmatpush1.bf16.xpose.msra.mxu0 %v7215
    %10563 = vmatprep.subr.bf16.mxu0 %v7224
    %10564 = vmatpush1.bf16.xpose.msra.mxu0 %v7223
    %10565 = vmatprep.subr.bf16.mxu0 %v7232
    %10566 = vmatpush1.bf16.xpose.msra.mxu0 %v7231
    %10567 = vmatprep.subr.bf16.mxu0 %v7240
    %10568 = vmatpush1.bf16.xpose.msra.mxu0 %v7239
    %10569 = vmatprep.mubr.bf16.mxu0 %v74
    %10570 = vmatmul.mubr.bf16.gmra.mrb[0].mxu0 %v73
    %v10571 = vpop.f32.mrb[0].mxu0
    %v10572 = vadd.f32 %v10529, %v10571
    %v10573 = vpop.f32.mrb[0].mxu0
    %v10574 = vadd.f32 %v10531, %v10573
    %v10575 = vpop.f32.mrb[0].mxu0
    %v10576 = vadd.f32 %v10533, %v10575
    %v10577 = vpop.f32.mrb[0].mxu0
    %v10578 = vadd.f32 %v10535, %v10577
    %10579 = vdwg.mxu0
    %10580 = vmatprep.subr.bf16.mxu0 %v7122
    %10581 = vmatpush1.bf16.xpose.msra.mxu0 %v7121
    %10582 = vmatprep.subr.bf16.mxu0 %v7130
    %10583 = vmatpush1.bf16.xpose.msra.mxu0 %v7129
    %10584 = vmatprep.subr.bf16.mxu0 %v7138
    %10585 = vmatpush1.bf16.xpose.msra.mxu0 %v7137
    %10586 = vmatprep.subr.bf16.mxu0 %v7146
    %10587 = vmatpush1.bf16.xpose.msra.mxu0 %v7145
    %10588 = vmatprep.subr.bf16.mxu0 %v7154
    %10589 = vmatpush1.bf16.xpose.msra.mxu0 %v7153
    %10590 = vmatprep.subr.bf16.mxu0 %v7162
    %10591 = vmatpush1.bf16.xpose.msra.mxu0 %v7161
    %10592 = vmatprep.subr.bf16.mxu0 %v7170
    %10593 = vmatpush1.bf16.xpose.msra.mxu0 %v7169
    %10594 = vmatprep.subr.bf16.mxu0 %v7178
    %10595 = vmatpush1.bf16.xpose.msra.mxu0 %v7177
    %10596 = vmatprep.subr.bf16.mxu0 %v7186
    %10597 = vmatpush1.bf16.xpose.msra.mxu0 %v7185
    %10598 = vmatprep.subr.bf16.mxu0 %v7194
    %10599 = vmatpush1.bf16.xpose.msra.mxu0 %v7193
    %10600 = vmatprep.subr.bf16.mxu0 %v7202
    %10601 = vmatpush1.bf16.xpose.msra.mxu0 %v7201
    %10602 = vmatprep.subr.bf16.mxu0 %v7210
    %10603 = vmatpush1.bf16.xpose.msra.mxu0 %v7209
    %10604 = vmatprep.subr.bf16.mxu0 %v7218
    %10605 = vmatpush1.bf16.xpose.msra.mxu0 %v7217
    %10606 = vmatprep.subr.bf16.mxu0 %v7226
    %10607 = vmatpush1.bf16.xpose.msra.mxu0 %v7225
    %10608 = vmatprep.subr.bf16.mxu0 %v7234
    %10609 = vmatpush1.bf16.xpose.msra.mxu0 %v7233
    %10610 = vmatprep.subr.bf16.mxu0 %v7242
    %10611 = vmatpush1.bf16.xpose.msra.mxu0 %v7241
    %10612 = vmatprep.mubr.bf16.mxu0 %v76
    %10613 = vmatmul.mubr.bf16.gmra.mrb[0].mxu0 %v75
    %v10614 = vpop.f32.mrb[0].mxu0
    %v10615 = vadd.f32 %v10572, %v10614
    %v10616 = vpop.f32.mrb[0].mxu0
    %v10617 = vadd.f32 %v10574, %v10616
    %v10618 = vpop.f32.mrb[0].mxu0
    %v10619 = vadd.f32 %v10576, %v10618
    %v10620 = vpop.f32.mrb[0].mxu0
    %v10621 = vadd.f32 %v10578, %v10620
    %10622 = vdwg.mxu0
    %10623 = vmatprep.subr.bf16.mxu0 %v7244
    %10624 = vmatpush1.bf16.xpose.msra.mxu0 %v7243
    %10625 = vmatprep.subr.bf16.mxu0 %v7252
    %10626 = vmatpush1.bf16.xpose.msra.mxu0 %v7251
    %10627 = vmatprep.subr.bf16.mxu0 %v7260
    %10628 = vmatpush1.bf16.xpose.msra.mxu0 %v7259
    %10629 = vmatprep.subr.bf16.mxu0 %v7268
    %10630 = vmatpush1.bf16.xpose.msra.mxu0 %v7267
    %10631 = vmatprep.subr.bf16.mxu0 %v7276
    %10632 = vmatpush1.bf16.xpose.msra.mxu0 %v7275
    %10633 = vmatprep.subr.bf16.mxu0 %v7284
    %10634 = vmatpush1.bf16.xpose.msra.mxu0 %v7283
    %10635 = vmatprep.subr.bf16.mxu0 %v7292
    %10636 = vmatpush1.bf16.xpose.msra.mxu0 %v7291
    %10637 = vmatprep.subr.bf16.mxu0 %v7300
    %10638 = vmatpush1.bf16.xpose.msra.mxu0 %v7299
    %10639 = vmatprep.subr.bf16.mxu0 %v7308
    %10640 = vmatpush1.bf16.xpose.msra.mxu0 %v7307
    %10641 = vmatprep.subr.bf16.mxu0 %v7316
    %10642 = vmatpush1.bf16.xpose.msra.mxu0 %v7315
    %10643 = vmatprep.subr.bf16.mxu0 %v7324
    %10644 = vmatpush1.bf16.xpose.msra.mxu0 %v7323
    %10645 = vmatprep.subr.bf16.mxu0 %v7332
    %10646 = vmatpush1.bf16.xpose.msra.mxu0 %v7331
    %10647 = vmatprep.subr.bf16.mxu0 %v7340
    %10648 = vmatpush1.bf16.xpose.msra.mxu0 %v7339
    %10649 = vmatprep.subr.bf16.mxu0 %v7348
    %10650 = vmatpush1.bf16.xpose.msra.mxu0 %v7347
    %10651 = vmatprep.subr.bf16.mxu0 %v7356
    %10652 = vmatpush1.bf16.xpose.msra.mxu0 %v7355
    %10653 = vmatprep.subr.bf16.mxu0 %v7364
    %10654 = vmatpush1.bf16.xpose.msra.mxu0 %v7363
    %10655 = vmatprep.mubr.bf16.mxu0 %v70
    %10656 = vmatmul.mubr.bf16.gmra.mrb[0].mxu0 %v69
    %v10657 = vpop.f32.mrb[0].mxu0
    %v10658 = vadd.f32 %v1678, %v10657
    %v10659 = vpop.f32.mrb[0].mxu0
    %v10660 = vadd.f32 %v1682, %v10659
    %v10661 = vpop.f32.mrb[0].mxu0
    %v10662 = vadd.f32 %v1678, %v10661
    %v10663 = vpop.f32.mrb[0].mxu0
    %v10664 = vadd.f32 %v1682, %v10663
    %10665 = vdwg.mxu0
    %10666 = vmatprep.subr.bf16.mxu0 %v7246
    %10667 = vmatpush1.bf16.xpose.msra.mxu0 %v7245
    %10668 = vmatprep.subr.bf16.mxu0 %v7254
    %10669 = vmatpush1.bf16.xpose.msra.mxu0 %v7253
    %10670 = vmatprep.subr.bf16.mxu0 %v7262
    %10671 = vmatpush1.bf16.xpose.msra.mxu0 %v7261
    %10672 = vmatprep.subr.bf16.mxu0 %v7270
    %10673 = vmatpush1.bf16.xpose.msra.mxu0 %v7269
    %10674 = vmatprep.subr.bf16.mxu0 %v7278
    %10675 = vmatpush1.bf16.xpose.msra.mxu0 %v7277
    %10676 = vmatprep.subr.bf16.mxu0 %v7286
    %10677 = vmatpush1.bf16.xpose.msra.mxu0 %v7285
    %10678 = vmatprep.subr.bf16.mxu0 %v7294
    %10679 = vmatpush1.bf16.xpose.msra.mxu0 %v7293
    %10680 = vmatprep.subr.bf16.mxu0 %v7302
    %10681 = vmatpush1.bf16.xpose.msra.mxu0 %v7301
    %10682 = vmatprep.subr.bf16.mxu0 %v7310
    %10683 = vmatpush1.bf16.xpose.msra.mxu0 %v7309
    %10684 = vmatprep.subr.bf16.mxu0 %v7318
    %10685 = vmatpush1.bf16.xpose.msra.mxu0 %v7317
    %10686 = vmatprep.subr.bf16.mxu0 %v7326
    %10687 = vmatpush1.bf16.xpose.msra.mxu0 %v7325
    %10688 = vmatprep.subr.bf16.mxu0 %v7334
    %10689 = vmatpush1.bf16.xpose.msra.mxu0 %v7333
    %10690 = vmatprep.subr.bf16.mxu0 %v7342
    %10691 = vmatpush1.bf16.xpose.msra.mxu0 %v7341
    %10692 = vmatprep.subr.bf16.mxu0 %v7350
    %10693 = vmatpush1.bf16.xpose.msra.mxu0 %v7349
    %10694 = vmatprep.subr.bf16.mxu0 %v7358
    %10695 = vmatpush1.bf16.xpose.msra.mxu0 %v7357
    %10696 = vmatprep.subr.bf16.mxu0 %v7366
    %10697 = vmatpush1.bf16.xpose.msra.mxu0 %v7365
    %10698 = vmatprep.mubr.bf16.mxu0 %v72
    %10699 = vmatmul.mubr.bf16.gmra.mrb[0].mxu0 %v71
    %v10700 = vpop.f32.mrb[0].mxu0
    %v10701 = vadd.f32 %v10658, %v10700
    %v10702 = vpop.f32.mrb[0].mxu0
    %v10703 = vadd.f32 %v10660, %v10702
    %v10704 = vpop.f32.mrb[0].mxu0
    %v10705 = vadd.f32 %v10662, %v10704
    %v10706 = vpop.f32.mrb[0].mxu0
    %v10707 = vadd.f32 %v10664, %v10706
    %10708 = vdwg.mxu0
    %10709 = vmatprep.subr.bf16.mxu0 %v7248
    %10710 = vmatpush1.bf16.xpose.msra.mxu0 %v7247
    %10711 = vmatprep.subr.bf16.mxu0 %v7256
    %10712 = vmatpush1.bf16.xpose.msra.mxu0 %v7255
    %10713 = vmatprep.subr.bf16.mxu0 %v7264
    %10714 = vmatpush1.bf16.xpose.msra.mxu0 %v7263
    %10715 = vmatprep.subr.bf16.mxu0 %v7272
    %10716 = vmatpush1.bf16.xpose.msra.mxu0 %v7271
    %10717 = vmatprep.subr.bf16.mxu0 %v7280
    %10718 = vmatpush1.bf16.xpose.msra.mxu0 %v7279
    %10719 = vmatprep.subr.bf16.mxu0 %v7288
    %10720 = vmatpush1.bf16.xpose.msra.mxu0 %v7287
    %10721 = vmatprep.subr.bf16.mxu0 %v7296
    %10722 = vmatpush1.bf16.xpose.msra.mxu0 %v7295
    %10723 = vmatprep.subr.bf16.mxu0 %v7304
    %10724 = vmatpush1.bf16.xpose.msra.mxu0 %v7303
    %10725 = vmatprep.subr.bf16.mxu0 %v7312
    %10726 = vmatpush1.bf16.xpose.msra.mxu0 %v7311
    %10727 = vmatprep.subr.bf16.mxu0 %v7320
    %10728 = vmatpush1.bf16.xpose.msra.mxu0 %v7319
    %10729 = vmatprep.subr.bf16.mxu0 %v7328
    %10730 = vmatpush1.bf16.xpose.msra.mxu0 %v7327
    %10731 = vmatprep.subr.bf16.mxu0 %v7336
    %10732 = vmatpush1.bf16.xpose.msra.mxu0 %v7335
    %10733 = vmatprep.subr.bf16.mxu0 %v7344
    %10734 = vmatpush1.bf16.xpose.msra.mxu0 %v7343
    %10735 = vmatprep.subr.bf16.mxu0 %v7352
    %10736 = vmatpush1.bf16.xpose.msra.mxu0 %v7351
    %10737 = vmatprep.subr.bf16.mxu0 %v7360
    %10738 = vmatpush1.bf16.xpose.msra.mxu0 %v7359
    %10739 = vmatprep.subr.bf16.mxu0 %v7368
    %10740 = vmatpush1.bf16.xpose.msra.mxu0 %v7367
    %10741 = vmatprep.mubr.bf16.mxu0 %v74
    %10742 = vmatmul.mubr.bf16.gmra.mrb[0].mxu0 %v73
    %v10743 = vpop.f32.mrb[0].mxu0
    %v10744 = vadd.f32 %v10701, %v10743
    %v10745 = vpop.f32.mrb[0].mxu0
    %v10746 = vadd.f32 %v10703, %v10745
    %v10747 = vpop.f32.mrb[0].mxu0
    %v10748 = vadd.f32 %v10705, %v10747
    %v10749 = vpop.f32.mrb[0].mxu0
    %v10750 = vadd.f32 %v10707, %v10749
    %10751 = vdwg.mxu0
    %10752 = vmatprep.subr.bf16.mxu0 %v7250
    %10753 = vmatpush1.bf16.xpose.msra.mxu0 %v7249
    %10754 = vmatprep.subr.bf16.mxu0 %v7258
    %10755 = vmatpush1.bf16.xpose.msra.mxu0 %v7257
    %10756 = vmatprep.subr.bf16.mxu0 %v7266
    %10757 = vmatpush1.bf16.xpose.msra.mxu0 %v7265
    %10758 = vmatprep.subr.bf16.mxu0 %v7274
    %10759 = vmatpush1.bf16.xpose.msra.mxu0 %v7273
    %10760 = vmatprep.subr.bf16.mxu0 %v7282
    %10761 = vmatpush1.bf16.xpose.msra.mxu0 %v7281
    %10762 = vmatprep.subr.bf16.mxu0 %v7290
    %10763 = vmatpush1.bf16.xpose.msra.mxu0 %v7289
    %10764 = vmatprep.subr.bf16.mxu0 %v7298
    %10765 = vmatpush1.bf16.xpose.msra.mxu0 %v7297
    %10766 = vmatprep.subr.bf16.mxu0 %v7306
    %10767 = vmatpush1.bf16.xpose.msra.mxu0 %v7305
    %10768 = vmatprep.subr.bf16.mxu0 %v7314
    %10769 = vmatpush1.bf16.xpose.msra.mxu0 %v7313
    %10770 = vmatprep.subr.bf16.mxu0 %v7322
    %10771 = vmatpush1.bf16.xpose.msra.mxu0 %v7321
    %10772 = vmatprep.subr.bf16.mxu0 %v7330
    %10773 = vmatpush1.bf16.xpose.msra.mxu0 %v7329
    %10774 = vmatprep.subr.bf16.mxu0 %v7338
    %10775 = vmatpush1.bf16.xpose.msra.mxu0 %v7337
    %10776 = vmatprep.subr.bf16.mxu0 %v7346
    %10777 = vmatpush1.bf16.xpose.msra.mxu0 %v7345
    %10778 = vmatprep.subr.bf16.mxu0 %v7354
    %10779 = vmatpush1.bf16.xpose.msra.mxu0 %v7353
    %10780 = vmatprep.subr.bf16.mxu0 %v7362
    %10781 = vmatpush1.bf16.xpose.msra.mxu0 %v7361
    %10782 = vmatprep.subr.bf16.mxu0 %v7370
    %10783 = vmatpush1.bf16.xpose.msra.mxu0 %v7369
    %10784 = vmatprep.mubr.bf16.mxu0 %v76
    %10785 = vmatmul.mubr.bf16.gmra.mrb[0].mxu0 %v75
    %v10786 = vpop.f32.mrb[0].mxu0
    %v10787 = vadd.f32 %v10744, %v10786
    %v10788 = vpop.f32.mrb[0].mxu0
    %v10789 = vadd.f32 %v10746, %v10788
    %v10790 = vpop.f32.mrb[0].mxu0
    %v10791 = vadd.f32 %v10748, %v10790
    %v10792 = vpop.f32.mrb[0].mxu0
    %v10793 = vadd.f32 %v10750, %v10792
    %10794 = vdwg.mxu0
    %10795 = vmatprep.subr.bf16.mxu0 %v7372
    %10796 = vmatpush1.bf16.xpose.msra.mxu0 %v7371
    %10797 = vmatprep.subr.bf16.mxu0 %v7380
    %10798 = vmatpush1.bf16.xpose.msra.mxu0 %v7379
    %10799 = vmatprep.subr.bf16.mxu0 %v7388
    %10800 = vmatpush1.bf16.xpose.msra.mxu0 %v7387
    %10801 = vmatprep.subr.bf16.mxu0 %v7396
    %10802 = vmatpush1.bf16.xpose.msra.mxu0 %v7395
    %10803 = vmatprep.subr.bf16.mxu0 %v7404
    %10804 = vmatpush1.bf16.xpose.msra.mxu0 %v7403
    %10805 = vmatprep.subr.bf16.mxu0 %v7412
    %10806 = vmatpush1.bf16.xpose.msra.mxu0 %v7411
    %10807 = vmatprep.subr.bf16.mxu0 %v7420
    %10808 = vmatpush1.bf16.xpose.msra.mxu0 %v7419
    %10809 = vmatprep.subr.bf16.mxu0 %v7428
    %10810 = vmatpush1.bf16.xpose.msra.mxu0 %v7427
    %10811 = vmatprep.subr.bf16.mxu0 %v7436
    %10812 = vmatpush1.bf16.xpose.msra.mxu0 %v7435
    %10813 = vmatprep.subr.bf16.mxu0 %v7444
    %10814 = vmatpush1.bf16.xpose.msra.mxu0 %v7443
    %10815 = vmatprep.subr.bf16.mxu0 %v7452
    %10816 = vmatpush1.bf16.xpose.msra.mxu0 %v7451
    %10817 = vmatprep.subr.bf16.mxu0 %v7460
    %10818 = vmatpush1.bf16.xpose.msra.mxu0 %v7459
    %10819 = vmatprep.subr.bf16.mxu0 %v7468
    %10820 = vmatpush1.bf16.xpose.msra.mxu0 %v7467
    %10821 = vmatprep.subr.bf16.mxu0 %v7476
    %10822 = vmatpush1.bf16.xpose.msra.mxu0 %v7475
    %10823 = vmatprep.subr.bf16.mxu0 %v7484
    %10824 = vmatpush1.bf16.xpose.msra.mxu0 %v7483
    %10825 = vmatprep.subr.bf16.mxu0 %v7492
    %10826 = vmatpush1.bf16.xpose.msra.mxu0 %v7491
    %10827 = vmatprep.mubr.bf16.mxu0 %v70
    %10828 = vmatmul.mubr.bf16.gmra.mrb[0].mxu0 %v69
    %v10829 = vpop.f32.mrb[0].mxu0
    %v10830 = vadd.f32 %v1686, %v10829
    %v10831 = vpop.f32.mrb[0].mxu0
    %v10832 = vadd.f32 %v1690, %v10831
    %v10833 = vpop.f32.mrb[0].mxu0
    %v10834 = vadd.f32 %v1686, %v10833
    %v10835 = vpop.f32.mrb[0].mxu0
    %v10836 = vadd.f32 %v1690, %v10835
    %10837 = vdwg.mxu0
    %10838 = vmatprep.subr.bf16.mxu0 %v7374
    %10839 = vmatpush1.bf16.xpose.msra.mxu0 %v7373
    %10840 = vmatprep.subr.bf16.mxu0 %v7382
    %10841 = vmatpush1.bf16.xpose.msra.mxu0 %v7381
    %10842 = vmatprep.subr.bf16.mxu0 %v7390
    %10843 = vmatpush1.bf16.xpose.msra.mxu0 %v7389
    %10844 = vmatprep.subr.bf16.mxu0 %v7398
    %10845 = vmatpush1.bf16.xpose.msra.mxu0 %v7397
    %10846 = vmatprep.subr.bf16.mxu0 %v7406
    %10847 = vmatpush1.bf16.xpose.msra.mxu0 %v7405
    %10848 = vmatprep.subr.bf16.mxu0 %v7414
    %10849 = vmatpush1.bf16.xpose.msra.mxu0 %v7413
    %10850 = vmatprep.subr.bf16.mxu0 %v7422
    %10851 = vmatpush1.bf16.xpose.msra.mxu0 %v7421
    %10852 = vmatprep.subr.bf16.mxu0 %v7430
    %10853 = vmatpush1.bf16.xpose.msra.mxu0 %v7429
    %10854 = vmatprep.subr.bf16.mxu0 %v7438
    %10855 = vmatpush1.bf16.xpose.msra.mxu0 %v7437
    %10856 = vmatprep.subr.bf16.mxu0 %v7446
    %10857 = vmatpush1.bf16.xpose.msra.mxu0 %v7445
    %10858 = vmatprep.subr.bf16.mxu0 %v7454
    %10859 = vmatpush1.bf16.xpose.msra.mxu0 %v7453
    %10860 = vmatprep.subr.bf16.mxu0 %v7462
    %10861 = vmatpush1.bf16.xpose.msra.mxu0 %v7461
    %10862 = vmatprep.subr.bf16.mxu0 %v7470
    %10863 = vmatpush1.bf16.xpose.msra.mxu0 %v7469
    %10864 = vmatprep.subr.bf16.mxu0 %v7478
    %10865 = vmatpush1.bf16.xpose.msra.mxu0 %v7477
    %10866 = vmatprep.subr.bf16.mxu0 %v7486
    %10867 = vmatpush1.bf16.xpose.msra.mxu0 %v7485
    %10868 = vmatprep.subr.bf16.mxu0 %v7494
    %10869 = vmatpush1.bf16.xpose.msra.mxu0 %v7493
    %10870 = vmatprep.mubr.bf16.mxu0 %v72
    %10871 = vmatmul.mubr.bf16.gmra.mrb[0].mxu0 %v71
    %v10872 = vpop.f32.mrb[0].mxu0
    %v10873 = vadd.f32 %v10830, %v10872
    %v10874 = vpop.f32.mrb[0].mxu0
    %v10875 = vadd.f32 %v10832, %v10874
    %v10876 = vpop.f32.mrb[0].mxu0
    %v10877 = vadd.f32 %v10834, %v10876
    %v10878 = vpop.f32.mrb[0].mxu0
    %v10879 = vadd.f32 %v10836, %v10878
    %10880 = vdwg.mxu0
    %10881 = vmatprep.subr.bf16.mxu0 %v7376
    %10882 = vmatpush1.bf16.xpose.msra.mxu0 %v7375
    %10883 = vmatprep.subr.bf16.mxu0 %v7384
    %10884 = vmatpush1.bf16.xpose.msra.mxu0 %v7383
    %10885 = vmatprep.subr.bf16.mxu0 %v7392
    %10886 = vmatpush1.bf16.xpose.msra.mxu0 %v7391
    %10887 = vmatprep.subr.bf16.mxu0 %v7400
    %10888 = vmatpush1.bf16.xpose.msra.mxu0 %v7399
    %10889 = vmatprep.subr.bf16.mxu0 %v7408
    %10890 = vmatpush1.bf16.xpose.msra.mxu0 %v7407
    %10891 = vmatprep.subr.bf16.mxu0 %v7416
    %10892 = vmatpush1.bf16.xpose.msra.mxu0 %v7415
    %10893 = vmatprep.subr.bf16.mxu0 %v7424
    %10894 = vmatpush1.bf16.xpose.msra.mxu0 %v7423
    %10895 = vmatprep.subr.bf16.mxu0 %v7432
    %10896 = vmatpush1.bf16.xpose.msra.mxu0 %v7431
    %10897 = vmatprep.subr.bf16.mxu0 %v7440
    %10898 = vmatpush1.bf16.xpose.msra.mxu0 %v7439
    %10899 = vmatprep.subr.bf16.mxu0 %v7448
    %10900 = vmatpush1.bf16.xpose.msra.mxu0 %v7447
    %10901 = vmatprep.subr.bf16.mxu0 %v7456
    %10902 = vmatpush1.bf16.xpose.msra.mxu0 %v7455
    %10903 = vmatprep.subr.bf16.mxu0 %v7464
    %10904 = vmatpush1.bf16.xpose.msra.mxu0 %v7463
    %10905 = vmatprep.subr.bf16.mxu0 %v7472
    %10906 = vmatpush1.bf16.xpose.msra.mxu0 %v7471
    %10907 = vmatprep.subr.bf16.mxu0 %v7480
    %10908 = vmatpush1.bf16.xpose.msra.mxu0 %v7479
    %10909 = vmatprep.subr.bf16.mxu0 %v7488
    %10910 = vmatpush1.bf16.xpose.msra.mxu0 %v7487
    %10911 = vmatprep.subr.bf16.mxu0 %v7496
    %10912 = vmatpush1.bf16.xpose.msra.mxu0 %v7495
    %10913 = vmatprep.mubr.bf16.mxu0 %v74
    %10914 = vmatmul.mubr.bf16.gmra.mrb[0].mxu0 %v73
    %v10915 = vpop.f32.mrb[0].mxu0
    %v10916 = vadd.f32 %v10873, %v10915
    %v10917 = vpop.f32.mrb[0].mxu0
    %v10918 = vadd.f32 %v10875, %v10917
    %v10919 = vpop.f32.mrb[0].mxu0
    %v10920 = vadd.f32 %v10877, %v10919
    %v10921 = vpop.f32.mrb[0].mxu0
    %v10922 = vadd.f32 %v10879, %v10921
    %10923 = vdwg.mxu0
    %10924 = vmatprep.subr.bf16.mxu0 %v7378
    %10925 = vmatpush1.bf16.xpose.msra.mxu0 %v7377
    %10926 = vmatprep.subr.bf16.mxu0 %v7386
    %10927 = vmatpush1.bf16.xpose.msra.mxu0 %v7385
    %10928 = vmatprep.subr.bf16.mxu0 %v7394
    %10929 = vmatpush1.bf16.xpose.msra.mxu0 %v7393
    %10930 = vmatprep.subr.bf16.mxu0 %v7402
    %10931 = vmatpush1.bf16.xpose.msra.mxu0 %v7401
    %10932 = vmatprep.subr.bf16.mxu0 %v7410
    %10933 = vmatpush1.bf16.xpose.msra.mxu0 %v7409
    %10934 = vmatprep.subr.bf16.mxu0 %v7418
    %10935 = vmatpush1.bf16.xpose.msra.mxu0 %v7417
    %10936 = vmatprep.subr.bf16.mxu0 %v7426
    %10937 = vmatpush1.bf16.xpose.msra.mxu0 %v7425
    %10938 = vmatprep.subr.bf16.mxu0 %v7434
    %10939 = vmatpush1.bf16.xpose.msra.mxu0 %v7433
    %10940 = vmatprep.subr.bf16.mxu0 %v7442
    %10941 = vmatpush1.bf16.xpose.msra.mxu0 %v7441
    %10942 = vmatprep.subr.bf16.mxu0 %v7450
    %10943 = vmatpush1.bf16.xpose.msra.mxu0 %v7449
    %10944 = vmatprep.subr.bf16.mxu0 %v7458
    %10945 = vmatpush1.bf16.xpose.msra.mxu0 %v7457
    %10946 = vmatprep.subr.bf16.mxu0 %v7466
    %10947 = vmatpush1.bf16.xpose.msra.mxu0 %v7465
    %10948 = vmatprep.subr.bf16.mxu0 %v7474
    %10949 = vmatpush1.bf16.xpose.msra.mxu0 %v7473
    %10950 = vmatprep.subr.bf16.mxu0 %v7482
    %10951 = vmatpush1.bf16.xpose.msra.mxu0 %v7481
    %10952 = vmatprep.subr.bf16.mxu0 %v7490
    %10953 = vmatpush1.bf16.xpose.msra.mxu0 %v7489
    %10954 = vmatprep.subr.bf16.mxu0 %v7498
    %10955 = vmatpush1.bf16.xpose.msra.mxu0 %v7497
    %10956 = vmatprep.mubr.bf16.mxu0 %v76
    %10957 = vmatmul.mubr.bf16.gmra.mrb[0].mxu0 %v75
    %v10958 = vpop.f32.mrb[0].mxu0
    %v10959 = vadd.f32 %v10916, %v10958
    %v10960 = vpop.f32.mrb[0].mxu0
    %v10961 = vadd.f32 %v10918, %v10960
    %v10962 = vpop.f32.mrb[0].mxu0
    %v10963 = vadd.f32 %v10920, %v10962
    %v10964 = vpop.f32.mrb[0].mxu0
    %v10965 = vadd.f32 %v10922, %v10964
    %10966 = vdwg.mxu0
    %10967 = vmatprep.subr.bf16.mxu0 %v7500
    %10968 = vmatpush1.bf16.xpose.msra.mxu0 %v7499
    %10969 = vmatprep.subr.bf16.mxu0 %v7508
    %10970 = vmatpush1.bf16.xpose.msra.mxu0 %v7507
    %10971 = vmatprep.subr.bf16.mxu0 %v7516
    %10972 = vmatpush1.bf16.xpose.msra.mxu0 %v7515
    %10973 = vmatprep.subr.bf16.mxu0 %v7524
    %10974 = vmatpush1.bf16.xpose.msra.mxu0 %v7523
    %10975 = vmatprep.subr.bf16.mxu0 %v7532
    %10976 = vmatpush1.bf16.xpose.msra.mxu0 %v7531
    %10977 = vmatprep.subr.bf16.mxu0 %v7540
    %10978 = vmatpush1.bf16.xpose.msra.mxu0 %v7539
    %10979 = vmatprep.subr.bf16.mxu0 %v7548
    %10980 = vmatpush1.bf16.xpose.msra.mxu0 %v7547
    %10981 = vmatprep.subr.bf16.mxu0 %v7556
    %10982 = vmatpush1.bf16.xpose.msra.mxu0 %v7555
    %10983 = vmatprep.subr.bf16.mxu0 %v7564
    %10984 = vmatpush1.bf16.xpose.msra.mxu0 %v7563
    %10985 = vmatprep.subr.bf16.mxu0 %v7572
    %10986 = vmatpush1.bf16.xpose.msra.mxu0 %v7571
    %10987 = vmatprep.subr.bf16.mxu0 %v7580
    %10988 = vmatpush1.bf16.xpose.msra.mxu0 %v7579
    %10989 = vmatprep.subr.bf16.mxu0 %v7588
    %10990 = vmatpush1.bf16.xpose.msra.mxu0 %v7587
    %10991 = vmatprep.subr.bf16.mxu0 %v7596
    %10992 = vmatpush1.bf16.xpose.msra.mxu0 %v7595
    %10993 = vmatprep.subr.bf16.mxu0 %v7604
    %10994 = vmatpush1.bf16.xpose.msra.mxu0 %v7603
    %10995 = vmatprep.subr.bf16.mxu0 %v7612
    %10996 = vmatpush1.bf16.xpose.msra.mxu0 %v7611
    %10997 = vmatprep.subr.bf16.mxu0 %v7620
    %10998 = vmatpush1.bf16.xpose.msra.mxu0 %v7619
    %10999 = vmatprep.mubr.bf16.mxu0 %v70
    %11000 = vmatmul.mubr.bf16.gmra.mrb[0].mxu0 %v69
    %v11001 = vpop.f32.mrb[0].mxu0
    %v11002 = vadd.f32 %v1694, %v11001
    %v11003 = vpop.f32.mrb[0].mxu0
    %v11004 = vadd.f32 %v1698, %v11003
    %v11005 = vpop.f32.mrb[0].mxu0
    %v11006 = vadd.f32 %v1694, %v11005
    %v11007 = vpop.f32.mrb[0].mxu0
    %v11008 = vadd.f32 %v1698, %v11007
    %11009 = vdwg.mxu0
    %11010 = vmatprep.subr.bf16.mxu0 %v7502
    %11011 = vmatpush1.bf16.xpose.msra.mxu0 %v7501
    %11012 = vmatprep.subr.bf16.mxu0 %v7510
    %11013 = vmatpush1.bf16.xpose.msra.mxu0 %v7509
    %11014 = vmatprep.subr.bf16.mxu0 %v7518
    %11015 = vmatpush1.bf16.xpose.msra.mxu0 %v7517
    %11016 = vmatprep.subr.bf16.mxu0 %v7526
    %11017 = vmatpush1.bf16.xpose.msra.mxu0 %v7525
    %11018 = vmatprep.subr.bf16.mxu0 %v7534
    %11019 = vmatpush1.bf16.xpose.msra.mxu0 %v7533
    %11020 = vmatprep.subr.bf16.mxu0 %v7542
    %11021 = vmatpush1.bf16.xpose.msra.mxu0 %v7541
    %11022 = vmatprep.subr.bf16.mxu0 %v7550
    %11023 = vmatpush1.bf16.xpose.msra.mxu0 %v7549
    %11024 = vmatprep.subr.bf16.mxu0 %v7558
    %11025 = vmatpush1.bf16.xpose.msra.mxu0 %v7557
    %11026 = vmatprep.subr.bf16.mxu0 %v7566
    %11027 = vmatpush1.bf16.xpose.msra.mxu0 %v7565
    %11028 = vmatprep.subr.bf16.mxu0 %v7574
    %11029 = vmatpush1.bf16.xpose.msra.mxu0 %v7573
    %11030 = vmatprep.subr.bf16.mxu0 %v7582
    %11031 = vmatpush1.bf16.xpose.msra.mxu0 %v7581
    %11032 = vmatprep.subr.bf16.mxu0 %v7590
    %11033 = vmatpush1.bf16.xpose.msra.mxu0 %v7589
    %11034 = vmatprep.subr.bf16.mxu0 %v7598
    %11035 = vmatpush1.bf16.xpose.msra.mxu0 %v7597
    %11036 = vmatprep.subr.bf16.mxu0 %v7606
    %11037 = vmatpush1.bf16.xpose.msra.mxu0 %v7605
    %11038 = vmatprep.subr.bf16.mxu0 %v7614
    %11039 = vmatpush1.bf16.xpose.msra.mxu0 %v7613
    %11040 = vmatprep.subr.bf16.mxu0 %v7622
    %11041 = vmatpush1.bf16.xpose.msra.mxu0 %v7621
    %11042 = vmatprep.mubr.bf16.mxu0 %v72
    %11043 = vmatmul.mubr.bf16.gmra.mrb[0].mxu0 %v71
    %v11044 = vpop.f32.mrb[0].mxu0
    %v11045 = vadd.f32 %v11002, %v11044
    %v11046 = vpop.f32.mrb[0].mxu0
    %v11047 = vadd.f32 %v11004, %v11046
    %v11048 = vpop.f32.mrb[0].mxu0
    %v11049 = vadd.f32 %v11006, %v11048
    %v11050 = vpop.f32.mrb[0].mxu0
    %v11051 = vadd.f32 %v11008, %v11050
    %11052 = vdwg.mxu0
    %11053 = vmatprep.subr.bf16.mxu0 %v7504
    %11054 = vmatpush1.bf16.xpose.msra.mxu0 %v7503
    %11055 = vmatprep.subr.bf16.mxu0 %v7512
    %11056 = vmatpush1.bf16.xpose.msra.mxu0 %v7511
    %11057 = vmatprep.subr.bf16.mxu0 %v7520
    %11058 = vmatpush1.bf16.xpose.msra.mxu0 %v7519
    %11059 = vmatprep.subr.bf16.mxu0 %v7528
    %11060 = vmatpush1.bf16.xpose.msra.mxu0 %v7527
    %11061 = vmatprep.subr.bf16.mxu0 %v7536
    %11062 = vmatpush1.bf16.xpose.msra.mxu0 %v7535
    %11063 = vmatprep.subr.bf16.mxu0 %v7544
    %11064 = vmatpush1.bf16.xpose.msra.mxu0 %v7543
    %11065 = vmatprep.subr.bf16.mxu0 %v7552
    %11066 = vmatpush1.bf16.xpose.msra.mxu0 %v7551
    %11067 = vmatprep.subr.bf16.mxu0 %v7560
    %11068 = vmatpush1.bf16.xpose.msra.mxu0 %v7559
    %11069 = vmatprep.subr.bf16.mxu0 %v7568
    %11070 = vmatpush1.bf16.xpose.msra.mxu0 %v7567
    %11071 = vmatprep.subr.bf16.mxu0 %v7576
    %11072 = vmatpush1.bf16.xpose.msra.mxu0 %v7575
    %11073 = vmatprep.subr.bf16.mxu0 %v7584
    %11074 = vmatpush1.bf16.xpose.msra.mxu0 %v7583
    %11075 = vmatprep.subr.bf16.mxu0 %v7592
    %11076 = vmatpush1.bf16.xpose.msra.mxu0 %v7591
    %11077 = vmatprep.subr.bf16.mxu0 %v7600
    %11078 = vmatpush1.bf16.xpose.msra.mxu0 %v7599
    %11079 = vmatprep.subr.bf16.mxu0 %v7608
    %11080 = vmatpush1.bf16.xpose.msra.mxu0 %v7607
    %11081 = vmatprep.subr.bf16.mxu0 %v7616
    %11082 = vmatpush1.bf16.xpose.msra.mxu0 %v7615
    %11083 = vmatprep.subr.bf16.mxu0 %v7624
    %11084 = vmatpush1.bf16.xpose.msra.mxu0 %v7623
    %11085 = vmatprep.mubr.bf16.mxu0 %v74
    %11086 = vmatmul.mubr.bf16.gmra.mrb[0].mxu0 %v73
    %v11087 = vpop.f32.mrb[0].mxu0
    %v11088 = vadd.f32 %v11045, %v11087
    %v11089 = vpop.f32.mrb[0].mxu0
    %v11090 = vadd.f32 %v11047, %v11089
    %v11091 = vpop.f32.mrb[0].mxu0
    %v11092 = vadd.f32 %v11049, %v11091
    %v11093 = vpop.f32.mrb[0].mxu0
    %v11094 = vadd.f32 %v11051, %v11093
    %11095 = vdwg.mxu0
    %11096 = vmatprep.subr.bf16.mxu0 %v7506
    %11097 = vmatpush1.bf16.xpose.msra.mxu0 %v7505
    %11098 = vmatprep.subr.bf16.mxu0 %v7514
    %11099 = vmatpush1.bf16.xpose.msra.mxu0 %v7513
    %11100 = vmatprep.subr.bf16.mxu0 %v7522
    %11101 = vmatpush1.bf16.xpose.msra.mxu0 %v7521
    %11102 = vmatprep.subr.bf16.mxu0 %v7530
    %11103 = vmatpush1.bf16.xpose.msra.mxu0 %v7529
    %11104 = vmatprep.subr.bf16.mxu0 %v7538
    %11105 = vmatpush1.bf16.xpose.msra.mxu0 %v7537
    %11106 = vmatprep.subr.bf16.mxu0 %v7546
    %11107 = vmatpush1.bf16.xpose.msra.mxu0 %v7545
    %11108 = vmatprep.subr.bf16.mxu0 %v7554
    %11109 = vmatpush1.bf16.xpose.msra.mxu0 %v7553
    %11110 = vmatprep.subr.bf16.mxu0 %v7562
    %11111 = vmatpush1.bf16.xpose.msra.mxu0 %v7561
    %11112 = vmatprep.subr.bf16.mxu0 %v7570
    %11113 = vmatpush1.bf16.xpose.msra.mxu0 %v7569
    %11114 = vmatprep.subr.bf16.mxu0 %v7578
    %11115 = vmatpush1.bf16.xpose.msra.mxu0 %v7577
    %11116 = vmatprep.subr.bf16.mxu0 %v7586
    %11117 = vmatpush1.bf16.xpose.msra.mxu0 %v7585
    %11118 = vmatprep.subr.bf16.mxu0 %v7594
    %11119 = vmatpush1.bf16.xpose.msra.mxu0 %v7593
    %11120 = vmatprep.subr.bf16.mxu0 %v7602
    %11121 = vmatpush1.bf16.xpose.msra.mxu0 %v7601
    %11122 = vmatprep.subr.bf16.mxu0 %v7610
    %11123 = vmatpush1.bf16.xpose.msra.mxu0 %v7609
    %11124 = vmatprep.subr.bf16.mxu0 %v7618
    %11125 = vmatpush1.bf16.xpose.msra.mxu0 %v7617
    %11126 = vmatprep.subr.bf16.mxu0 %v7626
    %11127 = vmatpush1.bf16.xpose.msra.mxu0 %v7625
    %11128 = vmatprep.mubr.bf16.mxu0 %v76
    %11129 = vmatmul.mubr.bf16.gmra.mrb[0].mxu0 %v75
    %v11130 = vpop.f32.mrb[0].mxu0
    %v11131 = vadd.f32 %v11088, %v11130
    %v11132 = vpop.f32.mrb[0].mxu0
    %v11133 = vadd.f32 %v11090, %v11132
    %v11134 = vpop.f32.mrb[0].mxu0
    %v11135 = vadd.f32 %v11092, %v11134
    %v11136 = vpop.f32.mrb[0].mxu0
    %v11137 = vadd.f32 %v11094, %v11136
    %11138 = vdwg.mxu0
    %11139 = vmatprep.subr.bf16.mxu0 %v7628
    %11140 = vmatpush1.bf16.xpose.msra.mxu0 %v7627
    %11141 = vmatprep.subr.bf16.mxu0 %v7636
    %11142 = vmatpush1.bf16.xpose.msra.mxu0 %v7635
    %11143 = vmatprep.subr.bf16.mxu0 %v7644
    %11144 = vmatpush1.bf16.xpose.msra.mxu0 %v7643
    %11145 = vmatprep.subr.bf16.mxu0 %v7652
    %11146 = vmatpush1.bf16.xpose.msra.mxu0 %v7651
    %11147 = vmatprep.subr.bf16.mxu0 %v7660
    %11148 = vmatpush1.bf16.xpose.msra.mxu0 %v7659
    %11149 = vmatprep.subr.bf16.mxu0 %v7668
    %11150 = vmatpush1.bf16.xpose.msra.mxu0 %v7667
    %11151 = vmatprep.subr.bf16.mxu0 %v7676
    %11152 = vmatpush1.bf16.xpose.msra.mxu0 %v7675
    %11153 = vmatprep.subr.bf16.mxu0 %v7684
    %11154 = vmatpush1.bf16.xpose.msra.mxu0 %v7683
    %11155 = vmatprep.subr.bf16.mxu0 %v7692
    %11156 = vmatpush1.bf16.xpose.msra.mxu0 %v7691
    %11157 = vmatprep.subr.bf16.mxu0 %v7700
    %11158 = vmatpush1.bf16.xpose.msra.mxu0 %v7699
    %11159 = vmatprep.subr.bf16.mxu0 %v7708
    %11160 = vmatpush1.bf16.xpose.msra.mxu0 %v7707
    %11161 = vmatprep.subr.bf16.mxu0 %v7716
    %11162 = vmatpush1.bf16.xpose.msra.mxu0 %v7715
    %11163 = vmatprep.subr.bf16.mxu0 %v7724
    %11164 = vmatpush1.bf16.xpose.msra.mxu0 %v7723
    %11165 = vmatprep.subr.bf16.mxu0 %v7732
    %11166 = vmatpush1.bf16.xpose.msra.mxu0 %v7731
    %11167 = vmatprep.subr.bf16.mxu0 %v7740
    %11168 = vmatpush1.bf16.xpose.msra.mxu0 %v7739
    %11169 = vmatprep.subr.bf16.mxu0 %v7748
    %11170 = vmatpush1.bf16.xpose.msra.mxu0 %v7747
    %11171 = vmatprep.mubr.bf16.mxu0 %v70
    %11172 = vmatmul.mubr.bf16.gmra.mrb[0].mxu0 %v69
    %v11173 = vpop.f32.mrb[0].mxu0
    %v11174 = vadd.f32 %v1702, %v11173
    %v11175 = vpop.f32.mrb[0].mxu0
    %v11176 = vadd.f32 %v1706, %v11175
    %v11177 = vpop.f32.mrb[0].mxu0
    %v11178 = vadd.f32 %v1702, %v11177
    %v11179 = vpop.f32.mrb[0].mxu0
    %v11180 = vadd.f32 %v1706, %v11179
    %11181 = vdwg.mxu0
    %11182 = vmatprep.subr.bf16.mxu0 %v7630
    %11183 = vmatpush1.bf16.xpose.msra.mxu0 %v7629
    %11184 = vmatprep.subr.bf16.mxu0 %v7638
    %11185 = vmatpush1.bf16.xpose.msra.mxu0 %v7637
    %11186 = vmatprep.subr.bf16.mxu0 %v7646
    %11187 = vmatpush1.bf16.xpose.msra.mxu0 %v7645
    %11188 = vmatprep.subr.bf16.mxu0 %v7654
    %11189 = vmatpush1.bf16.xpose.msra.mxu0 %v7653
    %11190 = vmatprep.subr.bf16.mxu0 %v7662
    %11191 = vmatpush1.bf16.xpose.msra.mxu0 %v7661
    %11192 = vmatprep.subr.bf16.mxu0 %v7670
    %11193 = vmatpush1.bf16.xpose.msra.mxu0 %v7669
    %11194 = vmatprep.subr.bf16.mxu0 %v7678
    %11195 = vmatpush1.bf16.xpose.msra.mxu0 %v7677
    %11196 = vmatprep.subr.bf16.mxu0 %v7686
    %11197 = vmatpush1.bf16.xpose.msra.mxu0 %v7685
    %11198 = vmatprep.subr.bf16.mxu0 %v7694
    %11199 = vmatpush1.bf16.xpose.msra.mxu0 %v7693
    %11200 = vmatprep.subr.bf16.mxu0 %v7702
    %11201 = vmatpush1.bf16.xpose.msra.mxu0 %v7701
    %11202 = vmatprep.subr.bf16.mxu0 %v7710
    %11203 = vmatpush1.bf16.xpose.msra.mxu0 %v7709
    %11204 = vmatprep.subr.bf16.mxu0 %v7718
    %11205 = vmatpush1.bf16.xpose.msra.mxu0 %v7717
    %11206 = vmatprep.subr.bf16.mxu0 %v7726
    %11207 = vmatpush1.bf16.xpose.msra.mxu0 %v7725
    %11208 = vmatprep.subr.bf16.mxu0 %v7734
    %11209 = vmatpush1.bf16.xpose.msra.mxu0 %v7733
    %11210 = vmatprep.subr.bf16.mxu0 %v7742
    %11211 = vmatpush1.bf16.xpose.msra.mxu0 %v7741
    %11212 = vmatprep.subr.bf16.mxu0 %v7750
    %11213 = vmatpush1.bf16.xpose.msra.mxu0 %v7749
    %11214 = vmatprep.mubr.bf16.mxu0 %v72
    %11215 = vmatmul.mubr.bf16.gmra.mrb[0].mxu0 %v71
    %v11216 = vpop.f32.mrb[0].mxu0
    %v11217 = vadd.f32 %v11174, %v11216
    %v11218 = vpop.f32.mrb[0].mxu0
    %v11219 = vadd.f32 %v11176, %v11218
    %v11220 = vpop.f32.mrb[0].mxu0
    %v11221 = vadd.f32 %v11178, %v11220
    %v11222 = vpop.f32.mrb[0].mxu0
    %v11223 = vadd.f32 %v11180, %v11222
    %11224 = vdwg.mxu0
    %11225 = vmatprep.subr.bf16.mxu0 %v7632
    %11226 = vmatpush1.bf16.xpose.msra.mxu0 %v7631
    %11227 = vmatprep.subr.bf16.mxu0 %v7640
    %11228 = vmatpush1.bf16.xpose.msra.mxu0 %v7639
    %11229 = vmatprep.subr.bf16.mxu0 %v7648
    %11230 = vmatpush1.bf16.xpose.msra.mxu0 %v7647
    %11231 = vmatprep.subr.bf16.mxu0 %v7656
    %11232 = vmatpush1.bf16.xpose.msra.mxu0 %v7655
    %11233 = vmatprep.subr.bf16.mxu0 %v7664
    %11234 = vmatpush1.bf16.xpose.msra.mxu0 %v7663
    %11235 = vmatprep.subr.bf16.mxu0 %v7672
    %11236 = vmatpush1.bf16.xpose.msra.mxu0 %v7671
    %11237 = vmatprep.subr.bf16.mxu0 %v7680
    %11238 = vmatpush1.bf16.xpose.msra.mxu0 %v7679
    %11239 = vmatprep.subr.bf16.mxu0 %v7688
    %11240 = vmatpush1.bf16.xpose.msra.mxu0 %v7687
    %11241 = vmatprep.subr.bf16.mxu0 %v7696
    %11242 = vmatpush1.bf16.xpose.msra.mxu0 %v7695
    %11243 = vmatprep.subr.bf16.mxu0 %v7704
    %11244 = vmatpush1.bf16.xpose.msra.mxu0 %v7703
    %11245 = vmatprep.subr.bf16.mxu0 %v7712
    %11246 = vmatpush1.bf16.xpose.msra.mxu0 %v7711
    %11247 = vmatprep.subr.bf16.mxu0 %v7720
    %11248 = vmatpush1.bf16.xpose.msra.mxu0 %v7719
    %11249 = vmatprep.subr.bf16.mxu0 %v7728
    %11250 = vmatpush1.bf16.xpose.msra.mxu0 %v7727
    %11251 = vmatprep.subr.bf16.mxu0 %v7736
    %11252 = vmatpush1.bf16.xpose.msra.mxu0 %v7735
    %11253 = vmatprep.subr.bf16.mxu0 %v7744
    %11254 = vmatpush1.bf16.xpose.msra.mxu0 %v7743
    %11255 = vmatprep.subr.bf16.mxu0 %v7752
    %11256 = vmatpush1.bf16.xpose.msra.mxu0 %v7751
    %11257 = vmatprep.mubr.bf16.mxu0 %v74
    %11258 = vmatmul.mubr.bf16.gmra.mrb[0].mxu0 %v73
    %v11259 = vpop.f32.mrb[0].mxu0
    %v11260 = vadd.f32 %v11217, %v11259
    %v11261 = vpop.f32.mrb[0].mxu0
    %v11262 = vadd.f32 %v11219, %v11261
    %v11263 = vpop.f32.mrb[0].mxu0
    %v11264 = vadd.f32 %v11221, %v11263
    %v11265 = vpop.f32.mrb[0].mxu0
    %v11266 = vadd.f32 %v11223, %v11265
    %11267 = vdwg.mxu0
    %11268 = vmatprep.subr.bf16.mxu0 %v7634
    %11269 = vmatpush1.bf16.xpose.msra.mxu0 %v7633
    %11270 = vmatprep.subr.bf16.mxu0 %v7642
    %11271 = vmatpush1.bf16.xpose.msra.mxu0 %v7641
    %11272 = vmatprep.subr.bf16.mxu0 %v7650
    %11273 = vmatpush1.bf16.xpose.msra.mxu0 %v7649
    %11274 = vmatprep.subr.bf16.mxu0 %v7658
    %11275 = vmatpush1.bf16.xpose.msra.mxu0 %v7657
    %11276 = vmatprep.subr.bf16.mxu0 %v7666
    %11277 = vmatpush1.bf16.xpose.msra.mxu0 %v7665
    %11278 = vmatprep.subr.bf16.mxu0 %v7674
    %11279 = vmatpush1.bf16.xpose.msra.mxu0 %v7673
    %11280 = vmatprep.subr.bf16.mxu0 %v7682
    %11281 = vmatpush1.bf16.xpose.msra.mxu0 %v7681
    %11282 = vmatprep.subr.bf16.mxu0 %v7690
    %11283 = vmatpush1.bf16.xpose.msra.mxu0 %v7689
    %11284 = vmatprep.subr.bf16.mxu0 %v7698
    %11285 = vmatpush1.bf16.xpose.msra.mxu0 %v7697
    %11286 = vmatprep.subr.bf16.mxu0 %v7706
    %11287 = vmatpush1.bf16.xpose.msra.mxu0 %v7705
    %11288 = vmatprep.subr.bf16.mxu0 %v7714
    %11289 = vmatpush1.bf16.xpose.msra.mxu0 %v7713
    %11290 = vmatprep.subr.bf16.mxu0 %v7722
    %11291 = vmatpush1.bf16.xpose.msra.mxu0 %v7721
    %11292 = vmatprep.subr.bf16.mxu0 %v7730
    %11293 = vmatpush1.bf16.xpose.msra.mxu0 %v7729
    %11294 = vmatprep.subr.bf16.mxu0 %v7738
    %11295 = vmatpush1.bf16.xpose.msra.mxu0 %v7737
    %11296 = vmatprep.subr.bf16.mxu0 %v7746
    %11297 = vmatpush1.bf16.xpose.msra.mxu0 %v7745
    %11298 = vmatprep.subr.bf16.mxu0 %v7754
    %11299 = vmatpush1.bf16.xpose.msra.mxu0 %v7753
    %11300 = vmatprep.mubr.bf16.mxu0 %v76
    %11301 = vmatmul.mubr.bf16.gmra.mrb[0].mxu0 %v75
    %v11302 = vpop.f32.mrb[0].mxu0
    %v11303 = vadd.f32 %v11260, %v11302
    %v11304 = vpop.f32.mrb[0].mxu0
    %v11305 = vadd.f32 %v11262, %v11304
    %v11306 = vpop.f32.mrb[0].mxu0
    %v11307 = vadd.f32 %v11264, %v11306
    %v11308 = vpop.f32.mrb[0].mxu0
    %v11309 = vadd.f32 %v11266, %v11308
    %11310 = vdwg.mxu0
    %11311 = vmatprep.subr.bf16.mxu0 %v7756
    %11312 = vmatpush1.bf16.xpose.msra.mxu0 %v7755
    %11313 = vmatprep.subr.bf16.mxu0 %v7764
    %11314 = vmatpush1.bf16.xpose.msra.mxu0 %v7763
    %11315 = vmatprep.subr.bf16.mxu0 %v7772
    %11316 = vmatpush1.bf16.xpose.msra.mxu0 %v7771
    %11317 = vmatprep.subr.bf16.mxu0 %v7780
    %11318 = vmatpush1.bf16.xpose.msra.mxu0 %v7779
    %11319 = vmatprep.subr.bf16.mxu0 %v7788
    %11320 = vmatpush1.bf16.xpose.msra.mxu0 %v7787
    %11321 = vmatprep.subr.bf16.mxu0 %v7796
    %11322 = vmatpush1.bf16.xpose.msra.mxu0 %v7795
    %11323 = vmatprep.subr.bf16.mxu0 %v7804
    %11324 = vmatpush1.bf16.xpose.msra.mxu0 %v7803
    %11325 = vmatprep.subr.bf16.mxu0 %v7812
    %11326 = vmatpush1.bf16.xpose.msra.mxu0 %v7811
    %11327 = vmatprep.subr.bf16.mxu0 %v7820
    %11328 = vmatpush1.bf16.xpose.msra.mxu0 %v7819
    %11329 = vmatprep.subr.bf16.mxu0 %v7828
    %11330 = vmatpush1.bf16.xpose.msra.mxu0 %v7827
    %11331 = vmatprep.subr.bf16.mxu0 %v7836
    %11332 = vmatpush1.bf16.xpose.msra.mxu0 %v7835
    %11333 = vmatprep.subr.bf16.mxu0 %v7844
    %11334 = vmatpush1.bf16.xpose.msra.mxu0 %v7843
    %11335 = vmatprep.subr.bf16.mxu0 %v7852
    %11336 = vmatpush1.bf16.xpose.msra.mxu0 %v7851
    %11337 = vmatprep.subr.bf16.mxu0 %v7860
    %11338 = vmatpush1.bf16.xpose.msra.mxu0 %v7859
    %11339 = vmatprep.subr.bf16.mxu0 %v7868
    %11340 = vmatpush1.bf16.xpose.msra.mxu0 %v7867
    %11341 = vmatprep.subr.bf16.mxu0 %v7876
    %11342 = vmatpush1.bf16.xpose.msra.mxu0 %v7875
    %11343 = vmatprep.mubr.bf16.mxu0 %v70
    %11344 = vmatmul.mubr.bf16.gmra.mrb[0].mxu0 %v69
    %v11345 = vpop.f32.mrb[0].mxu0
    %v11346 = vadd.f32 %v1710, %v11345
    %v11347 = vpop.f32.mrb[0].mxu0
    %v11348 = vadd.f32 %v1714, %v11347
    %v11349 = vpop.f32.mrb[0].mxu0
    %v11350 = vadd.f32 %v1710, %v11349
    %v11351 = vpop.f32.mrb[0].mxu0
    %v11352 = vadd.f32 %v1714, %v11351
    %11353 = vdwg.mxu0
    %11354 = vmatprep.subr.bf16.mxu0 %v7758
    %11355 = vmatpush1.bf16.xpose.msra.mxu0 %v7757
    %11356 = vmatprep.subr.bf16.mxu0 %v7766
    %11357 = vmatpush1.bf16.xpose.msra.mxu0 %v7765
    %11358 = vmatprep.subr.bf16.mxu0 %v7774
    %11359 = vmatpush1.bf16.xpose.msra.mxu0 %v7773
    %11360 = vmatprep.subr.bf16.mxu0 %v7782
    %11361 = vmatpush1.bf16.xpose.msra.mxu0 %v7781
    %11362 = vmatprep.subr.bf16.mxu0 %v7790
    %11363 = vmatpush1.bf16.xpose.msra.mxu0 %v7789
    %11364 = vmatprep.subr.bf16.mxu0 %v7798
    %11365 = vmatpush1.bf16.xpose.msra.mxu0 %v7797
    %11366 = vmatprep.subr.bf16.mxu0 %v7806
    %11367 = vmatpush1.bf16.xpose.msra.mxu0 %v7805
    %11368 = vmatprep.subr.bf16.mxu0 %v7814
    %11369 = vmatpush1.bf16.xpose.msra.mxu0 %v7813
    %11370 = vmatprep.subr.bf16.mxu0 %v7822
    %11371 = vmatpush1.bf16.xpose.msra.mxu0 %v7821
    %11372 = vmatprep.subr.bf16.mxu0 %v7830
    %11373 = vmatpush1.bf16.xpose.msra.mxu0 %v7829
    %11374 = vmatprep.subr.bf16.mxu0 %v7838
    %11375 = vmatpush1.bf16.xpose.msra.mxu0 %v7837
    %11376 = vmatprep.subr.bf16.mxu0 %v7846
    %11377 = vmatpush1.bf16.xpose.msra.mxu0 %v7845
    %11378 = vmatprep.subr.bf16.mxu0 %v7854
    %11379 = vmatpush1.bf16.xpose.msra.mxu0 %v7853
    %11380 = vmatprep.subr.bf16.mxu0 %v7862
    %11381 = vmatpush1.bf16.xpose.msra.mxu0 %v7861
    %11382 = vmatprep.subr.bf16.mxu0 %v7870
    %11383 = vmatpush1.bf16.xpose.msra.mxu0 %v7869
    %11384 = vmatprep.subr.bf16.mxu0 %v7878
    %11385 = vmatpush1.bf16.xpose.msra.mxu0 %v7877
    %11386 = vmatprep.mubr.bf16.mxu0 %v72
    %11387 = vmatmul.mubr.bf16.gmra.mrb[0].mxu0 %v71
    %v11388 = vpop.f32.mrb[0].mxu0
    %v11389 = vadd.f32 %v11346, %v11388
    %v11390 = vpop.f32.mrb[0].mxu0
    %v11391 = vadd.f32 %v11348, %v11390
    %v11392 = vpop.f32.mrb[0].mxu0
    %v11393 = vadd.f32 %v11350, %v11392
    %v11394 = vpop.f32.mrb[0].mxu0
    %v11395 = vadd.f32 %v11352, %v11394
    %11396 = vdwg.mxu0
    %11397 = vmatprep.subr.bf16.mxu0 %v7760
    %11398 = vmatpush1.bf16.xpose.msra.mxu0 %v7759
    %11399 = vmatprep.subr.bf16.mxu0 %v7768
    %11400 = vmatpush1.bf16.xpose.msra.mxu0 %v7767
    %11401 = vmatprep.subr.bf16.mxu0 %v7776
    %11402 = vmatpush1.bf16.xpose.msra.mxu0 %v7775
    %11403 = vmatprep.subr.bf16.mxu0 %v7784
    %11404 = vmatpush1.bf16.xpose.msra.mxu0 %v7783
    %11405 = vmatprep.subr.bf16.mxu0 %v7792
    %11406 = vmatpush1.bf16.xpose.msra.mxu0 %v7791
    %11407 = vmatprep.subr.bf16.mxu0 %v7800
    %11408 = vmatpush1.bf16.xpose.msra.mxu0 %v7799
    %11409 = vmatprep.subr.bf16.mxu0 %v7808
    %11410 = vmatpush1.bf16.xpose.msra.mxu0 %v7807
    %11411 = vmatprep.subr.bf16.mxu0 %v7816
    %11412 = vmatpush1.bf16.xpose.msra.mxu0 %v7815
    %11413 = vmatprep.subr.bf16.mxu0 %v7824
    %11414 = vmatpush1.bf16.xpose.msra.mxu0 %v7823
    %11415 = vmatprep.subr.bf16.mxu0 %v7832
    %11416 = vmatpush1.bf16.xpose.msra.mxu0 %v7831
    %11417 = vmatprep.subr.bf16.mxu0 %v7840
    %11418 = vmatpush1.bf16.xpose.msra.mxu0 %v7839
    %11419 = vmatprep.subr.bf16.mxu0 %v7848
    %11420 = vmatpush1.bf16.xpose.msra.mxu0 %v7847
    %11421 = vmatprep.subr.bf16.mxu0 %v7856
    %11422 = vmatpush1.bf16.xpose.msra.mxu0 %v7855
    %11423 = vmatprep.subr.bf16.mxu0 %v7864
    %11424 = vmatpush1.bf16.xpose.msra.mxu0 %v7863
    %11425 = vmatprep.subr.bf16.mxu0 %v7872
    %11426 = vmatpush1.bf16.xpose.msra.mxu0 %v7871
    %11427 = vmatprep.subr.bf16.mxu0 %v7880
    %11428 = vmatpush1.bf16.xpose.msra.mxu0 %v7879
    %11429 = vmatprep.mubr.bf16.mxu0 %v74
    %11430 = vmatmul.mubr.bf16.gmra.mrb[0].mxu0 %v73
    %v11431 = vpop.f32.mrb[0].mxu0
    %v11432 = vadd.f32 %v11389, %v11431
    %v11433 = vpop.f32.mrb[0].mxu0
    %v11434 = vadd.f32 %v11391, %v11433
    %v11435 = vpop.f32.mrb[0].mxu0
    %v11436 = vadd.f32 %v11393, %v11435
    %v11437 = vpop.f32.mrb[0].mxu0
    %v11438 = vadd.f32 %v11395, %v11437
    %11439 = vdwg.mxu0
    %11440 = vmatprep.subr.bf16.mxu0 %v7762
    %11441 = vmatpush1.bf16.xpose.msra.mxu0 %v7761
    %11442 = vmatprep.subr.bf16.mxu0 %v7770
    %11443 = vmatpush1.bf16.xpose.msra.mxu0 %v7769
    %11444 = vmatprep.subr.bf16.mxu0 %v7778
    %11445 = vmatpush1.bf16.xpose.msra.mxu0 %v7777
    %11446 = vmatprep.subr.bf16.mxu0 %v7786
    %11447 = vmatpush1.bf16.xpose.msra.mxu0 %v7785
    %11448 = vmatprep.subr.bf16.mxu0 %v7794
    %11449 = vmatpush1.bf16.xpose.msra.mxu0 %v7793
    %11450 = vmatprep.subr.bf16.mxu0 %v7802
    %11451 = vmatpush1.bf16.xpose.msra.mxu0 %v7801
    %11452 = vmatprep.subr.bf16.mxu0 %v7810
    %11453 = vmatpush1.bf16.xpose.msra.mxu0 %v7809
    %11454 = vmatprep.subr.bf16.mxu0 %v7818
    %11455 = vmatpush1.bf16.xpose.msra.mxu0 %v7817
    %11456 = vmatprep.subr.bf16.mxu0 %v7826
    %11457 = vmatpush1.bf16.xpose.msra.mxu0 %v7825
    %11458 = vmatprep.subr.bf16.mxu0 %v7834
    %11459 = vmatpush1.bf16.xpose.msra.mxu0 %v7833
    %11460 = vmatprep.subr.bf16.mxu0 %v7842
    %11461 = vmatpush1.bf16.xpose.msra.mxu0 %v7841
    %11462 = vmatprep.subr.bf16.mxu0 %v7850
    %11463 = vmatpush1.bf16.xpose.msra.mxu0 %v7849
    %11464 = vmatprep.subr.bf16.mxu0 %v7858
    %11465 = vmatpush1.bf16.xpose.msra.mxu0 %v7857
    %11466 = vmatprep.subr.bf16.mxu0 %v7866
    %11467 = vmatpush1.bf16.xpose.msra.mxu0 %v7865
    %11468 = vmatprep.subr.bf16.mxu0 %v7874
    %11469 = vmatpush1.bf16.xpose.msra.mxu0 %v7873
    %11470 = vmatprep.subr.bf16.mxu0 %v7882
    %11471 = vmatpush1.bf16.xpose.msra.mxu0 %v7881
    %11472 = vmatprep.mubr.bf16.mxu0 %v76
    %11473 = vmatmul.mubr.bf16.gmra.mrb[0].mxu0 %v75
    %v11474 = vpop.f32.mrb[0].mxu0
    %v11475 = vadd.f32 %v11432, %v11474
    %v11476 = vpop.f32.mrb[0].mxu0
    %v11477 = vadd.f32 %v11434, %v11476
    %v11478 = vpop.f32.mrb[0].mxu0
    %v11479 = vadd.f32 %v11436, %v11478
    %v11480 = vpop.f32.mrb[0].mxu0
    %v11481 = vadd.f32 %v11438, %v11480
    %11482 = vdwg.mxu0
    %v11483 = vpack.c.bf16 %v9587, %v9583
    %v11484 = vpack.c.bf16 %v9589, %v9585
    %v11485 = vpack.c.bf16 %v9759, %v9755
    %v11486 = vpack.c.bf16 %v9761, %v9757
    %v11487 = vpack.c.bf16 %v9931, %v9927
    %v11488 = vpack.c.bf16 %v9933, %v9929
    %v11489 = vpack.c.bf16 %v10103, %v10099
    %v11490 = vpack.c.bf16 %v10105, %v10101
    %v11491 = vpack.c.bf16 %v10275, %v10271
    %v11492 = vpack.c.bf16 %v10277, %v10273
    %v11493 = vpack.c.bf16 %v10447, %v10443
    %v11494 = vpack.c.bf16 %v10449, %v10445
    %v11495 = vpack.c.bf16 %v10619, %v10615
    %v11496 = vpack.c.bf16 %v10621, %v10617
    %v11497 = vpack.c.bf16 %v10791, %v10787
    %v11498 = vpack.c.bf16 %v10793, %v10789
    %v11499 = vpack.c.bf16 %v10963, %v10959
    %v11500 = vpack.c.bf16 %v10965, %v10961
    %v11501 = vpack.c.bf16 %v11135, %v11131
    %v11502 = vpack.c.bf16 %v11137, %v11133
    %v11503 = vpack.c.bf16 %v11307, %v11303
    %v11504 = vpack.c.bf16 %v11309, %v11305
    %v11505 = vpack.c.bf16 %v11479, %v11475
    %v11506 = vpack.c.bf16 %v11481, %v11477
    %v11531 = vunpack.c.l.b16 %v11483
    %v11532 = vunpack.c.l.b16 %v11484
    %v11533 = vunpack.c.l.b16 %v11485
    %v11534 = vunpack.c.l.b16 %v11486
    %v11535 = vunpack.c.l.b16 %v11487
    %v11536 = vunpack.c.l.b16 %v11488
    %v11537 = vunpack.c.l.b16 %v11489
    %v11538 = vunpack.c.l.b16 %v11490
    %v11539 = vunpack.c.l.b16 %v11491
    %v11540 = vunpack.c.l.b16 %v11492
    %v11541 = vunpack.c.l.b16 %v11493
    %v11542 = vunpack.c.l.b16 %v11494
    %v11543 = vunpack.c.l.b16 %v11495
    %v11544 = vunpack.c.l.b16 %v11496
    %v11545 = vunpack.c.l.b16 %v11497
    %v11546 = vunpack.c.l.b16 %v11498
    %v11547 = vunpack.c.l.b16 %v11499
    %v11548 = vunpack.c.l.b16 %v11500
    %v11549 = vunpack.c.l.b16 %v11501
    %v11550 = vunpack.c.l.b16 %v11502
    %v11551 = vunpack.c.l.b16 %v11503
    %v11552 = vunpack.c.l.b16 %v11504
    %v11553 = vunpack.c.l.b16 %v11505
    %v11554 = vunpack.c.l.b16 %v11506
    %v11555 = vunpack.c.h.b16 %v11483
    %v11556 = vunpack.c.h.b16 %v11484
    %v11557 = vunpack.c.h.b16 %v11485
    %v11558 = vunpack.c.h.b16 %v11486
    %v11559 = vunpack.c.h.b16 %v11487
    %v11560 = vunpack.c.h.b16 %v11488
    %v11561 = vunpack.c.h.b16 %v11489
    %v11562 = vunpack.c.h.b16 %v11490
    %v11563 = vunpack.c.h.b16 %v11491
    %v11564 = vunpack.c.h.b16 %v11492
    %v11565 = vunpack.c.h.b16 %v11493
    %v11566 = vunpack.c.h.b16 %v11494
    %v11567 = vunpack.c.h.b16 %v11495
    %v11568 = vunpack.c.h.b16 %v11496
    %v11569 = vunpack.c.h.b16 %v11497
    %v11570 = vunpack.c.h.b16 %v11498
    %v11571 = vunpack.c.h.b16 %v11499
    %v11572 = vunpack.c.h.b16 %v11500
    %v11573 = vunpack.c.h.b16 %v11501
    %v11574 = vunpack.c.h.b16 %v11502
    %v11575 = vunpack.c.h.b16 %v11503
    %v11576 = vunpack.c.h.b16 %v11504
    %v11577 = vunpack.c.h.b16 %v11505
    %v11578 = vunpack.c.h.b16 %v11506
    %v11579 = vpack.c.b16 %v11532, %v11531
    %v11580 = vpack.c.b16 %v11534, %v11533
    %v11581 = vpack.c.b16 %v11536, %v11535
    %v11582 = vpack.c.b16 %v11538, %v11537
    %v11583 = vpack.c.b16 %v11540, %v11539
    %v11584 = vpack.c.b16 %v11542, %v11541
    %v11585 = vpack.c.b16 %v11544, %v11543
    %v11586 = vpack.c.b16 %v11546, %v11545
    %v11587 = vpack.c.b16 %v11548, %v11547
    %v11588 = vpack.c.b16 %v11550, %v11549
    %v11589 = vpack.c.b16 %v11552, %v11551
    %v11590 = vpack.c.b16 %v11554, %v11553
    %v11591 = vpack.c.b16 %v11556, %v11555
    %v11592 = vpack.c.b16 %v11558, %v11557
    %v11593 = vpack.c.b16 %v11560, %v11559
    %v11594 = vpack.c.b16 %v11562, %v11561
    %v11595 = vpack.c.b16 %v11564, %v11563
    %v11596 = vpack.c.b16 %v11566, %v11565
    %v11597 = vpack.c.b16 %v11568, %v11567
    %v11598 = vpack.c.b16 %v11570, %v11569
    %v11599 = vpack.c.b16 %v11572, %v11571
    %v11600 = vpack.c.b16 %v11574, %v11573
    %v11601 = vpack.c.b16 %v11576, %v11575
    %v11602 = vpack.c.b16 %v11578, %v11577
    %11627 = vst [vmem:[%s3] sm:$0xff] %v11579
    %11628 = vst [vmem:[%s3 + $0x8] sm:$0xff] %v11580
    %11629 = vst [vmem:[%s3 + $0x10] sm:$0xff] %v11581
    %11630 = vst [vmem:[%s3 + $0x18] sm:$0xff] %v11582
    %11631 = vst [vmem:[%s3 + $0x20] sm:$0xff] %v11583
    %11632 = vst [vmem:[%s3 + $0x28] sm:$0xff] %v11584
    %11633 = vst [vmem:[%s3 + $0x30] sm:$0xff] %v11585
    %11634 = vst [vmem:[%s3 + $0x38] sm:$0xff] %v11586
    %11635 = vst [vmem:[%s3 + $0x40] sm:$0xff] %v11587
    %11636 = vst [vmem:[%s3 + $0x48] sm:$0xff] %v11588
    %11637 = vst [vmem:[%s3 + $0x50] sm:$0xff] %v11589
    %11638 = vst [vmem:[%s3 + $0x58] sm:$0xff] %v11590
    %11639 = vst [vmem:[%s3 + $0x60] sm:$0xff] %v11591
    %11640 = vst [vmem:[%s3 + $0x68] sm:$0xff] %v11592
    %11641 = vst [vmem:[%s3 + $0x70] sm:$0xff] %v11593
    %11642 = vst [vmem:[%s3 + $0x78] sm:$0xff] %v11594
    %11643 = vst [vmem:[%s3 + $0x80] sm:$0xff] %v11595
    %11644 = vst [vmem:[%s3 + $0x88] sm:$0xff] %v11596
    %11645 = vst [vmem:[%s3 + $0x90] sm:$0xff] %v11597
    %11646 = vst [vmem:[%s3 + $0x98] sm:$0xff] %v11598
    %11647 = vst [vmem:[%s3 + $0xa0] sm:$0xff] %v11599
    %11648 = vst [vmem:[%s3 + $0xa8] sm:$0xff] %v11600
    %11649 = vst [vmem:[%s3 + $0xb0] sm:$0xff] %v11601
    %11650 = vst [vmem:[%s3 + $0xb8] sm:$0xff] %v11602
    // Predicated region
    $region26: #{vit_self_attention.2} parent=1 // pred_check
      _
    $region27: #{vit_self_attention.2} parent=1 // pred_check_branch
      %11652 = sbr.rel (0) target = $region29
    $region28: #{vit_self_attention.2} parent=1 // pred_region
      _
    $region29: #{vit_self_attention.2} parent=1 // pred_fallthru
      _
    // Predicated region
    $region30: #{vit_self_attention.2} parent=1 // pred_check
      _
    $region31: #{vit_self_attention.2} parent=1 // pred_check_branch
      %11654 = sbr.rel (0) target = $region33
    $region32: #{vit_self_attention.2} parent=1 // pred_region
      _
    $region33: #{vit_self_attention.2} parent=1 // pred_fallthru
      _
    %11655 = vsyncpa [#allocation3], 1
    %11656 = vsyncpa [#allocation5], 1

</llo_original>
